<compile_context>
chip_gen: v6e
topology: v6e:2x2x1
jax: 0.10.0
libtpu: 0.0.40
codegen_flags: <defaults>
</compile_context>

<pallas_src>
import functools

import jax
import jax.numpy as jnp
from jax.experimental import pallas as pl
from jax.experimental.pallas import tpu as pltpu

LANES = 128
BN_EPS = 1e-5
VMEM_BUDGET = 12 << 20            # cap for double-buffered GEMM footprint (v5e safe)
COMBINE_BLOCK_ELEMS = 128 * 1024  # elements per combine input block


def _ru(x, m):
    return (x + m - 1) // m * m


# ----------------------------------------------------------------------------
# Pallas kernels
# ----------------------------------------------------------------------------
def _conv3x3_kernel(x_ref, w_ref, o_ref, s_ref, q_ref, *, Ho, Wo, Cin):
    """Direct 3x3 stride-1 conv for one image: no im2col in HBM.

    x_ref : (1, Ho+2, Wo+2, Cin) bf16 padded input image (VMEM block)
    w_ref : (9*Cin, Cout)        bf16 weights, tap-major
    o_ref : (1, Ho, Wo, Cout)    bf16 raw conv output
    s_ref / q_ref : (1, 1, Cout) f32 per-image partial BN sum / sum-of-squares
    """
    xp = x_ref[0]                                        # (Hp, Wp, Cin)
    acc = None
    for t in range(9):                                   # unrolled tap loop
        dy, dx = t // 3, t % 3
        a = xp[dy:dy + Ho, dx:dx + Wo, :].reshape(Ho * Wo, Cin)
        w = w_ref[t * Cin:(t + 1) * Cin, :]
        d = jnp.dot(a, w, preferred_element_type=jnp.float32)
        acc = d if acc is None else acc + d
    o_ref[...] = acc.reshape(o_ref.shape).astype(o_ref.dtype)
    # Per-image partial stats (reduced cheaply outside) -> grid axis stays
    # "parallel" (no cross-iteration accumulator).
    s_ref[...] = jnp.sum(acc, axis=0, keepdims=True).reshape(s_ref.shape)
    q_ref[...] = jnp.sum(acc * acc, axis=0, keepdims=True).reshape(q_ref.shape)


@functools.lru_cache(maxsize=None)
def _conv3x3_call(N, Ho, Wo, Cin, Cout):
    Hp, Wp = Ho + 2, Wo + 2
    kernel = functools.partial(_conv3x3_kernel, Ho=Ho, Wo=Wo, Cin=Cin)
    return pl.pallas_call(
        kernel,
        out_shape=(jax.ShapeDtypeStruct((N, Ho, Wo, Cout), jnp.bfloat16),
                   jax.ShapeDtypeStruct((N, 1, Cout), jnp.float32),
                   jax.ShapeDtypeStruct((N, 1, Cout), jnp.float32)),
        grid_spec=pltpu.PrefetchScalarGridSpec(
            num_scalar_prefetch=0,
            grid=(N,),
            in_specs=[pl.BlockSpec((1, Hp, Wp, Cin), lambda n: (n, 0, 0, 0)),
                      pl.BlockSpec((9 * Cin, Cout), lambda n: (0, 0))],
            out_specs=(pl.BlockSpec((1, Ho, Wo, Cout), lambda n: (n, 0, 0, 0)),
                       pl.BlockSpec((1, 1, Cout), lambda n: (n, 0, 0)),
                       pl.BlockSpec((1, 1, Cout), lambda n: (n, 0, 0)))),
        compiler_params=pltpu.CompilerParams(
            dimension_semantics=("parallel",)),       # megacore-shardable
    )


def _gemm_stats_kernel(a_ref, b_ref, o_ref, s_ref, q_ref):
    # bf16 x bf16 -> f32 MXU matmul, full K in one block; bf16 output; per-
    # M-tile partial BN stats (no cross-iteration RMW -> grid fully parallel).
    y = jnp.dot(a_ref[...], b_ref[...], preferred_element_type=jnp.float32)
    o_ref[...] = y.astype(o_ref.dtype)
    s_ref[...] = jnp.sum(y, axis=0, keepdims=True).reshape(s_ref.shape)
    q_ref[...] = jnp.sum(y * y, axis=0, keepdims=True).reshape(q_ref.shape)


@functools.lru_cache(maxsize=None)
def _gemm_stats_call(Mp, K, Nc, tm):
    nmt = Mp // tm
    return pl.pallas_call(
        _gemm_stats_kernel,
        out_shape=(jax.ShapeDtypeStruct((Mp, Nc), jnp.bfloat16),
                   jax.ShapeDtypeStruct((nmt, 1, Nc), jnp.float32),
                   jax.ShapeDtypeStruct((nmt, 1, Nc), jnp.float32)),
        grid_spec=pltpu.PrefetchScalarGridSpec(
            num_scalar_prefetch=0,
            grid=(nmt,),
            in_specs=[pl.BlockSpec((tm, K), lambda i: (i, 0)),
                      pl.BlockSpec((K, Nc), lambda i: (0, 0))],
            out_specs=(pl.BlockSpec((tm, Nc), lambda i: (i, 0)),
                       pl.BlockSpec((1, 1, Nc), lambda i: (i, 0, 0)),
                       pl.BlockSpec((1, 1, Nc), lambda i: (i, 0, 0)))),
        compiler_params=pltpu.CompilerParams(
            dimension_semantics=("parallel",)),
    )


def _combine_kernel(*refs, n, act):
    # refs = (x_0..x_{n-1}, ab, out); ab rows [0..n-1] = scales, [n..2n-1] = shifts.
    ab = refs[n][...]
    acc = refs[0][...].astype(jnp.float32) * ab[0:1, :] + ab[n:n + 1, :]
    for t in range(1, n):
        acc = (acc + refs[t][...].astype(jnp.float32) * ab[t:t + 1, :]
               + ab[n + t:n + t + 1, :])
    if act == "relu":
        acc = jnp.maximum(acc, 0.0)
    refs[n + 1][...] = acc.astype(refs[n + 1].dtype)


@functools.lru_cache(maxsize=None)
def _combine_call(Rp, br, lanes, n, act):
    kernel = functools.partial(_combine_kernel, n=n, act=act)
    row = pl.BlockSpec((br, lanes), lambda i: (i, 0))
    ab = pl.BlockSpec((2 * n, lanes), lambda i: (0, 0))   # one stacked affine ref
    return pl.pallas_call(
        kernel,
        out_shape=jax.ShapeDtypeStruct((Rp, lanes), jnp.bfloat16),
        grid_spec=pltpu.PrefetchScalarGridSpec(
            num_scalar_prefetch=0,
            grid=(Rp // br,),
            in_specs=[row] * n + [ab],
            out_specs=row),
        compiler_params=pltpu.CompilerParams(
            dimension_semantics=("parallel",)),
    )


# ----------------------------------------------------------------------------
# NN primitives built on the kernels
# ----------------------------------------------------------------------------
def _conv3x3_s1(x, p):
    N, H, W, Cin = x.shape
    Cout = p["w"].shape[-1]
    xp = jnp.pad(x, ((0, 0), (1, 1), (1, 1), (0, 0)))
    wmat = p["w"].reshape(9 * Cin, Cout)
    y, sp, qp = _conv3x3_call(N, H, W, Cin, Cout)(xp, wmat)
    return y, jnp.sum(sp, axis=0)[0], jnp.sum(qp, axis=0)[0], N * H * W


def _pick_tm(M, K, Nc):
    """Minimize zero-row padding (prefer larger tiles on ties) while keeping
    the double-buffered A+B+O footprint under VMEM_BUDGET."""
    if M <= 128:
        return _ru(M, 8)
    cands = [t for t in (512, 384, 256, 128)
             if 4 * (t * K + K * Nc + t * Nc) <= VMEM_BUDGET]
    if not cands:
        cands = [128]
    return min(cands, key=lambda t: (_ru(M, t) - M, -t))


def _conv_gemm(x, p):
    """1x1 convs and strided 3x3 convs via GEMM (im2col only for strided)."""
    N, H, W, Cin = x.shape
    k, s, pad = p["k"], p["stride"], p["pad"]
    Cout = p["w"].shape[-1]
    if k == 1 and s == 1 and pad == 0:
        Ho, Wo = H, W
        rows = x.reshape(N * H * W, Cin)
    else:
        xp = jnp.pad(x, ((0, 0), (pad, pad), (pad, pad), (0, 0)))
        Ho = (H + 2 * pad - k) // s + 1
        Wo = (W + 2 * pad - k) // s + 1
        taps = [xp[:, dy:dy + s * (Ho - 1) + 1:s, dx:dx + s * (Wo - 1) + 1:s, :]
                for dy in range(k) for dx in range(k)]
        rows = jnp.concatenate(taps, axis=-1).reshape(N * Ho * Wo, k * k * Cin)
        # TODO(synk): fold the strided taps into the kernel too; only the few
        # stride-2 fuse convs reach this branch (stride-1 3x3 is im2col-free),
        # and the stream is already bf16 so the cost is halved vs. before.
    wmat = p["w"].reshape(k * k * Cin, Cout)
    M, K = rows.shape
    tm = _pick_tm(M, K, Cout)
    Mp = _ru(M, tm)
    a = rows if Mp == M else jnp.pad(rows, ((0, Mp - M), (0, 0)))
    y, sp, qp = _gemm_stats_call(Mp, K, Cout, tm)(a, wmat)
    y = (y if Mp == M else y[:M]).reshape(N, Ho, Wo, Cout)
    return y, jnp.sum(sp, axis=0)[0], jnp.sum(qp, axis=0)[0], M


def conv2d_raw(x, p):
    """Conv (no bias): raw bf16 NHWC output + per-channel (sum, sumsq, count)."""
    if p["k"] == 3 and p["stride"] == 1:
        return _conv3x3_s1(x, p)
    return _conv_gemm(x, p)


def bn_scale_shift(ssum, ssq, count, bnp):
    """Training-mode BatchNorm2d batch statistics -> per-channel affine."""
    mean = ssum / count
    # TODO(synk): E[x^2]-E[x]^2 with a clamp; switch to centered/Welford
    # partials if bit-tight BN parity with PyTorch is ever required.
    var = jnp.maximum(ssq / count - mean * mean, 0.0)
    scale = bnp["gamma"] * jax.lax.rsqrt(var + BN_EPS)
    shift = bnp["beta"] - mean * scale
    return scale, shift


def _rows_layout(M, C):
    """Widest lane-dense layout in {512, 256, 128} for (M, C) rows; else pad C."""
    for lanes in (512, 256, 128):
        if lanes % C == 0 and (M * C) % lanes == 0:
            return (M * C) // lanes, lanes, lanes // C, False
    if C % LANES == 0:
        return M, C, 1, False
    return M, _ru(C, LANES), 1, True


def combine_affine(terms, act=None):
    """out = act(sum_i x_i * scale_i + shift_i) in one fused lane-dense pass.

    terms: list of (x_nhwc_bf16, scale_f32, shift_f32); scale/shift None ==
    identity.  All x_i share the same NHWC shape.  Output is bf16 NHWC."""
    N, H, W, C = terms[0][0].shape
    M = N * H * W
    n = len(terms)
    rows, lanes, rep, pad_c = _rows_layout(M, C)
    br_cap = max(16, (COMBINE_BLOCK_ELEMS // lanes) // 16 * 16)
    br = min(br_cap, _ru(rows, 8))
    Rp = _ru(rows, br)

    xs, scales, shifts = [], [], []
    for x, s, b in terms:
        s = jnp.ones((C,), jnp.float32) if s is None else s
        b = jnp.zeros((C,), jnp.float32) if b is None else b
        xr = x.reshape(M, C)
        if pad_c:
            xr = jnp.pad(xr, ((0, 0), (0, lanes - C)))
            sv, bv = jnp.pad(s, (0, lanes - C)), jnp.pad(b, (0, lanes - C))
        else:
            xr = xr.reshape(rows, lanes)                 # lane-dense repack
            sv, bv = jnp.tile(s, rep), jnp.tile(b, rep)
        if Rp != rows:
            xr = jnp.pad(xr, ((0, Rp - rows), (0, 0)))
        xs.append(xr.astype(jnp.bfloat16))
        scales.append(sv)
        shifts.append(bv)

    ab = jnp.stack(scales + shifts, axis=0).astype(jnp.float32)   # (2n, lanes)
    out = _combine_call(Rp, br, lanes, n, act)(*xs, ab)
    out = out if Rp == rows else out[:rows]
    if pad_c:
        out = out[:, :C]
    return out.reshape(N, H, W, C)


def upsample_nearest(x, scale):
    # TODO(synk): fuse the nearest replication into the combine kernel via a
    # (h//scale, w//scale) BlockSpec index_map on 4-D blocks instead of
    # materializing the upsampled tensor (already halved by bf16).
    x = jnp.repeat(x, scale, axis=1)
    return jnp.repeat(x, scale, axis=2)


# ----------------------------------------------------------------------------
# Deterministic parameter construction (matches module __init__ shapes)
# ----------------------------------------------------------------------------
class _Rng:
    def __init__(self, seed):
        self._key = jax.random.PRNGKey(seed)

    def normal(self, shape, std=0.1):
        self._key, sub = jax.random.split(self._key)
        return std * jax.random.normal(sub, shape, dtype=jnp.float32)


def conv_p(rng, cin, cout, k, stride=1):
    return {"w": rng.normal((k, k, cin, cout)).astype(jnp.bfloat16),
            "k": k, "stride": stride, "pad": (k - 1) // 2}


def bn_p(c):
    return {"gamma": jnp.ones((c,), jnp.float32),
            "beta": jnp.zeros((c,), jnp.float32)}


def basicblock_params(rng, inplanes, planes, stride=1):
    p = {"conv1": conv_p(rng, inplanes, planes, 3, stride), "bn1": bn_p(planes),
         "conv2": conv_p(rng, planes, planes, 3), "bn2": bn_p(planes)}
    if inplanes != planes or stride != 1:
        p["down"] = {"conv": conv_p(rng, inplanes, planes, 1, stride),
                     "bn": bn_p(planes)}
    return p


def hrmodule_params(rng, num_conv, c_out):
    branches = [[basicblock_params(rng, plane, plane) for _ in range(n)]
                for n, plane in zip(num_conv, c_out)]
    fuse = []
    for io, po in enumerate(c_out):
        row = []
        for ii, pi in enumerate(c_out):
            if ii == io:
                row.append(None)
            elif ii > io:
                row.append({"type": "up", "conv": conv_p(rng, pi, po, 1),
                            "bn": bn_p(po), "scale": 2 ** (ii - io)})
            else:
                convs = [{"conv": conv_p(rng, pi, pi, 3, 2), "bn": bn_p(pi)}
                         for _ in range(io - ii - 1)]
                convs.append({"conv": conv_p(rng, pi, po, 3, 2), "bn": bn_p(po)})
                row.append({"type": "down", "convs": convs})
        fuse.append(row)
    return {"branches": branches, "fuse": fuse}


# ----------------------------------------------------------------------------
# Forward passes mirroring the PyTorch modules
# ----------------------------------------------------------------------------
def basicblock_forward(p, x):
    y1, s1, q1, m1 = conv2d_raw(x, p["conv1"])
    sc1, sh1 = bn_scale_shift(s1, q1, m1, p["bn1"])
    h = combine_affine([(y1, sc1, sh1)], act="relu")            # bn1 + relu

    y2, s2, q2, m2 = conv2d_raw(h, p["conv2"])
    sc2, sh2 = bn_scale_shift(s2, q2, m2, p["bn2"])
    if "down" in p:
        yd, sd, qd, md = conv2d_raw(x, p["down"]["conv"])
        scd, shd = bn_scale_shift(sd, qd, md, p["down"]["bn"])
        res_term = (yd, scd, shd)                               # bn(down) folded in
    else:
        res_term = (x, None, None)
    # bn2 + residual add + relu in one fused pass
    return combine_affine([(y2, sc2, sh2), res_term], act="relu")


def hrmodule_forward(p, xs):
    ys = []
    for branch, x in zip(p["branches"], xs):
        for blk in branch:
            x = basicblock_forward(blk, x)
        ys.append(x)

    outs = []
    for row in p["fuse"]:
        terms = []
        for layer, y in zip(row, ys):
            if layer is None:
                terms.append((y, None, None))
            elif layer["type"] == "up":
                z, s, q, m = conv2d_raw(y, layer["conv"])
                sc, sh = bn_scale_shift(s, q, m, layer["bn"])
                # BN affine commutes with nearest upsample and torch computes
                # the batch stats pre-upsample (BN precedes Upsample): upsample
                # the raw conv output, fold the affine into the fused sum+ReLU.
                z = upsample_nearest(z, layer["scale"])
                terms.append((z, sc, sh))
            else:  # "down": chain of stride-2 3x3 conv+BN(+ReLU), last no ReLU
                z = y
                for c in layer["convs"][:-1]:
                    zz, s, q, m = conv2d_raw(z, c["conv"])
                    sc, sh = bn_scale_shift(s, q, m, c["bn"])
                    z = combine_affine([(zz, sc, sh)], act="relu")
                c = layer["convs"][-1]
                zz, s, q, m = conv2d_raw(z, c["conv"])
                sc, sh = bn_scale_shift(s, q, m, c["bn"])
                terms.append((zz, sc, sh))
        # BN affines + branch sum + ReLU all in one Pallas pass
        outs.append(combine_affine(terms, act="relu"))
    return outs


def hrmodule_apply(params, xs_nchw):
    xs = [jnp.transpose(x, (0, 2, 3, 1)).astype(jnp.bfloat16) for x in xs_nchw]
    ys = hrmodule_forward(params, xs)
    return tuple(jnp.transpose(y, (0, 3, 1, 2)).astype(jnp.float32) for y in ys)


# ----------------------------------------------------------------------------
if __name__ == "__main__":
    key = jax.random.PRNGKey(0)
    k0, k1 = jax.random.split(key)
    NUM_CONV = (4, 4)
    C_OUT = (32, 64)
    x0 = jax.random.normal(k0, (2, C_OUT[0], 16, 16), dtype=jnp.float32)  # NCHW
    x1 = jax.random.normal(k1, (2, C_OUT[1], 8, 8), dtype=jnp.float32)    # NCHW

    params = hrmodule_params(_Rng(0), NUM_CONV, C_OUT)

    @jax.jit                              # single outer jit over the whole module
    def fwd(a, b):
        return hrmodule_apply(params, (a, b))

    y0, y1 = jax.block_until_ready(fwd(x0, x1))

    assert y0.shape == (2, C_OUT[0], 16, 16), y0.shape
    assert y1.shape == (2, C_OUT[1], 8, 8), y1.shape
    for y in (y0, y1):
        assert bool(jnp.all(jnp.isfinite(y)))
        assert bool(jnp.all(y >= 0.0))    # module outputs pass through ReLU
    print("KERNEL_OK")
</pallas_src>

<mosaic_0001>
module attributes {stable_mosaic.version = 11 : i64} {
  func.func @_conv3x3_kernel(%arg0: i32, %arg1: memref<1x18x18x32xbf16, #tpu.memory_space<vmem>>, %arg2: memref<288x32xbf16, #tpu.memory_space<vmem>>, %arg3: memref<1x16x16x32xbf16, #tpu.memory_space<vmem>>, %arg4: memref<1x1x32xf32, #tpu.memory_space<vmem>>, %arg5: memref<1x1x32xf32, #tpu.memory_space<vmem>>) attributes {dimension_semantics = [#tpu.dimension_semantics<parallel>], iteration_bounds = array<i64: 2>, scalar_prefetch = 0 : i64, scratch_operands = 0 : i64, tpu.core_type = #tpu.core_type<tc>, window_params = [{transform_indices = @transform_0, window_bounds = array<i64: 1, 18, 18, 32>}, {pipeline_mode = #tpu.pipeline_mode<synchronous>, transform_indices = @transform_1, window_bounds = array<i64: 288, 32>}, {transform_indices = @transform_2, window_bounds = array<i64: 1, 16, 16, 32>}, {transform_indices = @transform_3, window_bounds = array<i64: 1, 1, 32>}, {transform_indices = @transform_4, window_bounds = array<i64: 1, 1, 32>}]} {
    %c0 = arith.constant 0 : index
    %c0_0 = arith.constant 0 : index
    %c0_1 = arith.constant 0 : index
    %c0_2 = arith.constant 0 : index
    %0 = vector.load %arg1[%c0, %c0_0, %c0_1, %c0_2] : memref<1x18x18x32xbf16, #tpu.memory_space<vmem>>, vector<1x18x18x32xbf16>
    %1 = vector.shape_cast %0 : vector<1x18x18x32xbf16> to vector<18x18x32xbf16>
    %2 = vector.extract_strided_slice %1 {offsets = [0, 0, 0], sizes = [16, 16, 32], strides = [1, 1, 1]} : vector<18x18x32xbf16> to vector<16x16x32xbf16>
    %3 = vector.shape_cast %2 : vector<16x16x32xbf16> to vector<256x32xbf16>
    %c0_3 = arith.constant 0 : index
    %c0_4 = arith.constant 0 : index
    %4 = vector.load %arg2[%c0_3, %c0_4] : memref<288x32xbf16, #tpu.memory_space<vmem>>, vector<32x32xbf16>
    %cst = arith.constant dense<0.000000e+00> : vector<256x32xf32>
    %5 = tpu.matmul %3, %4, %cst {dimension_numbers = #tpu.dot_dimension_numbers<[1], [0], [0], [1], [0, 0, 1, 1], [], []>} : vector<256x32xbf16>, vector<32x32xbf16>, vector<256x32xf32> -> vector<256x32xf32>
    %6 = vector.extract_strided_slice %1 {offsets = [0, 1, 0], sizes = [16, 16, 32], strides = [1, 1, 1]} : vector<18x18x32xbf16> to vector<16x16x32xbf16>
    %7 = vector.shape_cast %6 : vector<16x16x32xbf16> to vector<256x32xbf16>
    %c32 = arith.constant 32 : index
    %c0_5 = arith.constant 0 : index
    %8 = vector.load %arg2[%c32, %c0_5] : memref<288x32xbf16, #tpu.memory_space<vmem>>, vector<32x32xbf16>
    %cst_6 = arith.constant dense<0.000000e+00> : vector<256x32xf32>
    %9 = tpu.matmul %7, %8, %cst_6 {dimension_numbers = #tpu.dot_dimension_numbers<[1], [0], [0], [1], [0, 0, 1, 1], [], []>} : vector<256x32xbf16>, vector<32x32xbf16>, vector<256x32xf32> -> vector<256x32xf32>
    %10 = arith.addf %5, %9 : vector<256x32xf32>
    %11 = vector.extract_strided_slice %1 {offsets = [0, 2, 0], sizes = [16, 16, 32], strides = [1, 1, 1]} : vector<18x18x32xbf16> to vector<16x16x32xbf16>
    %12 = vector.shape_cast %11 : vector<16x16x32xbf16> to vector<256x32xbf16>
    %c64 = arith.constant 64 : index
    %c0_7 = arith.constant 0 : index
    %13 = vector.load %arg2[%c64, %c0_7] : memref<288x32xbf16, #tpu.memory_space<vmem>>, vector<32x32xbf16>
    %cst_8 = arith.constant dense<0.000000e+00> : vector<256x32xf32>
    %14 = tpu.matmul %12, %13, %cst_8 {dimension_numbers = #tpu.dot_dimension_numbers<[1], [0], [0], [1], [0, 0, 1, 1], [], []>} : vector<256x32xbf16>, vector<32x32xbf16>, vector<256x32xf32> -> vector<256x32xf32>
    %15 = arith.addf %10, %14 : vector<256x32xf32>
    %16 = vector.extract_strided_slice %1 {offsets = [1, 0, 0], sizes = [16, 16, 32], strides = [1, 1, 1]} : vector<18x18x32xbf16> to vector<16x16x32xbf16>
    %17 = vector.shape_cast %16 : vector<16x16x32xbf16> to vector<256x32xbf16>
    %c96 = arith.constant 96 : index
    %c0_9 = arith.constant 0 : index
    %18 = vector.load %arg2[%c96, %c0_9] : memref<288x32xbf16, #tpu.memory_space<vmem>>, vector<32x32xbf16>
    %cst_10 = arith.constant dense<0.000000e+00> : vector<256x32xf32>
    %19 = tpu.matmul %17, %18, %cst_10 {dimension_numbers = #tpu.dot_dimension_numbers<[1], [0], [0], [1], [0, 0, 1, 1], [], []>} : vector<256x32xbf16>, vector<32x32xbf16>, vector<256x32xf32> -> vector<256x32xf32>
    %20 = arith.addf %15, %19 : vector<256x32xf32>
    %21 = vector.extract_strided_slice %1 {offsets = [1, 1, 0], sizes = [16, 16, 32], strides = [1, 1, 1]} : vector<18x18x32xbf16> to vector<16x16x32xbf16>
    %22 = vector.shape_cast %21 : vector<16x16x32xbf16> to vector<256x32xbf16>
    %c128 = arith.constant 128 : index
    %c0_11 = arith.constant 0 : index
    %23 = vector.load %arg2[%c128, %c0_11] : memref<288x32xbf16, #tpu.memory_space<vmem>>, vector<32x32xbf16>
    %cst_12 = arith.constant dense<0.000000e+00> : vector<256x32xf32>
    %24 = tpu.matmul %22, %23, %cst_12 {dimension_numbers = #tpu.dot_dimension_numbers<[1], [0], [0], [1], [0, 0, 1, 1], [], []>} : vector<256x32xbf16>, vector<32x32xbf16>, vector<256x32xf32> -> vector<256x32xf32>
    %25 = arith.addf %20, %24 : vector<256x32xf32>
    %26 = vector.extract_strided_slice %1 {offsets = [1, 2, 0], sizes = [16, 16, 32], strides = [1, 1, 1]} : vector<18x18x32xbf16> to vector<16x16x32xbf16>
    %27 = vector.shape_cast %26 : vector<16x16x32xbf16> to vector<256x32xbf16>
    %c160 = arith.constant 160 : index
    %c0_13 = arith.constant 0 : index
    %28 = vector.load %arg2[%c160, %c0_13] : memref<288x32xbf16, #tpu.memory_space<vmem>>, vector<32x32xbf16>
    %cst_14 = arith.constant dense<0.000000e+00> : vector<256x32xf32>
    %29 = tpu.matmul %27, %28, %cst_14 {dimension_numbers = #tpu.dot_dimension_numbers<[1], [0], [0], [1], [0, 0, 1, 1], [], []>} : vector<256x32xbf16>, vector<32x32xbf16>, vector<256x32xf32> -> vector<256x32xf32>
    %30 = arith.addf %25, %29 : vector<256x32xf32>
    %31 = vector.extract_strided_slice %1 {offsets = [2, 0, 0], sizes = [16, 16, 32], strides = [1, 1, 1]} : vector<18x18x32xbf16> to vector<16x16x32xbf16>
    %32 = vector.shape_cast %31 : vector<16x16x32xbf16> to vector<256x32xbf16>
    %c192 = arith.constant 192 : index
    %c0_15 = arith.constant 0 : index
    %33 = vector.load %arg2[%c192, %c0_15] : memref<288x32xbf16, #tpu.memory_space<vmem>>, vector<32x32xbf16>
    %cst_16 = arith.constant dense<0.000000e+00> : vector<256x32xf32>
    %34 = tpu.matmul %32, %33, %cst_16 {dimension_numbers = #tpu.dot_dimension_numbers<[1], [0], [0], [1], [0, 0, 1, 1], [], []>} : vector<256x32xbf16>, vector<32x32xbf16>, vector<256x32xf32> -> vector<256x32xf32>
    %35 = arith.addf %30, %34 : vector<256x32xf32>
    %36 = vector.extract_strided_slice %1 {offsets = [2, 1, 0], sizes = [16, 16, 32], strides = [1, 1, 1]} : vector<18x18x32xbf16> to vector<16x16x32xbf16>
    %37 = vector.shape_cast %36 : vector<16x16x32xbf16> to vector<256x32xbf16>
    %c224 = arith.constant 224 : index
    %c0_17 = arith.constant 0 : index
    %38 = vector.load %arg2[%c224, %c0_17] : memref<288x32xbf16, #tpu.memory_space<vmem>>, vector<32x32xbf16>
    %cst_18 = arith.constant dense<0.000000e+00> : vector<256x32xf32>
    %39 = tpu.matmul %37, %38, %cst_18 {dimension_numbers = #tpu.dot_dimension_numbers<[1], [0], [0], [1], [0, 0, 1, 1], [], []>} : vector<256x32xbf16>, vector<32x32xbf16>, vector<256x32xf32> -> vector<256x32xf32>
    %40 = arith.addf %35, %39 : vector<256x32xf32>
    %41 = vector.extract_strided_slice %1 {offsets = [2, 2, 0], sizes = [16, 16, 32], strides = [1, 1, 1]} : vector<18x18x32xbf16> to vector<16x16x32xbf16>
    %42 = vector.shape_cast %41 : vector<16x16x32xbf16> to vector<256x32xbf16>
    %c256 = arith.constant 256 : index
    %c0_19 = arith.constant 0 : index
    %43 = vector.load %arg2[%c256, %c0_19] : memref<288x32xbf16, #tpu.memory_space<vmem>>, vector<32x32xbf16>
    %cst_20 = arith.constant dense<0.000000e+00> : vector<256x32xf32>
    %44 = tpu.matmul %42, %43, %cst_20 {dimension_numbers = #tpu.dot_dimension_numbers<[1], [0], [0], [1], [0, 0, 1, 1], [], []>} : vector<256x32xbf16>, vector<32x32xbf16>, vector<256x32xf32> -> vector<256x32xf32>
    %45 = arith.addf %40, %44 : vector<256x32xf32>
    %46 = vector.shape_cast %45 : vector<256x32xf32> to vector<1x16x16x32xf32>
    %47 = arith.truncf %46 : vector<1x16x16x32xf32> to vector<1x16x16x32xbf16>
    %c0_21 = arith.constant 0 : index
    %c0_22 = arith.constant 0 : index
    %c0_23 = arith.constant 0 : index
    %c0_24 = arith.constant 0 : index
    %48 = vector.load %arg3[%c0_21, %c0_22, %c0_23, %c0_24] : memref<1x16x16x32xbf16, #tpu.memory_space<vmem>>, vector<1x16x16x32xbf16>
    tpu.vector_store %arg3[%c0_21, %c0_22, %c0_23, %c0_24], %47 {strides = array<i32>} : memref<1x16x16x32xbf16, #tpu.memory_space<vmem>>, vector<1x16x16x32xbf16>,
    %cst_25 = arith.constant dense<0.000000e+00> : vector<32xf32>
    %49 = vector.multi_reduction <add>, %45, %cst_25 [0] : vector<256x32xf32> to vector<32xf32>
    %50 = vector.shape_cast %49 : vector<32xf32> to vector<1x32xf32>
    %51 = vector.shape_cast %50 : vector<1x32xf32> to vector<1x1x32xf32>
    %c0_26 = arith.constant 0 : index
    %c0_27 = arith.constant 0 : index
    %c0_28 = arith.constant 0 : index
    %52 = vector.load %arg4[%c0_26, %c0_27, %c0_28] : memref<1x1x32xf32, #tpu.memory_space<vmem>>, vector<1x1x32xf32>
    tpu.vector_store %arg4[%c0_26, %c0_27, %c0_28], %51 {strides = array<i32>} : memref<1x1x32xf32, #tpu.memory_space<vmem>>, vector<1x1x32xf32>,
    %53 = arith.mulf %45, %45 : vector<256x32xf32>
    %cst_29 = arith.constant dense<0.000000e+00> : vector<32xf32>
    %54 = vector.multi_reduction <add>, %53, %cst_29 [0] : vector<256x32xf32> to vector<32xf32>
    %55 = vector.shape_cast %54 : vector<32xf32> to vector<1x32xf32>
    %56 = vector.shape_cast %55 : vector<1x32xf32> to vector<1x1x32xf32>
    %c0_30 = arith.constant 0 : index
    %c0_31 = arith.constant 0 : index
    %c0_32 = arith.constant 0 : index
    %57 = vector.load %arg5[%c0_30, %c0_31, %c0_32] : memref<1x1x32xf32, #tpu.memory_space<vmem>>, vector<1x1x32xf32>
    tpu.vector_store %arg5[%c0_30, %c0_31, %c0_32], %56 {strides = array<i32>} : memref<1x1x32xf32, #tpu.memory_space<vmem>>, vector<1x1x32xf32>,
    return
  }
  func.func @transform_0(%arg0: i32) -> (i32, i32, i32, i32) {
    %c0_i32 = arith.constant 0 : i32
    %c0_i32_0 = arith.constant 0 : i32
    %c0_i32_1 = arith.constant 0 : i32
    %c0_i32_2 = arith.constant 0 : i32
    return %arg0, %c0_i32, %c0_i32_0, %c0_i32_1 : i32, i32, i32, i32
  }
  func.func @transform_1(%arg0: i32) -> (i32, i32) {
    %c0_i32 = arith.constant 0 : i32
    %c0_i32_0 = arith.constant 0 : i32
    %c0_i32_1 = arith.constant 0 : i32
    return %c0_i32, %c0_i32_0 : i32, i32
  }
  func.func @transform_2(%arg0: i32) -> (i32, i32, i32, i32) {
    %c0_i32 = arith.constant 0 : i32
    %c0_i32_0 = arith.constant 0 : i32
    %c0_i32_1 = arith.constant 0 : i32
    %c0_i32_2 = arith.constant 0 : i32
    return %arg0, %c0_i32, %c0_i32_0, %c0_i32_1 : i32, i32, i32, i32
  }
  func.func @transform_3(%arg0: i32) -> (i32, i32, i32) {
    %c0_i32 = arith.constant 0 : i32
    %c0_i32_0 = arith.constant 0 : i32
    %c0_i32_1 = arith.constant 0 : i32
    return %arg0, %c0_i32, %c0_i32_0 : i32, i32, i32
  }
  func.func @transform_4(%arg0: i32) -> (i32, i32, i32) {
    %c0_i32 = arith.constant 0 : i32
    %c0_i32_0 = arith.constant 0 : i32
    %c0_i32_1 = arith.constant 0 : i32
    return %arg0, %c0_i32, %c0_i32_0 : i32, i32, i32
  }
}

module attributes {stable_mosaic.version = 11 : i64} {
  func.func @_combine_kernel(%arg0: i32, %arg1: memref<32x512xbf16, #tpu.memory_space<vmem>>, %arg2: memref<2x512xf32, #tpu.memory_space<vmem>>, %arg3: memref<32x512xbf16, #tpu.memory_space<vmem>>) attributes {dimension_semantics = [#tpu.dimension_semantics<parallel>], iteration_bounds = array<i64: 1>, scalar_prefetch = 0 : i64, scratch_operands = 0 : i64, tpu.core_type = #tpu.core_type<tc>, window_params = [{transform_indices = @transform_0, window_bounds = array<i64: 32, 512>}, {pipeline_mode = #tpu.pipeline_mode<synchronous>, transform_indices = @transform_1, window_bounds = array<i64: 2, 512>}, {transform_indices = @transform_2, window_bounds = array<i64: 32, 512>}]} {
    %c0 = arith.constant 0 : index
    %c0_0 = arith.constant 0 : index
    %0 = vector.load %arg2[%c0, %c0_0] : memref<2x512xf32, #tpu.memory_space<vmem>>, vector<2x512xf32>
    %c0_1 = arith.constant 0 : index
    %c0_2 = arith.constant 0 : index
    %1 = vector.load %arg1[%c0_1, %c0_2] : memref<32x512xbf16, #tpu.memory_space<vmem>>, vector<32x512xbf16>
    %2 = arith.extf %1 : vector<32x512xbf16> to vector<32x512xf32>
    %3 = vector.extract_strided_slice %0 {offsets = [0, 0], sizes = [1, 512], strides = [1, 1]} : vector<2x512xf32> to vector<1x512xf32>
    %4 = vector.broadcast %3 : vector<1x512xf32> to vector<32x512xf32>
    %5 = arith.mulf %2, %4 : vector<32x512xf32>
    %6 = vector.extract_strided_slice %0 {offsets = [1, 0], sizes = [1, 512], strides = [1, 1]} : vector<2x512xf32> to vector<1x512xf32>
    %7 = vector.broadcast %6 : vector<1x512xf32> to vector<32x512xf32>
    %8 = arith.addf %5, %7 : vector<32x512xf32>
    %cst = arith.constant 0.000000e+00 : f32
    %9 = vector.broadcast %cst : f32 to vector<32x512xf32>
    %10 = arith.maximumf %8, %9 : vector<32x512xf32>
    %11 = arith.truncf %10 : vector<32x512xf32> to vector<32x512xbf16>
    %c0_3 = arith.constant 0 : index
    %c0_4 = arith.constant 0 : index
    %12 = vector.load %arg3[%c0_3, %c0_4] : memref<32x512xbf16, #tpu.memory_space<vmem>>, vector<32x512xbf16>
    tpu.vector_store %arg3[%c0_3, %c0_4], %11 {strides = array<i32>} : memref<32x512xbf16, #tpu.memory_space<vmem>>, vector<32x512xbf16>,
    return
  }
  func.func @transform_0(%arg0: i32) -> (i32, i32) {
    %c0_i32 = arith.constant 0 : i32
    %c0_i32_0 = arith.constant 0 : i32
    return %arg0, %c0_i32 : i32, i32
  }
  func.func @transform_1(%arg0: i32) -> (i32, i32) {
    %c0_i32 = arith.constant 0 : i32
    %c0_i32_0 = arith.constant 0 : i32
    %c0_i32_1 = arith.constant 0 : i32
    return %c0_i32, %c0_i32_0 : i32, i32
  }
  func.func @transform_2(%arg0: i32) -> (i32, i32) {
    %c0_i32 = arith.constant 0 : i32
    %c0_i32_0 = arith.constant 0 : i32
    return %arg0, %c0_i32 : i32, i32
  }
}

module attributes {stable_mosaic.version = 11 : i64} {
  func.func @_combine_kernel(%arg0: i32, %arg1: memref<32x512xbf16, #tpu.memory_space<vmem>>, %arg2: memref<32x512xbf16, #tpu.memory_space<vmem>>, %arg3: memref<4x512xf32, #tpu.memory_space<vmem>>, %arg4: memref<32x512xbf16, #tpu.memory_space<vmem>>) attributes {dimension_semantics = [#tpu.dimension_semantics<parallel>], iteration_bounds = array<i64: 1>, scalar_prefetch = 0 : i64, scratch_operands = 0 : i64, tpu.core_type = #tpu.core_type<tc>, window_params = [{transform_indices = @transform_0, window_bounds = array<i64: 32, 512>}, {transform_indices = @transform_1, window_bounds = array<i64: 32, 512>}, {pipeline_mode = #tpu.pipeline_mode<synchronous>, transform_indices = @transform_2, window_bounds = array<i64: 4, 512>}, {transform_indices = @transform_3, window_bounds = array<i64: 32, 512>}]} {
    %c0 = arith.constant 0 : index
    %c0_0 = arith.constant 0 : index
    %0 = vector.load %arg3[%c0, %c0_0] : memref<4x512xf32, #tpu.memory_space<vmem>>, vector<4x512xf32>
    %c0_1 = arith.constant 0 : index
    %c0_2 = arith.constant 0 : index
    %1 = vector.load %arg1[%c0_1, %c0_2] : memref<32x512xbf16, #tpu.memory_space<vmem>>, vector<32x512xbf16>
    %2 = arith.extf %1 : vector<32x512xbf16> to vector<32x512xf32>
    %3 = vector.extract_strided_slice %0 {offsets = [0, 0], sizes = [1, 512], strides = [1, 1]} : vector<4x512xf32> to vector<1x512xf32>
    %4 = vector.broadcast %3 : vector<1x512xf32> to vector<32x512xf32>
    %5 = arith.mulf %2, %4 : vector<32x512xf32>
    %6 = vector.extract_strided_slice %0 {offsets = [2, 0], sizes = [1, 512], strides = [1, 1]} : vector<4x512xf32> to vector<1x512xf32>
    %7 = vector.broadcast %6 : vector<1x512xf32> to vector<32x512xf32>
    %8 = arith.addf %5, %7 : vector<32x512xf32>
    %c0_3 = arith.constant 0 : index
    %c0_4 = arith.constant 0 : index
    %9 = vector.load %arg2[%c0_3, %c0_4] : memref<32x512xbf16, #tpu.memory_space<vmem>>, vector<32x512xbf16>
    %10 = arith.extf %9 : vector<32x512xbf16> to vector<32x512xf32>
    %11 = vector.extract_strided_slice %0 {offsets = [1, 0], sizes = [1, 512], strides = [1, 1]} : vector<4x512xf32> to vector<1x512xf32>
    %12 = vector.broadcast %11 : vector<1x512xf32> to vector<32x512xf32>
    %13 = arith.mulf %10, %12 : vector<32x512xf32>
    %14 = arith.addf %8, %13 : vector<32x512xf32>
    %15 = vector.extract_strided_slice %0 {offsets = [3, 0], sizes = [1, 512], strides = [1, 1]} : vector<4x512xf32> to vector<1x512xf32>
    %16 = vector.broadcast %15 : vector<1x512xf32> to vector<32x512xf32>
    %17 = arith.addf %14, %16 : vector<32x512xf32>
    %cst = arith.constant 0.000000e+00 : f32
    %18 = vector.broadcast %cst : f32 to vector<32x512xf32>
    %19 = arith.maximumf %17, %18 : vector<32x512xf32>
    %20 = arith.truncf %19 : vector<32x512xf32> to vector<32x512xbf16>
    %c0_5 = arith.constant 0 : index
    %c0_6 = arith.constant 0 : index
    %21 = vector.load %arg4[%c0_5, %c0_6] : memref<32x512xbf16, #tpu.memory_space<vmem>>, vector<32x512xbf16>
    tpu.vector_store %arg4[%c0_5, %c0_6], %20 {strides = array<i32>} : memref<32x512xbf16, #tpu.memory_space<vmem>>, vector<32x512xbf16>,
    return
  }
  func.func @transform_0(%arg0: i32) -> (i32, i32) {
    %c0_i32 = arith.constant 0 : i32
    %c0_i32_0 = arith.constant 0 : i32
    return %arg0, %c0_i32 : i32, i32
  }
  func.func @transform_1(%arg0: i32) -> (i32, i32) {
    %c0_i32 = arith.constant 0 : i32
    %c0_i32_0 = arith.constant 0 : i32
    return %arg0, %c0_i32 : i32, i32
  }
  func.func @transform_2(%arg0: i32) -> (i32, i32) {
    %c0_i32 = arith.constant 0 : i32
    %c0_i32_0 = arith.constant 0 : i32
    %c0_i32_1 = arith.constant 0 : i32
    return %c0_i32, %c0_i32_0 : i32, i32
  }
  func.func @transform_3(%arg0: i32) -> (i32, i32) {
    %c0_i32 = arith.constant 0 : i32
    %c0_i32_0 = arith.constant 0 : i32
    return %arg0, %c0_i32 : i32, i32
  }
}

module attributes {stable_mosaic.version = 11 : i64} {
  func.func @_gemm_stats_kernel(%arg0: i32, %arg1: memref<128x288xbf16, #tpu.memory_space<vmem>>, %arg2: memref<288x64xbf16, #tpu.memory_space<vmem>>, %arg3: memref<128x64xbf16, #tpu.memory_space<vmem>>, %arg4: memref<1x1x64xf32, #tpu.memory_space<vmem>>, %arg5: memref<1x1x64xf32, #tpu.memory_space<vmem>>) attributes {dimension_semantics = [#tpu.dimension_semantics<parallel>], iteration_bounds = array<i64: 1>, scalar_prefetch = 0 : i64, scratch_operands = 0 : i64, tpu.core_type = #tpu.core_type<tc>, window_params = [{transform_indices = @transform_0, window_bounds = array<i64: 128, 288>}, {pipeline_mode = #tpu.pipeline_mode<synchronous>, transform_indices = @transform_1, window_bounds = array<i64: 288, 64>}, {transform_indices = @transform_2, window_bounds = array<i64: 128, 64>}, {transform_indices = @transform_3, window_bounds = array<i64: 1, 1, 64>}, {transform_indices = @transform_4, window_bounds = array<i64: 1, 1, 64>}]} {
    %c0 = arith.constant 0 : index
    %c0_0 = arith.constant 0 : index
    %0 = vector.load %arg1[%c0, %c0_0] : memref<128x288xbf16, #tpu.memory_space<vmem>>, vector<128x288xbf16>
    %c0_1 = arith.constant 0 : index
    %c0_2 = arith.constant 0 : index
    %1 = vector.load %arg2[%c0_1, %c0_2] : memref<288x64xbf16, #tpu.memory_space<vmem>>, vector<288x64xbf16>
    %cst = arith.constant dense<0.000000e+00> : vector<128x64xf32>
    %2 = tpu.matmul %0, %1, %cst {dimension_numbers = #tpu.dot_dimension_numbers<[1], [0], [0], [1], [0, 0, 1, 1], [], []>} : vector<128x288xbf16>, vector<288x64xbf16>, vector<128x64xf32> -> vector<128x64xf32>
    %3 = arith.truncf %2 : vector<128x64xf32> to vector<128x64xbf16>
    %c0_3 = arith.constant 0 : index
    %c0_4 = arith.constant 0 : index
    %4 = vector.load %arg3[%c0_3, %c0_4] : memref<128x64xbf16, #tpu.memory_space<vmem>>, vector<128x64xbf16>
    tpu.vector_store %arg3[%c0_3, %c0_4], %3 {strides = array<i32>} : memref<128x64xbf16, #tpu.memory_space<vmem>>, vector<128x64xbf16>,
    %cst_5 = arith.constant dense<0.000000e+00> : vector<64xf32>
    %5 = vector.multi_reduction <add>, %2, %cst_5 [0] : vector<128x64xf32> to vector<64xf32>
    %6 = vector.shape_cast %5 : vector<64xf32> to vector<1x64xf32>
    %7 = vector.shape_cast %6 : vector<1x64xf32> to vector<1x1x64xf32>
    %c0_6 = arith.constant 0 : index
    %c0_7 = arith.constant 0 : index
    %c0_8 = arith.constant 0 : index
    %8 = vector.load %arg4[%c0_6, %c0_7, %c0_8] : memref<1x1x64xf32, #tpu.memory_space<vmem>>, vector<1x1x64xf32>
    tpu.vector_store %arg4[%c0_6, %c0_7, %c0_8], %7 {strides = array<i32>} : memref<1x1x64xf32, #tpu.memory_space<vmem>>, vector<1x1x64xf32>,
    %9 = arith.mulf %2, %2 : vector<128x64xf32>
    %cst_9 = arith.constant dense<0.000000e+00> : vector<64xf32>
    %10 = vector.multi_reduction <add>, %9, %cst_9 [0] : vector<128x64xf32> to vector<64xf32>
    %11 = vector.shape_cast %10 : vector<64xf32> to vector<1x64xf32>
    %12 = vector.shape_cast %11 : vector<1x64xf32> to vector<1x1x64xf32>
    %c0_10 = arith.constant 0 : index
    %c0_11 = arith.constant 0 : index
    %c0_12 = arith.constant 0 : index
    %13 = vector.load %arg5[%c0_10, %c0_11, %c0_12] : memref<1x1x64xf32, #tpu.memory_space<vmem>>, vector<1x1x64xf32>
    tpu.vector_store %arg5[%c0_10, %c0_11, %c0_12], %12 {strides = array<i32>} : memref<1x1x64xf32, #tpu.memory_space<vmem>>, vector<1x1x64xf32>,
    return
  }
  func.func @transform_0(%arg0: i32) -> (i32, i32) {
    %c0_i32 = arith.constant 0 : i32
    %c0_i32_0 = arith.constant 0 : i32
    return %arg0, %c0_i32 : i32, i32
  }
  func.func @transform_1(%arg0: i32) -> (i32, i32) {
    %c0_i32 = arith.constant 0 : i32
    %c0_i32_0 = arith.constant 0 : i32
    %c0_i32_1 = arith.constant 0 : i32
    return %c0_i32, %c0_i32_0 : i32, i32
  }
  func.func @transform_2(%arg0: i32) -> (i32, i32) {
    %c0_i32 = arith.constant 0 : i32
    %c0_i32_0 = arith.constant 0 : i32
    return %arg0, %c0_i32 : i32, i32
  }
  func.func @transform_3(%arg0: i32) -> (i32, i32, i32) {
    %c0_i32 = arith.constant 0 : i32
    %c0_i32_0 = arith.constant 0 : i32
    %c0_i32_1 = arith.constant 0 : i32
    return %arg0, %c0_i32, %c0_i32_0 : i32, i32, i32
  }
  func.func @transform_4(%arg0: i32) -> (i32, i32, i32) {
    %c0_i32 = arith.constant 0 : i32
    %c0_i32_0 = arith.constant 0 : i32
    %c0_i32_1 = arith.constant 0 : i32
    return %arg0, %c0_i32, %c0_i32_0 : i32, i32, i32
  }
}

module attributes {stable_mosaic.version = 11 : i64} {
  func.func @_conv3x3_kernel(%arg0: i32, %arg1: memref<1x10x10x64xbf16, #tpu.memory_space<vmem>>, %arg2: memref<576x64xbf16, #tpu.memory_space<vmem>>, %arg3: memref<1x8x8x64xbf16, #tpu.memory_space<vmem>>, %arg4: memref<1x1x64xf32, #tpu.memory_space<vmem>>, %arg5: memref<1x1x64xf32, #tpu.memory_space<vmem>>) attributes {dimension_semantics = [#tpu.dimension_semantics<parallel>], iteration_bounds = array<i64: 2>, scalar_prefetch = 0 : i64, scratch_operands = 0 : i64, tpu.core_type = #tpu.core_type<tc>, window_params = [{transform_indices = @transform_0, window_bounds = array<i64: 1, 10, 10, 64>}, {pipeline_mode = #tpu.pipeline_mode<synchronous>, transform_indices = @transform_1, window_bounds = array<i64: 576, 64>}, {transform_indices = @transform_2, window_bounds = array<i64: 1, 8, 8, 64>}, {transform_indices = @transform_3, window_bounds = array<i64: 1, 1, 64>}, {transform_indices = @transform_4, window_bounds = array<i64: 1, 1, 64>}]} {
    %c0 = arith.constant 0 : index
    %c0_0 = arith.constant 0 : index
    %c0_1 = arith.constant 0 : index
    %c0_2 = arith.constant 0 : index
    %0 = vector.load %arg1[%c0, %c0_0, %c0_1, %c0_2] : memref<1x10x10x64xbf16, #tpu.memory_space<vmem>>, vector<1x10x10x64xbf16>
    %1 = vector.shape_cast %0 : vector<1x10x10x64xbf16> to vector<10x10x64xbf16>
    %2 = vector.extract_strided_slice %1 {offsets = [0, 0, 0], sizes = [8, 8, 64], strides = [1, 1, 1]} : vector<10x10x64xbf16> to vector<8x8x64xbf16>
    %3 = vector.shape_cast %2 : vector<8x8x64xbf16> to vector<64x64xbf16>
    %c0_3 = arith.constant 0 : index
    %c0_4 = arith.constant 0 : index
    %4 = vector.load %arg2[%c0_3, %c0_4] : memref<576x64xbf16, #tpu.memory_space<vmem>>, vector<64x64xbf16>
    %cst = arith.constant dense<0.000000e+00> : vector<64x64xf32>
    %5 = tpu.matmul %3, %4, %cst {dimension_numbers = #tpu.dot_dimension_numbers<[1], [0], [0], [1], [0, 0, 1, 1], [], []>} : vector<64x64xbf16>, vector<64x64xbf16>, vector<64x64xf32> -> vector<64x64xf32>
    %6 = vector.extract_strided_slice %1 {offsets = [0, 1, 0], sizes = [8, 8, 64], strides = [1, 1, 1]} : vector<10x10x64xbf16> to vector<8x8x64xbf16>
    %7 = vector.shape_cast %6 : vector<8x8x64xbf16> to vector<64x64xbf16>
    %c64 = arith.constant 64 : index
    %c0_5 = arith.constant 0 : index
    %8 = vector.load %arg2[%c64, %c0_5] : memref<576x64xbf16, #tpu.memory_space<vmem>>, vector<64x64xbf16>
    %cst_6 = arith.constant dense<0.000000e+00> : vector<64x64xf32>
    %9 = tpu.matmul %7, %8, %cst_6 {dimension_numbers = #tpu.dot_dimension_numbers<[1], [0], [0], [1], [0, 0, 1, 1], [], []>} : vector<64x64xbf16>, vector<64x64xbf16>, vector<64x64xf32> -> vector<64x64xf32>
    %10 = arith.addf %5, %9 : vector<64x64xf32>
    %11 = vector.extract_strided_slice %1 {offsets = [0, 2, 0], sizes = [8, 8, 64], strides = [1, 1, 1]} : vector<10x10x64xbf16> to vector<8x8x64xbf16>
    %12 = vector.shape_cast %11 : vector<8x8x64xbf16> to vector<64x64xbf16>
    %c128 = arith.constant 128 : index
    %c0_7 = arith.constant 0 : index
    %13 = vector.load %arg2[%c128, %c0_7] : memref<576x64xbf16, #tpu.memory_space<vmem>>, vector<64x64xbf16>
    %cst_8 = arith.constant dense<0.000000e+00> : vector<64x64xf32>
    %14 = tpu.matmul %12, %13, %cst_8 {dimension_numbers = #tpu.dot_dimension_numbers<[1], [0], [0], [1], [0, 0, 1, 1], [], []>} : vector<64x64xbf16>, vector<64x64xbf16>, vector<64x64xf32> -> vector<64x64xf32>
    %15 = arith.addf %10, %14 : vector<64x64xf32>
    %16 = vector.extract_strided_slice %1 {offsets = [1, 0, 0], sizes = [8, 8, 64], strides = [1, 1, 1]} : vector<10x10x64xbf16> to vector<8x8x64xbf16>
    %17 = vector.shape_cast %16 : vector<8x8x64xbf16> to vector<64x64xbf16>
    %c192 = arith.constant 192 : index
    %c0_9 = arith.constant 0 : index
    %18 = vector.load %arg2[%c192, %c0_9] : memref<576x64xbf16, #tpu.memory_space<vmem>>, vector<64x64xbf16>
    %cst_10 = arith.constant dense<0.000000e+00> : vector<64x64xf32>
    %19 = tpu.matmul %17, %18, %cst_10 {dimension_numbers = #tpu.dot_dimension_numbers<[1], [0], [0], [1], [0, 0, 1, 1], [], []>} : vector<64x64xbf16>, vector<64x64xbf16>, vector<64x64xf32> -> vector<64x64xf32>
    %20 = arith.addf %15, %19 : vector<64x64xf32>
    %21 = vector.extract_strided_slice %1 {offsets = [1, 1, 0], sizes = [8, 8, 64], strides = [1, 1, 1]} : vector<10x10x64xbf16> to vector<8x8x64xbf16>
    %22 = vector.shape_cast %21 : vector<8x8x64xbf16> to vector<64x64xbf16>
    %c256 = arith.constant 256 : index
    %c0_11 = arith.constant 0 : index
    %23 = vector.load %arg2[%c256, %c0_11] : memref<576x64xbf16, #tpu.memory_space<vmem>>, vector<64x64xbf16>
    %cst_12 = arith.constant dense<0.000000e+00> : vector<64x64xf32>
    %24 = tpu.matmul %22, %23, %cst_12 {dimension_numbers = #tpu.dot_dimension_numbers<[1], [0], [0], [1], [0, 0, 1, 1], [], []>} : vector<64x64xbf16>, vector<64x64xbf16>, vector<64x64xf32> -> vector<64x64xf32>
    %25 = arith.addf %20, %24 : vector<64x64xf32>
    %26 = vector.extract_strided_slice %1 {offsets = [1, 2, 0], sizes = [8, 8, 64], strides = [1, 1, 1]} : vector<10x10x64xbf16> to vector<8x8x64xbf16>
    %27 = vector.shape_cast %26 : vector<8x8x64xbf16> to vector<64x64xbf16>
    %c320 = arith.constant 320 : index
    %c0_13 = arith.constant 0 : index
    %28 = vector.load %arg2[%c320, %c0_13] : memref<576x64xbf16, #tpu.memory_space<vmem>>, vector<64x64xbf16>
    %cst_14 = arith.constant dense<0.000000e+00> : vector<64x64xf32>
    %29 = tpu.matmul %27, %28, %cst_14 {dimension_numbers = #tpu.dot_dimension_numbers<[1], [0], [0], [1], [0, 0, 1, 1], [], []>} : vector<64x64xbf16>, vector<64x64xbf16>, vector<64x64xf32> -> vector<64x64xf32>
    %30 = arith.addf %25, %29 : vector<64x64xf32>
    %31 = vector.extract_strided_slice %1 {offsets = [2, 0, 0], sizes = [8, 8, 64], strides = [1, 1, 1]} : vector<10x10x64xbf16> to vector<8x8x64xbf16>
    %32 = vector.shape_cast %31 : vector<8x8x64xbf16> to vector<64x64xbf16>
    %c384 = arith.constant 384 : index
    %c0_15 = arith.constant 0 : index
    %33 = vector.load %arg2[%c384, %c0_15] : memref<576x64xbf16, #tpu.memory_space<vmem>>, vector<64x64xbf16>
    %cst_16 = arith.constant dense<0.000000e+00> : vector<64x64xf32>
    %34 = tpu.matmul %32, %33, %cst_16 {dimension_numbers = #tpu.dot_dimension_numbers<[1], [0], [0], [1], [0, 0, 1, 1], [], []>} : vector<64x64xbf16>, vector<64x64xbf16>, vector<64x64xf32> -> vector<64x64xf32>
    %35 = arith.addf %30, %34 : vector<64x64xf32>
    %36 = vector.extract_strided_slice %1 {offsets = [2, 1, 0], sizes = [8, 8, 64], strides = [1, 1, 1]} : vector<10x10x64xbf16> to vector<8x8x64xbf16>
    %37 = vector.shape_cast %36 : vector<8x8x64xbf16> to vector<64x64xbf16>
    %c448 = arith.constant 448 : index
    %c0_17 = arith.constant 0 : index
    %38 = vector.load %arg2[%c448, %c0_17] : memref<576x64xbf16, #tpu.memory_space<vmem>>, vector<64x64xbf16>
    %cst_18 = arith.constant dense<0.000000e+00> : vector<64x64xf32>
    %39 = tpu.matmul %37, %38, %cst_18 {dimension_numbers = #tpu.dot_dimension_numbers<[1], [0], [0], [1], [0, 0, 1, 1], [], []>} : vector<64x64xbf16>, vector<64x64xbf16>, vector<64x64xf32> -> vector<64x64xf32>
    %40 = arith.addf %35, %39 : vector<64x64xf32>
    %41 = vector.extract_strided_slice %1 {offsets = [2, 2, 0], sizes = [8, 8, 64], strides = [1, 1, 1]} : vector<10x10x64xbf16> to vector<8x8x64xbf16>
    %42 = vector.shape_cast %41 : vector<8x8x64xbf16> to vector<64x64xbf16>
    %c512 = arith.constant 512 : index
    %c0_19 = arith.constant 0 : index
    %43 = vector.load %arg2[%c512, %c0_19] : memref<576x64xbf16, #tpu.memory_space<vmem>>, vector<64x64xbf16>
    %cst_20 = arith.constant dense<0.000000e+00> : vector<64x64xf32>
    %44 = tpu.matmul %42, %43, %cst_20 {dimension_numbers = #tpu.dot_dimension_numbers<[1], [0], [0], [1], [0, 0, 1, 1], [], []>} : vector<64x64xbf16>, vector<64x64xbf16>, vector<64x64xf32> -> vector<64x64xf32>
    %45 = arith.addf %40, %44 : vector<64x64xf32>
    %46 = vector.shape_cast %45 : vector<64x64xf32> to vector<1x8x8x64xf32>
    %47 = arith.truncf %46 : vector<1x8x8x64xf32> to vector<1x8x8x64xbf16>
    %c0_21 = arith.constant 0 : index
    %c0_22 = arith.constant 0 : index
    %c0_23 = arith.constant 0 : index
    %c0_24 = arith.constant 0 : index
    %48 = vector.load %arg3[%c0_21, %c0_22, %c0_23, %c0_24] : memref<1x8x8x64xbf16, #tpu.memory_space<vmem>>, vector<1x8x8x64xbf16>
    tpu.vector_store %arg3[%c0_21, %c0_22, %c0_23, %c0_24], %47 {strides = array<i32>} : memref<1x8x8x64xbf16, #tpu.memory_space<vmem>>, vector<1x8x8x64xbf16>,
    %cst_25 = arith.constant dense<0.000000e+00> : vector<64xf32>
    %49 = vector.multi_reduction <add>, %45, %cst_25 [0] : vector<64x64xf32> to vector<64xf32>
    %50 = vector.shape_cast %49 : vector<64xf32> to vector<1x64xf32>
    %51 = vector.shape_cast %50 : vector<1x64xf32> to vector<1x1x64xf32>
    %c0_26 = arith.constant 0 : index
    %c0_27 = arith.constant 0 : index
    %c0_28 = arith.constant 0 : index
    %52 = vector.load %arg4[%c0_26, %c0_27, %c0_28] : memref<1x1x64xf32, #tpu.memory_space<vmem>>, vector<1x1x64xf32>
    tpu.vector_store %arg4[%c0_26, %c0_27, %c0_28], %51 {strides = array<i32>} : memref<1x1x64xf32, #tpu.memory_space<vmem>>, vector<1x1x64xf32>,
    %53 = arith.mulf %45, %45 : vector<64x64xf32>
    %cst_29 = arith.constant dense<0.000000e+00> : vector<64xf32>
    %54 = vector.multi_reduction <add>, %53, %cst_29 [0] : vector<64x64xf32> to vector<64xf32>
    %55 = vector.shape_cast %54 : vector<64xf32> to vector<1x64xf32>
    %56 = vector.shape_cast %55 : vector<1x64xf32> to vector<1x1x64xf32>
    %c0_30 = arith.constant 0 : index
    %c0_31 = arith.constant 0 : index
    %c0_32 = arith.constant 0 : index
    %57 = vector.load %arg5[%c0_30, %c0_31, %c0_32] : memref<1x1x64xf32, #tpu.memory_space<vmem>>, vector<1x1x64xf32>
    tpu.vector_store %arg5[%c0_30, %c0_31, %c0_32], %56 {strides = array<i32>} : memref<1x1x64xf32, #tpu.memory_space<vmem>>, vector<1x1x64xf32>,
    return
  }
  func.func @transform_0(%arg0: i32) -> (i32, i32, i32, i32) {
    %c0_i32 = arith.constant 0 : i32
    %c0_i32_0 = arith.constant 0 : i32
    %c0_i32_1 = arith.constant 0 : i32
    %c0_i32_2 = arith.constant 0 : i32
    return %arg0, %c0_i32, %c0_i32_0, %c0_i32_1 : i32, i32, i32, i32
  }
  func.func @transform_1(%arg0: i32) -> (i32, i32) {
    %c0_i32 = arith.constant 0 : i32
    %c0_i32_0 = arith.constant 0 : i32
    %c0_i32_1 = arith.constant 0 : i32
    return %c0_i32, %c0_i32_0 : i32, i32
  }
  func.func @transform_2(%arg0: i32) -> (i32, i32, i32, i32) {
    %c0_i32 = arith.constant 0 : i32
    %c0_i32_0 = arith.constant 0 : i32
    %c0_i32_1 = arith.constant 0 : i32
    %c0_i32_2 = arith.constant 0 : i32
    return %arg0, %c0_i32, %c0_i32_0, %c0_i32_1 : i32, i32, i32, i32
  }
  func.func @transform_3(%arg0: i32) -> (i32, i32, i32) {
    %c0_i32 = arith.constant 0 : i32
    %c0_i32_0 = arith.constant 0 : i32
    %c0_i32_1 = arith.constant 0 : i32
    return %arg0, %c0_i32, %c0_i32_0 : i32, i32, i32
  }
  func.func @transform_4(%arg0: i32) -> (i32, i32, i32) {
    %c0_i32 = arith.constant 0 : i32
    %c0_i32_0 = arith.constant 0 : i32
    %c0_i32_1 = arith.constant 0 : i32
    return %arg0, %c0_i32, %c0_i32_0 : i32, i32, i32
  }
}

module attributes {stable_mosaic.version = 11 : i64} {
  func.func @_combine_kernel(%arg0: i32, %arg1: memref<16x512xbf16, #tpu.memory_space<vmem>>, %arg2: memref<2x512xf32, #tpu.memory_space<vmem>>, %arg3: memref<16x512xbf16, #tpu.memory_space<vmem>>) attributes {dimension_semantics = [#tpu.dimension_semantics<parallel>], iteration_bounds = array<i64: 1>, scalar_prefetch = 0 : i64, scratch_operands = 0 : i64, tpu.core_type = #tpu.core_type<tc>, window_params = [{transform_indices = @transform_0, window_bounds = array<i64: 16, 512>}, {pipeline_mode = #tpu.pipeline_mode<synchronous>, transform_indices = @transform_1, window_bounds = array<i64: 2, 512>}, {transform_indices = @transform_2, window_bounds = array<i64: 16, 512>}]} {
    %c0 = arith.constant 0 : index
    %c0_0 = arith.constant 0 : index
    %0 = vector.load %arg2[%c0, %c0_0] : memref<2x512xf32, #tpu.memory_space<vmem>>, vector<2x512xf32>
    %c0_1 = arith.constant 0 : index
    %c0_2 = arith.constant 0 : index
    %1 = vector.load %arg1[%c0_1, %c0_2] : memref<16x512xbf16, #tpu.memory_space<vmem>>, vector<16x512xbf16>
    %2 = arith.extf %1 : vector<16x512xbf16> to vector<16x512xf32>
    %3 = vector.extract_strided_slice %0 {offsets = [0, 0], sizes = [1, 512], strides = [1, 1]} : vector<2x512xf32> to vector<1x512xf32>
    %4 = vector.broadcast %3 : vector<1x512xf32> to vector<16x512xf32>
    %5 = arith.mulf %2, %4 : vector<16x512xf32>
    %6 = vector.extract_strided_slice %0 {offsets = [1, 0], sizes = [1, 512], strides = [1, 1]} : vector<2x512xf32> to vector<1x512xf32>
    %7 = vector.broadcast %6 : vector<1x512xf32> to vector<16x512xf32>
    %8 = arith.addf %5, %7 : vector<16x512xf32>
    %cst = arith.constant 0.000000e+00 : f32
    %9 = vector.broadcast %cst : f32 to vector<16x512xf32>
    %10 = arith.maximumf %8, %9 : vector<16x512xf32>
    %11 = arith.truncf %10 : vector<16x512xf32> to vector<16x512xbf16>
    %c0_3 = arith.constant 0 : index
    %c0_4 = arith.constant 0 : index
    %12 = vector.load %arg3[%c0_3, %c0_4] : memref<16x512xbf16, #tpu.memory_space<vmem>>, vector<16x512xbf16>
    tpu.vector_store %arg3[%c0_3, %c0_4], %11 {strides = array<i32>} : memref<16x512xbf16, #tpu.memory_space<vmem>>, vector<16x512xbf16>,
    return
  }
  func.func @transform_0(%arg0: i32) -> (i32, i32) {
    %c0_i32 = arith.constant 0 : i32
    %c0_i32_0 = arith.constant 0 : i32
    return %arg0, %c0_i32 : i32, i32
  }
  func.func @transform_1(%arg0: i32) -> (i32, i32) {
    %c0_i32 = arith.constant 0 : i32
    %c0_i32_0 = arith.constant 0 : i32
    %c0_i32_1 = arith.constant 0 : i32
    return %c0_i32, %c0_i32_0 : i32, i32
  }
  func.func @transform_2(%arg0: i32) -> (i32, i32) {
    %c0_i32 = arith.constant 0 : i32
    %c0_i32_0 = arith.constant 0 : i32
    return %arg0, %c0_i32 : i32, i32
  }
}

module attributes {stable_mosaic.version = 11 : i64} {
  func.func @_combine_kernel(%arg0: i32, %arg1: memref<16x512xbf16, #tpu.memory_space<vmem>>, %arg2: memref<16x512xbf16, #tpu.memory_space<vmem>>, %arg3: memref<4x512xf32, #tpu.memory_space<vmem>>, %arg4: memref<16x512xbf16, #tpu.memory_space<vmem>>) attributes {dimension_semantics = [#tpu.dimension_semantics<parallel>], iteration_bounds = array<i64: 1>, scalar_prefetch = 0 : i64, scratch_operands = 0 : i64, tpu.core_type = #tpu.core_type<tc>, window_params = [{transform_indices = @transform_0, window_bounds = array<i64: 16, 512>}, {transform_indices = @transform_1, window_bounds = array<i64: 16, 512>}, {pipeline_mode = #tpu.pipeline_mode<synchronous>, transform_indices = @transform_2, window_bounds = array<i64: 4, 512>}, {transform_indices = @transform_3, window_bounds = array<i64: 16, 512>}]} {
    %c0 = arith.constant 0 : index
    %c0_0 = arith.constant 0 : index
    %0 = vector.load %arg3[%c0, %c0_0] : memref<4x512xf32, #tpu.memory_space<vmem>>, vector<4x512xf32>
    %c0_1 = arith.constant 0 : index
    %c0_2 = arith.constant 0 : index
    %1 = vector.load %arg1[%c0_1, %c0_2] : memref<16x512xbf16, #tpu.memory_space<vmem>>, vector<16x512xbf16>
    %2 = arith.extf %1 : vector<16x512xbf16> to vector<16x512xf32>
    %3 = vector.extract_strided_slice %0 {offsets = [0, 0], sizes = [1, 512], strides = [1, 1]} : vector<4x512xf32> to vector<1x512xf32>
    %4 = vector.broadcast %3 : vector<1x512xf32> to vector<16x512xf32>
    %5 = arith.mulf %2, %4 : vector<16x512xf32>
    %6 = vector.extract_strided_slice %0 {offsets = [2, 0], sizes = [1, 512], strides = [1, 1]} : vector<4x512xf32> to vector<1x512xf32>
    %7 = vector.broadcast %6 : vector<1x512xf32> to vector<16x512xf32>
    %8 = arith.addf %5, %7 : vector<16x512xf32>
    %c0_3 = arith.constant 0 : index
    %c0_4 = arith.constant 0 : index
    %9 = vector.load %arg2[%c0_3, %c0_4] : memref<16x512xbf16, #tpu.memory_space<vmem>>, vector<16x512xbf16>
    %10 = arith.extf %9 : vector<16x512xbf16> to vector<16x512xf32>
    %11 = vector.extract_strided_slice %0 {offsets = [1, 0], sizes = [1, 512], strides = [1, 1]} : vector<4x512xf32> to vector<1x512xf32>
    %12 = vector.broadcast %11 : vector<1x512xf32> to vector<16x512xf32>
    %13 = arith.mulf %10, %12 : vector<16x512xf32>
    %14 = arith.addf %8, %13 : vector<16x512xf32>
    %15 = vector.extract_strided_slice %0 {offsets = [3, 0], sizes = [1, 512], strides = [1, 1]} : vector<4x512xf32> to vector<1x512xf32>
    %16 = vector.broadcast %15 : vector<1x512xf32> to vector<16x512xf32>
    %17 = arith.addf %14, %16 : vector<16x512xf32>
    %cst = arith.constant 0.000000e+00 : f32
    %18 = vector.broadcast %cst : f32 to vector<16x512xf32>
    %19 = arith.maximumf %17, %18 : vector<16x512xf32>
    %20 = arith.truncf %19 : vector<16x512xf32> to vector<16x512xbf16>
    %c0_5 = arith.constant 0 : index
    %c0_6 = arith.constant 0 : index
    %21 = vector.load %arg4[%c0_5, %c0_6] : memref<16x512xbf16, #tpu.memory_space<vmem>>, vector<16x512xbf16>
    tpu.vector_store %arg4[%c0_5, %c0_6], %20 {strides = array<i32>} : memref<16x512xbf16, #tpu.memory_space<vmem>>, vector<16x512xbf16>,
    return
  }
  func.func @transform_0(%arg0: i32) -> (i32, i32) {
    %c0_i32 = arith.constant 0 : i32
    %c0_i32_0 = arith.constant 0 : i32
    return %arg0, %c0_i32 : i32, i32
  }
  func.func @transform_1(%arg0: i32) -> (i32, i32) {
    %c0_i32 = arith.constant 0 : i32
    %c0_i32_0 = arith.constant 0 : i32
    return %arg0, %c0_i32 : i32, i32
  }
  func.func @transform_2(%arg0: i32) -> (i32, i32) {
    %c0_i32 = arith.constant 0 : i32
    %c0_i32_0 = arith.constant 0 : i32
    %c0_i32_1 = arith.constant 0 : i32
    return %c0_i32, %c0_i32_0 : i32, i32
  }
  func.func @transform_3(%arg0: i32) -> (i32, i32) {
    %c0_i32 = arith.constant 0 : i32
    %c0_i32_0 = arith.constant 0 : i32
    return %arg0, %c0_i32 : i32, i32
  }
}

module attributes {stable_mosaic.version = 11 : i64} {
  func.func @_gemm_stats_kernel(%arg0: i32, %arg1: memref<128x64xbf16, #tpu.memory_space<vmem>>, %arg2: memref<64x32xbf16, #tpu.memory_space<vmem>>, %arg3: memref<128x32xbf16, #tpu.memory_space<vmem>>, %arg4: memref<1x1x32xf32, #tpu.memory_space<vmem>>, %arg5: memref<1x1x32xf32, #tpu.memory_space<vmem>>) attributes {dimension_semantics = [#tpu.dimension_semantics<parallel>], iteration_bounds = array<i64: 1>, scalar_prefetch = 0 : i64, scratch_operands = 0 : i64, tpu.core_type = #tpu.core_type<tc>, window_params = [{transform_indices = @transform_0, window_bounds = array<i64: 128, 64>}, {pipeline_mode = #tpu.pipeline_mode<synchronous>, transform_indices = @transform_1, window_bounds = array<i64: 64, 32>}, {transform_indices = @transform_2, window_bounds = array<i64: 128, 32>}, {transform_indices = @transform_3, window_bounds = array<i64: 1, 1, 32>}, {transform_indices = @transform_4, window_bounds = array<i64: 1, 1, 32>}]} {
    %c0 = arith.constant 0 : index
    %c0_0 = arith.constant 0 : index
    %0 = vector.load %arg1[%c0, %c0_0] : memref<128x64xbf16, #tpu.memory_space<vmem>>, vector<128x64xbf16>
    %c0_1 = arith.constant 0 : index
    %c0_2 = arith.constant 0 : index
    %1 = vector.load %arg2[%c0_1, %c0_2] : memref<64x32xbf16, #tpu.memory_space<vmem>>, vector<64x32xbf16>
    %cst = arith.constant dense<0.000000e+00> : vector<128x32xf32>
    %2 = tpu.matmul %0, %1, %cst {dimension_numbers = #tpu.dot_dimension_numbers<[1], [0], [0], [1], [0, 0, 1, 1], [], []>} : vector<128x64xbf16>, vector<64x32xbf16>, vector<128x32xf32> -> vector<128x32xf32>
    %3 = arith.truncf %2 : vector<128x32xf32> to vector<128x32xbf16>
    %c0_3 = arith.constant 0 : index
    %c0_4 = arith.constant 0 : index
    %4 = vector.load %arg3[%c0_3, %c0_4] : memref<128x32xbf16, #tpu.memory_space<vmem>>, vector<128x32xbf16>
    tpu.vector_store %arg3[%c0_3, %c0_4], %3 {strides = array<i32>} : memref<128x32xbf16, #tpu.memory_space<vmem>>, vector<128x32xbf16>,
    %cst_5 = arith.constant dense<0.000000e+00> : vector<32xf32>
    %5 = vector.multi_reduction <add>, %2, %cst_5 [0] : vector<128x32xf32> to vector<32xf32>
    %6 = vector.shape_cast %5 : vector<32xf32> to vector<1x32xf32>
    %7 = vector.shape_cast %6 : vector<1x32xf32> to vector<1x1x32xf32>
    %c0_6 = arith.constant 0 : index
    %c0_7 = arith.constant 0 : index
    %c0_8 = arith.constant 0 : index
    %8 = vector.load %arg4[%c0_6, %c0_7, %c0_8] : memref<1x1x32xf32, #tpu.memory_space<vmem>>, vector<1x1x32xf32>
    tpu.vector_store %arg4[%c0_6, %c0_7, %c0_8], %7 {strides = array<i32>} : memref<1x1x32xf32, #tpu.memory_space<vmem>>, vector<1x1x32xf32>,
    %9 = arith.mulf %2, %2 : vector<128x32xf32>
    %cst_9 = arith.constant dense<0.000000e+00> : vector<32xf32>
    %10 = vector.multi_reduction <add>, %9, %cst_9 [0] : vector<128x32xf32> to vector<32xf32>
    %11 = vector.shape_cast %10 : vector<32xf32> to vector<1x32xf32>
    %12 = vector.shape_cast %11 : vector<1x32xf32> to vector<1x1x32xf32>
    %c0_10 = arith.constant 0 : index
    %c0_11 = arith.constant 0 : index
    %c0_12 = arith.constant 0 : index
    %13 = vector.load %arg5[%c0_10, %c0_11, %c0_12] : memref<1x1x32xf32, #tpu.memory_space<vmem>>, vector<1x1x32xf32>
    tpu.vector_store %arg5[%c0_10, %c0_11, %c0_12], %12 {strides = array<i32>} : memref<1x1x32xf32, #tpu.memory_space<vmem>>, vector<1x1x32xf32>,
    return
  }
  func.func @transform_0(%arg0: i32) -> (i32, i32) {
    %c0_i32 = arith.constant 0 : i32
    %c0_i32_0 = arith.constant 0 : i32
    return %arg0, %c0_i32 : i32, i32
  }
  func.func @transform_1(%arg0: i32) -> (i32, i32) {
    %c0_i32 = arith.constant 0 : i32
    %c0_i32_0 = arith.constant 0 : i32
    %c0_i32_1 = arith.constant 0 : i32
    return %c0_i32, %c0_i32_0 : i32, i32
  }
  func.func @transform_2(%arg0: i32) -> (i32, i32) {
    %c0_i32 = arith.constant 0 : i32
    %c0_i32_0 = arith.constant 0 : i32
    return %arg0, %c0_i32 : i32, i32
  }
  func.func @transform_3(%arg0: i32) -> (i32, i32, i32) {
    %c0_i32 = arith.constant 0 : i32
    %c0_i32_0 = arith.constant 0 : i32
    %c0_i32_1 = arith.constant 0 : i32
    return %arg0, %c0_i32, %c0_i32_0 : i32, i32, i32
  }
  func.func @transform_4(%arg0: i32) -> (i32, i32, i32) {
    %c0_i32 = arith.constant 0 : i32
    %c0_i32_0 = arith.constant 0 : i32
    %c0_i32_1 = arith.constant 0 : i32
    return %arg0, %c0_i32, %c0_i32_0 : i32, i32, i32
  }
}

</mosaic_0001>

<llo_original>
// kernel: tile.183
$region0: #{tile.183}
  #allocation0 [shape = 's32[1]{0}', space=sflag, size = 0x4, scoped, tag = 'scoped memory for tile.183']
  %s0 = inlined_call_operand.vmem [shape: f32[32], index: 0, kind: input, shape index: {}]
  %s1 = inlined_call_operand.vmem [shape: f32[16,32], index: 1, kind: output, shape index: {}]
  // Predicated region
  $region2: #{tile.183} parent=0 // pred_check
    _
  $region3: #{tile.183} parent=0 // pred_check_branch
    %3 = sbr.rel (0) target = $region5
  $region4: #{tile.183} parent=0 // pred_region
    _
  $region5: #{tile.183} parent=0 // pred_fallthru
    _
  %v4 = vld [vmem:[%s0] ss:$0 sm:$0xff]
  %5 = vst [vmem:[%s1] sm:$0xff] %v4
  %s6 = scalar_lea.vmem %s1, 8
  %7 = vst [vmem:[%s6] sm:$0xff] %v4

// kernel: tile.188
$region0: #{tile.188}
  %s0 = inlined_call_operand.vmem [shape: f32[16,32], index: 0, kind: input, shape index: {}]
  %s1 = inlined_call_operand.vmem [shape: f32[1,512], index: 1, kind: output, shape index: {}]
  $region1: #{tile.188} parent=0
    #allocation0 [shape = 'u8[16384]{0}', space=vmem, size = 0x4000, scoped, tag = 'scoped mem for output reshape']
    %v2 = vld [vmem:[%s0] ss:$4 sm:$0xf]
    %vm3 = vcmask 261120
    %4 = vst.msk [vmem:[#allocation0] ss:$8 sm:$0xf] %vm3, %v2
    %s5 = scalar_lea.vmem %s0, 3
    %v6 = vld [vmem:[%s5] ss:$4 sm:$0xf]
    %7 = vrot.lane.b32.xlu0 %v6, 96
    %v8 = vpop.permute.xlu0 %7
    %vm9 = vcmask 1048320
    %10 = vst.msk [vmem:[#allocation0] ss:$8 sm:$0xf] %vm9, %v8
    %s11 = scalar_lea.vmem %s0, 2
    %v12 = vld [vmem:[%s11] ss:$4 sm:$0xf]
    %13 = vrot.lane.b32.xlu0 %v12, 64
    %v14 = vpop.permute.xlu0 %13
    %vm15 = vcmask 785920
    %16 = vst.msk [vmem:[#allocation0] ss:$8 sm:$0xf] %vm15, %v14
    %s17 = scalar_lea.vmem %s0, 1
    %v18 = vld [vmem:[%s17] ss:$4 sm:$0xf]
    %19 = vrot.lane.b32.xlu0 %v18, 32
    %v20 = vpop.permute.xlu0 %19
    %vm21 = vcmask 523520
    %22 = vst.msk [vmem:[#allocation0] ss:$8 sm:$0xf] %vm21, %v20
    %s24 = sshll.u32 1, 1
    %s25 = ssub.s32 %s24, 1
    %v27 = vld [vmem:[#allocation0] sm:%s25]
    %s28 = sshll.u32 1, 1
    %s29 = ssub.s32 %s28, 1
    %30 = vst [vmem:[%s1] sm:%s29] %v27
    %s31 = scalar_lea.vmem [#allocation0], 8
    %v32 = vld [vmem:[%s31] sm:%s25]
    %s33 = sshll.u32 1, 1
    %s34 = ssub.s32 %s33, 1
    %s35 = scalar_lea.vmem %s1, 1
    %36 = vst [vmem:[%s35] sm:%s34] %v32
    %s37 = scalar_lea.vmem [#allocation0], 16
    %v38 = vld [vmem:[%s37] sm:%s25]
    %s39 = sshll.u32 1, 1
    %s40 = ssub.s32 %s39, 1
    %s41 = smul.addr 1, 2
    %s42 = scalar_lea.vmem %s1, %s41
    %43 = vst [vmem:[%s42] sm:%s40] %v38
    %s44 = scalar_lea.vmem [#allocation0], 24
    %v45 = vld [vmem:[%s44] sm:%s25]
    %s46 = sshll.u32 1, 1
    %s47 = ssub.s32 %s46, 1
    %s48 = smul.addr 1, 3
    %s49 = scalar_lea.vmem %s1, %s48
    %50 = vst [vmem:[%s49] sm:%s47] %v45

// kernel: fwd.37
$region0: #{fwd.37}
  #allocation0 [shape = 'u32[]', space=smem, size = 0x4, offset = 0x4, fixed_abs, tag = 'smem constant byte address 0x4 - core index']
  #allocation1 [shape = 'u32[144,128]{1,0:T(1,128)}', space=vmem, size = 0x12000, scoped, tag = 'internal scratch']
  %s0 = inlined_call_operand.vmem [shape: bf16[32,512], index: 0, kind: input, shape index: {}]
  %s1 = inlined_call_operand.vmem [shape: f32[2,512], index: 1, kind: input, shape index: {}]
  %s2 = inlined_call_operand.vmem [shape: bf16[32,512], index: 2, kind: output, shape index: {}]
  %s3 = sld [smem:[#allocation0]]
  $region18: #{fwd.37} parent=0
    _
  %s5 = ssub.s32 1, %s3
  %s6 = scalar_select 0, %s5, %s3
  // Predicated region
  $region2: #{fwd.37} parent=0 // pred_check
    _
  $region3: #{fwd.37} parent=0 // pred_check_branch
    %8 = sbr.rel (0) target = $region5
  $region4: #{fwd.37} parent=0 // pred_region
    _
  $region5: #{fwd.37} parent=0 // pred_fallthru
    _
  // Predicated region
  $region6: #{fwd.37} parent=0 // pred_check
    _
  $region7: #{fwd.37} parent=0 // pred_check_branch
    %10 = sbr.rel (0) target = $region9
  $region8: #{fwd.37} parent=0 // pred_region
    _
  $region9: #{fwd.37} parent=0 // pred_fallthru
    _
  %v11 = vld [vmem:[%s1] sm:$0xff]
  %v12 = vld [vmem:[%s0] sm:$0xff]
  %v13 = vld [vmem:[%s0 + $0x8] sm:$0xff]
  %v14 = vld [vmem:[%s0 + $0x10] sm:$0xff]
  %v15 = vld [vmem:[%s0 + $0x18] sm:$0xff]
  %v16 = vld [vmem:[%s0 + $0x20] sm:$0xff]
  %v17 = vld [vmem:[%s0 + $0x28] sm:$0xff]
  %v18 = vld [vmem:[%s0 + $0x30] sm:$0xff]
  %v19 = vld [vmem:[%s0 + $0x38] sm:$0xff]
  %v20 = vunpack.c.l.bf16 %v12
  %v21 = vunpack.c.h.bf16 %v12
  %v22 = vunpack.c.l.bf16 %v13
  %v23 = vunpack.c.h.bf16 %v13
  %v24 = vunpack.c.l.bf16 %v14
  %v25 = vunpack.c.h.bf16 %v14
  %v26 = vunpack.c.l.bf16 %v15
  %v27 = vunpack.c.h.bf16 %v15
  %v28 = vunpack.c.l.bf16 %v16
  %v29 = vunpack.c.h.bf16 %v16
  %v30 = vunpack.c.l.bf16 %v17
  %v31 = vunpack.c.h.bf16 %v17
  %v32 = vunpack.c.l.bf16 %v18
  %v33 = vunpack.c.h.bf16 %v18
  %v34 = vunpack.c.l.bf16 %v19
  %v35 = vunpack.c.h.bf16 %v19
  %v37 = vlaneseq
  %v38 = vshrl.u32 %v37, 7
  %v39 = vsub.s32 0, %v38
  %v40 = vrot.slane %v11, %v39
  %v41 = vlaneseq
  %v42 = vshrl.u32 %v41, 7
  %v43 = vsub.s32 2, %v42
  %v44 = vrot.slane %v11, %v43
  %v45 = vlaneseq
  %v46 = vshrl.u32 %v45, 7
  %v47 = vsub.s32 4, %v46
  %v48 = vrot.slane %v11, %v47
  %v49 = vlaneseq
  %v50 = vshrl.u32 %v49, 7
  %v51 = vsub.s32 6, %v50
  %v52 = vrot.slane %v11, %v51
  %v57 = vlaneseq
  %v58 = vshrl.u32 %v57, 7
  %v59 = vsub.s32 0, %v58
  %v60 = vrot.slane %v40, %v59
  %v61 = vlaneseq
  %v62 = vshrl.u32 %v61, 7
  %v63 = vsub.s32 0, %v62
  %v64 = vrot.slane %v44, %v63
  %v65 = vlaneseq
  %v66 = vshrl.u32 %v65, 7
  %v67 = vsub.s32 0, %v66
  %v68 = vrot.slane %v48, %v67
  %v69 = vlaneseq
  %v70 = vshrl.u32 %v69, 7
  %v71 = vsub.s32 0, %v70
  %v72 = vrot.slane %v52, %v71
  %v73 = vmul.f32 %v20, %v60
  %v74 = vmul.f32 %v21, %v64
  %v75 = vmul.f32 %v22, %v68
  %v76 = vmul.f32 %v23, %v72
  %v77 = vmul.f32 %v24, %v60
  %v78 = vmul.f32 %v25, %v64
  %v79 = vmul.f32 %v26, %v68
  %v80 = vmul.f32 %v27, %v72
  %v81 = vmul.f32 %v28, %v60
  %v82 = vmul.f32 %v29, %v64
  %v83 = vmul.f32 %v30, %v68
  %v84 = vmul.f32 %v31, %v72
  %v85 = vmul.f32 %v32, %v60
  %v86 = vmul.f32 %v33, %v64
  %v87 = vmul.f32 %v34, %v68
  %v88 = vmul.f32 %v35, %v72
  %v89 = vlaneseq
  %v90 = vshrl.u32 %v89, 7
  %v91 = vsub.s32 1, %v90
  %v92 = vrot.slane %v11, %v91
  %v93 = vlaneseq
  %v94 = vshrl.u32 %v93, 7
  %v95 = vsub.s32 3, %v94
  %v96 = vrot.slane %v11, %v95
  %v97 = vlaneseq
  %v98 = vshrl.u32 %v97, 7
  %v99 = vsub.s32 5, %v98
  %v100 = vrot.slane %v11, %v99
  %v101 = vlaneseq
  %v102 = vshrl.u32 %v101, 7
  %v103 = vsub.s32 7, %v102
  %v104 = vrot.slane %v11, %v103
  %v109 = vlaneseq
  %v110 = vshrl.u32 %v109, 7
  %v111 = vsub.s32 1, %v110
  %v112 = vrot.slane %v92, %v111
  %v113 = vlaneseq
  %v114 = vshrl.u32 %v113, 7
  %v115 = vsub.s32 1, %v114
  %v116 = vrot.slane %v96, %v115
  %v117 = vlaneseq
  %v118 = vshrl.u32 %v117, 7
  %v119 = vsub.s32 1, %v118
  %v120 = vrot.slane %v100, %v119
  %v121 = vlaneseq
  %v122 = vshrl.u32 %v121, 7
  %v123 = vsub.s32 1, %v122
  %v124 = vrot.slane %v104, %v123
  %v125 = vadd.f32 %v73, %v112
  %v126 = vadd.f32 %v74, %v116
  %v127 = vadd.f32 %v75, %v120
  %v128 = vadd.f32 %v76, %v124
  %v129 = vadd.f32 %v77, %v112
  %v130 = vadd.f32 %v78, %v116
  %v131 = vadd.f32 %v79, %v120
  %v132 = vadd.f32 %v80, %v124
  %v133 = vadd.f32 %v81, %v112
  %v134 = vadd.f32 %v82, %v116
  %v135 = vadd.f32 %v83, %v120
  %v136 = vadd.f32 %v84, %v124
  %v137 = vadd.f32 %v85, %v112
  %v138 = vadd.f32 %v86, %v116
  %v139 = vadd.f32 %v87, %v120
  %v140 = vadd.f32 %v88, %v124
  %v141 = vmax.f32 %v125, 0.0
  %v142 = vmax.f32 %v126, 0.0
  %v143 = vmax.f32 %v127, 0.0
  %v144 = vmax.f32 %v128, 0.0
  %v145 = vmax.f32 %v129, 0.0
  %v146 = vmax.f32 %v130, 0.0
  %v147 = vmax.f32 %v131, 0.0
  %v148 = vmax.f32 %v132, 0.0
  %v149 = vmax.f32 %v133, 0.0
  %v150 = vmax.f32 %v134, 0.0
  %v151 = vmax.f32 %v135, 0.0
  %v152 = vmax.f32 %v136, 0.0
  %v153 = vmax.f32 %v137, 0.0
  %v154 = vmax.f32 %v138, 0.0
  %v155 = vmax.f32 %v139, 0.0
  %v156 = vmax.f32 %v140, 0.0
  %v157 = vpack.c.bf16 %v145, %v141
  %v158 = vpack.c.bf16 %v146, %v142
  %v159 = vpack.c.bf16 %v147, %v143
  %v160 = vpack.c.bf16 %v148, %v144
  %v161 = vpack.c.bf16 %v153, %v149
  %v162 = vpack.c.bf16 %v154, %v150
  %v163 = vpack.c.bf16 %v155, %v151
  %v164 = vpack.c.bf16 %v156, %v152
  %v173 = vunpack.c.l.b16 %v157
  %v174 = vunpack.c.l.b16 %v158
  %v175 = vunpack.c.l.b16 %v159
  %v176 = vunpack.c.l.b16 %v160
  %v177 = vunpack.c.h.b16 %v157
  %v178 = vunpack.c.h.b16 %v158
  %v179 = vunpack.c.h.b16 %v159
  %v180 = vunpack.c.h.b16 %v160
  %v181 = vunpack.c.l.b16 %v161
  %v182 = vunpack.c.l.b16 %v162
  %v183 = vunpack.c.l.b16 %v163
  %v184 = vunpack.c.l.b16 %v164
  %v185 = vunpack.c.h.b16 %v161
  %v186 = vunpack.c.h.b16 %v162
  %v187 = vunpack.c.h.b16 %v163
  %v188 = vunpack.c.h.b16 %v164
  %v189 = vpack.c.b16 %v174, %v173
  %v190 = vpack.c.b16 %v176, %v175
  %v191 = vpack.c.b16 %v178, %v177
  %v192 = vpack.c.b16 %v180, %v179
  %v193 = vpack.c.b16 %v182, %v181
  %v194 = vpack.c.b16 %v184, %v183
  %v195 = vpack.c.b16 %v186, %v185
  %v196 = vpack.c.b16 %v188, %v187
  %205 = vst [vmem:[%s2] sm:$0xff] %v189
  %206 = vst [vmem:[%s2 + $0x8] sm:$0xff] %v190
  %207 = vst [vmem:[%s2 + $0x10] sm:$0xff] %v191
  %208 = vst [vmem:[%s2 + $0x18] sm:$0xff] %v192
  %209 = vst [vmem:[%s2 + $0x20] sm:$0xff] %v193
  %210 = vst [vmem:[%s2 + $0x28] sm:$0xff] %v194
  %211 = vst [vmem:[%s2 + $0x30] sm:$0xff] %v195
  %212 = vst [vmem:[%s2 + $0x38] sm:$0xff] %v196
  // Predicated region
  $region10: #{fwd.37} parent=0 // pred_check
    _
  $region11: #{fwd.37} parent=0 // pred_check_branch
    %214 = sbr.rel (0) target = $region13
  $region12: #{fwd.37} parent=0 // pred_region
    _
  $region13: #{fwd.37} parent=0 // pred_fallthru
    _
  // Predicated region
  $region14: #{fwd.37} parent=0 // pred_check
    _
  $region15: #{fwd.37} parent=0 // pred_check_branch
    %216 = sbr.rel (0) target = $region17
  $region16: #{fwd.37} parent=0 // pred_region
    _
  $region17: #{fwd.37} parent=0 // pred_fallthru
    _

// kernel: fwd.39
$region0: #{fwd.39}
  #allocation0 [shape = 'u32[]', space=smem, size = 0x4, offset = 0x4, fixed_abs, tag = 'smem constant byte address 0x4 - core index']
  #allocation1 [shape = 'u32[144,128]{1,0:T(1,128)}', space=vmem, size = 0x12000, scoped, tag = 'internal scratch']
  %s0 = inlined_call_operand.vmem [shape: bf16[32,512], index: 0, kind: input, shape index: {}]
  %s1 = inlined_call_operand.vmem [shape: bf16[32,512], index: 1, kind: input, shape index: {}]
  %s2 = inlined_call_operand.vmem [shape: f32[4,512], index: 2, kind: input, shape index: {}]
  %s3 = inlined_call_operand.vmem [shape: bf16[32,512], index: 3, kind: output, shape index: {}]
  %s4 = sld [smem:[#allocation0]]
  $region22: #{fwd.39} parent=0
    _
  %s6 = ssub.s32 1, %s4
  %s7 = scalar_select 0, %s6, %s4
  // Predicated region
  $region2: #{fwd.39} parent=0 // pred_check
    _
  $region3: #{fwd.39} parent=0 // pred_check_branch
    %9 = sbr.rel (0) target = $region5
  $region4: #{fwd.39} parent=0 // pred_region
    _
  $region5: #{fwd.39} parent=0 // pred_fallthru
    _
  // Predicated region
  $region6: #{fwd.39} parent=0 // pred_check
    _
  $region7: #{fwd.39} parent=0 // pred_check_branch
    %11 = sbr.rel (0) target = $region9
  $region8: #{fwd.39} parent=0 // pred_region
    _
  $region9: #{fwd.39} parent=0 // pred_fallthru
    _
  // Predicated region
  $region10: #{fwd.39} parent=0 // pred_check
    _
  $region11: #{fwd.39} parent=0 // pred_check_branch
    %13 = sbr.rel (0) target = $region13
  $region12: #{fwd.39} parent=0 // pred_region
    _
  $region13: #{fwd.39} parent=0 // pred_fallthru
    _
  %v14 = vld [vmem:[%s2] sm:$0xff]
  %v15 = vld [vmem:[%s2 + $0x8] sm:$0xff]
  %v16 = vld [vmem:[%s0] sm:$0xff]
  %v17 = vld [vmem:[%s0 + $0x8] sm:$0xff]
  %v18 = vld [vmem:[%s0 + $0x10] sm:$0xff]
  %v19 = vld [vmem:[%s0 + $0x18] sm:$0xff]
  %v20 = vld [vmem:[%s0 + $0x20] sm:$0xff]
  %v21 = vld [vmem:[%s0 + $0x28] sm:$0xff]
  %v22 = vld [vmem:[%s0 + $0x30] sm:$0xff]
  %v23 = vld [vmem:[%s0 + $0x38] sm:$0xff]
  %v24 = vunpack.c.l.bf16 %v16
  %v25 = vunpack.c.h.bf16 %v16
  %v26 = vunpack.c.l.bf16 %v17
  %v27 = vunpack.c.h.bf16 %v17
  %v28 = vunpack.c.l.bf16 %v18
  %v29 = vunpack.c.h.bf16 %v18
  %v30 = vunpack.c.l.bf16 %v19
  %v31 = vunpack.c.h.bf16 %v19
  %v32 = vunpack.c.l.bf16 %v20
  %v33 = vunpack.c.h.bf16 %v20
  %v34 = vunpack.c.l.bf16 %v21
  %v35 = vunpack.c.h.bf16 %v21
  %v36 = vunpack.c.l.bf16 %v22
  %v37 = vunpack.c.h.bf16 %v22
  %v38 = vunpack.c.l.bf16 %v23
  %v39 = vunpack.c.h.bf16 %v23
  %v42 = vlaneseq
  %v43 = vshrl.u32 %v42, 7
  %v44 = vsub.s32 0, %v43
  %v45 = vrot.slane %v14, %v44
  %v46 = vlaneseq
  %v47 = vshrl.u32 %v46, 7
  %v48 = vsub.s32 4, %v47
  %v49 = vrot.slane %v14, %v48
  %v50 = vlaneseq
  %v51 = vshrl.u32 %v50, 7
  %v52 = vsub.s32 0, %v51
  %v53 = vrot.slane %v15, %v52
  %v54 = vlaneseq
  %v55 = vshrl.u32 %v54, 7
  %v56 = vsub.s32 4, %v55
  %v57 = vrot.slane %v15, %v56
  %v62 = vlaneseq
  %v63 = vshrl.u32 %v62, 7
  %v64 = vsub.s32 0, %v63
  %v65 = vrot.slane %v45, %v64
  %v66 = vlaneseq
  %v67 = vshrl.u32 %v66, 7
  %v68 = vsub.s32 0, %v67
  %v69 = vrot.slane %v49, %v68
  %v70 = vlaneseq
  %v71 = vshrl.u32 %v70, 7
  %v72 = vsub.s32 0, %v71
  %v73 = vrot.slane %v53, %v72
  %v74 = vlaneseq
  %v75 = vshrl.u32 %v74, 7
  %v76 = vsub.s32 0, %v75
  %v77 = vrot.slane %v57, %v76
  %v78 = vmul.f32 %v24, %v65
  %v79 = vmul.f32 %v25, %v69
  %v80 = vmul.f32 %v26, %v73
  %v81 = vmul.f32 %v27, %v77
  %v82 = vmul.f32 %v28, %v65
  %v83 = vmul.f32 %v29, %v69
  %v84 = vmul.f32 %v30, %v73
  %v85 = vmul.f32 %v31, %v77
  %v86 = vmul.f32 %v32, %v65
  %v87 = vmul.f32 %v33, %v69
  %v88 = vmul.f32 %v34, %v73
  %v89 = vmul.f32 %v35, %v77
  %v90 = vmul.f32 %v36, %v65
  %v91 = vmul.f32 %v37, %v69
  %v92 = vmul.f32 %v38, %v73
  %v93 = vmul.f32 %v39, %v77
  %v94 = vlaneseq
  %v95 = vshrl.u32 %v94, 7
  %v96 = vsub.s32 2, %v95
  %v97 = vrot.slane %v14, %v96
  %v98 = vlaneseq
  %v99 = vshrl.u32 %v98, 7
  %v100 = vsub.s32 6, %v99
  %v101 = vrot.slane %v14, %v100
  %v102 = vlaneseq
  %v103 = vshrl.u32 %v102, 7
  %v104 = vsub.s32 2, %v103
  %v105 = vrot.slane %v15, %v104
  %v106 = vlaneseq
  %v107 = vshrl.u32 %v106, 7
  %v108 = vsub.s32 6, %v107
  %v109 = vrot.slane %v15, %v108
  %v114 = vlaneseq
  %v115 = vshrl.u32 %v114, 7
  %v116 = vsub.s32 2, %v115
  %v117 = vrot.slane %v97, %v116
  %v118 = vlaneseq
  %v119 = vshrl.u32 %v118, 7
  %v120 = vsub.s32 2, %v119
  %v121 = vrot.slane %v101, %v120
  %v122 = vlaneseq
  %v123 = vshrl.u32 %v122, 7
  %v124 = vsub.s32 2, %v123
  %v125 = vrot.slane %v105, %v124
  %v126 = vlaneseq
  %v127 = vshrl.u32 %v126, 7
  %v128 = vsub.s32 2, %v127
  %v129 = vrot.slane %v109, %v128
  %v130 = vadd.f32 %v78, %v117
  %v131 = vadd.f32 %v79, %v121
  %v132 = vadd.f32 %v80, %v125
  %v133 = vadd.f32 %v81, %v129
  %v134 = vadd.f32 %v82, %v117
  %v135 = vadd.f32 %v83, %v121
  %v136 = vadd.f32 %v84, %v125
  %v137 = vadd.f32 %v85, %v129
  %v138 = vadd.f32 %v86, %v117
  %v139 = vadd.f32 %v87, %v121
  %v140 = vadd.f32 %v88, %v125
  %v141 = vadd.f32 %v89, %v129
  %v142 = vadd.f32 %v90, %v117
  %v143 = vadd.f32 %v91, %v121
  %v144 = vadd.f32 %v92, %v125
  %v145 = vadd.f32 %v93, %v129
  %v146 = vld [vmem:[%s1] sm:$0xff]
  %v147 = vld [vmem:[%s1 + $0x8] sm:$0xff]
  %v148 = vld [vmem:[%s1 + $0x10] sm:$0xff]
  %v149 = vld [vmem:[%s1 + $0x18] sm:$0xff]
  %v150 = vld [vmem:[%s1 + $0x20] sm:$0xff]
  %v151 = vld [vmem:[%s1 + $0x28] sm:$0xff]
  %v152 = vld [vmem:[%s1 + $0x30] sm:$0xff]
  %v153 = vld [vmem:[%s1 + $0x38] sm:$0xff]
  %v154 = vunpack.c.l.bf16 %v146
  %v155 = vunpack.c.h.bf16 %v146
  %v156 = vunpack.c.l.bf16 %v147
  %v157 = vunpack.c.h.bf16 %v147
  %v158 = vunpack.c.l.bf16 %v148
  %v159 = vunpack.c.h.bf16 %v148
  %v160 = vunpack.c.l.bf16 %v149
  %v161 = vunpack.c.h.bf16 %v149
  %v162 = vunpack.c.l.bf16 %v150
  %v163 = vunpack.c.h.bf16 %v150
  %v164 = vunpack.c.l.bf16 %v151
  %v165 = vunpack.c.h.bf16 %v151
  %v166 = vunpack.c.l.bf16 %v152
  %v167 = vunpack.c.h.bf16 %v152
  %v168 = vunpack.c.l.bf16 %v153
  %v169 = vunpack.c.h.bf16 %v153
  %v170 = vlaneseq
  %v171 = vshrl.u32 %v170, 7
  %v172 = vsub.s32 1, %v171
  %v173 = vrot.slane %v14, %v172
  %v174 = vlaneseq
  %v175 = vshrl.u32 %v174, 7
  %v176 = vsub.s32 5, %v175
  %v177 = vrot.slane %v14, %v176
  %v178 = vlaneseq
  %v179 = vshrl.u32 %v178, 7
  %v180 = vsub.s32 1, %v179
  %v181 = vrot.slane %v15, %v180
  %v182 = vlaneseq
  %v183 = vshrl.u32 %v182, 7
  %v184 = vsub.s32 5, %v183
  %v185 = vrot.slane %v15, %v184
  %v190 = vlaneseq
  %v191 = vshrl.u32 %v190, 7
  %v192 = vsub.s32 1, %v191
  %v193 = vrot.slane %v173, %v192
  %v194 = vlaneseq
  %v195 = vshrl.u32 %v194, 7
  %v196 = vsub.s32 1, %v195
  %v197 = vrot.slane %v177, %v196
  %v198 = vlaneseq
  %v199 = vshrl.u32 %v198, 7
  %v200 = vsub.s32 1, %v199
  %v201 = vrot.slane %v181, %v200
  %v202 = vlaneseq
  %v203 = vshrl.u32 %v202, 7
  %v204 = vsub.s32 1, %v203
  %v205 = vrot.slane %v185, %v204
  %v206 = vmul.f32 %v154, %v193
  %v207 = vmul.f32 %v155, %v197
  %v208 = vmul.f32 %v156, %v201
  %v209 = vmul.f32 %v157, %v205
  %v210 = vmul.f32 %v158, %v193
  %v211 = vmul.f32 %v159, %v197
  %v212 = vmul.f32 %v160, %v201
  %v213 = vmul.f32 %v161, %v205
  %v214 = vmul.f32 %v162, %v193
  %v215 = vmul.f32 %v163, %v197
  %v216 = vmul.f32 %v164, %v201
  %v217 = vmul.f32 %v165, %v205
  %v218 = vmul.f32 %v166, %v193
  %v219 = vmul.f32 %v167, %v197
  %v220 = vmul.f32 %v168, %v201
  %v221 = vmul.f32 %v169, %v205
  %v222 = vadd.f32 %v130, %v206
  %v223 = vadd.f32 %v131, %v207
  %v224 = vadd.f32 %v132, %v208
  %v225 = vadd.f32 %v133, %v209
  %v226 = vadd.f32 %v134, %v210
  %v227 = vadd.f32 %v135, %v211
  %v228 = vadd.f32 %v136, %v212
  %v229 = vadd.f32 %v137, %v213
  %v230 = vadd.f32 %v138, %v214
  %v231 = vadd.f32 %v139, %v215
  %v232 = vadd.f32 %v140, %v216
  %v233 = vadd.f32 %v141, %v217
  %v234 = vadd.f32 %v142, %v218
  %v235 = vadd.f32 %v143, %v219
  %v236 = vadd.f32 %v144, %v220
  %v237 = vadd.f32 %v145, %v221
  %v238 = vlaneseq
  %v239 = vshrl.u32 %v238, 7
  %v240 = vsub.s32 3, %v239
  %v241 = vrot.slane %v14, %v240
  %v242 = vlaneseq
  %v243 = vshrl.u32 %v242, 7
  %v244 = vsub.s32 7, %v243
  %v245 = vrot.slane %v14, %v244
  %v246 = vlaneseq
  %v247 = vshrl.u32 %v246, 7
  %v248 = vsub.s32 3, %v247
  %v249 = vrot.slane %v15, %v248
  %v250 = vlaneseq
  %v251 = vshrl.u32 %v250, 7
  %v252 = vsub.s32 7, %v251
  %v253 = vrot.slane %v15, %v252
  %v258 = vlaneseq
  %v259 = vshrl.u32 %v258, 7
  %v260 = vsub.s32 3, %v259
  %v261 = vrot.slane %v241, %v260
  %v262 = vlaneseq
  %v263 = vshrl.u32 %v262, 7
  %v264 = vsub.s32 3, %v263
  %v265 = vrot.slane %v245, %v264
  %v266 = vlaneseq
  %v267 = vshrl.u32 %v266, 7
  %v268 = vsub.s32 3, %v267
  %v269 = vrot.slane %v249, %v268
  %v270 = vlaneseq
  %v271 = vshrl.u32 %v270, 7
  %v272 = vsub.s32 3, %v271
  %v273 = vrot.slane %v253, %v272
  %v274 = vadd.f32 %v222, %v261
  %v275 = vadd.f32 %v223, %v265
  %v276 = vadd.f32 %v224, %v269
  %v277 = vadd.f32 %v225, %v273
  %v278 = vadd.f32 %v226, %v261
  %v279 = vadd.f32 %v227, %v265
  %v280 = vadd.f32 %v228, %v269
  %v281 = vadd.f32 %v229, %v273
  %v282 = vadd.f32 %v230, %v261
  %v283 = vadd.f32 %v231, %v265
  %v284 = vadd.f32 %v232, %v269
  %v285 = vadd.f32 %v233, %v273
  %v286 = vadd.f32 %v234, %v261
  %v287 = vadd.f32 %v235, %v265
  %v288 = vadd.f32 %v236, %v269
  %v289 = vadd.f32 %v237, %v273
  %v290 = vmax.f32 %v274, 0.0
  %v291 = vmax.f32 %v275, 0.0
  %v292 = vmax.f32 %v276, 0.0
  %v293 = vmax.f32 %v277, 0.0
  %v294 = vmax.f32 %v278, 0.0
  %v295 = vmax.f32 %v279, 0.0
  %v296 = vmax.f32 %v280, 0.0
  %v297 = vmax.f32 %v281, 0.0
  %v298 = vmax.f32 %v282, 0.0
  %v299 = vmax.f32 %v283, 0.0
  %v300 = vmax.f32 %v284, 0.0
  %v301 = vmax.f32 %v285, 0.0
  %v302 = vmax.f32 %v286, 0.0
  %v303 = vmax.f32 %v287, 0.0
  %v304 = vmax.f32 %v288, 0.0
  %v305 = vmax.f32 %v289, 0.0
  %v306 = vpack.c.bf16 %v294, %v290
  %v307 = vpack.c.bf16 %v295, %v291
  %v308 = vpack.c.bf16 %v296, %v292
  %v309 = vpack.c.bf16 %v297, %v293
  %v310 = vpack.c.bf16 %v302, %v298
  %v311 = vpack.c.bf16 %v303, %v299
  %v312 = vpack.c.bf16 %v304, %v300
  %v313 = vpack.c.bf16 %v305, %v301
  %v322 = vunpack.c.l.b16 %v306
  %v323 = vunpack.c.l.b16 %v307
  %v324 = vunpack.c.l.b16 %v308
  %v325 = vunpack.c.l.b16 %v309
  %v326 = vunpack.c.h.b16 %v306
  %v327 = vunpack.c.h.b16 %v307
  %v328 = vunpack.c.h.b16 %v308
  %v329 = vunpack.c.h.b16 %v309
  %v330 = vunpack.c.l.b16 %v310
  %v331 = vunpack.c.l.b16 %v311
  %v332 = vunpack.c.l.b16 %v312
  %v333 = vunpack.c.l.b16 %v313
  %v334 = vunpack.c.h.b16 %v310
  %v335 = vunpack.c.h.b16 %v311
  %v336 = vunpack.c.h.b16 %v312
  %v337 = vunpack.c.h.b16 %v313
  %v338 = vpack.c.b16 %v323, %v322
  %v339 = vpack.c.b16 %v325, %v324
  %v340 = vpack.c.b16 %v327, %v326
  %v341 = vpack.c.b16 %v329, %v328
  %v342 = vpack.c.b16 %v331, %v330
  %v343 = vpack.c.b16 %v333, %v332
  %v344 = vpack.c.b16 %v335, %v334
  %v345 = vpack.c.b16 %v337, %v336
  %354 = vst [vmem:[%s3] sm:$0xff] %v338
  %355 = vst [vmem:[%s3 + $0x8] sm:$0xff] %v339
  %356 = vst [vmem:[%s3 + $0x10] sm:$0xff] %v340
  %357 = vst [vmem:[%s3 + $0x18] sm:$0xff] %v341
  %358 = vst [vmem:[%s3 + $0x20] sm:$0xff] %v342
  %359 = vst [vmem:[%s3 + $0x28] sm:$0xff] %v343
  %360 = vst [vmem:[%s3 + $0x30] sm:$0xff] %v344
  %361 = vst [vmem:[%s3 + $0x38] sm:$0xff] %v345
  // Predicated region
  $region14: #{fwd.39} parent=0 // pred_check
    _
  $region15: #{fwd.39} parent=0 // pred_check_branch
    %363 = sbr.rel (0) target = $region17
  $region16: #{fwd.39} parent=0 // pred_region
    _
  $region17: #{fwd.39} parent=0 // pred_fallthru
    _
  // Predicated region
  $region18: #{fwd.39} parent=0 // pred_check
    _
  $region19: #{fwd.39} parent=0 // pred_check_branch
    %365 = sbr.rel (0) target = $region21
  $region20: #{fwd.39} parent=0 // pred_region
    _
  $region21: #{fwd.39} parent=0 // pred_fallthru
    _

// kernel: tile.353
$region0: #{tile.353}
  #allocation0 [shape = 's32[1]{0}', space=sflag, size = 0x4, scoped, tag = 'scoped memory for tile.353']
  %s0 = inlined_call_operand.vmem [shape: f32[64], index: 0, kind: input, shape index: {}]
  %s1 = inlined_call_operand.vmem [shape: f32[8,64], index: 1, kind: output, shape index: {}]
  // Predicated region
  $region2: #{tile.353} parent=0 // pred_check
    _
  $region3: #{tile.353} parent=0 // pred_check_branch
    %3 = sbr.rel (0) target = $region5
  $region4: #{tile.353} parent=0 // pred_region
    _
  $region5: #{tile.353} parent=0 // pred_fallthru
    _
  %v4 = vld [vmem:[%s0] ss:$0 sm:$0xff]
  %5 = vst [vmem:[%s1] sm:$0xff] %v4

// kernel: tile.358
$region0: #{tile.358}
  %s0 = inlined_call_operand.vmem [shape: f32[8,64], index: 0, kind: input, shape index: {}]
  %s1 = inlined_call_operand.vmem [shape: f32[1,512], index: 1, kind: output, shape index: {}]
  $region1: #{tile.358} parent=0
    #allocation0 [shape = 'u8[16384]{0}', space=vmem, size = 0x4000, scoped, tag = 'scoped mem for output reshape']
    %v2 = vld [vmem:[%s0] ss:$2 sm:$0xf]
    %vm3 = vcmask 523264
    %4 = vst.msk [vmem:[#allocation0] ss:$8 sm:$0xf] %vm3, %v2
    %s5 = scalar_lea.vmem %s0, 1
    %v6 = vld [vmem:[%s5] ss:$2 sm:$0xf]
    %7 = vrot.lane.b32.xlu0 %v6, 64
    %v8 = vpop.permute.xlu0 %7
    %vm9 = vcmask 1048064
    %10 = vst.msk [vmem:[#allocation0] ss:$8 sm:$0xf] %vm9, %v8
    %s12 = sshll.u32 1, 1
    %s13 = ssub.s32 %s12, 1
    %v15 = vld [vmem:[#allocation0] sm:%s13]
    %s16 = sshll.u32 1, 1
    %s17 = ssub.s32 %s16, 1
    %18 = vst [vmem:[%s1] sm:%s17] %v15
    %s19 = scalar_lea.vmem [#allocation0], 8
    %v20 = vld [vmem:[%s19] sm:%s13]
    %s21 = sshll.u32 1, 1
    %s22 = ssub.s32 %s21, 1
    %s23 = scalar_lea.vmem %s1, 1
    %24 = vst [vmem:[%s23] sm:%s22] %v20
    %s25 = scalar_lea.vmem [#allocation0], 16
    %v26 = vld [vmem:[%s25] sm:%s13]
    %s27 = sshll.u32 1, 1
    %s28 = ssub.s32 %s27, 1
    %s29 = smul.addr 1, 2
    %s30 = scalar_lea.vmem %s1, %s29
    %31 = vst [vmem:[%s30] sm:%s28] %v26
    %s32 = scalar_lea.vmem [#allocation0], 24
    %v33 = vld [vmem:[%s32] sm:%s13]
    %s34 = sshll.u32 1, 1
    %s35 = ssub.s32 %s34, 1
    %s36 = smul.addr 1, 3
    %s37 = scalar_lea.vmem %s1, %s36
    %38 = vst [vmem:[%s37] sm:%s35] %v33

// kernel: fwd.36
$region0: #{fwd.36}
  #allocation0 [shape = 'u32[]', space=smem, size = 0x4, offset = 0x4, fixed_abs, tag = 'smem constant byte address 0x4 - core index']
  #allocation1 [shape = 'u32[144,128]{1,0:T(1,128)}', space=vmem, size = 0x12000, scoped, tag = 'internal scratch']
  %s0 = inlined_call_operand.vmem [shape: bf16[2,18,18,32], index: 0, kind: input, shape index: {}]
  %s1 = inlined_call_operand.vmem [shape: bf16[288,32], index: 1, kind: input, shape index: {}]
  %s2 = inlined_call_operand.vmem [shape: bf16[2,16,16,32], index: 2, kind: output, shape index: {0}]
  %s3 = inlined_call_operand.vmem [shape: f32[2,1,32], index: 3, kind: output, shape index: {1}]
  %s4 = inlined_call_operand.vmem [shape: f32[2,1,32], index: 4, kind: output, shape index: {2}]
  %5 = xla_tuple %s2, %s3, %s4
  %s6 = sld [smem:[#allocation0]]
  $region57: #{fwd.36} parent=0
    _
  %s8 = ssub.s32 1, %s6
  %s9 = scalar_select 0, %s8, %s6
  loop: start=0, step=1, limit=4
  $region2: #{fwd.36} parent=0 // loop_pre_header
    _
  $region3: #{fwd.36} parent=0 // loop_header
    %s11 = sphi 0, %s15
    %p12 = scmp.ge.s32.totalorder %s11, 4
    %s21 = sphi 0, %s23
    %s24 = sphi 0, %s21
    %s25 = sphi 0, %s24
    %s41 = sphi 0, %s25
    %s45 = sphi 0, %s45
    %s47 = sphi 0, %s45
    %s48 = sphi 0, %s47
    %s62 = sphi 0, %s48
    %s68 = sphi 0, %s70
    %s71 = sphi 0, %s68
    %s72 = sphi 0, %s71
    %s88 = sphi 0, %s72
    %s94 = sphi 0, %s96
    %s97 = sphi 0, %s94
    %s98 = sphi 0, %s97
    %s114 = sphi 0, %s98
    %s120 = sphi 0, %s122
    %s123 = sphi 0, %s120
    %s124 = sphi 0, %s123
    %s140 = sphi 0, %s124
  $region4: #{fwd.36} parent=0 // loop_header_branch
    %14 = sbr.rel (%p12) target = $region8
  $region5: #{fwd.36} parent=0 // loop_body
    %s16 = ssub.s32 %s11, 1
    %s17 = ssub.s32 %s11, 2
    %s18 = sadd.s32 %s11, 1
    %s19 = ssub.s32 %s11, %s18
    %p20 = scmp.eq.s32.totalorder %s19, 0
    %s22 = sadd.s32 %s21, 1
    %s23 = scalar_select %p20, %s21, %s22
    %p26 = pneg %p20
    %p27 = scmp.eq.s32.totalorder %s11, 1
    %p28 = por %p26, %p27
    %p29 = scmp.ne.s32.totalorder %s21, %s24
    %p30 = scmp.eq.s32.totalorder %s11, 0
    %p31 = por %p29, %p30
    %p32 = scmp.ne.s32.totalorder %s21, %s24
    %p33 = scmp.eq.s32.totalorder %s16, 1
    %p34 = por %p32, %p33
    %p35 = scmp.ne.s32.totalorder %s24, %s25
    %p36 = scmp.eq.s32.totalorder %s16, 0
    %p37 = por %p35, %p36
    %p38 = scmp.ne.s32.totalorder %s24, %s25
    %p39 = scmp.eq.s32.totalorder %s17, 1
    %p40 = por %p38, %p39
    %p42 = scmp.ne.s32.totalorder %s25, %s41
    %p43 = scmp.eq.s32.totalorder %s17, 0
    %p44 = por %p42, %p43
    %s46 = sadd.s32 %s45, 1
    %p49 = scmp.eq.s32.totalorder %s11, 1
    %p50 = scmp.ne.s32.totalorder %s45, %s47
    %p51 = scmp.eq.s32.totalorder %s11, 0
    %p52 = por %p50, %p51
    %p53 = scmp.ne.s32.totalorder %s45, %s47
    %p54 = scmp.eq.s32.totalorder %s16, 1
    %p55 = por %p53, %p54
    %p56 = scmp.ne.s32.totalorder %s47, %s48
    %p57 = scmp.eq.s32.totalorder %s16, 0
    %p58 = por %p56, %p57
    %p59 = scmp.ne.s32.totalorder %s47, %s48
    %p60 = scmp.eq.s32.totalorder %s17, 1
    %p61 = por %p59, %p60
    %p63 = scmp.ne.s32.totalorder %s48, %s62
    %p64 = scmp.eq.s32.totalorder %s17, 0
    %p65 = por %p63, %p64
    %s66 = ssub.s32 %s11, %s18
    %p67 = scmp.eq.s32.totalorder %s66, 0
    %s69 = sadd.s32 %s68, 1
    %s70 = scalar_select %p67, %s68, %s69
    %p73 = pneg %p67
    %p74 = scmp.eq.s32.totalorder %s11, 1
    %p75 = por %p73, %p74
    %p76 = scmp.ne.s32.totalorder %s68, %s71
    %p77 = scmp.eq.s32.totalorder %s11, 0
    %p78 = por %p76, %p77
    %p79 = scmp.ne.s32.totalorder %s68, %s71
    %p80 = scmp.eq.s32.totalorder %s16, 1
    %p81 = por %p79, %p80
    %p82 = scmp.ne.s32.totalorder %s71, %s72
    %p83 = scmp.eq.s32.totalorder %s16, 0
    %p84 = por %p82, %p83
    %p85 = scmp.ne.s32.totalorder %s71, %s72
    %p86 = scmp.eq.s32.totalorder %s17, 1
    %p87 = por %p85, %p86
    %p89 = scmp.ne.s32.totalorder %s72, %s88
    %p90 = scmp.eq.s32.totalorder %s17, 0
    %p91 = por %p89, %p90
    %s92 = ssub.s32 %s11, %s18
    %p93 = scmp.eq.s32.totalorder %s92, 0
    %s95 = sadd.s32 %s94, 1
    %s96 = scalar_select %p93, %s94, %s95
    %p99 = pneg %p93
    %p100 = scmp.eq.s32.totalorder %s11, 1
    %p101 = por %p99, %p100
    %p102 = scmp.ne.s32.totalorder %s94, %s97
    %p103 = scmp.eq.s32.totalorder %s11, 0
    %p104 = por %p102, %p103
    %p105 = scmp.ne.s32.totalorder %s94, %s97
    %p106 = scmp.eq.s32.totalorder %s16, 1
    %p107 = por %p105, %p106
    %p108 = scmp.ne.s32.totalorder %s97, %s98
    %p109 = scmp.eq.s32.totalorder %s16, 0
    %p110 = por %p108, %p109
    %p111 = scmp.ne.s32.totalorder %s97, %s98
    %p112 = scmp.eq.s32.totalorder %s17, 1
    %p113 = por %p111, %p112
    %p115 = scmp.ne.s32.totalorder %s98, %s114
    %p116 = scmp.eq.s32.totalorder %s17, 0
    %p117 = por %p115, %p116
    %s118 = ssub.s32 %s11, %s18
    %p119 = scmp.eq.s32.totalorder %s118, 0
    %s121 = sadd.s32 %s120, 1
    %s122 = scalar_select %p119, %s120, %s121
    %p125 = pneg %p119
    %p126 = scmp.eq.s32.totalorder %s11, 1
    %p127 = por %p125, %p126
    %p128 = scmp.ne.s32.totalorder %s120, %s123
    %p129 = scmp.eq.s32.totalorder %s11, 0
    %p130 = por %p128, %p129
    %p131 = scmp.ne.s32.totalorder %s120, %s123
    %p132 = scmp.eq.s32.totalorder %s16, 1
    %p133 = por %p131, %p132
    %p134 = scmp.ne.s32.totalorder %s123, %s124
    %p135 = scmp.eq.s32.totalorder %s16, 0
    %p136 = por %p134, %p135
    %p137 = scmp.ne.s32.totalorder %s123, %s124
    %p138 = scmp.eq.s32.totalorder %s17, 1
    %p139 = por %p137, %p138
    %p141 = scmp.ne.s32.totalorder %s124, %s140
    %p142 = scmp.eq.s32.totalorder %s17, 0
    %p143 = por %p141, %p142
    %p144 = scmp.le.s32.totalorder 1, %s11
    %p145 = scmp.lt.s32.totalorder %s11, 3
    %p146 = pnand %p144, %p145
    %p147 = pneg %p146
    // Predicated region
    $region9: #{fwd.36} parent=5 // pred_check
      _
    $region10: #{fwd.36} parent=5 // pred_check_branch
      %149 = sbr.rel (%p146) target = $region12
    $region11: #{fwd.36} parent=5 // pred_region
      %s150 = ssub.s32 %s11, 1
      // Predicated region
      $region13: #{fwd.36} parent=11 // pred_check
        %p151 = pneg %p58
      $region14: #{fwd.36} parent=11 // pred_check_branch
        %153 = sbr.rel (%p151) target = $region16
      $region15: #{fwd.36} parent=11 // pred_region
        _
      $region16: #{fwd.36} parent=11 // pred_fallthru
        _
    $region12: #{fwd.36} parent=5 // pred_fallthru
      _
    %p154 = scmp.lt.s32.totalorder %s11, 2
    // Predicated region
    $region17: #{fwd.36} parent=5 // pred_check
      %p155 = pneg %p154
    $region18: #{fwd.36} parent=5 // pred_check_branch
      %157 = sbr.rel (%p155) target = $region20
    $region19: #{fwd.36} parent=5 // pred_region
      // Predicated region
      $region21: #{fwd.36} parent=19 // pred_check
        %p158 = pneg %p31
      $region22: #{fwd.36} parent=19 // pred_check_branch
        %160 = sbr.rel (%p158) target = $region24
      $region23: #{fwd.36} parent=19 // pred_region
        %p161 = scmp.lt.s32.totalorder %s11, 1
        %s162 = scalar_select %p161, %s11, 1
        %s163 = smul.addr %s162, 54
        %s164 = smul.addr %s163, 4
        %s165 = scalar_lea.vmem %s0, %s164
      $region24: #{fwd.36} parent=19 // pred_fallthru
        _
    $region20: #{fwd.36} parent=5 // pred_fallthru
      _
    %p166 = scmp.le.s32.totalorder 1, %s11
    %p167 = scmp.lt.s32.totalorder %s11, 3
    %p168 = pnand %p166, %p167
    %p169 = pneg %p168
    // Predicated region
    $region25: #{fwd.36} parent=5 // pred_check
      _
    $region26: #{fwd.36} parent=5 // pred_check_branch
      %171 = sbr.rel (%p168) target = $region28
    $region27: #{fwd.36} parent=5 // pred_region
      %s172 = ssub.s32 %s11, 1
      %p173 = scmp.lt.s32.totalorder %s16, 1
      %s174 = scalar_select %p173, %s16, 1
      %s175 = smul.addr %s174, 54
      %s176 = smul.addr %s175, 4
      %s177 = scalar_lea.vmem %s0, %s176
      %p178 = pneg %p37
      %p179 = pneg %p34
      %p180 = pneg %p58
      %p181 = pneg %p55
      %p182 = pneg %p84
      %p183 = pneg %p81
      %p184 = scmp.lt.s32.totalorder %s16, 1
      %s185 = scalar_select %p184, %s16, 1
      %s186 = smul.addr %s185, 32
      %s187 = smul.addr %s186, 4
      %s188 = scalar_lea.vmem %s2, %s187
      %p189 = pneg %p110
      %p190 = pneg %p107
      %p191 = scmp.lt.s32.totalorder %s16, 1
      %s192 = scalar_select %p191, %s16, 1
      %s193 = scalar_lea.vmem %s3, %s192
      %p194 = pneg %p136
      %p195 = pneg %p133
      %p196 = scmp.lt.s32.totalorder %s16, 1
      %s197 = scalar_select %p196, %s16, 1
      %s198 = scalar_lea.vmem %s4, %s197
      %p199 = scmp.lt.s32.totalorder %s16, 1
      %s200 = scalar_select %p199, %s16, 1
      %s201 = smul.addr %s200, 54
      %s202 = smul.addr %s201, 4
      %s203 = scalar_lea.vmem %s0, %s202
      %p204 = scmp.lt.s32.totalorder %s16, 1
      %s205 = scalar_select %p204, %s16, 1
      %s206 = smul.addr %s205, 32
      %s207 = smul.addr %s206, 4
      %s208 = scalar_lea.vmem %s2, %s207
      %p209 = scmp.lt.s32.totalorder %s16, 1
      %s210 = scalar_select %p209, %s16, 1
      %s211 = scalar_lea.vmem %s3, %s210
      %p212 = scmp.lt.s32.totalorder %s16, 1
      %s213 = scalar_select %p212, %s16, 1
      %s214 = scalar_lea.vmem %s4, %s213
      %v216 = vld [vmem:[%s203] sm:$0xf]
      %v217 = vld [vmem:[%s203 + $0x4] sm:$0xf]
      %v218 = vld [vmem:[%s203 + $0x8] sm:$0x1]
      %v219 = vld [vmem:[%s203 + $0xc] sm:$0xf]
      %v220 = vld [vmem:[%s203 + $0x10] sm:$0xf]
      %v221 = vld [vmem:[%s203 + $0x14] sm:$0x1]
      %v222 = vld [vmem:[%s203 + $0x18] sm:$0xf]
      %v223 = vld [vmem:[%s203 + $0x1c] sm:$0xf]
      %v224 = vld [vmem:[%s203 + $0x20] sm:$0x1]
      %v225 = vld [vmem:[%s203 + $0x24] sm:$0xf]
      %v226 = vld [vmem:[%s203 + $0x28] sm:$0xf]
      %v227 = vld [vmem:[%s203 + $0x2c] sm:$0x1]
      %v228 = vld [vmem:[%s203 + $0x30] sm:$0xf]
      %v229 = vld [vmem:[%s203 + $0x34] sm:$0xf]
      %v230 = vld [vmem:[%s203 + $0x38] sm:$0x1]
      %v231 = vld [vmem:[%s203 + $0x3c] sm:$0xf]
      %v232 = vld [vmem:[%s203 + $0x40] sm:$0xf]
      %v233 = vld [vmem:[%s203 + $0x44] sm:$0x1]
      %v234 = vld [vmem:[%s203 + $0x48] sm:$0xf]
      %v235 = vld [vmem:[%s203 + $0x4c] sm:$0xf]
      %v236 = vld [vmem:[%s203 + $0x50] sm:$0x1]
      %v237 = vld [vmem:[%s203 + $0x54] sm:$0xf]
      %v238 = vld [vmem:[%s203 + $0x58] sm:$0xf]
      %v239 = vld [vmem:[%s203 + $0x5c] sm:$0x1]
      %v240 = vld [vmem:[%s203 + $0x60] sm:$0xf]
      %v241 = vld [vmem:[%s203 + $0x64] sm:$0xf]
      %v242 = vld [vmem:[%s203 + $0x68] sm:$0x1]
      %v243 = vld [vmem:[%s203 + $0x6c] sm:$0xf]
      %v244 = vld [vmem:[%s203 + $0x70] sm:$0xf]
      %v245 = vld [vmem:[%s203 + $0x74] sm:$0x1]
      %v246 = vld [vmem:[%s203 + $0x78] sm:$0xf]
      %v247 = vld [vmem:[%s203 + $0x7c] sm:$0xf]
      %v248 = vld [vmem:[%s203 + $0x80] sm:$0x1]
      %v249 = vld [vmem:[%s203 + $0x84] sm:$0xf]
      %v250 = vld [vmem:[%s203 + $0x88] sm:$0xf]
      %v251 = vld [vmem:[%s203 + $0x8c] sm:$0x1]
      %v252 = vld [vmem:[%s203 + $0x90] sm:$0xf]
      %v253 = vld [vmem:[%s203 + $0x94] sm:$0xf]
      %v254 = vld [vmem:[%s203 + $0x98] sm:$0x1]
      %v255 = vld [vmem:[%s203 + $0x9c] sm:$0xf]
      %v256 = vld [vmem:[%s203 + $0xa0] sm:$0xf]
      %v257 = vld [vmem:[%s203 + $0xa4] sm:$0x1]
      %v258 = vld [vmem:[%s203 + $0xa8] sm:$0xf]
      %v259 = vld [vmem:[%s203 + $0xac] sm:$0xf]
      %v260 = vld [vmem:[%s203 + $0xb0] sm:$0x1]
      %v261 = vld [vmem:[%s203 + $0xb4] sm:$0xf]
      %v262 = vld [vmem:[%s203 + $0xb8] sm:$0xf]
      %v263 = vld [vmem:[%s203 + $0xbc] sm:$0x1]
      %v264 = vld [vmem:[%s203 + $0xc0] sm:$0xf]
      %v265 = vld [vmem:[%s203 + $0xc4] sm:$0xf]
      %v266 = vld [vmem:[%s203 + $0xc8] sm:$0x1]
      %v267 = vld [vmem:[%s203 + $0xcc] sm:$0xf]
      %v268 = vld [vmem:[%s203 + $0xd0] sm:$0xf]
      %v269 = vld [vmem:[%s203 + $0xd4] sm:$0x1]
      %v270 = vld [vmem:[%s1] sm:$0xf]
      %v271 = vld [vmem:[%s1 + $0x4] sm:$0xf]
      %v272 = vld [vmem:[%s1 + $0x8] sm:$0xf]
      %v273 = vld [vmem:[%s1 + $0xc] sm:$0xf]
      %vm274 = vsmask.f32 3328
      %vm275 = vsmask.f32 7440
      %vm276 = vmor %vm274, %vm275
      %v278 = vshrl.u32 %v216, 16
      %v280 = vrot.slane %v278, 4
      %v281 = vshll.u32 %v216, 16
      %v283 = vrot.slane %v281, 5
      %v284 = vor.u32 %v280, %v283
      %v285 = vrot.slane %v284, 4
      %v287 = vshll.u32 %v217, 16
      %v289 = vrot.slane %v287, 5
      %v290 = vsel %vm276, %v285, %v289
      %v291 = vshrl.u32 %v217, 16
      %v293 = vrot.slane %v291, 4
      %v294 = vor.u32 %v293, %v289
      %v295 = vrot.slane %v294, 4
      %v297 = vshll.u32 %v218, 16
      %v299 = vrot.slane %v297, 5
      %v300 = vsel %vm276, %v295, %v299
      %v302 = vshrl.u32 %v219, 16
      %v304 = vrot.slane %v302, 4
      %v305 = vshll.u32 %v219, 16
      %v307 = vrot.slane %v305, 5
      %v308 = vor.u32 %v304, %v307
      %v309 = vrot.slane %v308, 4
      %v311 = vshll.u32 %v220, 16
      %v313 = vrot.slane %v311, 5
      %v314 = vsel %vm276, %v309, %v313
      %v315 = vshrl.u32 %v220, 16
      %v317 = vrot.slane %v315, 4
      %v318 = vor.u32 %v317, %v313
      %v319 = vrot.slane %v318, 4
      %v321 = vshll.u32 %v221, 16
      %v323 = vrot.slane %v321, 5
      %v324 = vsel %vm276, %v319, %v323
      %v326 = vshrl.u32 %v222, 16
      %v328 = vrot.slane %v326, 4
      %v329 = vshll.u32 %v222, 16
      %v331 = vrot.slane %v329, 5
      %v332 = vor.u32 %v328, %v331
      %v333 = vrot.slane %v332, 4
      %v335 = vshll.u32 %v223, 16
      %v337 = vrot.slane %v335, 5
      %v338 = vsel %vm276, %v333, %v337
      %v339 = vshrl.u32 %v223, 16
      %v341 = vrot.slane %v339, 4
      %v342 = vor.u32 %v341, %v337
      %v343 = vrot.slane %v342, 4
      %v345 = vshll.u32 %v224, 16
      %v347 = vrot.slane %v345, 5
      %v348 = vsel %vm276, %v343, %v347
      %v350 = vshrl.u32 %v225, 16
      %v352 = vrot.slane %v350, 4
      %v353 = vshll.u32 %v225, 16
      %v355 = vrot.slane %v353, 5
      %v356 = vor.u32 %v352, %v355
      %v357 = vrot.slane %v356, 4
      %v359 = vshll.u32 %v226, 16
      %v361 = vrot.slane %v359, 5
      %v362 = vsel %vm276, %v357, %v361
      %v363 = vshrl.u32 %v226, 16
      %v365 = vrot.slane %v363, 4
      %v366 = vor.u32 %v365, %v361
      %v367 = vrot.slane %v366, 4
      %v369 = vshll.u32 %v227, 16
      %v371 = vrot.slane %v369, 5
      %v372 = vsel %vm276, %v367, %v371
      %v374 = vshrl.u32 %v228, 16
      %v376 = vrot.slane %v374, 4
      %v377 = vshll.u32 %v228, 16
      %v379 = vrot.slane %v377, 5
      %v380 = vor.u32 %v376, %v379
      %v381 = vrot.slane %v380, 4
      %v383 = vshll.u32 %v229, 16
      %v385 = vrot.slane %v383, 5
      %v386 = vsel %vm276, %v381, %v385
      %v387 = vshrl.u32 %v229, 16
      %v389 = vrot.slane %v387, 4
      %v390 = vor.u32 %v389, %v385
      %v391 = vrot.slane %v390, 4
      %v393 = vshll.u32 %v230, 16
      %v395 = vrot.slane %v393, 5
      %v396 = vsel %vm276, %v391, %v395
      %v398 = vshrl.u32 %v231, 16
      %v400 = vrot.slane %v398, 4
      %v401 = vshll.u32 %v231, 16
      %v403 = vrot.slane %v401, 5
      %v404 = vor.u32 %v400, %v403
      %v405 = vrot.slane %v404, 4
      %v407 = vshll.u32 %v232, 16
      %v409 = vrot.slane %v407, 5
      %v410 = vsel %vm276, %v405, %v409
      %v411 = vshrl.u32 %v232, 16
      %v413 = vrot.slane %v411, 4
      %v414 = vor.u32 %v413, %v409
      %v415 = vrot.slane %v414, 4
      %v417 = vshll.u32 %v233, 16
      %v419 = vrot.slane %v417, 5
      %v420 = vsel %vm276, %v415, %v419
      %v422 = vshrl.u32 %v234, 16
      %v424 = vrot.slane %v422, 4
      %v425 = vshll.u32 %v234, 16
      %v427 = vrot.slane %v425, 5
      %v428 = vor.u32 %v424, %v427
      %v429 = vrot.slane %v428, 4
      %v431 = vshll.u32 %v235, 16
      %v433 = vrot.slane %v431, 5
      %v434 = vsel %vm276, %v429, %v433
      %v435 = vshrl.u32 %v235, 16
      %v437 = vrot.slane %v435, 4
      %v438 = vor.u32 %v437, %v433
      %v439 = vrot.slane %v438, 4
      %v441 = vshll.u32 %v236, 16
      %v443 = vrot.slane %v441, 5
      %v444 = vsel %vm276, %v439, %v443
      %v446 = vshrl.u32 %v237, 16
      %v448 = vrot.slane %v446, 4
      %v449 = vshll.u32 %v237, 16
      %v451 = vrot.slane %v449, 5
      %v452 = vor.u32 %v448, %v451
      %v453 = vrot.slane %v452, 4
      %v455 = vshll.u32 %v238, 16
      %v457 = vrot.slane %v455, 5
      %v458 = vsel %vm276, %v453, %v457
      %v459 = vshrl.u32 %v238, 16
      %v461 = vrot.slane %v459, 4
      %v462 = vor.u32 %v461, %v457
      %v463 = vrot.slane %v462, 4
      %v465 = vshll.u32 %v239, 16
      %v467 = vrot.slane %v465, 5
      %v468 = vsel %vm276, %v463, %v467
      %v470 = vshrl.u32 %v240, 16
      %v472 = vrot.slane %v470, 4
      %v473 = vshll.u32 %v240, 16
      %v475 = vrot.slane %v473, 5
      %v476 = vor.u32 %v472, %v475
      %v477 = vrot.slane %v476, 4
      %v479 = vshll.u32 %v241, 16
      %v481 = vrot.slane %v479, 5
      %v482 = vsel %vm276, %v477, %v481
      %v483 = vshrl.u32 %v241, 16
      %v485 = vrot.slane %v483, 4
      %v486 = vor.u32 %v485, %v481
      %v487 = vrot.slane %v486, 4
      %v489 = vshll.u32 %v242, 16
      %v491 = vrot.slane %v489, 5
      %v492 = vsel %vm276, %v487, %v491
      %v494 = vshrl.u32 %v243, 16
      %v496 = vrot.slane %v494, 4
      %v497 = vshll.u32 %v243, 16
      %v499 = vrot.slane %v497, 5
      %v500 = vor.u32 %v496, %v499
      %v501 = vrot.slane %v500, 4
      %v503 = vshll.u32 %v244, 16
      %v505 = vrot.slane %v503, 5
      %v506 = vsel %vm276, %v501, %v505
      %v507 = vshrl.u32 %v244, 16
      %v509 = vrot.slane %v507, 4
      %v510 = vor.u32 %v509, %v505
      %v511 = vrot.slane %v510, 4
      %v513 = vshll.u32 %v245, 16
      %v515 = vrot.slane %v513, 5
      %v516 = vsel %vm276, %v511, %v515
      %v518 = vshrl.u32 %v246, 16
      %v520 = vrot.slane %v518, 4
      %v521 = vshll.u32 %v246, 16
      %v523 = vrot.slane %v521, 5
      %v524 = vor.u32 %v520, %v523
      %v525 = vrot.slane %v524, 4
      %v527 = vshll.u32 %v247, 16
      %v529 = vrot.slane %v527, 5
      %v530 = vsel %vm276, %v525, %v529
      %v531 = vshrl.u32 %v247, 16
      %v533 = vrot.slane %v531, 4
      %v534 = vor.u32 %v533, %v529
      %v535 = vrot.slane %v534, 4
      %v537 = vshll.u32 %v248, 16
      %v539 = vrot.slane %v537, 5
      %v540 = vsel %vm276, %v535, %v539
      %v542 = vshrl.u32 %v249, 16
      %v544 = vrot.slane %v542, 4
      %v545 = vshll.u32 %v249, 16
      %v547 = vrot.slane %v545, 5
      %v548 = vor.u32 %v544, %v547
      %v549 = vrot.slane %v548, 4
      %v551 = vshll.u32 %v250, 16
      %v553 = vrot.slane %v551, 5
      %v554 = vsel %vm276, %v549, %v553
      %v555 = vshrl.u32 %v250, 16
      %v557 = vrot.slane %v555, 4
      %v558 = vor.u32 %v557, %v553
      %v559 = vrot.slane %v558, 4
      %v561 = vshll.u32 %v251, 16
      %v563 = vrot.slane %v561, 5
      %v564 = vsel %vm276, %v559, %v563
      %v566 = vshrl.u32 %v252, 16
      %v568 = vrot.slane %v566, 4
      %v569 = vshll.u32 %v252, 16
      %v571 = vrot.slane %v569, 5
      %v572 = vor.u32 %v568, %v571
      %v573 = vrot.slane %v572, 4
      %v575 = vshll.u32 %v253, 16
      %v577 = vrot.slane %v575, 5
      %v578 = vsel %vm276, %v573, %v577
      %v579 = vshrl.u32 %v253, 16
      %v581 = vrot.slane %v579, 4
      %v582 = vor.u32 %v581, %v577
      %v583 = vrot.slane %v582, 4
      %v585 = vshll.u32 %v254, 16
      %v587 = vrot.slane %v585, 5
      %v588 = vsel %vm276, %v583, %v587
      %v590 = vshrl.u32 %v255, 16
      %v592 = vrot.slane %v590, 4
      %v593 = vshll.u32 %v255, 16
      %v595 = vrot.slane %v593, 5
      %v596 = vor.u32 %v592, %v595
      %v597 = vrot.slane %v596, 4
      %v599 = vshll.u32 %v256, 16
      %v601 = vrot.slane %v599, 5
      %v602 = vsel %vm276, %v597, %v601
      %v603 = vshrl.u32 %v256, 16
      %v605 = vrot.slane %v603, 4
      %v606 = vor.u32 %v605, %v601
      %v607 = vrot.slane %v606, 4
      %v609 = vshll.u32 %v257, 16
      %v611 = vrot.slane %v609, 5
      %v612 = vsel %vm276, %v607, %v611
      %v614 = vshrl.u32 %v258, 16
      %v616 = vrot.slane %v614, 4
      %v617 = vshll.u32 %v258, 16
      %v619 = vrot.slane %v617, 5
      %v620 = vor.u32 %v616, %v619
      %v621 = vrot.slane %v620, 4
      %v623 = vshll.u32 %v259, 16
      %v625 = vrot.slane %v623, 5
      %v626 = vsel %vm276, %v621, %v625
      %v627 = vshrl.u32 %v259, 16
      %v629 = vrot.slane %v627, 4
      %v630 = vor.u32 %v629, %v625
      %v631 = vrot.slane %v630, 4
      %v633 = vshll.u32 %v260, 16
      %v635 = vrot.slane %v633, 5
      %v636 = vsel %vm276, %v631, %v635
      %v638 = vshrl.u32 %v261, 16
      %v640 = vrot.slane %v638, 4
      %v641 = vshll.u32 %v261, 16
      %v643 = vrot.slane %v641, 5
      %v644 = vor.u32 %v640, %v643
      %v645 = vrot.slane %v644, 4
      %v647 = vshll.u32 %v262, 16
      %v649 = vrot.slane %v647, 5
      %v650 = vsel %vm276, %v645, %v649
      %v651 = vshrl.u32 %v262, 16
      %v653 = vrot.slane %v651, 4
      %v654 = vor.u32 %v653, %v649
      %v655 = vrot.slane %v654, 4
      %v657 = vshll.u32 %v263, 16
      %v659 = vrot.slane %v657, 5
      %v660 = vsel %vm276, %v655, %v659
      %v661 = vld [vmem:[%s1 + $0x10] sm:$0xf]
      %v662 = vld [vmem:[%s1 + $0x14] sm:$0xf]
      %v663 = vld [vmem:[%s1 + $0x18] sm:$0xf]
      %v664 = vld [vmem:[%s1 + $0x1c] sm:$0xf]
      %v665 = vunpack.c.l.b16 %v290
      %v666 = vunpack.c.l.b16 %v300
      %v667 = vunpack.c.l.b16 %v314
      %v668 = vunpack.c.l.b16 %v324
      %v669 = vunpack.c.l.b16 %v338
      %v670 = vunpack.c.l.b16 %v348
      %v671 = vunpack.c.l.b16 %v362
      %v672 = vunpack.c.l.b16 %v372
      %v673 = vunpack.c.l.b16 %v386
      %v674 = vunpack.c.l.b16 %v396
      %v675 = vunpack.c.l.b16 %v410
      %v676 = vunpack.c.l.b16 %v420
      %v677 = vunpack.c.l.b16 %v434
      %v678 = vunpack.c.l.b16 %v444
      %v679 = vunpack.c.l.b16 %v458
      %v680 = vunpack.c.l.b16 %v468
      %v681 = vunpack.c.l.b16 %v482
      %v682 = vunpack.c.l.b16 %v492
      %v683 = vunpack.c.l.b16 %v506
      %v684 = vunpack.c.l.b16 %v516
      %v685 = vunpack.c.l.b16 %v530
      %v686 = vunpack.c.l.b16 %v540
      %v687 = vunpack.c.l.b16 %v554
      %v688 = vunpack.c.l.b16 %v564
      %v689 = vunpack.c.l.b16 %v578
      %v690 = vunpack.c.l.b16 %v588
      %v691 = vunpack.c.l.b16 %v602
      %v692 = vunpack.c.l.b16 %v612
      %v693 = vunpack.c.l.b16 %v626
      %v694 = vunpack.c.l.b16 %v636
      %v695 = vunpack.c.l.b16 %v650
      %v696 = vunpack.c.l.b16 %v660
      %v697 = vpack.c.b16 %v666, %v665
      %v698 = vpack.c.b16 %v668, %v667
      %v699 = vpack.c.b16 %v670, %v669
      %v700 = vpack.c.b16 %v672, %v671
      %v701 = vpack.c.b16 %v674, %v673
      %v702 = vpack.c.b16 %v676, %v675
      %v703 = vpack.c.b16 %v678, %v677
      %v704 = vpack.c.b16 %v680, %v679
      %v705 = vpack.c.b16 %v682, %v681
      %v706 = vpack.c.b16 %v684, %v683
      %v707 = vpack.c.b16 %v686, %v685
      %v708 = vpack.c.b16 %v688, %v687
      %v709 = vpack.c.b16 %v690, %v689
      %v710 = vpack.c.b16 %v692, %v691
      %v711 = vpack.c.b16 %v694, %v693
      %v712 = vpack.c.b16 %v696, %v695
      %v717 = vunpack.c.l.b16 %v661
      %v718 = vunpack.c.l.b16 %v662
      %v719 = vunpack.c.l.b16 %v663
      %v720 = vunpack.c.l.b16 %v664
      %v721 = vpack.c.b16 %v718, %v717
      %v722 = vpack.c.b16 %v720, %v719
      %vm725 = vcmask 261120
      %v727 = vsel %vm725, %v697, 0
      %v730 = vsel %vm725, %v698, 0
      %v733 = vsel %vm725, %v699, 0
      %v736 = vsel %vm725, %v700, 0
      %v739 = vsel %vm725, %v701, 0
      %v742 = vsel %vm725, %v702, 0
      %v745 = vsel %vm725, %v703, 0
      %v748 = vsel %vm725, %v704, 0
      %v751 = vsel %vm725, %v705, 0
      %v754 = vsel %vm725, %v706, 0
      %v757 = vsel %vm725, %v707, 0
      %v760 = vsel %vm725, %v708, 0
      %v763 = vsel %vm725, %v709, 0
      %v766 = vsel %vm725, %v710, 0
      %v769 = vsel %vm725, %v711, 0
      %v772 = vsel %vm725, %v712, 0
      %774 = vmatprep.subr.bf16.mxu0 0
      %775 = vmatpush1.bf16.msra.mxu0 0
      %776 = vmatprep.subr.bf16.mxu0 0
      %777 = vmatpush1.bf16.msra.mxu0 0
      %778 = vmatprep.subr.bf16.mxu0 0
      %779 = vmatpush1.bf16.msra.mxu0 0
      %780 = vmatprep.subr.bf16.mxu0 0
      %781 = vmatpush1.bf16.msra.mxu0 0
      %782 = vmatprep.subr.bf16.mxu0 0
      %783 = vmatpush1.bf16.msra.mxu0 0
      %784 = vmatprep.subr.bf16.mxu0 0
      %785 = vmatpush1.bf16.msra.mxu0 0
      %786 = vmatprep.subr.bf16.mxu0 0
      %787 = vmatpush1.bf16.msra.mxu0 %v722
      %788 = vmatprep.subr.bf16.mxu0 0
      %789 = vmatpush1.bf16.msra.mxu0 %v721
      %790 = vmatprep.subr.bf16.mxu0 0
      %791 = vmatpush2.bf16.msra.mxu0 0
      %792 = vmatprep.subr.bf16.mxu0 0
      %793 = vmatpush2.bf16.msra.mxu0 0
      %794 = vmatprep.subr.bf16.mxu0 0
      %795 = vmatpush2.bf16.msra.mxu0 0
      %796 = vmatprep.subr.bf16.mxu0 0
      %797 = vmatpush2.bf16.msra.mxu0 0
      %798 = vmatprep.subr.bf16.mxu0 0
      %799 = vmatpush2.bf16.msra.mxu0 0
      %800 = vmatprep.subr.bf16.mxu0 0
      %801 = vmatpush2.bf16.msra.mxu0 0
      %802 = vmatprep.subr.bf16.mxu0 0
      %803 = vmatpush2.bf16.msra.mxu0 0
      %804 = vmatprep.subr.bf16.mxu0 0
      %805 = vmatpush2.bf16.msra.mxu0 0
      %806 = vmatprep.mubr.bf16.mxu0 0
      %807 = vmatmul.mubr.bf16.gmra.mxu0 %v727
      %v808 = vpop.f32.mrf.mxu0
      %v809 = vadd.f32 0.0, %v808
      %v810 = vpop.f32.mrf.mxu0
      %v811 = vpop.f32.mrf.mxu0
      %v812 = vadd.f32 0.0, %v811
      %v813 = vpop.f32.mrf.mxu0
      %814 = vmatprep.mubr.bf16.mxu0 0
      %815 = vmatmul.mubr.bf16.gmra.mxu0 %v730
      %v816 = vpop.f32.mrf.mxu0
      %v817 = vadd.f32 0.0, %v816
      %v818 = vpop.f32.mrf.mxu0
      %v819 = vpop.f32.mrf.mxu0
      %v820 = vadd.f32 0.0, %v819
      %v821 = vpop.f32.mrf.mxu0
      %822 = vmatprep.mubr.bf16.mxu0 0
      %823 = vmatmul.mubr.bf16.gmra.mxu0 %v733
      %v824 = vpop.f32.mrf.mxu0
      %v825 = vadd.f32 0.0, %v824
      %v826 = vpop.f32.mrf.mxu0
      %v827 = vpop.f32.mrf.mxu0
      %v828 = vadd.f32 0.0, %v827
      %v829 = vpop.f32.mrf.mxu0
      %830 = vmatprep.mubr.bf16.mxu0 0
      %831 = vmatmul.mubr.bf16.gmra.mxu0 %v736
      %v832 = vpop.f32.mrf.mxu0
      %v833 = vadd.f32 0.0, %v832
      %v834 = vpop.f32.mrf.mxu0
      %v835 = vpop.f32.mrf.mxu0
      %v836 = vadd.f32 0.0, %v835
      %v837 = vpop.f32.mrf.mxu0
      %838 = vmatprep.mubr.bf16.mxu0 0
      %839 = vmatmul.mubr.bf16.gmra.mxu0 %v739
      %v840 = vpop.f32.mrf.mxu0
      %v841 = vadd.f32 0.0, %v840
      %v842 = vpop.f32.mrf.mxu0
      %v843 = vpop.f32.mrf.mxu0
      %v844 = vadd.f32 0.0, %v843
      %v845 = vpop.f32.mrf.mxu0
      %846 = vmatprep.mubr.bf16.mxu0 0
      %847 = vmatmul.mubr.bf16.gmra.mxu0 %v742
      %v848 = vpop.f32.mrf.mxu0
      %v849 = vadd.f32 0.0, %v848
      %v850 = vpop.f32.mrf.mxu0
      %v851 = vpop.f32.mrf.mxu0
      %v852 = vadd.f32 0.0, %v851
      %v853 = vpop.f32.mrf.mxu0
      %854 = vmatprep.mubr.bf16.mxu0 0
      %855 = vmatmul.mubr.bf16.gmra.mxu0 %v745
      %v856 = vpop.f32.mrf.mxu0
      %v857 = vadd.f32 0.0, %v856
      %v858 = vpop.f32.mrf.mxu0
      %v859 = vpop.f32.mrf.mxu0
      %v860 = vadd.f32 0.0, %v859
      %v861 = vpop.f32.mrf.mxu0
      %862 = vmatprep.mubr.bf16.mxu0 0
      %863 = vmatmul.mubr.bf16.gmra.mxu0 %v748
      %v864 = vpop.f32.mrf.mxu0
      %v865 = vadd.f32 0.0, %v864
      %v866 = vpop.f32.mrf.mxu0
      %v867 = vpop.f32.mrf.mxu0
      %v868 = vadd.f32 0.0, %v867
      %v869 = vpop.f32.mrf.mxu0
      %870 = vmatprep.mubr.bf16.mxu0 0
      %871 = vmatmul.mubr.bf16.gmra.mxu0 %v751
      %v872 = vpop.f32.mrf.mxu0
      %v873 = vadd.f32 0.0, %v872
      %v874 = vpop.f32.mrf.mxu0
      %v875 = vpop.f32.mrf.mxu0
      %v876 = vadd.f32 0.0, %v875
      %v877 = vpop.f32.mrf.mxu0
      %878 = vmatprep.mubr.bf16.mxu0 0
      %879 = vmatmul.mubr.bf16.gmra.mxu0 %v754
      %v880 = vpop.f32.mrf.mxu0
      %v881 = vadd.f32 0.0, %v880
      %v882 = vpop.f32.mrf.mxu0
      %v883 = vpop.f32.mrf.mxu0
      %v884 = vadd.f32 0.0, %v883
      %v885 = vpop.f32.mrf.mxu0
      %886 = vmatprep.mubr.bf16.mxu0 0
      %887 = vmatmul.mubr.bf16.gmra.mxu0 %v757
      %v888 = vpop.f32.mrf.mxu0
      %v889 = vadd.f32 0.0, %v888
      %v890 = vpop.f32.mrf.mxu0
      %v891 = vpop.f32.mrf.mxu0
      %v892 = vadd.f32 0.0, %v891
      %v893 = vpop.f32.mrf.mxu0
      %894 = vmatprep.mubr.bf16.mxu0 0
      %895 = vmatmul.mubr.bf16.gmra.mxu0 %v760
      %v896 = vpop.f32.mrf.mxu0
      %v897 = vadd.f32 0.0, %v896
      %v898 = vpop.f32.mrf.mxu0
      %v899 = vpop.f32.mrf.mxu0
      %v900 = vadd.f32 0.0, %v899
      %v901 = vpop.f32.mrf.mxu0
      %902 = vmatprep.mubr.bf16.mxu0 0
      %903 = vmatmul.mubr.bf16.gmra.mxu0 %v763
      %v904 = vpop.f32.mrf.mxu0
      %v905 = vadd.f32 0.0, %v904
      %v906 = vpop.f32.mrf.mxu0
      %v907 = vpop.f32.mrf.mxu0
      %v908 = vadd.f32 0.0, %v907
      %v909 = vpop.f32.mrf.mxu0
      %910 = vmatprep.mubr.bf16.mxu0 0
      %911 = vmatmul.mubr.bf16.gmra.mxu0 %v766
      %v912 = vpop.f32.mrf.mxu0
      %v913 = vadd.f32 0.0, %v912
      %v914 = vpop.f32.mrf.mxu0
      %v915 = vpop.f32.mrf.mxu0
      %v916 = vadd.f32 0.0, %v915
      %v917 = vpop.f32.mrf.mxu0
      %918 = vmatprep.mubr.bf16.mxu0 0
      %919 = vmatmul.mubr.bf16.gmra.mxu0 %v769
      %v920 = vpop.f32.mrf.mxu0
      %v921 = vadd.f32 0.0, %v920
      %v922 = vpop.f32.mrf.mxu0
      %v923 = vpop.f32.mrf.mxu0
      %v924 = vadd.f32 0.0, %v923
      %v925 = vpop.f32.mrf.mxu0
      %926 = vmatprep.mubr.bf16.mxu0 0
      %927 = vmatmul.mubr.bf16.gmra.mxu0 %v772
      %v928 = vpop.f32.mrf.mxu0
      %v929 = vadd.f32 0.0, %v928
      %v930 = vpop.f32.mrf.mxu0
      %v931 = vpop.f32.mrf.mxu0
      %v932 = vadd.f32 0.0, %v931
      %v933 = vpop.f32.mrf.mxu0
      %934 = vdwg.mxu0
      %v967 = vunpack.c.l.b16 %v216
      %v968 = vunpack.c.l.b16 %v217
      %v969 = vunpack.c.l.b16 %v219
      %v970 = vunpack.c.l.b16 %v220
      %v971 = vunpack.c.l.b16 %v222
      %v972 = vunpack.c.l.b16 %v223
      %v973 = vunpack.c.l.b16 %v225
      %v974 = vunpack.c.l.b16 %v226
      %v975 = vunpack.c.l.b16 %v228
      %v976 = vunpack.c.l.b16 %v229
      %v977 = vunpack.c.l.b16 %v231
      %v978 = vunpack.c.l.b16 %v232
      %v979 = vunpack.c.l.b16 %v234
      %v980 = vunpack.c.l.b16 %v235
      %v981 = vunpack.c.l.b16 %v237
      %v982 = vunpack.c.l.b16 %v238
      %v983 = vunpack.c.l.b16 %v240
      %v984 = vunpack.c.l.b16 %v241
      %v985 = vunpack.c.l.b16 %v243
      %v986 = vunpack.c.l.b16 %v244
      %v987 = vunpack.c.l.b16 %v246
      %v988 = vunpack.c.l.b16 %v247
      %v989 = vunpack.c.l.b16 %v249
      %v990 = vunpack.c.l.b16 %v250
      %v991 = vunpack.c.l.b16 %v252
      %v992 = vunpack.c.l.b16 %v253
      %v993 = vunpack.c.l.b16 %v255
      %v994 = vunpack.c.l.b16 %v256
      %v995 = vunpack.c.l.b16 %v258
      %v996 = vunpack.c.l.b16 %v259
      %v997 = vunpack.c.l.b16 %v261
      %v998 = vunpack.c.l.b16 %v262
      %v999 = vpack.c.b16 %v968, %v967
      %v1000 = vpack.c.b16 %v970, %v969
      %v1001 = vpack.c.b16 %v972, %v971
      %v1002 = vpack.c.b16 %v974, %v973
      %v1003 = vpack.c.b16 %v976, %v975
      %v1004 = vpack.c.b16 %v978, %v977
      %v1005 = vpack.c.b16 %v980, %v979
      %v1006 = vpack.c.b16 %v982, %v981
      %v1007 = vpack.c.b16 %v984, %v983
      %v1008 = vpack.c.b16 %v986, %v985
      %v1009 = vpack.c.b16 %v988, %v987
      %v1010 = vpack.c.b16 %v990, %v989
      %v1011 = vpack.c.b16 %v992, %v991
      %v1012 = vpack.c.b16 %v994, %v993
      %v1013 = vpack.c.b16 %v996, %v995
      %v1014 = vpack.c.b16 %v998, %v997
      %v1019 = vunpack.c.l.b16 %v270
      %v1020 = vunpack.c.l.b16 %v271
      %v1021 = vunpack.c.l.b16 %v272
      %v1022 = vunpack.c.l.b16 %v273
      %v1023 = vpack.c.b16 %v1020, %v1019
      %v1024 = vpack.c.b16 %v1022, %v1021
      %v1028 = vsel %vm725, %v999, 0
      %v1031 = vsel %vm725, %v1000, 0
      %v1034 = vsel %vm725, %v1001, 0
      %v1037 = vsel %vm725, %v1002, 0
      %v1040 = vsel %vm725, %v1003, 0
      %v1043 = vsel %vm725, %v1004, 0
      %v1046 = vsel %vm725, %v1005, 0
      %v1049 = vsel %vm725, %v1006, 0
      %v1052 = vsel %vm725, %v1007, 0
      %v1055 = vsel %vm725, %v1008, 0
      %v1058 = vsel %vm725, %v1009, 0
      %v1061 = vsel %vm725, %v1010, 0
      %v1064 = vsel %vm725, %v1011, 0
      %v1067 = vsel %vm725, %v1012, 0
      %v1070 = vsel %vm725, %v1013, 0
      %v1073 = vsel %vm725, %v1014, 0
      %1075 = vmatprep.subr.bf16.mxu0 0
      %1076 = vmatpush1.bf16.msra.mxu0 0
      %1077 = vmatprep.subr.bf16.mxu0 0
      %1078 = vmatpush1.bf16.msra.mxu0 0
      %1079 = vmatprep.subr.bf16.mxu0 0
      %1080 = vmatpush1.bf16.msra.mxu0 0
      %1081 = vmatprep.subr.bf16.mxu0 0
      %1082 = vmatpush1.bf16.msra.mxu0 0
      %1083 = vmatprep.subr.bf16.mxu0 0
      %1084 = vmatpush1.bf16.msra.mxu0 0
      %1085 = vmatprep.subr.bf16.mxu0 0
      %1086 = vmatpush1.bf16.msra.mxu0 0
      %1087 = vmatprep.subr.bf16.mxu0 0
      %1088 = vmatpush1.bf16.msra.mxu0 %v1024
      %1089 = vmatprep.subr.bf16.mxu0 0
      %1090 = vmatpush1.bf16.msra.mxu0 %v1023
      %1091 = vmatprep.subr.bf16.mxu0 0
      %1092 = vmatpush2.bf16.msra.mxu0 0
      %1093 = vmatprep.subr.bf16.mxu0 0
      %1094 = vmatpush2.bf16.msra.mxu0 0
      %1095 = vmatprep.subr.bf16.mxu0 0
      %1096 = vmatpush2.bf16.msra.mxu0 0
      %1097 = vmatprep.subr.bf16.mxu0 0
      %1098 = vmatpush2.bf16.msra.mxu0 0
      %1099 = vmatprep.subr.bf16.mxu0 0
      %1100 = vmatpush2.bf16.msra.mxu0 0
      %1101 = vmatprep.subr.bf16.mxu0 0
      %1102 = vmatpush2.bf16.msra.mxu0 0
      %1103 = vmatprep.subr.bf16.mxu0 0
      %1104 = vmatpush2.bf16.msra.mxu0 0
      %1105 = vmatprep.subr.bf16.mxu0 0
      %1106 = vmatpush2.bf16.msra.mxu0 0
      %1107 = vmatprep.mubr.bf16.mxu0 0
      %1108 = vmatmul.mubr.bf16.gmra.mxu0 %v1028
      %v1109 = vpop.f32.mrf.mxu0
      %v1110 = vadd.f32 %v809, %v1109
      %v1111 = vpop.f32.mrf.mxu0
      %v1112 = vpop.f32.mrf.mxu0
      %v1113 = vadd.f32 %v812, %v1112
      %v1114 = vpop.f32.mrf.mxu0
      %1115 = vmatprep.mubr.bf16.mxu0 0
      %1116 = vmatmul.mubr.bf16.gmra.mxu0 %v1031
      %v1117 = vpop.f32.mrf.mxu0
      %v1118 = vadd.f32 %v817, %v1117
      %v1119 = vpop.f32.mrf.mxu0
      %v1120 = vpop.f32.mrf.mxu0
      %v1121 = vadd.f32 %v820, %v1120
      %v1122 = vpop.f32.mrf.mxu0
      %1123 = vmatprep.mubr.bf16.mxu0 0
      %1124 = vmatmul.mubr.bf16.gmra.mxu0 %v1034
      %v1125 = vpop.f32.mrf.mxu0
      %v1126 = vadd.f32 %v825, %v1125
      %v1127 = vpop.f32.mrf.mxu0
      %v1128 = vpop.f32.mrf.mxu0
      %v1129 = vadd.f32 %v828, %v1128
      %v1130 = vpop.f32.mrf.mxu0
      %1131 = vmatprep.mubr.bf16.mxu0 0
      %1132 = vmatmul.mubr.bf16.gmra.mxu0 %v1037
      %v1133 = vpop.f32.mrf.mxu0
      %v1134 = vadd.f32 %v833, %v1133
      %v1135 = vpop.f32.mrf.mxu0
      %v1136 = vpop.f32.mrf.mxu0
      %v1137 = vadd.f32 %v836, %v1136
      %v1138 = vpop.f32.mrf.mxu0
      %1139 = vmatprep.mubr.bf16.mxu0 0
      %1140 = vmatmul.mubr.bf16.gmra.mxu0 %v1040
      %v1141 = vpop.f32.mrf.mxu0
      %v1142 = vadd.f32 %v841, %v1141
      %v1143 = vpop.f32.mrf.mxu0
      %v1144 = vpop.f32.mrf.mxu0
      %v1145 = vadd.f32 %v844, %v1144
      %v1146 = vpop.f32.mrf.mxu0
      %1147 = vmatprep.mubr.bf16.mxu0 0
      %1148 = vmatmul.mubr.bf16.gmra.mxu0 %v1043
      %v1149 = vpop.f32.mrf.mxu0
      %v1150 = vadd.f32 %v849, %v1149
      %v1151 = vpop.f32.mrf.mxu0
      %v1152 = vpop.f32.mrf.mxu0
      %v1153 = vadd.f32 %v852, %v1152
      %v1154 = vpop.f32.mrf.mxu0
      %1155 = vmatprep.mubr.bf16.mxu0 0
      %1156 = vmatmul.mubr.bf16.gmra.mxu0 %v1046
      %v1157 = vpop.f32.mrf.mxu0
      %v1158 = vadd.f32 %v857, %v1157
      %v1159 = vpop.f32.mrf.mxu0
      %v1160 = vpop.f32.mrf.mxu0
      %v1161 = vadd.f32 %v860, %v1160
      %v1162 = vpop.f32.mrf.mxu0
      %1163 = vmatprep.mubr.bf16.mxu0 0
      %1164 = vmatmul.mubr.bf16.gmra.mxu0 %v1049
      %v1165 = vpop.f32.mrf.mxu0
      %v1166 = vadd.f32 %v865, %v1165
      %v1167 = vpop.f32.mrf.mxu0
      %v1168 = vpop.f32.mrf.mxu0
      %v1169 = vadd.f32 %v868, %v1168
      %v1170 = vpop.f32.mrf.mxu0
      %1171 = vmatprep.mubr.bf16.mxu0 0
      %1172 = vmatmul.mubr.bf16.gmra.mxu0 %v1052
      %v1173 = vpop.f32.mrf.mxu0
      %v1174 = vadd.f32 %v873, %v1173
      %v1175 = vpop.f32.mrf.mxu0
      %v1176 = vpop.f32.mrf.mxu0
      %v1177 = vadd.f32 %v876, %v1176
      %v1178 = vpop.f32.mrf.mxu0
      %1179 = vmatprep.mubr.bf16.mxu0 0
      %1180 = vmatmul.mubr.bf16.gmra.mxu0 %v1055
      %v1181 = vpop.f32.mrf.mxu0
      %v1182 = vadd.f32 %v881, %v1181
      %v1183 = vpop.f32.mrf.mxu0
      %v1184 = vpop.f32.mrf.mxu0
      %v1185 = vadd.f32 %v884, %v1184
      %v1186 = vpop.f32.mrf.mxu0
      %1187 = vmatprep.mubr.bf16.mxu0 0
      %1188 = vmatmul.mubr.bf16.gmra.mxu0 %v1058
      %v1189 = vpop.f32.mrf.mxu0
      %v1190 = vadd.f32 %v889, %v1189
      %v1191 = vpop.f32.mrf.mxu0
      %v1192 = vpop.f32.mrf.mxu0
      %v1193 = vadd.f32 %v892, %v1192
      %v1194 = vpop.f32.mrf.mxu0
      %1195 = vmatprep.mubr.bf16.mxu0 0
      %1196 = vmatmul.mubr.bf16.gmra.mxu0 %v1061
      %v1197 = vpop.f32.mrf.mxu0
      %v1198 = vadd.f32 %v897, %v1197
      %v1199 = vpop.f32.mrf.mxu0
      %v1200 = vpop.f32.mrf.mxu0
      %v1201 = vadd.f32 %v900, %v1200
      %v1202 = vpop.f32.mrf.mxu0
      %1203 = vmatprep.mubr.bf16.mxu0 0
      %1204 = vmatmul.mubr.bf16.gmra.mxu0 %v1064
      %v1205 = vpop.f32.mrf.mxu0
      %v1206 = vadd.f32 %v905, %v1205
      %v1207 = vpop.f32.mrf.mxu0
      %v1208 = vpop.f32.mrf.mxu0
      %v1209 = vadd.f32 %v908, %v1208
      %v1210 = vpop.f32.mrf.mxu0
      %1211 = vmatprep.mubr.bf16.mxu0 0
      %1212 = vmatmul.mubr.bf16.gmra.mxu0 %v1067
      %v1213 = vpop.f32.mrf.mxu0
      %v1214 = vadd.f32 %v913, %v1213
      %v1215 = vpop.f32.mrf.mxu0
      %v1216 = vpop.f32.mrf.mxu0
      %v1217 = vadd.f32 %v916, %v1216
      %v1218 = vpop.f32.mrf.mxu0
      %1219 = vmatprep.mubr.bf16.mxu0 0
      %1220 = vmatmul.mubr.bf16.gmra.mxu0 %v1070
      %v1221 = vpop.f32.mrf.mxu0
      %v1222 = vadd.f32 %v921, %v1221
      %v1223 = vpop.f32.mrf.mxu0
      %v1224 = vpop.f32.mrf.mxu0
      %v1225 = vadd.f32 %v924, %v1224
      %v1226 = vpop.f32.mrf.mxu0
      %1227 = vmatprep.mubr.bf16.mxu0 0
      %1228 = vmatmul.mubr.bf16.gmra.mxu0 %v1073
      %v1229 = vpop.f32.mrf.mxu0
      %v1230 = vadd.f32 %v929, %v1229
      %v1231 = vpop.f32.mrf.mxu0
      %v1232 = vpop.f32.mrf.mxu0
      %v1233 = vadd.f32 %v932, %v1232
      %v1234 = vpop.f32.mrf.mxu0
      %1235 = vdwg.mxu0
      %vm1252 = vcmask 1042432
      %vm1253 = vcmask 1046532
      %vm1254 = vmor %vm1252, %vm1253
      %v1255 = vrot.slane %v216, 5
      %v1256 = vrot.slane %v1255, 4
      %v1257 = vrot.slane %v217, 5
      %v1258 = vsel %vm1254, %v1256, %v1257
      %v1259 = vrot.slane %v1257, 4
      %v1260 = vrot.slane %v218, 5
      %v1261 = vsel %vm1254, %v1259, %v1260
      %v1262 = vrot.slane %v219, 5
      %v1263 = vrot.slane %v1262, 4
      %v1264 = vrot.slane %v220, 5
      %v1265 = vsel %vm1254, %v1263, %v1264
      %v1266 = vrot.slane %v1264, 4
      %v1267 = vrot.slane %v221, 5
      %v1268 = vsel %vm1254, %v1266, %v1267
      %v1269 = vrot.slane %v222, 5
      %v1270 = vrot.slane %v1269, 4
      %v1271 = vrot.slane %v223, 5
      %v1272 = vsel %vm1254, %v1270, %v1271
      %v1273 = vrot.slane %v1271, 4
      %v1274 = vrot.slane %v224, 5
      %v1275 = vsel %vm1254, %v1273, %v1274
      %v1276 = vrot.slane %v225, 5
      %v1277 = vrot.slane %v1276, 4
      %v1278 = vrot.slane %v226, 5
      %v1279 = vsel %vm1254, %v1277, %v1278
      %v1280 = vrot.slane %v1278, 4
      %v1281 = vrot.slane %v227, 5
      %v1282 = vsel %vm1254, %v1280, %v1281
      %v1283 = vrot.slane %v228, 5
      %v1284 = vrot.slane %v1283, 4
      %v1285 = vrot.slane %v229, 5
      %v1286 = vsel %vm1254, %v1284, %v1285
      %v1287 = vrot.slane %v1285, 4
      %v1288 = vrot.slane %v230, 5
      %v1289 = vsel %vm1254, %v1287, %v1288
      %v1290 = vrot.slane %v231, 5
      %v1291 = vrot.slane %v1290, 4
      %v1292 = vrot.slane %v232, 5
      %v1293 = vsel %vm1254, %v1291, %v1292
      %v1294 = vrot.slane %v1292, 4
      %v1295 = vrot.slane %v233, 5
      %v1296 = vsel %vm1254, %v1294, %v1295
      %v1297 = vrot.slane %v234, 5
      %v1298 = vrot.slane %v1297, 4
      %v1299 = vrot.slane %v235, 5
      %v1300 = vsel %vm1254, %v1298, %v1299
      %v1301 = vrot.slane %v1299, 4
      %v1302 = vrot.slane %v236, 5
      %v1303 = vsel %vm1254, %v1301, %v1302
      %v1304 = vrot.slane %v237, 5
      %v1305 = vrot.slane %v1304, 4
      %v1306 = vrot.slane %v238, 5
      %v1307 = vsel %vm1254, %v1305, %v1306
      %v1308 = vrot.slane %v1306, 4
      %v1309 = vrot.slane %v239, 5
      %v1310 = vsel %vm1254, %v1308, %v1309
      %v1311 = vrot.slane %v240, 5
      %v1312 = vrot.slane %v1311, 4
      %v1313 = vrot.slane %v241, 5
      %v1314 = vsel %vm1254, %v1312, %v1313
      %v1315 = vrot.slane %v1313, 4
      %v1316 = vrot.slane %v242, 5
      %v1317 = vsel %vm1254, %v1315, %v1316
      %v1318 = vrot.slane %v243, 5
      %v1319 = vrot.slane %v1318, 4
      %v1320 = vrot.slane %v244, 5
      %v1321 = vsel %vm1254, %v1319, %v1320
      %v1322 = vrot.slane %v1320, 4
      %v1323 = vrot.slane %v245, 5
      %v1324 = vsel %vm1254, %v1322, %v1323
      %v1325 = vrot.slane %v246, 5
      %v1326 = vrot.slane %v1325, 4
      %v1327 = vrot.slane %v247, 5
      %v1328 = vsel %vm1254, %v1326, %v1327
      %v1329 = vrot.slane %v1327, 4
      %v1330 = vrot.slane %v248, 5
      %v1331 = vsel %vm1254, %v1329, %v1330
      %v1332 = vrot.slane %v249, 5
      %v1333 = vrot.slane %v1332, 4
      %v1334 = vrot.slane %v250, 5
      %v1335 = vsel %vm1254, %v1333, %v1334
      %v1336 = vrot.slane %v1334, 4
      %v1337 = vrot.slane %v251, 5
      %v1338 = vsel %vm1254, %v1336, %v1337
      %v1339 = vrot.slane %v252, 5
      %v1340 = vrot.slane %v1339, 4
      %v1341 = vrot.slane %v253, 5
      %v1342 = vsel %vm1254, %v1340, %v1341
      %v1343 = vrot.slane %v1341, 4
      %v1344 = vrot.slane %v254, 5
      %v1345 = vsel %vm1254, %v1343, %v1344
      %v1346 = vrot.slane %v255, 5
      %v1347 = vrot.slane %v1346, 4
      %v1348 = vrot.slane %v256, 5
      %v1349 = vsel %vm1254, %v1347, %v1348
      %v1350 = vrot.slane %v1348, 4
      %v1351 = vrot.slane %v257, 5
      %v1352 = vsel %vm1254, %v1350, %v1351
      %v1353 = vrot.slane %v258, 5
      %v1354 = vrot.slane %v1353, 4
      %v1355 = vrot.slane %v259, 5
      %v1356 = vsel %vm1254, %v1354, %v1355
      %v1357 = vrot.slane %v1355, 4
      %v1358 = vrot.slane %v260, 5
      %v1359 = vsel %vm1254, %v1357, %v1358
      %v1360 = vrot.slane %v261, 5
      %v1361 = vrot.slane %v1360, 4
      %v1362 = vrot.slane %v262, 5
      %v1363 = vsel %vm1254, %v1361, %v1362
      %v1364 = vrot.slane %v1362, 4
      %v1365 = vrot.slane %v263, 5
      %v1366 = vsel %vm1254, %v1364, %v1365
      %v1367 = vld [vmem:[%s1 + $0x20] sm:$0xf]
      %v1368 = vld [vmem:[%s1 + $0x24] sm:$0xf]
      %v1369 = vld [vmem:[%s1 + $0x28] sm:$0xf]
      %v1370 = vld [vmem:[%s1 + $0x2c] sm:$0xf]
      %v1371 = vunpack.c.l.b16 %v1258
      %v1372 = vunpack.c.l.b16 %v1261
      %v1373 = vunpack.c.l.b16 %v1265
      %v1374 = vunpack.c.l.b16 %v1268
      %v1375 = vunpack.c.l.b16 %v1272
      %v1376 = vunpack.c.l.b16 %v1275
      %v1377 = vunpack.c.l.b16 %v1279
      %v1378 = vunpack.c.l.b16 %v1282
      %v1379 = vunpack.c.l.b16 %v1286
      %v1380 = vunpack.c.l.b16 %v1289
      %v1381 = vunpack.c.l.b16 %v1293
      %v1382 = vunpack.c.l.b16 %v1296
      %v1383 = vunpack.c.l.b16 %v1300
      %v1384 = vunpack.c.l.b16 %v1303
      %v1385 = vunpack.c.l.b16 %v1307
      %v1386 = vunpack.c.l.b16 %v1310
      %v1387 = vunpack.c.l.b16 %v1314
      %v1388 = vunpack.c.l.b16 %v1317
      %v1389 = vunpack.c.l.b16 %v1321
      %v1390 = vunpack.c.l.b16 %v1324
      %v1391 = vunpack.c.l.b16 %v1328
      %v1392 = vunpack.c.l.b16 %v1331
      %v1393 = vunpack.c.l.b16 %v1335
      %v1394 = vunpack.c.l.b16 %v1338
      %v1395 = vunpack.c.l.b16 %v1342
      %v1396 = vunpack.c.l.b16 %v1345
      %v1397 = vunpack.c.l.b16 %v1349
      %v1398 = vunpack.c.l.b16 %v1352
      %v1399 = vunpack.c.l.b16 %v1356
      %v1400 = vunpack.c.l.b16 %v1359
      %v1401 = vunpack.c.l.b16 %v1363
      %v1402 = vunpack.c.l.b16 %v1366
      %v1403 = vpack.c.b16 %v1372, %v1371
      %v1404 = vpack.c.b16 %v1374, %v1373
      %v1405 = vpack.c.b16 %v1376, %v1375
      %v1406 = vpack.c.b16 %v1378, %v1377
      %v1407 = vpack.c.b16 %v1380, %v1379
      %v1408 = vpack.c.b16 %v1382, %v1381
      %v1409 = vpack.c.b16 %v1384, %v1383
      %v1410 = vpack.c.b16 %v1386, %v1385
      %v1411 = vpack.c.b16 %v1388, %v1387
      %v1412 = vpack.c.b16 %v1390, %v1389
      %v1413 = vpack.c.b16 %v1392, %v1391
      %v1414 = vpack.c.b16 %v1394, %v1393
      %v1415 = vpack.c.b16 %v1396, %v1395
      %v1416 = vpack.c.b16 %v1398, %v1397
      %v1417 = vpack.c.b16 %v1400, %v1399
      %v1418 = vpack.c.b16 %v1402, %v1401
      %v1423 = vunpack.c.l.b16 %v1367
      %v1424 = vunpack.c.l.b16 %v1368
      %v1425 = vunpack.c.l.b16 %v1369
      %v1426 = vunpack.c.l.b16 %v1370
      %v1427 = vpack.c.b16 %v1424, %v1423
      %v1428 = vpack.c.b16 %v1426, %v1425
      %v1432 = vsel %vm725, %v1403, 0
      %v1435 = vsel %vm725, %v1404, 0
      %v1438 = vsel %vm725, %v1405, 0
      %v1441 = vsel %vm725, %v1406, 0
      %v1444 = vsel %vm725, %v1407, 0
      %v1447 = vsel %vm725, %v1408, 0
      %v1450 = vsel %vm725, %v1409, 0
      %v1453 = vsel %vm725, %v1410, 0
      %v1456 = vsel %vm725, %v1411, 0
      %v1459 = vsel %vm725, %v1412, 0
      %v1462 = vsel %vm725, %v1413, 0
      %v1465 = vsel %vm725, %v1414, 0
      %v1468 = vsel %vm725, %v1415, 0
      %v1471 = vsel %vm725, %v1416, 0
      %v1474 = vsel %vm725, %v1417, 0
      %v1477 = vsel %vm725, %v1418, 0
      %1479 = vmatprep.subr.bf16.mxu0 0
      %1480 = vmatpush1.bf16.msra.mxu0 0
      %1481 = vmatprep.subr.bf16.mxu0 0
      %1482 = vmatpush1.bf16.msra.mxu0 0
      %1483 = vmatprep.subr.bf16.mxu0 0
      %1484 = vmatpush1.bf16.msra.mxu0 0
      %1485 = vmatprep.subr.bf16.mxu0 0
      %1486 = vmatpush1.bf16.msra.mxu0 0
      %1487 = vmatprep.subr.bf16.mxu0 0
      %1488 = vmatpush1.bf16.msra.mxu0 0
      %1489 = vmatprep.subr.bf16.mxu0 0
      %1490 = vmatpush1.bf16.msra.mxu0 0
      %1491 = vmatprep.subr.bf16.mxu0 0
      %1492 = vmatpush1.bf16.msra.mxu0 %v1428
      %1493 = vmatprep.subr.bf16.mxu0 0
      %1494 = vmatpush1.bf16.msra.mxu0 %v1427
      %1495 = vmatprep.subr.bf16.mxu0 0
      %1496 = vmatpush2.bf16.msra.mxu0 0
      %1497 = vmatprep.subr.bf16.mxu0 0
      %1498 = vmatpush2.bf16.msra.mxu0 0
      %1499 = vmatprep.subr.bf16.mxu0 0
      %1500 = vmatpush2.bf16.msra.mxu0 0
      %1501 = vmatprep.subr.bf16.mxu0 0
      %1502 = vmatpush2.bf16.msra.mxu0 0
      %1503 = vmatprep.subr.bf16.mxu0 0
      %1504 = vmatpush2.bf16.msra.mxu0 0
      %1505 = vmatprep.subr.bf16.mxu0 0
      %1506 = vmatpush2.bf16.msra.mxu0 0
      %1507 = vmatprep.subr.bf16.mxu0 0
      %1508 = vmatpush2.bf16.msra.mxu0 0
      %1509 = vmatprep.subr.bf16.mxu0 0
      %1510 = vmatpush2.bf16.msra.mxu0 0
      %1511 = vmatprep.mubr.bf16.mxu0 0
      %1512 = vmatmul.mubr.bf16.gmra.mxu0 %v1432
      %v1513 = vpop.f32.mrf.mxu0
      %v1514 = vadd.f32 0.0, %v1513
      %v1515 = vpop.f32.mrf.mxu0
      %v1516 = vpop.f32.mrf.mxu0
      %v1517 = vadd.f32 0.0, %v1516
      %v1518 = vpop.f32.mrf.mxu0
      %1519 = vmatprep.mubr.bf16.mxu0 0
      %1520 = vmatmul.mubr.bf16.gmra.mxu0 %v1435
      %v1521 = vpop.f32.mrf.mxu0
      %v1522 = vadd.f32 0.0, %v1521
      %v1523 = vpop.f32.mrf.mxu0
      %v1524 = vpop.f32.mrf.mxu0
      %v1525 = vadd.f32 0.0, %v1524
      %v1526 = vpop.f32.mrf.mxu0
      %1527 = vmatprep.mubr.bf16.mxu0 0
      %1528 = vmatmul.mubr.bf16.gmra.mxu0 %v1438
      %v1529 = vpop.f32.mrf.mxu0
      %v1530 = vadd.f32 0.0, %v1529
      %v1531 = vpop.f32.mrf.mxu0
      %v1532 = vpop.f32.mrf.mxu0
      %v1533 = vadd.f32 0.0, %v1532
      %v1534 = vpop.f32.mrf.mxu0
      %1535 = vmatprep.mubr.bf16.mxu0 0
      %1536 = vmatmul.mubr.bf16.gmra.mxu0 %v1441
      %v1537 = vpop.f32.mrf.mxu0
      %v1538 = vadd.f32 0.0, %v1537
      %v1539 = vpop.f32.mrf.mxu0
      %v1540 = vpop.f32.mrf.mxu0
      %v1541 = vadd.f32 0.0, %v1540
      %v1542 = vpop.f32.mrf.mxu0
      %1543 = vmatprep.mubr.bf16.mxu0 0
      %1544 = vmatmul.mubr.bf16.gmra.mxu0 %v1444
      %v1545 = vpop.f32.mrf.mxu0
      %v1546 = vadd.f32 0.0, %v1545
      %v1547 = vpop.f32.mrf.mxu0
      %v1548 = vpop.f32.mrf.mxu0
      %v1549 = vadd.f32 0.0, %v1548
      %v1550 = vpop.f32.mrf.mxu0
      %1551 = vmatprep.mubr.bf16.mxu0 0
      %1552 = vmatmul.mubr.bf16.gmra.mxu0 %v1447
      %v1553 = vpop.f32.mrf.mxu0
      %v1554 = vadd.f32 0.0, %v1553
      %v1555 = vpop.f32.mrf.mxu0
      %v1556 = vpop.f32.mrf.mxu0
      %v1557 = vadd.f32 0.0, %v1556
      %v1558 = vpop.f32.mrf.mxu0
      %1559 = vmatprep.mubr.bf16.mxu0 0
      %1560 = vmatmul.mubr.bf16.gmra.mxu0 %v1450
      %v1561 = vpop.f32.mrf.mxu0
      %v1562 = vadd.f32 0.0, %v1561
      %v1563 = vpop.f32.mrf.mxu0
      %v1564 = vpop.f32.mrf.mxu0
      %v1565 = vadd.f32 0.0, %v1564
      %v1566 = vpop.f32.mrf.mxu0
      %1567 = vmatprep.mubr.bf16.mxu0 0
      %1568 = vmatmul.mubr.bf16.gmra.mxu0 %v1453
      %v1569 = vpop.f32.mrf.mxu0
      %v1570 = vadd.f32 0.0, %v1569
      %v1571 = vpop.f32.mrf.mxu0
      %v1572 = vpop.f32.mrf.mxu0
      %v1573 = vadd.f32 0.0, %v1572
      %v1574 = vpop.f32.mrf.mxu0
      %1575 = vmatprep.mubr.bf16.mxu0 0
      %1576 = vmatmul.mubr.bf16.gmra.mxu0 %v1456
      %v1577 = vpop.f32.mrf.mxu0
      %v1578 = vadd.f32 0.0, %v1577
      %v1579 = vpop.f32.mrf.mxu0
      %v1580 = vpop.f32.mrf.mxu0
      %v1581 = vadd.f32 0.0, %v1580
      %v1582 = vpop.f32.mrf.mxu0
      %1583 = vmatprep.mubr.bf16.mxu0 0
      %1584 = vmatmul.mubr.bf16.gmra.mxu0 %v1459
      %v1585 = vpop.f32.mrf.mxu0
      %v1586 = vadd.f32 0.0, %v1585
      %v1587 = vpop.f32.mrf.mxu0
      %v1588 = vpop.f32.mrf.mxu0
      %v1589 = vadd.f32 0.0, %v1588
      %v1590 = vpop.f32.mrf.mxu0
      %1591 = vmatprep.mubr.bf16.mxu0 0
      %1592 = vmatmul.mubr.bf16.gmra.mxu0 %v1462
      %v1593 = vpop.f32.mrf.mxu0
      %v1594 = vadd.f32 0.0, %v1593
      %v1595 = vpop.f32.mrf.mxu0
      %v1596 = vpop.f32.mrf.mxu0
      %v1597 = vadd.f32 0.0, %v1596
      %v1598 = vpop.f32.mrf.mxu0
      %1599 = vmatprep.mubr.bf16.mxu0 0
      %1600 = vmatmul.mubr.bf16.gmra.mxu0 %v1465
      %v1601 = vpop.f32.mrf.mxu0
      %v1602 = vadd.f32 0.0, %v1601
      %v1603 = vpop.f32.mrf.mxu0
      %v1604 = vpop.f32.mrf.mxu0
      %v1605 = vadd.f32 0.0, %v1604
      %v1606 = vpop.f32.mrf.mxu0
      %1607 = vmatprep.mubr.bf16.mxu0 0
      %1608 = vmatmul.mubr.bf16.gmra.mxu0 %v1468
      %v1609 = vpop.f32.mrf.mxu0
      %v1610 = vadd.f32 0.0, %v1609
      %v1611 = vpop.f32.mrf.mxu0
      %v1612 = vpop.f32.mrf.mxu0
      %v1613 = vadd.f32 0.0, %v1612
      %v1614 = vpop.f32.mrf.mxu0
      %1615 = vmatprep.mubr.bf16.mxu0 0
      %1616 = vmatmul.mubr.bf16.gmra.mxu0 %v1471
      %v1617 = vpop.f32.mrf.mxu0
      %v1618 = vadd.f32 0.0, %v1617
      %v1619 = vpop.f32.mrf.mxu0
      %v1620 = vpop.f32.mrf.mxu0
      %v1621 = vadd.f32 0.0, %v1620
      %v1622 = vpop.f32.mrf.mxu0
      %1623 = vmatprep.mubr.bf16.mxu0 0
      %1624 = vmatmul.mubr.bf16.gmra.mxu0 %v1474
      %v1625 = vpop.f32.mrf.mxu0
      %v1626 = vadd.f32 0.0, %v1625
      %v1627 = vpop.f32.mrf.mxu0
      %v1628 = vpop.f32.mrf.mxu0
      %v1629 = vadd.f32 0.0, %v1628
      %v1630 = vpop.f32.mrf.mxu0
      %1631 = vmatprep.mubr.bf16.mxu0 0
      %1632 = vmatmul.mubr.bf16.gmra.mxu0 %v1477
      %v1633 = vpop.f32.mrf.mxu0
      %v1634 = vadd.f32 0.0, %v1633
      %v1635 = vpop.f32.mrf.mxu0
      %v1636 = vpop.f32.mrf.mxu0
      %v1637 = vadd.f32 0.0, %v1636
      %v1638 = vpop.f32.mrf.mxu0
      %1639 = vdwg.mxu0
      %v1640 = vadd.f32 %v1110, %v1514
      %v1641 = vadd.f32 %v1113, %v1517
      %v1642 = vadd.f32 %v1118, %v1522
      %v1643 = vadd.f32 %v1121, %v1525
      %v1644 = vadd.f32 %v1126, %v1530
      %v1645 = vadd.f32 %v1129, %v1533
      %v1646 = vadd.f32 %v1134, %v1538
      %v1647 = vadd.f32 %v1137, %v1541
      %v1648 = vadd.f32 %v1142, %v1546
      %v1649 = vadd.f32 %v1145, %v1549
      %v1650 = vadd.f32 %v1150, %v1554
      %v1651 = vadd.f32 %v1153, %v1557
      %v1652 = vadd.f32 %v1158, %v1562
      %v1653 = vadd.f32 %v1161, %v1565
      %v1654 = vadd.f32 %v1166, %v1570
      %v1655 = vadd.f32 %v1169, %v1573
      %v1656 = vadd.f32 %v1174, %v1578
      %v1657 = vadd.f32 %v1177, %v1581
      %v1658 = vadd.f32 %v1182, %v1586
      %v1659 = vadd.f32 %v1185, %v1589
      %v1660 = vadd.f32 %v1190, %v1594
      %v1661 = vadd.f32 %v1193, %v1597
      %v1662 = vadd.f32 %v1198, %v1602
      %v1663 = vadd.f32 %v1201, %v1605
      %v1664 = vadd.f32 %v1206, %v1610
      %v1665 = vadd.f32 %v1209, %v1613
      %v1666 = vadd.f32 %v1214, %v1618
      %v1667 = vadd.f32 %v1217, %v1621
      %v1668 = vadd.f32 %v1222, %v1626
      %v1669 = vadd.f32 %v1225, %v1629
      %v1670 = vadd.f32 %v1230, %v1634
      %v1671 = vadd.f32 %v1233, %v1637
      %v1672 = vld [vmem:[%s1 + $0x30] sm:$0xf]
      %v1673 = vld [vmem:[%s1 + $0x34] sm:$0xf]
      %v1674 = vld [vmem:[%s1 + $0x38] sm:$0xf]
      %v1675 = vld [vmem:[%s1 + $0x3c] sm:$0xf]
      %v1678 = vunpack.c.l.b16 %v264
      %v1679 = vunpack.c.l.b16 %v265
      %v1680 = vpack.c.b16 %v1679, %v1678
      %v1685 = vunpack.c.l.b16 %v1672
      %v1686 = vunpack.c.l.b16 %v1673
      %v1687 = vunpack.c.l.b16 %v1674
      %v1688 = vunpack.c.l.b16 %v1675
      %v1689 = vpack.c.b16 %v1686, %v1685
      %v1690 = vpack.c.b16 %v1688, %v1687
      %v1694 = vsel %vm725, %v1680, 0
      %1696 = vmatprep.subr.bf16.mxu0 0
      %1697 = vmatpush1.bf16.msra.mxu0 0
      %1698 = vmatprep.subr.bf16.mxu0 0
      %1699 = vmatpush1.bf16.msra.mxu0 0
      %1700 = vmatprep.subr.bf16.mxu0 0
      %1701 = vmatpush1.bf16.msra.mxu0 0
      %1702 = vmatprep.subr.bf16.mxu0 0
      %1703 = vmatpush1.bf16.msra.mxu0 0
      %1704 = vmatprep.subr.bf16.mxu0 0
      %1705 = vmatpush1.bf16.msra.mxu0 0
      %1706 = vmatprep.subr.bf16.mxu0 0
      %1707 = vmatpush1.bf16.msra.mxu0 0
      %1708 = vmatprep.subr.bf16.mxu0 0
      %1709 = vmatpush1.bf16.msra.mxu0 %v1690
      %1710 = vmatprep.subr.bf16.mxu0 0
      %1711 = vmatpush1.bf16.msra.mxu0 %v1689
      %1712 = vmatprep.subr.bf16.mxu0 0
      %1713 = vmatpush2.bf16.msra.mxu0 0
      %1714 = vmatprep.subr.bf16.mxu0 0
      %1715 = vmatpush2.bf16.msra.mxu0 0
      %1716 = vmatprep.subr.bf16.mxu0 0
      %1717 = vmatpush2.bf16.msra.mxu0 0
      %1718 = vmatprep.subr.bf16.mxu0 0
      %1719 = vmatpush2.bf16.msra.mxu0 0
      %1720 = vmatprep.subr.bf16.mxu0 0
      %1721 = vmatpush2.bf16.msra.mxu0 0
      %1722 = vmatprep.subr.bf16.mxu0 0
      %1723 = vmatpush2.bf16.msra.mxu0 0
      %1724 = vmatprep.subr.bf16.mxu0 0
      %1725 = vmatpush2.bf16.msra.mxu0 0
      %1726 = vmatprep.subr.bf16.mxu0 0
      %1727 = vmatpush2.bf16.msra.mxu0 0
      %1728 = vmatprep.mubr.bf16.mxu0 0
      %1729 = vmatmul.mubr.bf16.gmra.mxu0 %v1031
      %v1730 = vpop.f32.mrf.mxu0
      %v1731 = vadd.f32 0.0, %v1730
      %v1732 = vpop.f32.mrf.mxu0
      %v1733 = vpop.f32.mrf.mxu0
      %v1734 = vadd.f32 0.0, %v1733
      %v1735 = vpop.f32.mrf.mxu0
      %1736 = vmatprep.mubr.bf16.mxu0 0
      %1737 = vmatmul.mubr.bf16.gmra.mxu0 %v1034
      %v1738 = vpop.f32.mrf.mxu0
      %v1739 = vadd.f32 0.0, %v1738
      %v1740 = vpop.f32.mrf.mxu0
      %v1741 = vpop.f32.mrf.mxu0
      %v1742 = vadd.f32 0.0, %v1741
      %v1743 = vpop.f32.mrf.mxu0
      %1744 = vmatprep.mubr.bf16.mxu0 0
      %1745 = vmatmul.mubr.bf16.gmra.mxu0 %v1037
      %v1746 = vpop.f32.mrf.mxu0
      %v1747 = vadd.f32 0.0, %v1746
      %v1748 = vpop.f32.mrf.mxu0
      %v1749 = vpop.f32.mrf.mxu0
      %v1750 = vadd.f32 0.0, %v1749
      %v1751 = vpop.f32.mrf.mxu0
      %1752 = vmatprep.mubr.bf16.mxu0 0
      %1753 = vmatmul.mubr.bf16.gmra.mxu0 %v1040
      %v1754 = vpop.f32.mrf.mxu0
      %v1755 = vadd.f32 0.0, %v1754
      %v1756 = vpop.f32.mrf.mxu0
      %v1757 = vpop.f32.mrf.mxu0
      %v1758 = vadd.f32 0.0, %v1757
      %v1759 = vpop.f32.mrf.mxu0
      %1760 = vmatprep.mubr.bf16.mxu0 0
      %1761 = vmatmul.mubr.bf16.gmra.mxu0 %v1043
      %v1762 = vpop.f32.mrf.mxu0
      %v1763 = vadd.f32 0.0, %v1762
      %v1764 = vpop.f32.mrf.mxu0
      %v1765 = vpop.f32.mrf.mxu0
      %v1766 = vadd.f32 0.0, %v1765
      %v1767 = vpop.f32.mrf.mxu0
      %1768 = vmatprep.mubr.bf16.mxu0 0
      %1769 = vmatmul.mubr.bf16.gmra.mxu0 %v1046
      %v1770 = vpop.f32.mrf.mxu0
      %v1771 = vadd.f32 0.0, %v1770
      %v1772 = vpop.f32.mrf.mxu0
      %v1773 = vpop.f32.mrf.mxu0
      %v1774 = vadd.f32 0.0, %v1773
      %v1775 = vpop.f32.mrf.mxu0
      %1776 = vmatprep.mubr.bf16.mxu0 0
      %1777 = vmatmul.mubr.bf16.gmra.mxu0 %v1049
      %v1778 = vpop.f32.mrf.mxu0
      %v1779 = vadd.f32 0.0, %v1778
      %v1780 = vpop.f32.mrf.mxu0
      %v1781 = vpop.f32.mrf.mxu0
      %v1782 = vadd.f32 0.0, %v1781
      %v1783 = vpop.f32.mrf.mxu0
      %1784 = vmatprep.mubr.bf16.mxu0 0
      %1785 = vmatmul.mubr.bf16.gmra.mxu0 %v1052
      %v1786 = vpop.f32.mrf.mxu0
      %v1787 = vadd.f32 0.0, %v1786
      %v1788 = vpop.f32.mrf.mxu0
      %v1789 = vpop.f32.mrf.mxu0
      %v1790 = vadd.f32 0.0, %v1789
      %v1791 = vpop.f32.mrf.mxu0
      %1792 = vmatprep.mubr.bf16.mxu0 0
      %1793 = vmatmul.mubr.bf16.gmra.mxu0 %v1055
      %v1794 = vpop.f32.mrf.mxu0
      %v1795 = vadd.f32 0.0, %v1794
      %v1796 = vpop.f32.mrf.mxu0
      %v1797 = vpop.f32.mrf.mxu0
      %v1798 = vadd.f32 0.0, %v1797
      %v1799 = vpop.f32.mrf.mxu0
      %1800 = vmatprep.mubr.bf16.mxu0 0
      %1801 = vmatmul.mubr.bf16.gmra.mxu0 %v1058
      %v1802 = vpop.f32.mrf.mxu0
      %v1803 = vadd.f32 0.0, %v1802
      %v1804 = vpop.f32.mrf.mxu0
      %v1805 = vpop.f32.mrf.mxu0
      %v1806 = vadd.f32 0.0, %v1805
      %v1807 = vpop.f32.mrf.mxu0
      %1808 = vmatprep.mubr.bf16.mxu0 0
      %1809 = vmatmul.mubr.bf16.gmra.mxu0 %v1061
      %v1810 = vpop.f32.mrf.mxu0
      %v1811 = vadd.f32 0.0, %v1810
      %v1812 = vpop.f32.mrf.mxu0
      %v1813 = vpop.f32.mrf.mxu0
      %v1814 = vadd.f32 0.0, %v1813
      %v1815 = vpop.f32.mrf.mxu0
      %1816 = vmatprep.mubr.bf16.mxu0 0
      %1817 = vmatmul.mubr.bf16.gmra.mxu0 %v1064
      %v1818 = vpop.f32.mrf.mxu0
      %v1819 = vadd.f32 0.0, %v1818
      %v1820 = vpop.f32.mrf.mxu0
      %v1821 = vpop.f32.mrf.mxu0
      %v1822 = vadd.f32 0.0, %v1821
      %v1823 = vpop.f32.mrf.mxu0
      %1824 = vmatprep.mubr.bf16.mxu0 0
      %1825 = vmatmul.mubr.bf16.gmra.mxu0 %v1067
      %v1826 = vpop.f32.mrf.mxu0
      %v1827 = vadd.f32 0.0, %v1826
      %v1828 = vpop.f32.mrf.mxu0
      %v1829 = vpop.f32.mrf.mxu0
      %v1830 = vadd.f32 0.0, %v1829
      %v1831 = vpop.f32.mrf.mxu0
      %1832 = vmatprep.mubr.bf16.mxu0 0
      %1833 = vmatmul.mubr.bf16.gmra.mxu0 %v1070
      %v1834 = vpop.f32.mrf.mxu0
      %v1835 = vadd.f32 0.0, %v1834
      %v1836 = vpop.f32.mrf.mxu0
      %v1837 = vpop.f32.mrf.mxu0
      %v1838 = vadd.f32 0.0, %v1837
      %v1839 = vpop.f32.mrf.mxu0
      %1840 = vmatprep.mubr.bf16.mxu0 0
      %1841 = vmatmul.mubr.bf16.gmra.mxu0 %v1073
      %v1842 = vpop.f32.mrf.mxu0
      %v1843 = vadd.f32 0.0, %v1842
      %v1844 = vpop.f32.mrf.mxu0
      %v1845 = vpop.f32.mrf.mxu0
      %v1846 = vadd.f32 0.0, %v1845
      %v1847 = vpop.f32.mrf.mxu0
      %1848 = vmatprep.mubr.bf16.mxu0 0
      %1849 = vmatmul.mubr.bf16.gmra.mxu0 %v1694
      %v1850 = vpop.f32.mrf.mxu0
      %v1851 = vadd.f32 0.0, %v1850
      %v1852 = vpop.f32.mrf.mxu0
      %v1853 = vpop.f32.mrf.mxu0
      %v1854 = vadd.f32 0.0, %v1853
      %v1855 = vpop.f32.mrf.mxu0
      %1856 = vdwg.mxu0
      %v1857 = vadd.f32 %v1640, %v1731
      %v1858 = vadd.f32 %v1641, %v1734
      %v1859 = vadd.f32 %v1642, %v1739
      %v1860 = vadd.f32 %v1643, %v1742
      %v1861 = vadd.f32 %v1644, %v1747
      %v1862 = vadd.f32 %v1645, %v1750
      %v1863 = vadd.f32 %v1646, %v1755
      %v1864 = vadd.f32 %v1647, %v1758
      %v1865 = vadd.f32 %v1648, %v1763
      %v1866 = vadd.f32 %v1649, %v1766
      %v1867 = vadd.f32 %v1650, %v1771
      %v1868 = vadd.f32 %v1651, %v1774
      %v1869 = vadd.f32 %v1652, %v1779
      %v1870 = vadd.f32 %v1653, %v1782
      %v1871 = vadd.f32 %v1654, %v1787
      %v1872 = vadd.f32 %v1655, %v1790
      %v1873 = vadd.f32 %v1656, %v1795
      %v1874 = vadd.f32 %v1657, %v1798
      %v1875 = vadd.f32 %v1658, %v1803
      %v1876 = vadd.f32 %v1659, %v1806
      %v1877 = vadd.f32 %v1660, %v1811
      %v1878 = vadd.f32 %v1661, %v1814
      %v1879 = vadd.f32 %v1662, %v1819
      %v1880 = vadd.f32 %v1663, %v1822
      %v1881 = vadd.f32 %v1664, %v1827
      %v1882 = vadd.f32 %v1665, %v1830
      %v1883 = vadd.f32 %v1666, %v1835
      %v1884 = vadd.f32 %v1667, %v1838
      %v1885 = vadd.f32 %v1668, %v1843
      %v1886 = vadd.f32 %v1669, %v1846
      %v1887 = vadd.f32 %v1670, %v1851
      %v1888 = vadd.f32 %v1671, %v1854
      %v1890 = vshrl.u32 %v264, 16
      %v1892 = vrot.slane %v1890, 4
      %v1893 = vshll.u32 %v264, 16
      %v1895 = vrot.slane %v1893, 5
      %v1896 = vor.u32 %v1892, %v1895
      %v1897 = vrot.slane %v1896, 4
      %v1899 = vshll.u32 %v265, 16
      %v1901 = vrot.slane %v1899, 5
      %v1902 = vsel %vm276, %v1897, %v1901
      %v1903 = vshrl.u32 %v265, 16
      %v1905 = vrot.slane %v1903, 4
      %v1906 = vor.u32 %v1905, %v1901
      %v1907 = vrot.slane %v1906, 4
      %v1909 = vshll.u32 %v266, 16
      %v1911 = vrot.slane %v1909, 5
      %v1912 = vsel %vm276, %v1907, %v1911
      %v1913 = vld [vmem:[%s1 + $0x40] sm:$0xf]
      %v1914 = vld [vmem:[%s1 + $0x44] sm:$0xf]
      %v1915 = vld [vmem:[%s1 + $0x48] sm:$0xf]
      %v1916 = vld [vmem:[%s1 + $0x4c] sm:$0xf]
      %v1917 = vunpack.c.l.b16 %v1902
      %v1918 = vunpack.c.l.b16 %v1912
      %v1919 = vpack.c.b16 %v1918, %v1917
      %v1924 = vunpack.c.l.b16 %v1913
      %v1925 = vunpack.c.l.b16 %v1914
      %v1926 = vunpack.c.l.b16 %v1915
      %v1927 = vunpack.c.l.b16 %v1916
      %v1928 = vpack.c.b16 %v1925, %v1924
      %v1929 = vpack.c.b16 %v1927, %v1926
      %v1933 = vsel %vm725, %v1919, 0
      %1935 = vmatprep.subr.bf16.mxu0 0
      %1936 = vmatpush1.bf16.msra.mxu0 0
      %1937 = vmatprep.subr.bf16.mxu0 0
      %1938 = vmatpush1.bf16.msra.mxu0 0
      %1939 = vmatprep.subr.bf16.mxu0 0
      %1940 = vmatpush1.bf16.msra.mxu0 0
      %1941 = vmatprep.subr.bf16.mxu0 0
      %1942 = vmatpush1.bf16.msra.mxu0 0
      %1943 = vmatprep.subr.bf16.mxu0 0
      %1944 = vmatpush1.bf16.msra.mxu0 0
      %1945 = vmatprep.subr.bf16.mxu0 0
      %1946 = vmatpush1.bf16.msra.mxu0 0
      %1947 = vmatprep.subr.bf16.mxu0 0
      %1948 = vmatpush1.bf16.msra.mxu0 %v1929
      %1949 = vmatprep.subr.bf16.mxu0 0
      %1950 = vmatpush1.bf16.msra.mxu0 %v1928
      %1951 = vmatprep.subr.bf16.mxu0 0
      %1952 = vmatpush2.bf16.msra.mxu0 0
      %1953 = vmatprep.subr.bf16.mxu0 0
      %1954 = vmatpush2.bf16.msra.mxu0 0
      %1955 = vmatprep.subr.bf16.mxu0 0
      %1956 = vmatpush2.bf16.msra.mxu0 0
      %1957 = vmatprep.subr.bf16.mxu0 0
      %1958 = vmatpush2.bf16.msra.mxu0 0
      %1959 = vmatprep.subr.bf16.mxu0 0
      %1960 = vmatpush2.bf16.msra.mxu0 0
      %1961 = vmatprep.subr.bf16.mxu0 0
      %1962 = vmatpush2.bf16.msra.mxu0 0
      %1963 = vmatprep.subr.bf16.mxu0 0
      %1964 = vmatpush2.bf16.msra.mxu0 0
      %1965 = vmatprep.subr.bf16.mxu0 0
      %1966 = vmatpush2.bf16.msra.mxu0 0
      %1967 = vmatprep.mubr.bf16.mxu0 0
      %1968 = vmatmul.mubr.bf16.gmra.mxu0 %v730
      %v1969 = vpop.f32.mrf.mxu0
      %v1970 = vadd.f32 0.0, %v1969
      %v1971 = vpop.f32.mrf.mxu0
      %v1972 = vpop.f32.mrf.mxu0
      %v1973 = vadd.f32 0.0, %v1972
      %v1974 = vpop.f32.mrf.mxu0
      %1975 = vmatprep.mubr.bf16.mxu0 0
      %1976 = vmatmul.mubr.bf16.gmra.mxu0 %v733
      %v1977 = vpop.f32.mrf.mxu0
      %v1978 = vadd.f32 0.0, %v1977
      %v1979 = vpop.f32.mrf.mxu0
      %v1980 = vpop.f32.mrf.mxu0
      %v1981 = vadd.f32 0.0, %v1980
      %v1982 = vpop.f32.mrf.mxu0
      %1983 = vmatprep.mubr.bf16.mxu0 0
      %1984 = vmatmul.mubr.bf16.gmra.mxu0 %v736
      %v1985 = vpop.f32.mrf.mxu0
      %v1986 = vadd.f32 0.0, %v1985
      %v1987 = vpop.f32.mrf.mxu0
      %v1988 = vpop.f32.mrf.mxu0
      %v1989 = vadd.f32 0.0, %v1988
      %v1990 = vpop.f32.mrf.mxu0
      %1991 = vmatprep.mubr.bf16.mxu0 0
      %1992 = vmatmul.mubr.bf16.gmra.mxu0 %v739
      %v1993 = vpop.f32.mrf.mxu0
      %v1994 = vadd.f32 0.0, %v1993
      %v1995 = vpop.f32.mrf.mxu0
      %v1996 = vpop.f32.mrf.mxu0
      %v1997 = vadd.f32 0.0, %v1996
      %v1998 = vpop.f32.mrf.mxu0
      %1999 = vmatprep.mubr.bf16.mxu0 0
      %2000 = vmatmul.mubr.bf16.gmra.mxu0 %v742
      %v2001 = vpop.f32.mrf.mxu0
      %v2002 = vadd.f32 0.0, %v2001
      %v2003 = vpop.f32.mrf.mxu0
      %v2004 = vpop.f32.mrf.mxu0
      %v2005 = vadd.f32 0.0, %v2004
      %v2006 = vpop.f32.mrf.mxu0
      %2007 = vmatprep.mubr.bf16.mxu0 0
      %2008 = vmatmul.mubr.bf16.gmra.mxu0 %v745
      %v2009 = vpop.f32.mrf.mxu0
      %v2010 = vadd.f32 0.0, %v2009
      %v2011 = vpop.f32.mrf.mxu0
      %v2012 = vpop.f32.mrf.mxu0
      %v2013 = vadd.f32 0.0, %v2012
      %v2014 = vpop.f32.mrf.mxu0
      %2015 = vmatprep.mubr.bf16.mxu0 0
      %2016 = vmatmul.mubr.bf16.gmra.mxu0 %v748
      %v2017 = vpop.f32.mrf.mxu0
      %v2018 = vadd.f32 0.0, %v2017
      %v2019 = vpop.f32.mrf.mxu0
      %v2020 = vpop.f32.mrf.mxu0
      %v2021 = vadd.f32 0.0, %v2020
      %v2022 = vpop.f32.mrf.mxu0
      %2023 = vmatprep.mubr.bf16.mxu0 0
      %2024 = vmatmul.mubr.bf16.gmra.mxu0 %v751
      %v2025 = vpop.f32.mrf.mxu0
      %v2026 = vadd.f32 0.0, %v2025
      %v2027 = vpop.f32.mrf.mxu0
      %v2028 = vpop.f32.mrf.mxu0
      %v2029 = vadd.f32 0.0, %v2028
      %v2030 = vpop.f32.mrf.mxu0
      %2031 = vmatprep.mubr.bf16.mxu0 0
      %2032 = vmatmul.mubr.bf16.gmra.mxu0 %v754
      %v2033 = vpop.f32.mrf.mxu0
      %v2034 = vadd.f32 0.0, %v2033
      %v2035 = vpop.f32.mrf.mxu0
      %v2036 = vpop.f32.mrf.mxu0
      %v2037 = vadd.f32 0.0, %v2036
      %v2038 = vpop.f32.mrf.mxu0
      %2039 = vmatprep.mubr.bf16.mxu0 0
      %2040 = vmatmul.mubr.bf16.gmra.mxu0 %v757
      %v2041 = vpop.f32.mrf.mxu0
      %v2042 = vadd.f32 0.0, %v2041
      %v2043 = vpop.f32.mrf.mxu0
      %v2044 = vpop.f32.mrf.mxu0
      %v2045 = vadd.f32 0.0, %v2044
      %v2046 = vpop.f32.mrf.mxu0
      %2047 = vmatprep.mubr.bf16.mxu0 0
      %2048 = vmatmul.mubr.bf16.gmra.mxu0 %v760
      %v2049 = vpop.f32.mrf.mxu0
      %v2050 = vadd.f32 0.0, %v2049
      %v2051 = vpop.f32.mrf.mxu0
      %v2052 = vpop.f32.mrf.mxu0
      %v2053 = vadd.f32 0.0, %v2052
      %v2054 = vpop.f32.mrf.mxu0
      %2055 = vmatprep.mubr.bf16.mxu0 0
      %2056 = vmatmul.mubr.bf16.gmra.mxu0 %v763
      %v2057 = vpop.f32.mrf.mxu0
      %v2058 = vadd.f32 0.0, %v2057
      %v2059 = vpop.f32.mrf.mxu0
      %v2060 = vpop.f32.mrf.mxu0
      %v2061 = vadd.f32 0.0, %v2060
      %v2062 = vpop.f32.mrf.mxu0
      %2063 = vmatprep.mubr.bf16.mxu0 0
      %2064 = vmatmul.mubr.bf16.gmra.mxu0 %v766
      %v2065 = vpop.f32.mrf.mxu0
      %v2066 = vadd.f32 0.0, %v2065
      %v2067 = vpop.f32.mrf.mxu0
      %v2068 = vpop.f32.mrf.mxu0
      %v2069 = vadd.f32 0.0, %v2068
      %v2070 = vpop.f32.mrf.mxu0
      %2071 = vmatprep.mubr.bf16.mxu0 0
      %2072 = vmatmul.mubr.bf16.gmra.mxu0 %v769
      %v2073 = vpop.f32.mrf.mxu0
      %v2074 = vadd.f32 0.0, %v2073
      %v2075 = vpop.f32.mrf.mxu0
      %v2076 = vpop.f32.mrf.mxu0
      %v2077 = vadd.f32 0.0, %v2076
      %v2078 = vpop.f32.mrf.mxu0
      %2079 = vmatprep.mubr.bf16.mxu0 0
      %2080 = vmatmul.mubr.bf16.gmra.mxu0 %v772
      %v2081 = vpop.f32.mrf.mxu0
      %v2082 = vadd.f32 0.0, %v2081
      %v2083 = vpop.f32.mrf.mxu0
      %v2084 = vpop.f32.mrf.mxu0
      %v2085 = vadd.f32 0.0, %v2084
      %v2086 = vpop.f32.mrf.mxu0
      %2087 = vmatprep.mubr.bf16.mxu0 0
      %2088 = vmatmul.mubr.bf16.gmra.mxu0 %v1933
      %v2089 = vpop.f32.mrf.mxu0
      %v2090 = vadd.f32 0.0, %v2089
      %v2091 = vpop.f32.mrf.mxu0
      %v2092 = vpop.f32.mrf.mxu0
      %v2093 = vadd.f32 0.0, %v2092
      %v2094 = vpop.f32.mrf.mxu0
      %2095 = vdwg.mxu0
      %v2096 = vadd.f32 %v1857, %v1970
      %v2097 = vadd.f32 %v1858, %v1973
      %v2098 = vadd.f32 %v1859, %v1978
      %v2099 = vadd.f32 %v1860, %v1981
      %v2100 = vadd.f32 %v1861, %v1986
      %v2101 = vadd.f32 %v1862, %v1989
      %v2102 = vadd.f32 %v1863, %v1994
      %v2103 = vadd.f32 %v1864, %v1997
      %v2104 = vadd.f32 %v1865, %v2002
      %v2105 = vadd.f32 %v1866, %v2005
      %v2106 = vadd.f32 %v1867, %v2010
      %v2107 = vadd.f32 %v1868, %v2013
      %v2108 = vadd.f32 %v1869, %v2018
      %v2109 = vadd.f32 %v1870, %v2021
      %v2110 = vadd.f32 %v1871, %v2026
      %v2111 = vadd.f32 %v1872, %v2029
      %v2112 = vadd.f32 %v1873, %v2034
      %v2113 = vadd.f32 %v1874, %v2037
      %v2114 = vadd.f32 %v1875, %v2042
      %v2115 = vadd.f32 %v1876, %v2045
      %v2116 = vadd.f32 %v1877, %v2050
      %v2117 = vadd.f32 %v1878, %v2053
      %v2118 = vadd.f32 %v1879, %v2058
      %v2119 = vadd.f32 %v1880, %v2061
      %v2120 = vadd.f32 %v1881, %v2066
      %v2121 = vadd.f32 %v1882, %v2069
      %v2122 = vadd.f32 %v1883, %v2074
      %v2123 = vadd.f32 %v1884, %v2077
      %v2124 = vadd.f32 %v1885, %v2082
      %v2125 = vadd.f32 %v1886, %v2085
      %v2126 = vadd.f32 %v1887, %v2090
      %v2127 = vadd.f32 %v1888, %v2093
      %v2129 = vrot.slane %v264, 5
      %v2130 = vrot.slane %v2129, 4
      %v2131 = vrot.slane %v265, 5
      %v2132 = vsel %vm1254, %v2130, %v2131
      %v2133 = vrot.slane %v2131, 4
      %v2134 = vrot.slane %v266, 5
      %v2135 = vsel %vm1254, %v2133, %v2134
      %v2136 = vld [vmem:[%s1 + $0x50] sm:$0xf]
      %v2137 = vld [vmem:[%s1 + $0x54] sm:$0xf]
      %v2138 = vld [vmem:[%s1 + $0x58] sm:$0xf]
      %v2139 = vld [vmem:[%s1 + $0x5c] sm:$0xf]
      %v2140 = vunpack.c.l.b16 %v2132
      %v2141 = vunpack.c.l.b16 %v2135
      %v2142 = vpack.c.b16 %v2141, %v2140
      %v2147 = vunpack.c.l.b16 %v2136
      %v2148 = vunpack.c.l.b16 %v2137
      %v2149 = vunpack.c.l.b16 %v2138
      %v2150 = vunpack.c.l.b16 %v2139
      %v2151 = vpack.c.b16 %v2148, %v2147
      %v2152 = vpack.c.b16 %v2150, %v2149
      %v2156 = vsel %vm725, %v2142, 0
      %2158 = vmatprep.subr.bf16.mxu0 0
      %2159 = vmatpush1.bf16.msra.mxu0 0
      %2160 = vmatprep.subr.bf16.mxu0 0
      %2161 = vmatpush1.bf16.msra.mxu0 0
      %2162 = vmatprep.subr.bf16.mxu0 0
      %2163 = vmatpush1.bf16.msra.mxu0 0
      %2164 = vmatprep.subr.bf16.mxu0 0
      %2165 = vmatpush1.bf16.msra.mxu0 0
      %2166 = vmatprep.subr.bf16.mxu0 0
      %2167 = vmatpush1.bf16.msra.mxu0 0
      %2168 = vmatprep.subr.bf16.mxu0 0
      %2169 = vmatpush1.bf16.msra.mxu0 0
      %2170 = vmatprep.subr.bf16.mxu0 0
      %2171 = vmatpush1.bf16.msra.mxu0 %v2152
      %2172 = vmatprep.subr.bf16.mxu0 0
      %2173 = vmatpush1.bf16.msra.mxu0 %v2151
      %2174 = vmatprep.subr.bf16.mxu0 0
      %2175 = vmatpush2.bf16.msra.mxu0 0
      %2176 = vmatprep.subr.bf16.mxu0 0
      %2177 = vmatpush2.bf16.msra.mxu0 0
      %2178 = vmatprep.subr.bf16.mxu0 0
      %2179 = vmatpush2.bf16.msra.mxu0 0
      %2180 = vmatprep.subr.bf16.mxu0 0
      %2181 = vmatpush2.bf16.msra.mxu0 0
      %2182 = vmatprep.subr.bf16.mxu0 0
      %2183 = vmatpush2.bf16.msra.mxu0 0
      %2184 = vmatprep.subr.bf16.mxu0 0
      %2185 = vmatpush2.bf16.msra.mxu0 0
      %2186 = vmatprep.subr.bf16.mxu0 0
      %2187 = vmatpush2.bf16.msra.mxu0 0
      %2188 = vmatprep.subr.bf16.mxu0 0
      %2189 = vmatpush2.bf16.msra.mxu0 0
      %2190 = vmatprep.mubr.bf16.mxu0 0
      %2191 = vmatmul.mubr.bf16.gmra.mxu0 %v1435
      %v2192 = vpop.f32.mrf.mxu0
      %v2193 = vadd.f32 0.0, %v2192
      %v2194 = vpop.f32.mrf.mxu0
      %v2195 = vpop.f32.mrf.mxu0
      %v2196 = vadd.f32 0.0, %v2195
      %v2197 = vpop.f32.mrf.mxu0
      %2198 = vmatprep.mubr.bf16.mxu0 0
      %2199 = vmatmul.mubr.bf16.gmra.mxu0 %v1438
      %v2200 = vpop.f32.mrf.mxu0
      %v2201 = vadd.f32 0.0, %v2200
      %v2202 = vpop.f32.mrf.mxu0
      %v2203 = vpop.f32.mrf.mxu0
      %v2204 = vadd.f32 0.0, %v2203
      %v2205 = vpop.f32.mrf.mxu0
      %2206 = vmatprep.mubr.bf16.mxu0 0
      %2207 = vmatmul.mubr.bf16.gmra.mxu0 %v1441
      %v2208 = vpop.f32.mrf.mxu0
      %v2209 = vadd.f32 0.0, %v2208
      %v2210 = vpop.f32.mrf.mxu0
      %v2211 = vpop.f32.mrf.mxu0
      %v2212 = vadd.f32 0.0, %v2211
      %v2213 = vpop.f32.mrf.mxu0
      %2214 = vmatprep.mubr.bf16.mxu0 0
      %2215 = vmatmul.mubr.bf16.gmra.mxu0 %v1444
      %v2216 = vpop.f32.mrf.mxu0
      %v2217 = vadd.f32 0.0, %v2216
      %v2218 = vpop.f32.mrf.mxu0
      %v2219 = vpop.f32.mrf.mxu0
      %v2220 = vadd.f32 0.0, %v2219
      %v2221 = vpop.f32.mrf.mxu0
      %2222 = vmatprep.mubr.bf16.mxu0 0
      %2223 = vmatmul.mubr.bf16.gmra.mxu0 %v1447
      %v2224 = vpop.f32.mrf.mxu0
      %v2225 = vadd.f32 0.0, %v2224
      %v2226 = vpop.f32.mrf.mxu0
      %v2227 = vpop.f32.mrf.mxu0
      %v2228 = vadd.f32 0.0, %v2227
      %v2229 = vpop.f32.mrf.mxu0
      %2230 = vmatprep.mubr.bf16.mxu0 0
      %2231 = vmatmul.mubr.bf16.gmra.mxu0 %v1450
      %v2232 = vpop.f32.mrf.mxu0
      %v2233 = vadd.f32 0.0, %v2232
      %v2234 = vpop.f32.mrf.mxu0
      %v2235 = vpop.f32.mrf.mxu0
      %v2236 = vadd.f32 0.0, %v2235
      %v2237 = vpop.f32.mrf.mxu0
      %2238 = vmatprep.mubr.bf16.mxu0 0
      %2239 = vmatmul.mubr.bf16.gmra.mxu0 %v1453
      %v2240 = vpop.f32.mrf.mxu0
      %v2241 = vadd.f32 0.0, %v2240
      %v2242 = vpop.f32.mrf.mxu0
      %v2243 = vpop.f32.mrf.mxu0
      %v2244 = vadd.f32 0.0, %v2243
      %v2245 = vpop.f32.mrf.mxu0
      %2246 = vmatprep.mubr.bf16.mxu0 0
      %2247 = vmatmul.mubr.bf16.gmra.mxu0 %v1456
      %v2248 = vpop.f32.mrf.mxu0
      %v2249 = vadd.f32 0.0, %v2248
      %v2250 = vpop.f32.mrf.mxu0
      %v2251 = vpop.f32.mrf.mxu0
      %v2252 = vadd.f32 0.0, %v2251
      %v2253 = vpop.f32.mrf.mxu0
      %2254 = vmatprep.mubr.bf16.mxu0 0
      %2255 = vmatmul.mubr.bf16.gmra.mxu0 %v1459
      %v2256 = vpop.f32.mrf.mxu0
      %v2257 = vadd.f32 0.0, %v2256
      %v2258 = vpop.f32.mrf.mxu0
      %v2259 = vpop.f32.mrf.mxu0
      %v2260 = vadd.f32 0.0, %v2259
      %v2261 = vpop.f32.mrf.mxu0
      %2262 = vmatprep.mubr.bf16.mxu0 0
      %2263 = vmatmul.mubr.bf16.gmra.mxu0 %v1462
      %v2264 = vpop.f32.mrf.mxu0
      %v2265 = vadd.f32 0.0, %v2264
      %v2266 = vpop.f32.mrf.mxu0
      %v2267 = vpop.f32.mrf.mxu0
      %v2268 = vadd.f32 0.0, %v2267
      %v2269 = vpop.f32.mrf.mxu0
      %2270 = vmatprep.mubr.bf16.mxu0 0
      %2271 = vmatmul.mubr.bf16.gmra.mxu0 %v1465
      %v2272 = vpop.f32.mrf.mxu0
      %v2273 = vadd.f32 0.0, %v2272
      %v2274 = vpop.f32.mrf.mxu0
      %v2275 = vpop.f32.mrf.mxu0
      %v2276 = vadd.f32 0.0, %v2275
      %v2277 = vpop.f32.mrf.mxu0
      %2278 = vmatprep.mubr.bf16.mxu0 0
      %2279 = vmatmul.mubr.bf16.gmra.mxu0 %v1468
      %v2280 = vpop.f32.mrf.mxu0
      %v2281 = vadd.f32 0.0, %v2280
      %v2282 = vpop.f32.mrf.mxu0
      %v2283 = vpop.f32.mrf.mxu0
      %v2284 = vadd.f32 0.0, %v2283
      %v2285 = vpop.f32.mrf.mxu0
      %2286 = vmatprep.mubr.bf16.mxu0 0
      %2287 = vmatmul.mubr.bf16.gmra.mxu0 %v1471
      %v2288 = vpop.f32.mrf.mxu0
      %v2289 = vadd.f32 0.0, %v2288
      %v2290 = vpop.f32.mrf.mxu0
      %v2291 = vpop.f32.mrf.mxu0
      %v2292 = vadd.f32 0.0, %v2291
      %v2293 = vpop.f32.mrf.mxu0
      %2294 = vmatprep.mubr.bf16.mxu0 0
      %2295 = vmatmul.mubr.bf16.gmra.mxu0 %v1474
      %v2296 = vpop.f32.mrf.mxu0
      %v2297 = vadd.f32 0.0, %v2296
      %v2298 = vpop.f32.mrf.mxu0
      %v2299 = vpop.f32.mrf.mxu0
      %v2300 = vadd.f32 0.0, %v2299
      %v2301 = vpop.f32.mrf.mxu0
      %2302 = vmatprep.mubr.bf16.mxu0 0
      %2303 = vmatmul.mubr.bf16.gmra.mxu0 %v1477
      %v2304 = vpop.f32.mrf.mxu0
      %v2305 = vadd.f32 0.0, %v2304
      %v2306 = vpop.f32.mrf.mxu0
      %v2307 = vpop.f32.mrf.mxu0
      %v2308 = vadd.f32 0.0, %v2307
      %v2309 = vpop.f32.mrf.mxu0
      %2310 = vmatprep.mubr.bf16.mxu0 0
      %2311 = vmatmul.mubr.bf16.gmra.mxu0 %v2156
      %v2312 = vpop.f32.mrf.mxu0
      %v2313 = vadd.f32 0.0, %v2312
      %v2314 = vpop.f32.mrf.mxu0
      %v2315 = vpop.f32.mrf.mxu0
      %v2316 = vadd.f32 0.0, %v2315
      %v2317 = vpop.f32.mrf.mxu0
      %2318 = vdwg.mxu0
      %v2319 = vadd.f32 %v2096, %v2193
      %v2320 = vadd.f32 %v2097, %v2196
      %v2321 = vadd.f32 %v2098, %v2201
      %v2322 = vadd.f32 %v2099, %v2204
      %v2323 = vadd.f32 %v2100, %v2209
      %v2324 = vadd.f32 %v2101, %v2212
      %v2325 = vadd.f32 %v2102, %v2217
      %v2326 = vadd.f32 %v2103, %v2220
      %v2327 = vadd.f32 %v2104, %v2225
      %v2328 = vadd.f32 %v2105, %v2228
      %v2329 = vadd.f32 %v2106, %v2233
      %v2330 = vadd.f32 %v2107, %v2236
      %v2331 = vadd.f32 %v2108, %v2241
      %v2332 = vadd.f32 %v2109, %v2244
      %v2333 = vadd.f32 %v2110, %v2249
      %v2334 = vadd.f32 %v2111, %v2252
      %v2335 = vadd.f32 %v2112, %v2257
      %v2336 = vadd.f32 %v2113, %v2260
      %v2337 = vadd.f32 %v2114, %v2265
      %v2338 = vadd.f32 %v2115, %v2268
      %v2339 = vadd.f32 %v2116, %v2273
      %v2340 = vadd.f32 %v2117, %v2276
      %v2341 = vadd.f32 %v2118, %v2281
      %v2342 = vadd.f32 %v2119, %v2284
      %v2343 = vadd.f32 %v2120, %v2289
      %v2344 = vadd.f32 %v2121, %v2292
      %v2345 = vadd.f32 %v2122, %v2297
      %v2346 = vadd.f32 %v2123, %v2300
      %v2347 = vadd.f32 %v2124, %v2305
      %v2348 = vadd.f32 %v2125, %v2308
      %v2349 = vadd.f32 %v2126, %v2313
      %v2350 = vadd.f32 %v2127, %v2316
      %v2351 = vld [vmem:[%s1 + $0x60] sm:$0xf]
      %v2352 = vld [vmem:[%s1 + $0x64] sm:$0xf]
      %v2353 = vld [vmem:[%s1 + $0x68] sm:$0xf]
      %v2354 = vld [vmem:[%s1 + $0x6c] sm:$0xf]
      %v2357 = vunpack.c.l.b16 %v267
      %v2358 = vunpack.c.l.b16 %v268
      %v2359 = vpack.c.b16 %v2358, %v2357
      %v2364 = vunpack.c.l.b16 %v2351
      %v2365 = vunpack.c.l.b16 %v2352
      %v2366 = vunpack.c.l.b16 %v2353
      %v2367 = vunpack.c.l.b16 %v2354
      %v2368 = vpack.c.b16 %v2365, %v2364
      %v2369 = vpack.c.b16 %v2367, %v2366
      %v2373 = vsel %vm725, %v2359, 0
      %2375 = vmatprep.subr.bf16.mxu0 0
      %2376 = vmatpush1.bf16.msra.mxu0 0
      %2377 = vmatprep.subr.bf16.mxu0 0
      %2378 = vmatpush1.bf16.msra.mxu0 0
      %2379 = vmatprep.subr.bf16.mxu0 0
      %2380 = vmatpush1.bf16.msra.mxu0 0
      %2381 = vmatprep.subr.bf16.mxu0 0
      %2382 = vmatpush1.bf16.msra.mxu0 0
      %2383 = vmatprep.subr.bf16.mxu0 0
      %2384 = vmatpush1.bf16.msra.mxu0 0
      %2385 = vmatprep.subr.bf16.mxu0 0
      %2386 = vmatpush1.bf16.msra.mxu0 0
      %2387 = vmatprep.subr.bf16.mxu0 0
      %2388 = vmatpush1.bf16.msra.mxu0 %v2369
      %2389 = vmatprep.subr.bf16.mxu0 0
      %2390 = vmatpush1.bf16.msra.mxu0 %v2368
      %2391 = vmatprep.subr.bf16.mxu0 0
      %2392 = vmatpush2.bf16.msra.mxu0 0
      %2393 = vmatprep.subr.bf16.mxu0 0
      %2394 = vmatpush2.bf16.msra.mxu0 0
      %2395 = vmatprep.subr.bf16.mxu0 0
      %2396 = vmatpush2.bf16.msra.mxu0 0
      %2397 = vmatprep.subr.bf16.mxu0 0
      %2398 = vmatpush2.bf16.msra.mxu0 0
      %2399 = vmatprep.subr.bf16.mxu0 0
      %2400 = vmatpush2.bf16.msra.mxu0 0
      %2401 = vmatprep.subr.bf16.mxu0 0
      %2402 = vmatpush2.bf16.msra.mxu0 0
      %2403 = vmatprep.subr.bf16.mxu0 0
      %2404 = vmatpush2.bf16.msra.mxu0 0
      %2405 = vmatprep.subr.bf16.mxu0 0
      %2406 = vmatpush2.bf16.msra.mxu0 0
      %2407 = vmatprep.mubr.bf16.mxu0 0
      %2408 = vmatmul.mubr.bf16.gmra.mxu0 %v1034
      %v2409 = vpop.f32.mrf.mxu0
      %v2410 = vadd.f32 0.0, %v2409
      %v2411 = vpop.f32.mrf.mxu0
      %v2412 = vpop.f32.mrf.mxu0
      %v2413 = vadd.f32 0.0, %v2412
      %v2414 = vpop.f32.mrf.mxu0
      %2415 = vmatprep.mubr.bf16.mxu0 0
      %2416 = vmatmul.mubr.bf16.gmra.mxu0 %v1037
      %v2417 = vpop.f32.mrf.mxu0
      %v2418 = vadd.f32 0.0, %v2417
      %v2419 = vpop.f32.mrf.mxu0
      %v2420 = vpop.f32.mrf.mxu0
      %v2421 = vadd.f32 0.0, %v2420
      %v2422 = vpop.f32.mrf.mxu0
      %2423 = vmatprep.mubr.bf16.mxu0 0
      %2424 = vmatmul.mubr.bf16.gmra.mxu0 %v1040
      %v2425 = vpop.f32.mrf.mxu0
      %v2426 = vadd.f32 0.0, %v2425
      %v2427 = vpop.f32.mrf.mxu0
      %v2428 = vpop.f32.mrf.mxu0
      %v2429 = vadd.f32 0.0, %v2428
      %v2430 = vpop.f32.mrf.mxu0
      %2431 = vmatprep.mubr.bf16.mxu0 0
      %2432 = vmatmul.mubr.bf16.gmra.mxu0 %v1043
      %v2433 = vpop.f32.mrf.mxu0
      %v2434 = vadd.f32 0.0, %v2433
      %v2435 = vpop.f32.mrf.mxu0
      %v2436 = vpop.f32.mrf.mxu0
      %v2437 = vadd.f32 0.0, %v2436
      %v2438 = vpop.f32.mrf.mxu0
      %2439 = vmatprep.mubr.bf16.mxu0 0
      %2440 = vmatmul.mubr.bf16.gmra.mxu0 %v1046
      %v2441 = vpop.f32.mrf.mxu0
      %v2442 = vadd.f32 0.0, %v2441
      %v2443 = vpop.f32.mrf.mxu0
      %v2444 = vpop.f32.mrf.mxu0
      %v2445 = vadd.f32 0.0, %v2444
      %v2446 = vpop.f32.mrf.mxu0
      %2447 = vmatprep.mubr.bf16.mxu0 0
      %2448 = vmatmul.mubr.bf16.gmra.mxu0 %v1049
      %v2449 = vpop.f32.mrf.mxu0
      %v2450 = vadd.f32 0.0, %v2449
      %v2451 = vpop.f32.mrf.mxu0
      %v2452 = vpop.f32.mrf.mxu0
      %v2453 = vadd.f32 0.0, %v2452
      %v2454 = vpop.f32.mrf.mxu0
      %2455 = vmatprep.mubr.bf16.mxu0 0
      %2456 = vmatmul.mubr.bf16.gmra.mxu0 %v1052
      %v2457 = vpop.f32.mrf.mxu0
      %v2458 = vadd.f32 0.0, %v2457
      %v2459 = vpop.f32.mrf.mxu0
      %v2460 = vpop.f32.mrf.mxu0
      %v2461 = vadd.f32 0.0, %v2460
      %v2462 = vpop.f32.mrf.mxu0
      %2463 = vmatprep.mubr.bf16.mxu0 0
      %2464 = vmatmul.mubr.bf16.gmra.mxu0 %v1055
      %v2465 = vpop.f32.mrf.mxu0
      %v2466 = vadd.f32 0.0, %v2465
      %v2467 = vpop.f32.mrf.mxu0
      %v2468 = vpop.f32.mrf.mxu0
      %v2469 = vadd.f32 0.0, %v2468
      %v2470 = vpop.f32.mrf.mxu0
      %2471 = vmatprep.mubr.bf16.mxu0 0
      %2472 = vmatmul.mubr.bf16.gmra.mxu0 %v1058
      %v2473 = vpop.f32.mrf.mxu0
      %v2474 = vadd.f32 0.0, %v2473
      %v2475 = vpop.f32.mrf.mxu0
      %v2476 = vpop.f32.mrf.mxu0
      %v2477 = vadd.f32 0.0, %v2476
      %v2478 = vpop.f32.mrf.mxu0
      %2479 = vmatprep.mubr.bf16.mxu0 0
      %2480 = vmatmul.mubr.bf16.gmra.mxu0 %v1061
      %v2481 = vpop.f32.mrf.mxu0
      %v2482 = vadd.f32 0.0, %v2481
      %v2483 = vpop.f32.mrf.mxu0
      %v2484 = vpop.f32.mrf.mxu0
      %v2485 = vadd.f32 0.0, %v2484
      %v2486 = vpop.f32.mrf.mxu0
      %2487 = vmatprep.mubr.bf16.mxu0 0
      %2488 = vmatmul.mubr.bf16.gmra.mxu0 %v1064
      %v2489 = vpop.f32.mrf.mxu0
      %v2490 = vadd.f32 0.0, %v2489
      %v2491 = vpop.f32.mrf.mxu0
      %v2492 = vpop.f32.mrf.mxu0
      %v2493 = vadd.f32 0.0, %v2492
      %v2494 = vpop.f32.mrf.mxu0
      %2495 = vmatprep.mubr.bf16.mxu0 0
      %2496 = vmatmul.mubr.bf16.gmra.mxu0 %v1067
      %v2497 = vpop.f32.mrf.mxu0
      %v2498 = vadd.f32 0.0, %v2497
      %v2499 = vpop.f32.mrf.mxu0
      %v2500 = vpop.f32.mrf.mxu0
      %v2501 = vadd.f32 0.0, %v2500
      %v2502 = vpop.f32.mrf.mxu0
      %2503 = vmatprep.mubr.bf16.mxu0 0
      %2504 = vmatmul.mubr.bf16.gmra.mxu0 %v1070
      %v2505 = vpop.f32.mrf.mxu0
      %v2506 = vadd.f32 0.0, %v2505
      %v2507 = vpop.f32.mrf.mxu0
      %v2508 = vpop.f32.mrf.mxu0
      %v2509 = vadd.f32 0.0, %v2508
      %v2510 = vpop.f32.mrf.mxu0
      %2511 = vmatprep.mubr.bf16.mxu0 0
      %2512 = vmatmul.mubr.bf16.gmra.mxu0 %v1073
      %v2513 = vpop.f32.mrf.mxu0
      %v2514 = vadd.f32 0.0, %v2513
      %v2515 = vpop.f32.mrf.mxu0
      %v2516 = vpop.f32.mrf.mxu0
      %v2517 = vadd.f32 0.0, %v2516
      %v2518 = vpop.f32.mrf.mxu0
      %2519 = vmatprep.mubr.bf16.mxu0 0
      %2520 = vmatmul.mubr.bf16.gmra.mxu0 %v1694
      %v2521 = vpop.f32.mrf.mxu0
      %v2522 = vadd.f32 0.0, %v2521
      %v2523 = vpop.f32.mrf.mxu0
      %v2524 = vpop.f32.mrf.mxu0
      %v2525 = vadd.f32 0.0, %v2524
      %v2526 = vpop.f32.mrf.mxu0
      %2527 = vmatprep.mubr.bf16.mxu0 0
      %2528 = vmatmul.mubr.bf16.gmra.mxu0 %v2373
      %v2529 = vpop.f32.mrf.mxu0
      %v2530 = vadd.f32 0.0, %v2529
      %v2531 = vpop.f32.mrf.mxu0
      %v2532 = vpop.f32.mrf.mxu0
      %v2533 = vadd.f32 0.0, %v2532
      %v2534 = vpop.f32.mrf.mxu0
      %2535 = vdwg.mxu0
      %v2536 = vadd.f32 %v2319, %v2410
      %v2537 = vadd.f32 %v2320, %v2413
      %v2538 = vadd.f32 %v2321, %v2418
      %v2539 = vadd.f32 %v2322, %v2421
      %v2540 = vadd.f32 %v2323, %v2426
      %v2541 = vadd.f32 %v2324, %v2429
      %v2542 = vadd.f32 %v2325, %v2434
      %v2543 = vadd.f32 %v2326, %v2437
      %v2544 = vadd.f32 %v2327, %v2442
      %v2545 = vadd.f32 %v2328, %v2445
      %v2546 = vadd.f32 %v2329, %v2450
      %v2547 = vadd.f32 %v2330, %v2453
      %v2548 = vadd.f32 %v2331, %v2458
      %v2549 = vadd.f32 %v2332, %v2461
      %v2550 = vadd.f32 %v2333, %v2466
      %v2551 = vadd.f32 %v2334, %v2469
      %v2552 = vadd.f32 %v2335, %v2474
      %v2553 = vadd.f32 %v2336, %v2477
      %v2554 = vadd.f32 %v2337, %v2482
      %v2555 = vadd.f32 %v2338, %v2485
      %v2556 = vadd.f32 %v2339, %v2490
      %v2557 = vadd.f32 %v2340, %v2493
      %v2558 = vadd.f32 %v2341, %v2498
      %v2559 = vadd.f32 %v2342, %v2501
      %v2560 = vadd.f32 %v2343, %v2506
      %v2561 = vadd.f32 %v2344, %v2509
      %v2562 = vadd.f32 %v2345, %v2514
      %v2563 = vadd.f32 %v2346, %v2517
      %v2564 = vadd.f32 %v2347, %v2522
      %v2565 = vadd.f32 %v2348, %v2525
      %v2566 = vadd.f32 %v2349, %v2530
      %v2567 = vadd.f32 %v2350, %v2533
      %v2569 = vshrl.u32 %v267, 16
      %v2571 = vrot.slane %v2569, 4
      %v2572 = vshll.u32 %v267, 16
      %v2574 = vrot.slane %v2572, 5
      %v2575 = vor.u32 %v2571, %v2574
      %v2576 = vrot.slane %v2575, 4
      %v2578 = vshll.u32 %v268, 16
      %v2580 = vrot.slane %v2578, 5
      %v2581 = vsel %vm276, %v2576, %v2580
      %v2582 = vshrl.u32 %v268, 16
      %v2584 = vrot.slane %v2582, 4
      %v2585 = vor.u32 %v2584, %v2580
      %v2586 = vrot.slane %v2585, 4
      %v2588 = vshll.u32 %v269, 16
      %v2590 = vrot.slane %v2588, 5
      %v2591 = vsel %vm276, %v2586, %v2590
      %v2592 = vld [vmem:[%s1 + $0x70] sm:$0xf]
      %v2593 = vld [vmem:[%s1 + $0x74] sm:$0xf]
      %v2594 = vld [vmem:[%s1 + $0x78] sm:$0xf]
      %v2595 = vld [vmem:[%s1 + $0x7c] sm:$0xf]
      %v2596 = vunpack.c.l.b16 %v2581
      %v2597 = vunpack.c.l.b16 %v2591
      %v2598 = vpack.c.b16 %v2597, %v2596
      %v2603 = vunpack.c.l.b16 %v2592
      %v2604 = vunpack.c.l.b16 %v2593
      %v2605 = vunpack.c.l.b16 %v2594
      %v2606 = vunpack.c.l.b16 %v2595
      %v2607 = vpack.c.b16 %v2604, %v2603
      %v2608 = vpack.c.b16 %v2606, %v2605
      %v2612 = vsel %vm725, %v2598, 0
      %2614 = vmatprep.subr.bf16.mxu0 0
      %2615 = vmatpush1.bf16.msra.mxu0 0
      %2616 = vmatprep.subr.bf16.mxu0 0
      %2617 = vmatpush1.bf16.msra.mxu0 0
      %2618 = vmatprep.subr.bf16.mxu0 0
      %2619 = vmatpush1.bf16.msra.mxu0 0
      %2620 = vmatprep.subr.bf16.mxu0 0
      %2621 = vmatpush1.bf16.msra.mxu0 0
      %2622 = vmatprep.subr.bf16.mxu0 0
      %2623 = vmatpush1.bf16.msra.mxu0 0
      %2624 = vmatprep.subr.bf16.mxu0 0
      %2625 = vmatpush1.bf16.msra.mxu0 0
      %2626 = vmatprep.subr.bf16.mxu0 0
      %2627 = vmatpush1.bf16.msra.mxu0 %v2608
      %2628 = vmatprep.subr.bf16.mxu0 0
      %2629 = vmatpush1.bf16.msra.mxu0 %v2607
      %2630 = vmatprep.subr.bf16.mxu0 0
      %2631 = vmatpush2.bf16.msra.mxu0 0
      %2632 = vmatprep.subr.bf16.mxu0 0
      %2633 = vmatpush2.bf16.msra.mxu0 0
      %2634 = vmatprep.subr.bf16.mxu0 0
      %2635 = vmatpush2.bf16.msra.mxu0 0
      %2636 = vmatprep.subr.bf16.mxu0 0
      %2637 = vmatpush2.bf16.msra.mxu0 0
      %2638 = vmatprep.subr.bf16.mxu0 0
      %2639 = vmatpush2.bf16.msra.mxu0 0
      %2640 = vmatprep.subr.bf16.mxu0 0
      %2641 = vmatpush2.bf16.msra.mxu0 0
      %2642 = vmatprep.subr.bf16.mxu0 0
      %2643 = vmatpush2.bf16.msra.mxu0 0
      %2644 = vmatprep.subr.bf16.mxu0 0
      %2645 = vmatpush2.bf16.msra.mxu0 0
      %2646 = vmatprep.mubr.bf16.mxu0 0
      %2647 = vmatmul.mubr.bf16.gmra.mxu0 %v733
      %v2648 = vpop.f32.mrf.mxu0
      %v2649 = vadd.f32 0.0, %v2648
      %v2650 = vpop.f32.mrf.mxu0
      %v2651 = vpop.f32.mrf.mxu0
      %v2652 = vadd.f32 0.0, %v2651
      %v2653 = vpop.f32.mrf.mxu0
      %2654 = vmatprep.mubr.bf16.mxu0 0
      %2655 = vmatmul.mubr.bf16.gmra.mxu0 %v736
      %v2656 = vpop.f32.mrf.mxu0
      %v2657 = vadd.f32 0.0, %v2656
      %v2658 = vpop.f32.mrf.mxu0
      %v2659 = vpop.f32.mrf.mxu0
      %v2660 = vadd.f32 0.0, %v2659
      %v2661 = vpop.f32.mrf.mxu0
      %2662 = vmatprep.mubr.bf16.mxu0 0
      %2663 = vmatmul.mubr.bf16.gmra.mxu0 %v739
      %v2664 = vpop.f32.mrf.mxu0
      %v2665 = vadd.f32 0.0, %v2664
      %v2666 = vpop.f32.mrf.mxu0
      %v2667 = vpop.f32.mrf.mxu0
      %v2668 = vadd.f32 0.0, %v2667
      %v2669 = vpop.f32.mrf.mxu0
      %2670 = vmatprep.mubr.bf16.mxu0 0
      %2671 = vmatmul.mubr.bf16.gmra.mxu0 %v742
      %v2672 = vpop.f32.mrf.mxu0
      %v2673 = vadd.f32 0.0, %v2672
      %v2674 = vpop.f32.mrf.mxu0
      %v2675 = vpop.f32.mrf.mxu0
      %v2676 = vadd.f32 0.0, %v2675
      %v2677 = vpop.f32.mrf.mxu0
      %2678 = vmatprep.mubr.bf16.mxu0 0
      %2679 = vmatmul.mubr.bf16.gmra.mxu0 %v745
      %v2680 = vpop.f32.mrf.mxu0
      %v2681 = vadd.f32 0.0, %v2680
      %v2682 = vpop.f32.mrf.mxu0
      %v2683 = vpop.f32.mrf.mxu0
      %v2684 = vadd.f32 0.0, %v2683
      %v2685 = vpop.f32.mrf.mxu0
      %2686 = vmatprep.mubr.bf16.mxu0 0
      %2687 = vmatmul.mubr.bf16.gmra.mxu0 %v748
      %v2688 = vpop.f32.mrf.mxu0
      %v2689 = vadd.f32 0.0, %v2688
      %v2690 = vpop.f32.mrf.mxu0
      %v2691 = vpop.f32.mrf.mxu0
      %v2692 = vadd.f32 0.0, %v2691
      %v2693 = vpop.f32.mrf.mxu0
      %2694 = vmatprep.mubr.bf16.mxu0 0
      %2695 = vmatmul.mubr.bf16.gmra.mxu0 %v751
      %v2696 = vpop.f32.mrf.mxu0
      %v2697 = vadd.f32 0.0, %v2696
      %v2698 = vpop.f32.mrf.mxu0
      %v2699 = vpop.f32.mrf.mxu0
      %v2700 = vadd.f32 0.0, %v2699
      %v2701 = vpop.f32.mrf.mxu0
      %2702 = vmatprep.mubr.bf16.mxu0 0
      %2703 = vmatmul.mubr.bf16.gmra.mxu0 %v754
      %v2704 = vpop.f32.mrf.mxu0
      %v2705 = vadd.f32 0.0, %v2704
      %v2706 = vpop.f32.mrf.mxu0
      %v2707 = vpop.f32.mrf.mxu0
      %v2708 = vadd.f32 0.0, %v2707
      %v2709 = vpop.f32.mrf.mxu0
      %2710 = vmatprep.mubr.bf16.mxu0 0
      %2711 = vmatmul.mubr.bf16.gmra.mxu0 %v757
      %v2712 = vpop.f32.mrf.mxu0
      %v2713 = vadd.f32 0.0, %v2712
      %v2714 = vpop.f32.mrf.mxu0
      %v2715 = vpop.f32.mrf.mxu0
      %v2716 = vadd.f32 0.0, %v2715
      %v2717 = vpop.f32.mrf.mxu0
      %2718 = vmatprep.mubr.bf16.mxu0 0
      %2719 = vmatmul.mubr.bf16.gmra.mxu0 %v760
      %v2720 = vpop.f32.mrf.mxu0
      %v2721 = vadd.f32 0.0, %v2720
      %v2722 = vpop.f32.mrf.mxu0
      %v2723 = vpop.f32.mrf.mxu0
      %v2724 = vadd.f32 0.0, %v2723
      %v2725 = vpop.f32.mrf.mxu0
      %2726 = vmatprep.mubr.bf16.mxu0 0
      %2727 = vmatmul.mubr.bf16.gmra.mxu0 %v763
      %v2728 = vpop.f32.mrf.mxu0
      %v2729 = vadd.f32 0.0, %v2728
      %v2730 = vpop.f32.mrf.mxu0
      %v2731 = vpop.f32.mrf.mxu0
      %v2732 = vadd.f32 0.0, %v2731
      %v2733 = vpop.f32.mrf.mxu0
      %2734 = vmatprep.mubr.bf16.mxu0 0
      %2735 = vmatmul.mubr.bf16.gmra.mxu0 %v766
      %v2736 = vpop.f32.mrf.mxu0
      %v2737 = vadd.f32 0.0, %v2736
      %v2738 = vpop.f32.mrf.mxu0
      %v2739 = vpop.f32.mrf.mxu0
      %v2740 = vadd.f32 0.0, %v2739
      %v2741 = vpop.f32.mrf.mxu0
      %2742 = vmatprep.mubr.bf16.mxu0 0
      %2743 = vmatmul.mubr.bf16.gmra.mxu0 %v769
      %v2744 = vpop.f32.mrf.mxu0
      %v2745 = vadd.f32 0.0, %v2744
      %v2746 = vpop.f32.mrf.mxu0
      %v2747 = vpop.f32.mrf.mxu0
      %v2748 = vadd.f32 0.0, %v2747
      %v2749 = vpop.f32.mrf.mxu0
      %2750 = vmatprep.mubr.bf16.mxu0 0
      %2751 = vmatmul.mubr.bf16.gmra.mxu0 %v772
      %v2752 = vpop.f32.mrf.mxu0
      %v2753 = vadd.f32 0.0, %v2752
      %v2754 = vpop.f32.mrf.mxu0
      %v2755 = vpop.f32.mrf.mxu0
      %v2756 = vadd.f32 0.0, %v2755
      %v2757 = vpop.f32.mrf.mxu0
      %2758 = vmatprep.mubr.bf16.mxu0 0
      %2759 = vmatmul.mubr.bf16.gmra.mxu0 %v1933
      %v2760 = vpop.f32.mrf.mxu0
      %v2761 = vadd.f32 0.0, %v2760
      %v2762 = vpop.f32.mrf.mxu0
      %v2763 = vpop.f32.mrf.mxu0
      %v2764 = vadd.f32 0.0, %v2763
      %v2765 = vpop.f32.mrf.mxu0
      %2766 = vmatprep.mubr.bf16.mxu0 0
      %2767 = vmatmul.mubr.bf16.gmra.mxu0 %v2612
      %v2768 = vpop.f32.mrf.mxu0
      %v2769 = vadd.f32 0.0, %v2768
      %v2770 = vpop.f32.mrf.mxu0
      %v2771 = vpop.f32.mrf.mxu0
      %v2772 = vadd.f32 0.0, %v2771
      %v2773 = vpop.f32.mrf.mxu0
      %2774 = vdwg.mxu0
      %v2775 = vadd.f32 %v2536, %v2649
      %v2776 = vadd.f32 %v2537, %v2652
      %v2777 = vadd.f32 %v2538, %v2657
      %v2778 = vadd.f32 %v2539, %v2660
      %v2779 = vadd.f32 %v2540, %v2665
      %v2780 = vadd.f32 %v2541, %v2668
      %v2781 = vadd.f32 %v2542, %v2673
      %v2782 = vadd.f32 %v2543, %v2676
      %v2783 = vadd.f32 %v2544, %v2681
      %v2784 = vadd.f32 %v2545, %v2684
      %v2785 = vadd.f32 %v2546, %v2689
      %v2786 = vadd.f32 %v2547, %v2692
      %v2787 = vadd.f32 %v2548, %v2697
      %v2788 = vadd.f32 %v2549, %v2700
      %v2789 = vadd.f32 %v2550, %v2705
      %v2790 = vadd.f32 %v2551, %v2708
      %v2791 = vadd.f32 %v2552, %v2713
      %v2792 = vadd.f32 %v2553, %v2716
      %v2793 = vadd.f32 %v2554, %v2721
      %v2794 = vadd.f32 %v2555, %v2724
      %v2795 = vadd.f32 %v2556, %v2729
      %v2796 = vadd.f32 %v2557, %v2732
      %v2797 = vadd.f32 %v2558, %v2737
      %v2798 = vadd.f32 %v2559, %v2740
      %v2799 = vadd.f32 %v2560, %v2745
      %v2800 = vadd.f32 %v2561, %v2748
      %v2801 = vadd.f32 %v2562, %v2753
      %v2802 = vadd.f32 %v2563, %v2756
      %v2803 = vadd.f32 %v2564, %v2761
      %v2804 = vadd.f32 %v2565, %v2764
      %v2805 = vadd.f32 %v2566, %v2769
      %v2806 = vadd.f32 %v2567, %v2772
      %v2808 = vrot.slane %v267, 5
      %v2809 = vrot.slane %v2808, 4
      %v2810 = vrot.slane %v268, 5
      %v2811 = vsel %vm1254, %v2809, %v2810
      %v2812 = vrot.slane %v2810, 4
      %v2813 = vrot.slane %v269, 5
      %v2814 = vsel %vm1254, %v2812, %v2813
      %v2815 = vld [vmem:[%s1 + $0x80] sm:$0xf]
      %v2816 = vld [vmem:[%s1 + $0x84] sm:$0xf]
      %v2817 = vld [vmem:[%s1 + $0x88] sm:$0xf]
      %v2818 = vld [vmem:[%s1 + $0x8c] sm:$0xf]
      %v2819 = vunpack.c.l.b16 %v2811
      %v2820 = vunpack.c.l.b16 %v2814
      %v2821 = vpack.c.b16 %v2820, %v2819
      %v2826 = vunpack.c.l.b16 %v2815
      %v2827 = vunpack.c.l.b16 %v2816
      %v2828 = vunpack.c.l.b16 %v2817
      %v2829 = vunpack.c.l.b16 %v2818
      %v2830 = vpack.c.b16 %v2827, %v2826
      %v2831 = vpack.c.b16 %v2829, %v2828
      %v2835 = vsel %vm725, %v2821, 0
      %2837 = vmatprep.subr.bf16.mxu0 0
      %2838 = vmatpush1.bf16.msra.mxu0 0
      %2839 = vmatprep.subr.bf16.mxu0 0
      %2840 = vmatpush1.bf16.msra.mxu0 0
      %2841 = vmatprep.subr.bf16.mxu0 0
      %2842 = vmatpush1.bf16.msra.mxu0 0
      %2843 = vmatprep.subr.bf16.mxu0 0
      %2844 = vmatpush1.bf16.msra.mxu0 0
      %2845 = vmatprep.subr.bf16.mxu0 0
      %2846 = vmatpush1.bf16.msra.mxu0 0
      %2847 = vmatprep.subr.bf16.mxu0 0
      %2848 = vmatpush1.bf16.msra.mxu0 0
      %2849 = vmatprep.subr.bf16.mxu0 0
      %2850 = vmatpush1.bf16.msra.mxu0 %v2831
      %2851 = vmatprep.subr.bf16.mxu0 0
      %2852 = vmatpush1.bf16.msra.mxu0 %v2830
      %2853 = vmatprep.subr.bf16.mxu0 0
      %2854 = vmatpush2.bf16.msra.mxu0 0
      %2855 = vmatprep.subr.bf16.mxu0 0
      %2856 = vmatpush2.bf16.msra.mxu0 0
      %2857 = vmatprep.subr.bf16.mxu0 0
      %2858 = vmatpush2.bf16.msra.mxu0 0
      %2859 = vmatprep.subr.bf16.mxu0 0
      %2860 = vmatpush2.bf16.msra.mxu0 0
      %2861 = vmatprep.subr.bf16.mxu0 0
      %2862 = vmatpush2.bf16.msra.mxu0 0
      %2863 = vmatprep.subr.bf16.mxu0 0
      %2864 = vmatpush2.bf16.msra.mxu0 0
      %2865 = vmatprep.subr.bf16.mxu0 0
      %2866 = vmatpush2.bf16.msra.mxu0 0
      %2867 = vmatprep.subr.bf16.mxu0 0
      %2868 = vmatpush2.bf16.msra.mxu0 0
      %2869 = vmatprep.mubr.bf16.mxu0 0
      %2870 = vmatmul.mubr.bf16.gmra.mxu0 %v1438
      %v2871 = vpop.f32.mrf.mxu0
      %v2872 = vadd.f32 0.0, %v2871
      %v2873 = vpop.f32.mrf.mxu0
      %v2874 = vpop.f32.mrf.mxu0
      %v2875 = vadd.f32 0.0, %v2874
      %v2876 = vpop.f32.mrf.mxu0
      %2877 = vmatprep.mubr.bf16.mxu0 0
      %2878 = vmatmul.mubr.bf16.gmra.mxu0 %v1441
      %v2879 = vpop.f32.mrf.mxu0
      %v2880 = vadd.f32 0.0, %v2879
      %v2881 = vpop.f32.mrf.mxu0
      %v2882 = vpop.f32.mrf.mxu0
      %v2883 = vadd.f32 0.0, %v2882
      %v2884 = vpop.f32.mrf.mxu0
      %2885 = vmatprep.mubr.bf16.mxu0 0
      %2886 = vmatmul.mubr.bf16.gmra.mxu0 %v1444
      %v2887 = vpop.f32.mrf.mxu0
      %v2888 = vadd.f32 0.0, %v2887
      %v2889 = vpop.f32.mrf.mxu0
      %v2890 = vpop.f32.mrf.mxu0
      %v2891 = vadd.f32 0.0, %v2890
      %v2892 = vpop.f32.mrf.mxu0
      %2893 = vmatprep.mubr.bf16.mxu0 0
      %2894 = vmatmul.mubr.bf16.gmra.mxu0 %v1447
      %v2895 = vpop.f32.mrf.mxu0
      %v2896 = vadd.f32 0.0, %v2895
      %v2897 = vpop.f32.mrf.mxu0
      %v2898 = vpop.f32.mrf.mxu0
      %v2899 = vadd.f32 0.0, %v2898
      %v2900 = vpop.f32.mrf.mxu0
      %2901 = vmatprep.mubr.bf16.mxu0 0
      %2902 = vmatmul.mubr.bf16.gmra.mxu0 %v1450
      %v2903 = vpop.f32.mrf.mxu0
      %v2904 = vadd.f32 0.0, %v2903
      %v2905 = vpop.f32.mrf.mxu0
      %v2906 = vpop.f32.mrf.mxu0
      %v2907 = vadd.f32 0.0, %v2906
      %v2908 = vpop.f32.mrf.mxu0
      %2909 = vmatprep.mubr.bf16.mxu0 0
      %2910 = vmatmul.mubr.bf16.gmra.mxu0 %v1453
      %v2911 = vpop.f32.mrf.mxu0
      %v2912 = vadd.f32 0.0, %v2911
      %v2913 = vpop.f32.mrf.mxu0
      %v2914 = vpop.f32.mrf.mxu0
      %v2915 = vadd.f32 0.0, %v2914
      %v2916 = vpop.f32.mrf.mxu0
      %2917 = vmatprep.mubr.bf16.mxu0 0
      %2918 = vmatmul.mubr.bf16.gmra.mxu0 %v1456
      %v2919 = vpop.f32.mrf.mxu0
      %v2920 = vadd.f32 0.0, %v2919
      %v2921 = vpop.f32.mrf.mxu0
      %v2922 = vpop.f32.mrf.mxu0
      %v2923 = vadd.f32 0.0, %v2922
      %v2924 = vpop.f32.mrf.mxu0
      %2925 = vmatprep.mubr.bf16.mxu0 0
      %2926 = vmatmul.mubr.bf16.gmra.mxu0 %v1459
      %v2927 = vpop.f32.mrf.mxu0
      %v2928 = vadd.f32 0.0, %v2927
      %v2929 = vpop.f32.mrf.mxu0
      %v2930 = vpop.f32.mrf.mxu0
      %v2931 = vadd.f32 0.0, %v2930
      %v2932 = vpop.f32.mrf.mxu0
      %2933 = vmatprep.mubr.bf16.mxu0 0
      %2934 = vmatmul.mubr.bf16.gmra.mxu0 %v1462
      %v2935 = vpop.f32.mrf.mxu0
      %v2936 = vadd.f32 0.0, %v2935
      %v2937 = vpop.f32.mrf.mxu0
      %v2938 = vpop.f32.mrf.mxu0
      %v2939 = vadd.f32 0.0, %v2938
      %v2940 = vpop.f32.mrf.mxu0
      %2941 = vmatprep.mubr.bf16.mxu0 0
      %2942 = vmatmul.mubr.bf16.gmra.mxu0 %v1465
      %v2943 = vpop.f32.mrf.mxu0
      %v2944 = vadd.f32 0.0, %v2943
      %v2945 = vpop.f32.mrf.mxu0
      %v2946 = vpop.f32.mrf.mxu0
      %v2947 = vadd.f32 0.0, %v2946
      %v2948 = vpop.f32.mrf.mxu0
      %2949 = vmatprep.mubr.bf16.mxu0 0
      %2950 = vmatmul.mubr.bf16.gmra.mxu0 %v1468
      %v2951 = vpop.f32.mrf.mxu0
      %v2952 = vadd.f32 0.0, %v2951
      %v2953 = vpop.f32.mrf.mxu0
      %v2954 = vpop.f32.mrf.mxu0
      %v2955 = vadd.f32 0.0, %v2954
      %v2956 = vpop.f32.mrf.mxu0
      %2957 = vmatprep.mubr.bf16.mxu0 0
      %2958 = vmatmul.mubr.bf16.gmra.mxu0 %v1471
      %v2959 = vpop.f32.mrf.mxu0
      %v2960 = vadd.f32 0.0, %v2959
      %v2961 = vpop.f32.mrf.mxu0
      %v2962 = vpop.f32.mrf.mxu0
      %v2963 = vadd.f32 0.0, %v2962
      %v2964 = vpop.f32.mrf.mxu0
      %2965 = vmatprep.mubr.bf16.mxu0 0
      %2966 = vmatmul.mubr.bf16.gmra.mxu0 %v1474
      %v2967 = vpop.f32.mrf.mxu0
      %v2968 = vadd.f32 0.0, %v2967
      %v2969 = vpop.f32.mrf.mxu0
      %v2970 = vpop.f32.mrf.mxu0
      %v2971 = vadd.f32 0.0, %v2970
      %v2972 = vpop.f32.mrf.mxu0
      %2973 = vmatprep.mubr.bf16.mxu0 0
      %2974 = vmatmul.mubr.bf16.gmra.mxu0 %v1477
      %v2975 = vpop.f32.mrf.mxu0
      %v2976 = vadd.f32 0.0, %v2975
      %v2977 = vpop.f32.mrf.mxu0
      %v2978 = vpop.f32.mrf.mxu0
      %v2979 = vadd.f32 0.0, %v2978
      %v2980 = vpop.f32.mrf.mxu0
      %2981 = vmatprep.mubr.bf16.mxu0 0
      %2982 = vmatmul.mubr.bf16.gmra.mxu0 %v2156
      %v2983 = vpop.f32.mrf.mxu0
      %v2984 = vadd.f32 0.0, %v2983
      %v2985 = vpop.f32.mrf.mxu0
      %v2986 = vpop.f32.mrf.mxu0
      %v2987 = vadd.f32 0.0, %v2986
      %v2988 = vpop.f32.mrf.mxu0
      %2989 = vmatprep.mubr.bf16.mxu0 0
      %2990 = vmatmul.mubr.bf16.gmra.mxu0 %v2835
      %v2991 = vpop.f32.mrf.mxu0
      %v2992 = vadd.f32 0.0, %v2991
      %v2993 = vpop.f32.mrf.mxu0
      %v2994 = vpop.f32.mrf.mxu0
      %v2995 = vadd.f32 0.0, %v2994
      %v2996 = vpop.f32.mrf.mxu0
      %2997 = vdwg.mxu0
      %v2998 = vadd.f32 %v2775, %v2872
      %v2999 = vadd.f32 %v2776, %v2875
      %v3000 = vadd.f32 %v2777, %v2880
      %v3001 = vadd.f32 %v2778, %v2883
      %v3002 = vadd.f32 %v2779, %v2888
      %v3003 = vadd.f32 %v2780, %v2891
      %v3004 = vadd.f32 %v2781, %v2896
      %v3005 = vadd.f32 %v2782, %v2899
      %v3006 = vadd.f32 %v2783, %v2904
      %v3007 = vadd.f32 %v2784, %v2907
      %v3008 = vadd.f32 %v2785, %v2912
      %v3009 = vadd.f32 %v2786, %v2915
      %v3010 = vadd.f32 %v2787, %v2920
      %v3011 = vadd.f32 %v2788, %v2923
      %v3012 = vadd.f32 %v2789, %v2928
      %v3013 = vadd.f32 %v2790, %v2931
      %v3014 = vadd.f32 %v2791, %v2936
      %v3015 = vadd.f32 %v2792, %v2939
      %v3016 = vadd.f32 %v2793, %v2944
      %v3017 = vadd.f32 %v2794, %v2947
      %v3018 = vadd.f32 %v2795, %v2952
      %v3019 = vadd.f32 %v2796, %v2955
      %v3020 = vadd.f32 %v2797, %v2960
      %v3021 = vadd.f32 %v2798, %v2963
      %v3022 = vadd.f32 %v2799, %v2968
      %v3023 = vadd.f32 %v2800, %v2971
      %v3024 = vadd.f32 %v2801, %v2976
      %v3025 = vadd.f32 %v2802, %v2979
      %v3026 = vadd.f32 %v2803, %v2984
      %v3027 = vadd.f32 %v2804, %v2987
      %v3028 = vadd.f32 %v2805, %v2992
      %v3029 = vadd.f32 %v2806, %v2995
      %v3030 = vpack.c.bf16 %v2999, %v2998
      %v3031 = vpack.c.bf16 %v3001, %v3000
      %v3032 = vpack.c.bf16 %v3003, %v3002
      %v3033 = vpack.c.bf16 %v3005, %v3004
      %v3034 = vpack.c.bf16 %v3007, %v3006
      %v3035 = vpack.c.bf16 %v3009, %v3008
      %v3036 = vpack.c.bf16 %v3011, %v3010
      %v3037 = vpack.c.bf16 %v3013, %v3012
      %v3038 = vpack.c.bf16 %v3015, %v3014
      %v3039 = vpack.c.bf16 %v3017, %v3016
      %v3040 = vpack.c.bf16 %v3019, %v3018
      %v3041 = vpack.c.bf16 %v3021, %v3020
      %v3042 = vpack.c.bf16 %v3023, %v3022
      %v3043 = vpack.c.bf16 %v3025, %v3024
      %v3044 = vpack.c.bf16 %v3027, %v3026
      %v3045 = vpack.c.bf16 %v3029, %v3028
      %v3062 = vunpack.c.l.b16 %v3030
      %v3063 = vunpack.c.h.b16 %v3030
      %v3064 = vunpack.c.l.b16 %v3031
      %v3065 = vunpack.c.h.b16 %v3031
      %v3066 = vunpack.c.l.b16 %v3032
      %v3067 = vunpack.c.h.b16 %v3032
      %v3068 = vunpack.c.l.b16 %v3033
      %v3069 = vunpack.c.h.b16 %v3033
      %v3070 = vunpack.c.l.b16 %v3034
      %v3071 = vunpack.c.h.b16 %v3034
      %v3072 = vunpack.c.l.b16 %v3035
      %v3073 = vunpack.c.h.b16 %v3035
      %v3074 = vunpack.c.l.b16 %v3036
      %v3075 = vunpack.c.h.b16 %v3036
      %v3076 = vunpack.c.l.b16 %v3037
      %v3077 = vunpack.c.h.b16 %v3037
      %v3078 = vunpack.c.l.b16 %v3038
      %v3079 = vunpack.c.h.b16 %v3038
      %v3080 = vunpack.c.l.b16 %v3039
      %v3081 = vunpack.c.h.b16 %v3039
      %v3082 = vunpack.c.l.b16 %v3040
      %v3083 = vunpack.c.h.b16 %v3040
      %v3084 = vunpack.c.l.b16 %v3041
      %v3085 = vunpack.c.h.b16 %v3041
      %v3086 = vunpack.c.l.b16 %v3042
      %v3087 = vunpack.c.h.b16 %v3042
      %v3088 = vunpack.c.l.b16 %v3043
      %v3089 = vunpack.c.h.b16 %v3043
      %v3090 = vunpack.c.l.b16 %v3044
      %v3091 = vunpack.c.h.b16 %v3044
      %v3092 = vunpack.c.l.b16 %v3045
      %v3093 = vunpack.c.h.b16 %v3045
      %v3094 = vpack.c.b16 %v3062, %v3062
      %v3095 = vpack.c.b16 %v3063, %v3063
      %v3096 = vpack.c.b16 %v3064, %v3064
      %v3097 = vpack.c.b16 %v3065, %v3065
      %v3098 = vpack.c.b16 %v3066, %v3066
      %v3099 = vpack.c.b16 %v3067, %v3067
      %v3100 = vpack.c.b16 %v3068, %v3068
      %v3101 = vpack.c.b16 %v3069, %v3069
      %v3102 = vpack.c.b16 %v3070, %v3070
      %v3103 = vpack.c.b16 %v3071, %v3071
      %v3104 = vpack.c.b16 %v3072, %v3072
      %v3105 = vpack.c.b16 %v3073, %v3073
      %v3106 = vpack.c.b16 %v3074, %v3074
      %v3107 = vpack.c.b16 %v3075, %v3075
      %v3108 = vpack.c.b16 %v3076, %v3076
      %v3109 = vpack.c.b16 %v3077, %v3077
      %v3110 = vpack.c.b16 %v3078, %v3078
      %v3111 = vpack.c.b16 %v3079, %v3079
      %v3112 = vpack.c.b16 %v3080, %v3080
      %v3113 = vpack.c.b16 %v3081, %v3081
      %v3114 = vpack.c.b16 %v3082, %v3082
      %v3115 = vpack.c.b16 %v3083, %v3083
      %v3116 = vpack.c.b16 %v3084, %v3084
      %v3117 = vpack.c.b16 %v3085, %v3085
      %v3118 = vpack.c.b16 %v3086, %v3086
      %v3119 = vpack.c.b16 %v3087, %v3087
      %v3120 = vpack.c.b16 %v3088, %v3088
      %v3121 = vpack.c.b16 %v3089, %v3089
      %v3122 = vpack.c.b16 %v3090, %v3090
      %v3123 = vpack.c.b16 %v3091, %v3091
      %v3124 = vpack.c.b16 %v3092, %v3092
      %v3125 = vpack.c.b16 %v3093, %v3093
      %vm3158 = vcmask 257024
      %3159 = vst.msk [vmem:[%s208] sm:$0xf] %vm3158, %v3094
      %3160 = vst.msk [vmem:[%s208 + $0x4] sm:$0xf] %vm3158, %v3095
      %3161 = vst.msk [vmem:[%s208 + $0x8] sm:$0xf] %vm3158, %v3096
      %3162 = vst.msk [vmem:[%s208 + $0xc] sm:$0xf] %vm3158, %v3097
      %3163 = vst.msk [vmem:[%s208 + $0x10] sm:$0xf] %vm3158, %v3098
      %3164 = vst.msk [vmem:[%s208 + $0x14] sm:$0xf] %vm3158, %v3099
      %3165 = vst.msk [vmem:[%s208 + $0x18] sm:$0xf] %vm3158, %v3100
      %3166 = vst.msk [vmem:[%s208 + $0x1c] sm:$0xf] %vm3158, %v3101
      %3167 = vst.msk [vmem:[%s208 + $0x20] sm:$0xf] %vm3158, %v3102
      %3168 = vst.msk [vmem:[%s208 + $0x24] sm:$0xf] %vm3158, %v3103
      %3169 = vst.msk [vmem:[%s208 + $0x28] sm:$0xf] %vm3158, %v3104
      %3170 = vst.msk [vmem:[%s208 + $0x2c] sm:$0xf] %vm3158, %v3105
      %3171 = vst.msk [vmem:[%s208 + $0x30] sm:$0xf] %vm3158, %v3106
      %3172 = vst.msk [vmem:[%s208 + $0x34] sm:$0xf] %vm3158, %v3107
      %3173 = vst.msk [vmem:[%s208 + $0x38] sm:$0xf] %vm3158, %v3108
      %3174 = vst.msk [vmem:[%s208 + $0x3c] sm:$0xf] %vm3158, %v3109
      %3175 = vst.msk [vmem:[%s208 + $0x40] sm:$0xf] %vm3158, %v3110
      %3176 = vst.msk [vmem:[%s208 + $0x44] sm:$0xf] %vm3158, %v3111
      %3177 = vst.msk [vmem:[%s208 + $0x48] sm:$0xf] %vm3158, %v3112
      %3178 = vst.msk [vmem:[%s208 + $0x4c] sm:$0xf] %vm3158, %v3113
      %3179 = vst.msk [vmem:[%s208 + $0x50] sm:$0xf] %vm3158, %v3114
      %3180 = vst.msk [vmem:[%s208 + $0x54] sm:$0xf] %vm3158, %v3115
      %3181 = vst.msk [vmem:[%s208 + $0x58] sm:$0xf] %vm3158, %v3116
      %3182 = vst.msk [vmem:[%s208 + $0x5c] sm:$0xf] %vm3158, %v3117
      %3183 = vst.msk [vmem:[%s208 + $0x60] sm:$0xf] %vm3158, %v3118
      %3184 = vst.msk [vmem:[%s208 + $0x64] sm:$0xf] %vm3158, %v3119
      %3185 = vst.msk [vmem:[%s208 + $0x68] sm:$0xf] %vm3158, %v3120
      %3186 = vst.msk [vmem:[%s208 + $0x6c] sm:$0xf] %vm3158, %v3121
      %3187 = vst.msk [vmem:[%s208 + $0x70] sm:$0xf] %vm3158, %v3122
      %3188 = vst.msk [vmem:[%s208 + $0x74] sm:$0xf] %vm3158, %v3123
      %3189 = vst.msk [vmem:[%s208 + $0x78] sm:$0xf] %vm3158, %v3124
      %3190 = vst.msk [vmem:[%s208 + $0x7c] sm:$0xf] %vm3158, %v3125
      %v3191 = vsel %vm725, %v2998, 0.0
      %v3192 = vsel %vm725, %v2999, 0.0
      %v3193 = vadd.f32 %v3191, %v3192
      %v3194 = vsel %vm725, %v3000, 0.0
      %v3195 = vadd.f32 %v3193, %v3194
      %v3196 = vsel %vm725, %v3001, 0.0
      %v3197 = vadd.f32 %v3195, %v3196
      %v3198 = vsel %vm725, %v3002, 0.0
      %v3199 = vadd.f32 %v3197, %v3198
      %v3200 = vsel %vm725, %v3003, 0.0
      %v3201 = vadd.f32 %v3199, %v3200
      %v3202 = vsel %vm725, %v3004, 0.0
      %v3203 = vadd.f32 %v3201, %v3202
      %v3204 = vsel %vm725, %v3005, 0.0
      %v3205 = vadd.f32 %v3203, %v3204
      %v3206 = vsel %vm725, %v3006, 0.0
      %v3207 = vadd.f32 %v3205, %v3206
      %v3208 = vsel %vm725, %v3007, 0.0
      %v3209 = vadd.f32 %v3207, %v3208
      %v3210 = vsel %vm725, %v3008, 0.0
      %v3211 = vadd.f32 %v3209, %v3210
      %v3212 = vsel %vm725, %v3009, 0.0
      %v3213 = vadd.f32 %v3211, %v3212
      %v3214 = vsel %vm725, %v3010, 0.0
      %v3215 = vadd.f32 %v3213, %v3214
      %v3216 = vsel %vm725, %v3011, 0.0
      %v3217 = vadd.f32 %v3215, %v3216
      %v3218 = vsel %vm725, %v3012, 0.0
      %v3219 = vadd.f32 %v3217, %v3218
      %v3220 = vsel %vm725, %v3013, 0.0
      %v3221 = vadd.f32 %v3219, %v3220
      %v3222 = vsel %vm725, %v3014, 0.0
      %v3223 = vadd.f32 %v3221, %v3222
      %v3224 = vsel %vm725, %v3015, 0.0
      %v3225 = vadd.f32 %v3223, %v3224
      %v3226 = vsel %vm725, %v3016, 0.0
      %v3227 = vadd.f32 %v3225, %v3226
      %v3228 = vsel %vm725, %v3017, 0.0
      %v3229 = vadd.f32 %v3227, %v3228
      %v3230 = vsel %vm725, %v3018, 0.0
      %v3231 = vadd.f32 %v3229, %v3230
      %v3232 = vsel %vm725, %v3019, 0.0
      %v3233 = vadd.f32 %v3231, %v3232
      %v3234 = vsel %vm725, %v3020, 0.0
      %v3235 = vadd.f32 %v3233, %v3234
      %v3236 = vsel %vm725, %v3021, 0.0
      %v3237 = vadd.f32 %v3235, %v3236
      %v3238 = vsel %vm725, %v3022, 0.0
      %v3239 = vadd.f32 %v3237, %v3238
      %v3240 = vsel %vm725, %v3023, 0.0
      %v3241 = vadd.f32 %v3239, %v3240
      %v3242 = vsel %vm725, %v3024, 0.0
      %v3243 = vadd.f32 %v3241, %v3242
      %v3244 = vsel %vm725, %v3025, 0.0
      %v3245 = vadd.f32 %v3243, %v3244
      %v3246 = vsel %vm725, %v3026, 0.0
      %v3247 = vadd.f32 %v3245, %v3246
      %v3248 = vsel %vm725, %v3027, 0.0
      %v3249 = vadd.f32 %v3247, %v3248
      %v3250 = vsel %vm725, %v3028, 0.0
      %v3251 = vadd.f32 %v3249, %v3250
      %v3252 = vsel %vm725, %v3029, 0.0
      %v3253 = vadd.f32 %v3251, %v3252
      %v3254 = vrot.slane %v3253, 4
      %v3255 = vadd.f32 %v3253, %v3254
      %v3256 = vrot.slane %v3255, 2
      %v3257 = vadd.f32 %v3255, %v3256
      %v3258 = vrot.slane %v3257, 1
      %v3259 = vadd.f32 %v3257, %v3258
      %vm3260 = vcmask 253952
      %3261 = vst.msk [vmem:[%s211] sm:$0x1] %vm3260, %v3259
      %v3262 = vmul.f32 %v2998, %v2998
      %v3263 = vmul.f32 %v2999, %v2999
      %v3264 = vmul.f32 %v3000, %v3000
      %v3265 = vmul.f32 %v3001, %v3001
      %v3266 = vmul.f32 %v3002, %v3002
      %v3267 = vmul.f32 %v3003, %v3003
      %v3268 = vmul.f32 %v3004, %v3004
      %v3269 = vmul.f32 %v3005, %v3005
      %v3270 = vmul.f32 %v3006, %v3006
      %v3271 = vmul.f32 %v3007, %v3007
      %v3272 = vmul.f32 %v3008, %v3008
      %v3273 = vmul.f32 %v3009, %v3009
      %v3274 = vmul.f32 %v3010, %v3010
      %v3275 = vmul.f32 %v3011, %v3011
      %v3276 = vmul.f32 %v3012, %v3012
      %v3277 = vmul.f32 %v3013, %v3013
      %v3278 = vmul.f32 %v3014, %v3014
      %v3279 = vmul.f32 %v3015, %v3015
      %v3280 = vmul.f32 %v3016, %v3016
      %v3281 = vmul.f32 %v3017, %v3017
      %v3282 = vmul.f32 %v3018, %v3018
      %v3283 = vmul.f32 %v3019, %v3019
      %v3284 = vmul.f32 %v3020, %v3020
      %v3285 = vmul.f32 %v3021, %v3021
      %v3286 = vmul.f32 %v3022, %v3022
      %v3287 = vmul.f32 %v3023, %v3023
      %v3288 = vmul.f32 %v3024, %v3024
      %v3289 = vmul.f32 %v3025, %v3025
      %v3290 = vmul.f32 %v3026, %v3026
      %v3291 = vmul.f32 %v3027, %v3027
      %v3292 = vmul.f32 %v3028, %v3028
      %v3293 = vmul.f32 %v3029, %v3029
      %v3294 = vsel %vm725, %v3262, 0.0
      %v3295 = vsel %vm725, %v3263, 0.0
      %v3296 = vadd.f32 %v3294, %v3295
      %v3297 = vsel %vm725, %v3264, 0.0
      %v3298 = vadd.f32 %v3296, %v3297
      %v3299 = vsel %vm725, %v3265, 0.0
      %v3300 = vadd.f32 %v3298, %v3299
      %v3301 = vsel %vm725, %v3266, 0.0
      %v3302 = vadd.f32 %v3300, %v3301
      %v3303 = vsel %vm725, %v3267, 0.0
      %v3304 = vadd.f32 %v3302, %v3303
      %v3305 = vsel %vm725, %v3268, 0.0
      %v3306 = vadd.f32 %v3304, %v3305
      %v3307 = vsel %vm725, %v3269, 0.0
      %v3308 = vadd.f32 %v3306, %v3307
      %v3309 = vsel %vm725, %v3270, 0.0
      %v3310 = vadd.f32 %v3308, %v3309
      %v3311 = vsel %vm725, %v3271, 0.0
      %v3312 = vadd.f32 %v3310, %v3311
      %v3313 = vsel %vm725, %v3272, 0.0
      %v3314 = vadd.f32 %v3312, %v3313
      %v3315 = vsel %vm725, %v3273, 0.0
      %v3316 = vadd.f32 %v3314, %v3315
      %v3317 = vsel %vm725, %v3274, 0.0
      %v3318 = vadd.f32 %v3316, %v3317
      %v3319 = vsel %vm725, %v3275, 0.0
      %v3320 = vadd.f32 %v3318, %v3319
      %v3321 = vsel %vm725, %v3276, 0.0
      %v3322 = vadd.f32 %v3320, %v3321
      %v3323 = vsel %vm725, %v3277, 0.0
      %v3324 = vadd.f32 %v3322, %v3323
      %v3325 = vsel %vm725, %v3278, 0.0
      %v3326 = vadd.f32 %v3324, %v3325
      %v3327 = vsel %vm725, %v3279, 0.0
      %v3328 = vadd.f32 %v3326, %v3327
      %v3329 = vsel %vm725, %v3280, 0.0
      %v3330 = vadd.f32 %v3328, %v3329
      %v3331 = vsel %vm725, %v3281, 0.0
      %v3332 = vadd.f32 %v3330, %v3331
      %v3333 = vsel %vm725, %v3282, 0.0
      %v3334 = vadd.f32 %v3332, %v3333
      %v3335 = vsel %vm725, %v3283, 0.0
      %v3336 = vadd.f32 %v3334, %v3335
      %v3337 = vsel %vm725, %v3284, 0.0
      %v3338 = vadd.f32 %v3336, %v3337
      %v3339 = vsel %vm725, %v3285, 0.0
      %v3340 = vadd.f32 %v3338, %v3339
      %v3341 = vsel %vm725, %v3286, 0.0
      %v3342 = vadd.f32 %v3340, %v3341
      %v3343 = vsel %vm725, %v3287, 0.0
      %v3344 = vadd.f32 %v3342, %v3343
      %v3345 = vsel %vm725, %v3288, 0.0
      %v3346 = vadd.f32 %v3344, %v3345
      %v3347 = vsel %vm725, %v3289, 0.0
      %v3348 = vadd.f32 %v3346, %v3347
      %v3349 = vsel %vm725, %v3290, 0.0
      %v3350 = vadd.f32 %v3348, %v3349
      %v3351 = vsel %vm725, %v3291, 0.0
      %v3352 = vadd.f32 %v3350, %v3351
      %v3353 = vsel %vm725, %v3292, 0.0
      %v3354 = vadd.f32 %v3352, %v3353
      %v3355 = vsel %vm725, %v3293, 0.0
      %v3356 = vadd.f32 %v3354, %v3355
      %v3357 = vrot.slane %v3356, 4
      %v3358 = vadd.f32 %v3356, %v3357
      %v3359 = vrot.slane %v3358, 2
      %v3360 = vadd.f32 %v3358, %v3359
      %v3361 = vrot.slane %v3360, 1
      %v3362 = vadd.f32 %v3360, %v3361
      %3363 = vst.msk [vmem:[%s214] sm:$0x1] %vm3260, %v3362
      %p3364 = scmp.lt.s32.totalorder %s16, 1
      %s3365 = scalar_select %p3364, %s16, 1
      %s3366 = smul.addr %s3365, 32
      %s3367 = smul.addr %s3366, 4
      %s3368 = scalar_lea.vmem %s2, %s3367
      %p3369 = scmp.lt.s32.totalorder %s16, 1
      %s3370 = scalar_select %p3369, %s16, 1
      %s3371 = scalar_lea.vmem %s3, %s3370
      %p3372 = scmp.lt.s32.totalorder %s16, 1
      %s3373 = scalar_select %p3372, %s16, 1
      %s3374 = scalar_lea.vmem %s4, %s3373
      // Predicated region
      $region29: #{fwd.36} parent=27 // pred_check
        %p3375 = pneg %p81
      $region30: #{fwd.36} parent=27 // pred_check_branch
        %3377 = sbr.rel (%p3375) target = $region32
      $region31: #{fwd.36} parent=27 // pred_region
        _
      $region32: #{fwd.36} parent=27 // pred_fallthru
        _
      // Predicated region
      $region33: #{fwd.36} parent=27 // pred_check
        %p3378 = pneg %p107
      $region34: #{fwd.36} parent=27 // pred_check_branch
        %3380 = sbr.rel (%p3378) target = $region36
      $region35: #{fwd.36} parent=27 // pred_region
        _
      $region36: #{fwd.36} parent=27 // pred_fallthru
        _
      // Predicated region
      $region37: #{fwd.36} parent=27 // pred_check
        %p3381 = pneg %p133
      $region38: #{fwd.36} parent=27 // pred_check_branch
        %3383 = sbr.rel (%p3381) target = $region40
      $region39: #{fwd.36} parent=27 // pred_region
        _
      $region40: #{fwd.36} parent=27 // pred_fallthru
        _
    $region28: #{fwd.36} parent=5 // pred_fallthru
      _
    %p3384 = scmp.le.s32.totalorder 2, %s11
    // Predicated region
    $region41: #{fwd.36} parent=5 // pred_check
      %p3385 = pneg %p3384
    $region42: #{fwd.36} parent=5 // pred_check_branch
      %3387 = sbr.rel (%p3385) target = $region44
    $region43: #{fwd.36} parent=5 // pred_region
      %s3388 = ssub.s32 %s11, 2
      // Predicated region
      $region45: #{fwd.36} parent=43 // pred_check
        %p3389 = pneg %p87
      $region46: #{fwd.36} parent=43 // pred_check_branch
        %3391 = sbr.rel (%p3389) target = $region48
      $region47: #{fwd.36} parent=43 // pred_region
        %p3392 = scmp.lt.s32.totalorder %s17, 1
        %s3393 = scalar_select %p3392, %s17, 1
        %s3394 = smul.addr %s3393, 32
        %s3395 = smul.addr %s3394, 4
        %s3396 = scalar_lea.vmem %s2, %s3395
      $region48: #{fwd.36} parent=43 // pred_fallthru
        _
      // Predicated region
      $region49: #{fwd.36} parent=43 // pred_check
        %p3397 = pneg %p113
      $region50: #{fwd.36} parent=43 // pred_check_branch
        %3399 = sbr.rel (%p3397) target = $region52
      $region51: #{fwd.36} parent=43 // pred_region
        %p3400 = scmp.lt.s32.totalorder %s17, 1
        %s3401 = scalar_select %p3400, %s17, 1
        %s3402 = scalar_lea.vmem %s3, %s3401
      $region52: #{fwd.36} parent=43 // pred_fallthru
        _
      // Predicated region
      $region53: #{fwd.36} parent=43 // pred_check
        %p3403 = pneg %p139
      $region54: #{fwd.36} parent=43 // pred_check_branch
        %3405 = sbr.rel (%p3403) target = $region56
      $region55: #{fwd.36} parent=43 // pred_region
        %p3406 = scmp.lt.s32.totalorder %s17, 1
        %s3407 = scalar_select %p3406, %s17, 1
        %s3408 = scalar_lea.vmem %s4, %s3407
      $region56: #{fwd.36} parent=43 // pred_fallthru
        _
    $region44: #{fwd.36} parent=5 // pred_fallthru
      _
  $region6: #{fwd.36} parent=0 // loop_footer
    %s15 = sadd.s32 1, %s11
  $region7: #{fwd.36} parent=0 // loop_footer_branch
    %10 = sbr.rel target = $region3
  $region8: #{fwd.36} parent=0 // loop_exit
    _

// kernel: fwd.70
$region0: #{fwd.70}
  #allocation0 [shape = 'u32[]', space=smem, size = 0x4, offset = 0x4, fixed_abs, tag = 'smem constant byte address 0x4 - core index']
  #allocation1 [shape = 'u32[144,128]{1,0:T(1,128)}', space=vmem, size = 0x12000, scoped, tag = 'internal scratch']
  %s0 = inlined_call_operand.vmem [shape: bf16[128,288], index: 0, kind: input, shape index: {}]
  %s1 = inlined_call_operand.vmem [shape: bf16[288,64], index: 1, kind: input, shape index: {}]
  %s2 = inlined_call_operand.vmem [shape: bf16[128,64], index: 2, kind: output, shape index: {0}]
  %s3 = inlined_call_operand.vmem [shape: f32[1,1,64], index: 3, kind: output, shape index: {1}]
  %s4 = inlined_call_operand.vmem [shape: f32[1,1,64], index: 4, kind: output, shape index: {2}]
  %5 = xla_tuple %s2, %s3, %s4
  %s6 = sld [smem:[#allocation0]]
  $region34: #{fwd.70} parent=0
    _
  %s8 = ssub.s32 1, %s6
  %s9 = scalar_select 0, %s8, %s6
  // Predicated region
  $region2: #{fwd.70} parent=0 // pred_check
    _
  $region3: #{fwd.70} parent=0 // pred_check_branch
    %11 = sbr.rel (0) target = $region5
  $region4: #{fwd.70} parent=0 // pred_region
    _
  $region5: #{fwd.70} parent=0 // pred_fallthru
    _
  // Predicated region
  $region6: #{fwd.70} parent=0 // pred_check
    _
  $region7: #{fwd.70} parent=0 // pred_check_branch
    %13 = sbr.rel (0) target = $region9
  $region8: #{fwd.70} parent=0 // pred_region
    _
  $region9: #{fwd.70} parent=0 // pred_fallthru
    _
  %v15 = vld [vmem:[%s0] sm:$0xff]
  %v16 = vld [vmem:[%s0 + $0x8] sm:$0xf]
  %v17 = vld [vmem:[%s0 + $0xc] sm:$0xff]
  %v18 = vld [vmem:[%s0 + $0x14] sm:$0xf]
  %v19 = vld [vmem:[%s0 + $0x18] sm:$0xff]
  %v20 = vld [vmem:[%s0 + $0x20] sm:$0xf]
  %v21 = vld [vmem:[%s0 + $0x24] sm:$0xff]
  %v22 = vld [vmem:[%s0 + $0x2c] sm:$0xf]
  %v23 = vld [vmem:[%s0 + $0x30] sm:$0xff]
  %v24 = vld [vmem:[%s0 + $0x38] sm:$0xf]
  %v25 = vld [vmem:[%s0 + $0x3c] sm:$0xff]
  %v26 = vld [vmem:[%s0 + $0x44] sm:$0xf]
  %v27 = vld [vmem:[%s0 + $0x48] sm:$0xff]
  %v28 = vld [vmem:[%s0 + $0x50] sm:$0xf]
  %v29 = vld [vmem:[%s0 + $0x54] sm:$0xff]
  %v30 = vld [vmem:[%s0 + $0x5c] sm:$0xf]
  %v31 = vld [vmem:[%s0 + $0x60] sm:$0xff]
  %v32 = vld [vmem:[%s0 + $0x68] sm:$0xf]
  %v33 = vld [vmem:[%s0 + $0x6c] sm:$0xff]
  %v34 = vld [vmem:[%s0 + $0x74] sm:$0xf]
  %v35 = vld [vmem:[%s0 + $0x78] sm:$0xff]
  %v36 = vld [vmem:[%s0 + $0x80] sm:$0xf]
  %v37 = vld [vmem:[%s0 + $0x84] sm:$0xff]
  %v38 = vld [vmem:[%s0 + $0x8c] sm:$0xf]
  %v39 = vld [vmem:[%s0 + $0x90] sm:$0xff]
  %v40 = vld [vmem:[%s0 + $0x98] sm:$0xf]
  %v41 = vld [vmem:[%s0 + $0x9c] sm:$0xff]
  %v42 = vld [vmem:[%s0 + $0xa4] sm:$0xf]
  %v43 = vld [vmem:[%s0 + $0xa8] sm:$0xff]
  %v44 = vld [vmem:[%s0 + $0xb0] sm:$0xf]
  %v45 = vld [vmem:[%s0 + $0xb4] sm:$0xff]
  %v46 = vld [vmem:[%s0 + $0xbc] sm:$0xf]
  %v47 = vld [vmem:[%s1] sm:$0xf]
  %v48 = vld [vmem:[%s1 + $0x4] sm:$0xf]
  %v49 = vld [vmem:[%s1 + $0x8] sm:$0xf]
  %v50 = vld [vmem:[%s1 + $0xc] sm:$0xf]
  %v51 = vld [vmem:[%s1 + $0x10] sm:$0xf]
  %v52 = vld [vmem:[%s1 + $0x14] sm:$0xf]
  %v53 = vld [vmem:[%s1 + $0x18] sm:$0xf]
  %v54 = vld [vmem:[%s1 + $0x1c] sm:$0xf]
  %v55 = vld [vmem:[%s1 + $0x20] sm:$0xf]
  %v56 = vld [vmem:[%s1 + $0x24] sm:$0xf]
  %v57 = vld [vmem:[%s1 + $0x28] sm:$0xf]
  %v58 = vld [vmem:[%s1 + $0x2c] sm:$0xf]
  %v59 = vld [vmem:[%s1 + $0x30] sm:$0xf]
  %v60 = vld [vmem:[%s1 + $0x34] sm:$0xf]
  %v61 = vld [vmem:[%s1 + $0x38] sm:$0xf]
  %v62 = vld [vmem:[%s1 + $0x3c] sm:$0xf]
  %v63 = vld [vmem:[%s1 + $0x40] sm:$0xf]
  %v64 = vld [vmem:[%s1 + $0x44] sm:$0xf]
  %v65 = vld [vmem:[%s1 + $0x48] sm:$0xf]
  %v66 = vld [vmem:[%s1 + $0x4c] sm:$0xf]
  %v67 = vld [vmem:[%s1 + $0x50] sm:$0xf]
  %v68 = vld [vmem:[%s1 + $0x54] sm:$0xf]
  %v69 = vld [vmem:[%s1 + $0x58] sm:$0xf]
  %v70 = vld [vmem:[%s1 + $0x5c] sm:$0xf]
  %v71 = vld [vmem:[%s1 + $0x60] sm:$0xf]
  %v72 = vld [vmem:[%s1 + $0x64] sm:$0xf]
  %v73 = vld [vmem:[%s1 + $0x68] sm:$0xf]
  %v74 = vld [vmem:[%s1 + $0x6c] sm:$0xf]
  %v75 = vld [vmem:[%s1 + $0x70] sm:$0xf]
  %v76 = vld [vmem:[%s1 + $0x74] sm:$0xf]
  %v77 = vld [vmem:[%s1 + $0x78] sm:$0xf]
  %v78 = vld [vmem:[%s1 + $0x7c] sm:$0xf]
  %v79 = vld [vmem:[%s1 + $0x80] sm:$0xf]
  %v80 = vld [vmem:[%s1 + $0x84] sm:$0xf]
  %v81 = vld [vmem:[%s1 + $0x88] sm:$0xf]
  %v82 = vld [vmem:[%s1 + $0x8c] sm:$0xf]
  %v115 = vunpack.c.l.b16 %v15
  %v116 = vunpack.c.h.b16 %v15
  %v117 = vunpack.c.l.b16 %v16
  %v118 = vunpack.c.l.b16 %v17
  %v119 = vunpack.c.h.b16 %v17
  %v120 = vunpack.c.l.b16 %v18
  %v121 = vunpack.c.l.b16 %v19
  %v122 = vunpack.c.h.b16 %v19
  %v123 = vunpack.c.l.b16 %v20
  %v124 = vunpack.c.l.b16 %v21
  %v125 = vunpack.c.h.b16 %v21
  %v126 = vunpack.c.l.b16 %v22
  %v127 = vunpack.c.l.b16 %v23
  %v128 = vunpack.c.h.b16 %v23
  %v129 = vunpack.c.l.b16 %v24
  %v130 = vunpack.c.l.b16 %v25
  %v131 = vunpack.c.h.b16 %v25
  %v132 = vunpack.c.l.b16 %v26
  %v133 = vunpack.c.l.b16 %v27
  %v134 = vunpack.c.h.b16 %v27
  %v135 = vunpack.c.l.b16 %v28
  %v136 = vunpack.c.l.b16 %v29
  %v137 = vunpack.c.h.b16 %v29
  %v138 = vunpack.c.l.b16 %v30
  %v139 = vunpack.c.l.b16 %v31
  %v140 = vunpack.c.h.b16 %v31
  %v141 = vunpack.c.l.b16 %v32
  %v142 = vunpack.c.l.b16 %v33
  %v143 = vunpack.c.h.b16 %v33
  %v144 = vunpack.c.l.b16 %v34
  %v145 = vunpack.c.l.b16 %v35
  %v146 = vunpack.c.h.b16 %v35
  %v147 = vunpack.c.l.b16 %v36
  %v148 = vunpack.c.l.b16 %v37
  %v149 = vunpack.c.h.b16 %v37
  %v150 = vunpack.c.l.b16 %v38
  %v151 = vunpack.c.l.b16 %v39
  %v152 = vunpack.c.h.b16 %v39
  %v153 = vunpack.c.l.b16 %v40
  %v154 = vunpack.c.l.b16 %v41
  %v155 = vunpack.c.h.b16 %v41
  %v156 = vunpack.c.l.b16 %v42
  %v157 = vunpack.c.l.b16 %v43
  %v158 = vunpack.c.h.b16 %v43
  %v159 = vunpack.c.l.b16 %v44
  %v160 = vunpack.c.l.b16 %v45
  %v161 = vunpack.c.h.b16 %v45
  %v162 = vunpack.c.l.b16 %v46
  %v163 = vpack.c.b16 %v118, %v115
  %v164 = vpack.c.b16 %v119, %v116
  %v165 = vpack.c.b16 %v120, %v117
  %v166 = vpack.c.b16 %v124, %v121
  %v167 = vpack.c.b16 %v125, %v122
  %v168 = vpack.c.b16 %v126, %v123
  %v169 = vpack.c.b16 %v130, %v127
  %v170 = vpack.c.b16 %v131, %v128
  %v171 = vpack.c.b16 %v132, %v129
  %v172 = vpack.c.b16 %v136, %v133
  %v173 = vpack.c.b16 %v137, %v134
  %v174 = vpack.c.b16 %v138, %v135
  %v175 = vpack.c.b16 %v142, %v139
  %v176 = vpack.c.b16 %v143, %v140
  %v177 = vpack.c.b16 %v144, %v141
  %v178 = vpack.c.b16 %v148, %v145
  %v179 = vpack.c.b16 %v149, %v146
  %v180 = vpack.c.b16 %v150, %v147
  %v181 = vpack.c.b16 %v154, %v151
  %v182 = vpack.c.b16 %v155, %v152
  %v183 = vpack.c.b16 %v156, %v153
  %v184 = vpack.c.b16 %v160, %v157
  %v185 = vpack.c.b16 %v161, %v158
  %v186 = vpack.c.b16 %v162, %v159
  %v239 = vunpack.c.l.b16 %v47
  %v240 = vunpack.c.l.b16 %v48
  %v241 = vunpack.c.l.b16 %v49
  %v242 = vunpack.c.l.b16 %v50
  %v243 = vunpack.c.l.b16 %v51
  %v244 = vunpack.c.l.b16 %v52
  %v245 = vunpack.c.l.b16 %v53
  %v246 = vunpack.c.l.b16 %v54
  %v247 = vunpack.c.l.b16 %v55
  %v248 = vunpack.c.l.b16 %v56
  %v249 = vunpack.c.l.b16 %v57
  %v250 = vunpack.c.l.b16 %v58
  %v251 = vunpack.c.l.b16 %v59
  %v252 = vunpack.c.l.b16 %v60
  %v253 = vunpack.c.l.b16 %v61
  %v254 = vunpack.c.l.b16 %v62
  %v255 = vunpack.c.l.b16 %v63
  %v256 = vunpack.c.l.b16 %v64
  %v257 = vunpack.c.l.b16 %v65
  %v258 = vunpack.c.l.b16 %v66
  %v259 = vunpack.c.l.b16 %v67
  %v260 = vunpack.c.l.b16 %v68
  %v261 = vunpack.c.l.b16 %v69
  %v262 = vunpack.c.l.b16 %v70
  %v263 = vunpack.c.l.b16 %v71
  %v264 = vunpack.c.l.b16 %v72
  %v265 = vunpack.c.l.b16 %v73
  %v266 = vunpack.c.l.b16 %v74
  %v267 = vunpack.c.l.b16 %v75
  %v268 = vunpack.c.l.b16 %v76
  %v269 = vunpack.c.l.b16 %v77
  %v270 = vunpack.c.l.b16 %v78
  %v271 = vunpack.c.l.b16 %v79
  %v272 = vunpack.c.l.b16 %v80
  %v273 = vunpack.c.l.b16 %v81
  %v274 = vunpack.c.l.b16 %v82
  %v275 = vpack.c.b16 %v240, %v239
  %v276 = vpack.c.b16 %v242, %v241
  %v277 = vpack.c.b16 %v244, %v243
  %v278 = vpack.c.b16 %v246, %v245
  %v279 = vpack.c.b16 %v248, %v247
  %v280 = vpack.c.b16 %v250, %v249
  %v281 = vpack.c.b16 %v252, %v251
  %v282 = vpack.c.b16 %v254, %v253
  %v283 = vpack.c.b16 %v256, %v255
  %v284 = vpack.c.b16 %v258, %v257
  %v285 = vpack.c.b16 %v260, %v259
  %v286 = vpack.c.b16 %v262, %v261
  %v287 = vpack.c.b16 %v264, %v263
  %v288 = vpack.c.b16 %v266, %v265
  %v289 = vpack.c.b16 %v268, %v267
  %v290 = vpack.c.b16 %v270, %v269
  %v291 = vpack.c.b16 %v272, %v271
  %v292 = vpack.c.b16 %v274, %v273
  %vm311 = vcmask 261120
  %v313 = vsel %vm311, %v165, 0
  %v316 = vsel %vm311, %v168, 0
  %v319 = vsel %vm311, %v171, 0
  %v322 = vsel %vm311, %v174, 0
  %v325 = vsel %vm311, %v177, 0
  %v328 = vsel %vm311, %v180, 0
  %v331 = vsel %vm311, %v183, 0
  %v334 = vsel %vm311, %v186, 0
  %336 = vmatprep.subr.bf16.mxu0 0
  %337 = vmatpush1.bf16.msra.mxu0 %v282
  %338 = vmatprep.subr.bf16.mxu0 0
  %339 = vmatpush1.bf16.msra.mxu0 %v281
  %340 = vmatprep.subr.bf16.mxu0 0
  %341 = vmatpush1.bf16.msra.mxu0 %v280
  %342 = vmatprep.subr.bf16.mxu0 0
  %343 = vmatpush1.bf16.msra.mxu0 %v279
  %344 = vmatprep.subr.bf16.mxu0 0
  %345 = vmatpush1.bf16.msra.mxu0 %v278
  %346 = vmatprep.subr.bf16.mxu0 0
  %347 = vmatpush1.bf16.msra.mxu0 %v277
  %348 = vmatprep.subr.bf16.mxu0 0
  %349 = vmatpush1.bf16.msra.mxu0 %v276
  %350 = vmatprep.subr.bf16.mxu0 0
  %351 = vmatpush1.bf16.msra.mxu0 %v275
  %352 = vmatprep.subr.bf16.mxu0 0
  %353 = vmatpush2.bf16.msra.mxu0 %v290
  %354 = vmatprep.subr.bf16.mxu0 0
  %355 = vmatpush2.bf16.msra.mxu0 %v289
  %356 = vmatprep.subr.bf16.mxu0 0
  %357 = vmatpush2.bf16.msra.mxu0 %v288
  %358 = vmatprep.subr.bf16.mxu0 0
  %359 = vmatpush2.bf16.msra.mxu0 %v287
  %360 = vmatprep.subr.bf16.mxu0 0
  %361 = vmatpush2.bf16.msra.mxu0 %v286
  %362 = vmatprep.subr.bf16.mxu0 0
  %363 = vmatpush2.bf16.msra.mxu0 %v285
  %364 = vmatprep.subr.bf16.mxu0 0
  %365 = vmatpush2.bf16.msra.mxu0 %v284
  %366 = vmatprep.subr.bf16.mxu0 0
  %367 = vmatpush2.bf16.msra.mxu0 %v283
  %368 = vmatprep.mubr.bf16.mxu0 %v164
  %369 = vmatmul.mubr.bf16.gmra.mxu0 %v163
  %v370 = vpop.f32.mrf.mxu0
  %v371 = vadd.f32 0.0, %v370
  %v372 = vpop.f32.mrf.mxu0
  %v373 = vpop.f32.mrf.mxu0
  %v374 = vadd.f32 0.0, %v373
  %v375 = vpop.f32.mrf.mxu0
  %376 = vmatprep.mubr.bf16.mxu0 %v167
  %377 = vmatmul.mubr.bf16.gmra.mxu0 %v166
  %v378 = vpop.f32.mrf.mxu0
  %v379 = vadd.f32 0.0, %v378
  %v380 = vpop.f32.mrf.mxu0
  %v381 = vpop.f32.mrf.mxu0
  %v382 = vadd.f32 0.0, %v381
  %v383 = vpop.f32.mrf.mxu0
  %384 = vmatprep.mubr.bf16.mxu0 %v170
  %385 = vmatmul.mubr.bf16.gmra.mxu0 %v169
  %v386 = vpop.f32.mrf.mxu0
  %v387 = vadd.f32 0.0, %v386
  %v388 = vpop.f32.mrf.mxu0
  %v389 = vpop.f32.mrf.mxu0
  %v390 = vadd.f32 0.0, %v389
  %v391 = vpop.f32.mrf.mxu0
  %392 = vmatprep.mubr.bf16.mxu0 %v173
  %393 = vmatmul.mubr.bf16.gmra.mxu0 %v172
  %v394 = vpop.f32.mrf.mxu0
  %v395 = vadd.f32 0.0, %v394
  %v396 = vpop.f32.mrf.mxu0
  %v397 = vpop.f32.mrf.mxu0
  %v398 = vadd.f32 0.0, %v397
  %v399 = vpop.f32.mrf.mxu0
  %400 = vmatprep.mubr.bf16.mxu0 %v176
  %401 = vmatmul.mubr.bf16.gmra.mxu0 %v175
  %v402 = vpop.f32.mrf.mxu0
  %v403 = vadd.f32 0.0, %v402
  %v404 = vpop.f32.mrf.mxu0
  %v405 = vpop.f32.mrf.mxu0
  %v406 = vadd.f32 0.0, %v405
  %v407 = vpop.f32.mrf.mxu0
  %408 = vmatprep.mubr.bf16.mxu0 %v179
  %409 = vmatmul.mubr.bf16.gmra.mxu0 %v178
  %v410 = vpop.f32.mrf.mxu0
  %v411 = vadd.f32 0.0, %v410
  %v412 = vpop.f32.mrf.mxu0
  %v413 = vpop.f32.mrf.mxu0
  %v414 = vadd.f32 0.0, %v413
  %v415 = vpop.f32.mrf.mxu0
  %416 = vmatprep.mubr.bf16.mxu0 %v182
  %417 = vmatmul.mubr.bf16.gmra.mxu0 %v181
  %v418 = vpop.f32.mrf.mxu0
  %v419 = vadd.f32 0.0, %v418
  %v420 = vpop.f32.mrf.mxu0
  %v421 = vpop.f32.mrf.mxu0
  %v422 = vadd.f32 0.0, %v421
  %v423 = vpop.f32.mrf.mxu0
  %424 = vmatprep.mubr.bf16.mxu0 %v185
  %425 = vmatmul.mubr.bf16.gmra.mxu0 %v184
  %v426 = vpop.f32.mrf.mxu0
  %v427 = vadd.f32 0.0, %v426
  %v428 = vpop.f32.mrf.mxu0
  %v429 = vpop.f32.mrf.mxu0
  %v430 = vadd.f32 0.0, %v429
  %v431 = vpop.f32.mrf.mxu0
  %432 = vdwg.mxu0
  %433 = vmatprep.subr.bf16.mxu0 0
  %434 = vmatpush1.bf16.msra.mxu0 0
  %435 = vmatprep.subr.bf16.mxu0 0
  %436 = vmatpush1.bf16.msra.mxu0 0
  %437 = vmatprep.subr.bf16.mxu0 0
  %438 = vmatpush1.bf16.msra.mxu0 0
  %439 = vmatprep.subr.bf16.mxu0 0
  %440 = vmatpush1.bf16.msra.mxu0 0
  %441 = vmatprep.subr.bf16.mxu0 0
  %442 = vmatpush1.bf16.msra.mxu0 0
  %443 = vmatprep.subr.bf16.mxu0 0
  %444 = vmatpush1.bf16.msra.mxu0 0
  %445 = vmatprep.subr.bf16.mxu0 0
  %446 = vmatpush1.bf16.msra.mxu0 %v292
  %447 = vmatprep.subr.bf16.mxu0 0
  %448 = vmatpush1.bf16.msra.mxu0 %v291
  %449 = vmatprep.subr.bf16.mxu0 0
  %450 = vmatpush2.bf16.msra.mxu0 0
  %451 = vmatprep.subr.bf16.mxu0 0
  %452 = vmatpush2.bf16.msra.mxu0 0
  %453 = vmatprep.subr.bf16.mxu0 0
  %454 = vmatpush2.bf16.msra.mxu0 0
  %455 = vmatprep.subr.bf16.mxu0 0
  %456 = vmatpush2.bf16.msra.mxu0 0
  %457 = vmatprep.subr.bf16.mxu0 0
  %458 = vmatpush2.bf16.msra.mxu0 0
  %459 = vmatprep.subr.bf16.mxu0 0
  %460 = vmatpush2.bf16.msra.mxu0 0
  %461 = vmatprep.subr.bf16.mxu0 0
  %462 = vmatpush2.bf16.msra.mxu0 0
  %463 = vmatprep.subr.bf16.mxu0 0
  %464 = vmatpush2.bf16.msra.mxu0 0
  %465 = vmatprep.mubr.bf16.mxu0 0
  %466 = vmatmul.mubr.bf16.gmra.mxu0 %v313
  %v467 = vpop.f32.mrf.mxu0
  %v468 = vadd.f32 %v371, %v467
  %v469 = vpop.f32.mrf.mxu0
  %v470 = vpop.f32.mrf.mxu0
  %v471 = vadd.f32 %v374, %v470
  %v472 = vpop.f32.mrf.mxu0
  %473 = vmatprep.mubr.bf16.mxu0 0
  %474 = vmatmul.mubr.bf16.gmra.mxu0 %v316
  %v475 = vpop.f32.mrf.mxu0
  %v476 = vadd.f32 %v379, %v475
  %v477 = vpop.f32.mrf.mxu0
  %v478 = vpop.f32.mrf.mxu0
  %v479 = vadd.f32 %v382, %v478
  %v480 = vpop.f32.mrf.mxu0
  %481 = vmatprep.mubr.bf16.mxu0 0
  %482 = vmatmul.mubr.bf16.gmra.mxu0 %v319
  %v483 = vpop.f32.mrf.mxu0
  %v484 = vadd.f32 %v387, %v483
  %v485 = vpop.f32.mrf.mxu0
  %v486 = vpop.f32.mrf.mxu0
  %v487 = vadd.f32 %v390, %v486
  %v488 = vpop.f32.mrf.mxu0
  %489 = vmatprep.mubr.bf16.mxu0 0
  %490 = vmatmul.mubr.bf16.gmra.mxu0 %v322
  %v491 = vpop.f32.mrf.mxu0
  %v492 = vadd.f32 %v395, %v491
  %v493 = vpop.f32.mrf.mxu0
  %v494 = vpop.f32.mrf.mxu0
  %v495 = vadd.f32 %v398, %v494
  %v496 = vpop.f32.mrf.mxu0
  %497 = vmatprep.mubr.bf16.mxu0 0
  %498 = vmatmul.mubr.bf16.gmra.mxu0 %v325
  %v499 = vpop.f32.mrf.mxu0
  %v500 = vadd.f32 %v403, %v499
  %v501 = vpop.f32.mrf.mxu0
  %v502 = vpop.f32.mrf.mxu0
  %v503 = vadd.f32 %v406, %v502
  %v504 = vpop.f32.mrf.mxu0
  %505 = vmatprep.mubr.bf16.mxu0 0
  %506 = vmatmul.mubr.bf16.gmra.mxu0 %v328
  %v507 = vpop.f32.mrf.mxu0
  %v508 = vadd.f32 %v411, %v507
  %v509 = vpop.f32.mrf.mxu0
  %v510 = vpop.f32.mrf.mxu0
  %v511 = vadd.f32 %v414, %v510
  %v512 = vpop.f32.mrf.mxu0
  %513 = vmatprep.mubr.bf16.mxu0 0
  %514 = vmatmul.mubr.bf16.gmra.mxu0 %v331
  %v515 = vpop.f32.mrf.mxu0
  %v516 = vadd.f32 %v419, %v515
  %v517 = vpop.f32.mrf.mxu0
  %v518 = vpop.f32.mrf.mxu0
  %v519 = vadd.f32 %v422, %v518
  %v520 = vpop.f32.mrf.mxu0
  %521 = vmatprep.mubr.bf16.mxu0 0
  %522 = vmatmul.mubr.bf16.gmra.mxu0 %v334
  %v523 = vpop.f32.mrf.mxu0
  %v524 = vadd.f32 %v427, %v523
  %v525 = vpop.f32.mrf.mxu0
  %v526 = vpop.f32.mrf.mxu0
  %v527 = vadd.f32 %v430, %v526
  %v528 = vpop.f32.mrf.mxu0
  %529 = vdwg.mxu0
  %v530 = vpack.c.bf16 %v471, %v468
  %v531 = vpack.c.bf16 %v479, %v476
  %v532 = vpack.c.bf16 %v487, %v484
  %v533 = vpack.c.bf16 %v495, %v492
  %v534 = vpack.c.bf16 %v503, %v500
  %v535 = vpack.c.bf16 %v511, %v508
  %v536 = vpack.c.bf16 %v519, %v516
  %v537 = vpack.c.bf16 %v527, %v524
  %v546 = vunpack.c.l.b16 %v530
  %v547 = vunpack.c.h.b16 %v530
  %v548 = vunpack.c.l.b16 %v531
  %v549 = vunpack.c.h.b16 %v531
  %v550 = vunpack.c.l.b16 %v532
  %v551 = vunpack.c.h.b16 %v532
  %v552 = vunpack.c.l.b16 %v533
  %v553 = vunpack.c.h.b16 %v533
  %v554 = vunpack.c.l.b16 %v534
  %v555 = vunpack.c.h.b16 %v534
  %v556 = vunpack.c.l.b16 %v535
  %v557 = vunpack.c.h.b16 %v535
  %v558 = vunpack.c.l.b16 %v536
  %v559 = vunpack.c.h.b16 %v536
  %v560 = vunpack.c.l.b16 %v537
  %v561 = vunpack.c.h.b16 %v537
  %v562 = vpack.c.b16 %v546, %v546
  %v563 = vpack.c.b16 %v547, %v547
  %v564 = vpack.c.b16 %v548, %v548
  %v565 = vpack.c.b16 %v549, %v549
  %v566 = vpack.c.b16 %v550, %v550
  %v567 = vpack.c.b16 %v551, %v551
  %v568 = vpack.c.b16 %v552, %v552
  %v569 = vpack.c.b16 %v553, %v553
  %v570 = vpack.c.b16 %v554, %v554
  %v571 = vpack.c.b16 %v555, %v555
  %v572 = vpack.c.b16 %v556, %v556
  %v573 = vpack.c.b16 %v557, %v557
  %v574 = vpack.c.b16 %v558, %v558
  %v575 = vpack.c.b16 %v559, %v559
  %v576 = vpack.c.b16 %v560, %v560
  %v577 = vpack.c.b16 %v561, %v561
  %vm594 = vcmask 519168
  %595 = vst.msk [vmem:[%s2] sm:$0xf] %vm594, %v562
  %596 = vst.msk [vmem:[%s2 + $0x4] sm:$0xf] %vm594, %v563
  %597 = vst.msk [vmem:[%s2 + $0x8] sm:$0xf] %vm594, %v564
  %598 = vst.msk [vmem:[%s2 + $0xc] sm:$0xf] %vm594, %v565
  %599 = vst.msk [vmem:[%s2 + $0x10] sm:$0xf] %vm594, %v566
  %600 = vst.msk [vmem:[%s2 + $0x14] sm:$0xf] %vm594, %v567
  %601 = vst.msk [vmem:[%s2 + $0x18] sm:$0xf] %vm594, %v568
  %602 = vst.msk [vmem:[%s2 + $0x1c] sm:$0xf] %vm594, %v569
  %603 = vst.msk [vmem:[%s2 + $0x20] sm:$0xf] %vm594, %v570
  %604 = vst.msk [vmem:[%s2 + $0x24] sm:$0xf] %vm594, %v571
  %605 = vst.msk [vmem:[%s2 + $0x28] sm:$0xf] %vm594, %v572
  %606 = vst.msk [vmem:[%s2 + $0x2c] sm:$0xf] %vm594, %v573
  %607 = vst.msk [vmem:[%s2 + $0x30] sm:$0xf] %vm594, %v574
  %608 = vst.msk [vmem:[%s2 + $0x34] sm:$0xf] %vm594, %v575
  %609 = vst.msk [vmem:[%s2 + $0x38] sm:$0xf] %vm594, %v576
  %610 = vst.msk [vmem:[%s2 + $0x3c] sm:$0xf] %vm594, %v577
  %vm611 = vcmask 523264
  %v612 = vsel %vm611, %v468, 0.0
  %v613 = vsel %vm611, %v471, 0.0
  %v614 = vadd.f32 %v612, %v613
  %v615 = vsel %vm611, %v476, 0.0
  %v616 = vadd.f32 %v614, %v615
  %v617 = vsel %vm611, %v479, 0.0
  %v618 = vadd.f32 %v616, %v617
  %v619 = vsel %vm611, %v484, 0.0
  %v620 = vadd.f32 %v618, %v619
  %v621 = vsel %vm611, %v487, 0.0
  %v622 = vadd.f32 %v620, %v621
  %v623 = vsel %vm611, %v492, 0.0
  %v624 = vadd.f32 %v622, %v623
  %v625 = vsel %vm611, %v495, 0.0
  %v626 = vadd.f32 %v624, %v625
  %v627 = vsel %vm611, %v500, 0.0
  %v628 = vadd.f32 %v626, %v627
  %v629 = vsel %vm611, %v503, 0.0
  %v630 = vadd.f32 %v628, %v629
  %v631 = vsel %vm611, %v508, 0.0
  %v632 = vadd.f32 %v630, %v631
  %v633 = vsel %vm611, %v511, 0.0
  %v634 = vadd.f32 %v632, %v633
  %v635 = vsel %vm611, %v516, 0.0
  %v636 = vadd.f32 %v634, %v635
  %v637 = vsel %vm611, %v519, 0.0
  %v638 = vadd.f32 %v636, %v637
  %v639 = vsel %vm611, %v524, 0.0
  %v640 = vadd.f32 %v638, %v639
  %v641 = vsel %vm611, %v527, 0.0
  %v642 = vadd.f32 %v640, %v641
  %v643 = vrot.slane %v642, 4
  %v644 = vadd.f32 %v642, %v643
  %v645 = vrot.slane %v644, 2
  %v646 = vadd.f32 %v644, %v645
  %v647 = vrot.slane %v646, 1
  %v648 = vadd.f32 %v646, %v647
  %vm649 = vcmask 516096
  %650 = vst.msk [vmem:[%s3] sm:$0x1] %vm649, %v648
  %v651 = vmul.f32 %v468, %v468
  %v652 = vmul.f32 %v471, %v471
  %v653 = vmul.f32 %v476, %v476
  %v654 = vmul.f32 %v479, %v479
  %v655 = vmul.f32 %v484, %v484
  %v656 = vmul.f32 %v487, %v487
  %v657 = vmul.f32 %v492, %v492
  %v658 = vmul.f32 %v495, %v495
  %v659 = vmul.f32 %v500, %v500
  %v660 = vmul.f32 %v503, %v503
  %v661 = vmul.f32 %v508, %v508
  %v662 = vmul.f32 %v511, %v511
  %v663 = vmul.f32 %v516, %v516
  %v664 = vmul.f32 %v519, %v519
  %v665 = vmul.f32 %v524, %v524
  %v666 = vmul.f32 %v527, %v527
  %v667 = vsel %vm611, %v651, 0.0
  %v668 = vsel %vm611, %v652, 0.0
  %v669 = vadd.f32 %v667, %v668
  %v670 = vsel %vm611, %v653, 0.0
  %v671 = vadd.f32 %v669, %v670
  %v672 = vsel %vm611, %v654, 0.0
  %v673 = vadd.f32 %v671, %v672
  %v674 = vsel %vm611, %v655, 0.0
  %v675 = vadd.f32 %v673, %v674
  %v676 = vsel %vm611, %v656, 0.0
  %v677 = vadd.f32 %v675, %v676
  %v678 = vsel %vm611, %v657, 0.0
  %v679 = vadd.f32 %v677, %v678
  %v680 = vsel %vm611, %v658, 0.0
  %v681 = vadd.f32 %v679, %v680
  %v682 = vsel %vm611, %v659, 0.0
  %v683 = vadd.f32 %v681, %v682
  %v684 = vsel %vm611, %v660, 0.0
  %v685 = vadd.f32 %v683, %v684
  %v686 = vsel %vm611, %v661, 0.0
  %v687 = vadd.f32 %v685, %v686
  %v688 = vsel %vm611, %v662, 0.0
  %v689 = vadd.f32 %v687, %v688
  %v690 = vsel %vm611, %v663, 0.0
  %v691 = vadd.f32 %v689, %v690
  %v692 = vsel %vm611, %v664, 0.0
  %v693 = vadd.f32 %v691, %v692
  %v694 = vsel %vm611, %v665, 0.0
  %v695 = vadd.f32 %v693, %v694
  %v696 = vsel %vm611, %v666, 0.0
  %v697 = vadd.f32 %v695, %v696
  %v698 = vrot.slane %v697, 4
  %v699 = vadd.f32 %v697, %v698
  %v700 = vrot.slane %v699, 2
  %v701 = vadd.f32 %v699, %v700
  %v702 = vrot.slane %v701, 1
  %v703 = vadd.f32 %v701, %v702
  %704 = vst.msk [vmem:[%s4] sm:$0x1] %vm649, %v703
  // Predicated region
  $region10: #{fwd.70} parent=0 // pred_check
    _
  $region11: #{fwd.70} parent=0 // pred_check_branch
    %706 = sbr.rel (0) target = $region13
  $region12: #{fwd.70} parent=0 // pred_region
    _
  $region13: #{fwd.70} parent=0 // pred_fallthru
    _
  // Predicated region
  $region14: #{fwd.70} parent=0 // pred_check
    _
  $region15: #{fwd.70} parent=0 // pred_check_branch
    %708 = sbr.rel (0) target = $region17
  $region16: #{fwd.70} parent=0 // pred_region
    _
  $region17: #{fwd.70} parent=0 // pred_fallthru
    _
  // Predicated region
  $region18: #{fwd.70} parent=0 // pred_check
    _
  $region19: #{fwd.70} parent=0 // pred_check_branch
    %710 = sbr.rel (0) target = $region21
  $region20: #{fwd.70} parent=0 // pred_region
    _
  $region21: #{fwd.70} parent=0 // pred_fallthru
    _
  // Predicated region
  $region22: #{fwd.70} parent=0 // pred_check
    _
  $region23: #{fwd.70} parent=0 // pred_check_branch
    %712 = sbr.rel (0) target = $region25
  $region24: #{fwd.70} parent=0 // pred_region
    _
  $region25: #{fwd.70} parent=0 // pred_fallthru
    _
  // Predicated region
  $region26: #{fwd.70} parent=0 // pred_check
    _
  $region27: #{fwd.70} parent=0 // pred_check_branch
    %714 = sbr.rel (0) target = $region29
  $region28: #{fwd.70} parent=0 // pred_region
    _
  $region29: #{fwd.70} parent=0 // pred_fallthru
    _
  // Predicated region
  $region30: #{fwd.70} parent=0 // pred_check
    _
  $region31: #{fwd.70} parent=0 // pred_check_branch
    %716 = sbr.rel (0) target = $region33
  $region32: #{fwd.70} parent=0 // pred_region
    _
  $region33: #{fwd.70} parent=0 // pred_fallthru
    _

// kernel: fwd.53
$region0: #{fwd.53}
  #allocation0 [shape = 'u32[]', space=smem, size = 0x4, offset = 0x4, fixed_abs, tag = 'smem constant byte address 0x4 - core index']
  #allocation1 [shape = 'u32[144,128]{1,0:T(1,128)}', space=vmem, size = 0x12000, scoped, tag = 'internal scratch']
  %s0 = inlined_call_operand.vmem [shape: bf16[16,512], index: 0, kind: input, shape index: {}]
  %s1 = inlined_call_operand.vmem [shape: f32[2,512], index: 1, kind: input, shape index: {}]
  %s2 = inlined_call_operand.vmem [shape: bf16[16,512], index: 2, kind: output, shape index: {}]
  %s3 = sld [smem:[#allocation0]]
  $region18: #{fwd.53} parent=0
    _
  %s5 = ssub.s32 1, %s3
  %s6 = scalar_select 0, %s5, %s3
  // Predicated region
  $region2: #{fwd.53} parent=0 // pred_check
    _
  $region3: #{fwd.53} parent=0 // pred_check_branch
    %8 = sbr.rel (0) target = $region5
  $region4: #{fwd.53} parent=0 // pred_region
    _
  $region5: #{fwd.53} parent=0 // pred_fallthru
    _
  // Predicated region
  $region6: #{fwd.53} parent=0 // pred_check
    _
  $region7: #{fwd.53} parent=0 // pred_check_branch
    %10 = sbr.rel (0) target = $region9
  $region8: #{fwd.53} parent=0 // pred_region
    _
  $region9: #{fwd.53} parent=0 // pred_fallthru
    _
  %v11 = vld [vmem:[%s1] sm:$0xff]
  %v12 = vld [vmem:[%s0] sm:$0xff]
  %v13 = vld [vmem:[%s0 + $0x8] sm:$0xff]
  %v14 = vld [vmem:[%s0 + $0x10] sm:$0xff]
  %v15 = vld [vmem:[%s0 + $0x18] sm:$0xff]
  %v16 = vunpack.c.l.bf16 %v12
  %v17 = vunpack.c.h.bf16 %v12
  %v18 = vunpack.c.l.bf16 %v13
  %v19 = vunpack.c.h.bf16 %v13
  %v20 = vunpack.c.l.bf16 %v14
  %v21 = vunpack.c.h.bf16 %v14
  %v22 = vunpack.c.l.bf16 %v15
  %v23 = vunpack.c.h.bf16 %v15
  %v25 = vlaneseq
  %v26 = vshrl.u32 %v25, 7
  %v27 = vsub.s32 0, %v26
  %v28 = vrot.slane %v11, %v27
  %v29 = vlaneseq
  %v30 = vshrl.u32 %v29, 7
  %v31 = vsub.s32 2, %v30
  %v32 = vrot.slane %v11, %v31
  %v33 = vlaneseq
  %v34 = vshrl.u32 %v33, 7
  %v35 = vsub.s32 4, %v34
  %v36 = vrot.slane %v11, %v35
  %v37 = vlaneseq
  %v38 = vshrl.u32 %v37, 7
  %v39 = vsub.s32 6, %v38
  %v40 = vrot.slane %v11, %v39
  %v45 = vlaneseq
  %v46 = vshrl.u32 %v45, 7
  %v47 = vsub.s32 0, %v46
  %v48 = vrot.slane %v28, %v47
  %v49 = vlaneseq
  %v50 = vshrl.u32 %v49, 7
  %v51 = vsub.s32 0, %v50
  %v52 = vrot.slane %v32, %v51
  %v53 = vlaneseq
  %v54 = vshrl.u32 %v53, 7
  %v55 = vsub.s32 0, %v54
  %v56 = vrot.slane %v36, %v55
  %v57 = vlaneseq
  %v58 = vshrl.u32 %v57, 7
  %v59 = vsub.s32 0, %v58
  %v60 = vrot.slane %v40, %v59
  %v61 = vmul.f32 %v16, %v48
  %v62 = vmul.f32 %v17, %v52
  %v63 = vmul.f32 %v18, %v56
  %v64 = vmul.f32 %v19, %v60
  %v65 = vmul.f32 %v20, %v48
  %v66 = vmul.f32 %v21, %v52
  %v67 = vmul.f32 %v22, %v56
  %v68 = vmul.f32 %v23, %v60
  %v69 = vlaneseq
  %v70 = vshrl.u32 %v69, 7
  %v71 = vsub.s32 1, %v70
  %v72 = vrot.slane %v11, %v71
  %v73 = vlaneseq
  %v74 = vshrl.u32 %v73, 7
  %v75 = vsub.s32 3, %v74
  %v76 = vrot.slane %v11, %v75
  %v77 = vlaneseq
  %v78 = vshrl.u32 %v77, 7
  %v79 = vsub.s32 5, %v78
  %v80 = vrot.slane %v11, %v79
  %v81 = vlaneseq
  %v82 = vshrl.u32 %v81, 7
  %v83 = vsub.s32 7, %v82
  %v84 = vrot.slane %v11, %v83
  %v89 = vlaneseq
  %v90 = vshrl.u32 %v89, 7
  %v91 = vsub.s32 1, %v90
  %v92 = vrot.slane %v72, %v91
  %v93 = vlaneseq
  %v94 = vshrl.u32 %v93, 7
  %v95 = vsub.s32 1, %v94
  %v96 = vrot.slane %v76, %v95
  %v97 = vlaneseq
  %v98 = vshrl.u32 %v97, 7
  %v99 = vsub.s32 1, %v98
  %v100 = vrot.slane %v80, %v99
  %v101 = vlaneseq
  %v102 = vshrl.u32 %v101, 7
  %v103 = vsub.s32 1, %v102
  %v104 = vrot.slane %v84, %v103
  %v105 = vadd.f32 %v61, %v92
  %v106 = vadd.f32 %v62, %v96
  %v107 = vadd.f32 %v63, %v100
  %v108 = vadd.f32 %v64, %v104
  %v109 = vadd.f32 %v65, %v92
  %v110 = vadd.f32 %v66, %v96
  %v111 = vadd.f32 %v67, %v100
  %v112 = vadd.f32 %v68, %v104
  %v113 = vmax.f32 %v105, 0.0
  %v114 = vmax.f32 %v106, 0.0
  %v115 = vmax.f32 %v107, 0.0
  %v116 = vmax.f32 %v108, 0.0
  %v117 = vmax.f32 %v109, 0.0
  %v118 = vmax.f32 %v110, 0.0
  %v119 = vmax.f32 %v111, 0.0
  %v120 = vmax.f32 %v112, 0.0
  %v121 = vpack.c.bf16 %v117, %v113
  %v122 = vpack.c.bf16 %v118, %v114
  %v123 = vpack.c.bf16 %v119, %v115
  %v124 = vpack.c.bf16 %v120, %v116
  %v129 = vunpack.c.l.b16 %v121
  %v130 = vunpack.c.l.b16 %v122
  %v131 = vunpack.c.l.b16 %v123
  %v132 = vunpack.c.l.b16 %v124
  %v133 = vunpack.c.h.b16 %v121
  %v134 = vunpack.c.h.b16 %v122
  %v135 = vunpack.c.h.b16 %v123
  %v136 = vunpack.c.h.b16 %v124
  %v137 = vpack.c.b16 %v130, %v129
  %v138 = vpack.c.b16 %v132, %v131
  %v139 = vpack.c.b16 %v134, %v133
  %v140 = vpack.c.b16 %v136, %v135
  %145 = vst [vmem:[%s2] sm:$0xff] %v137
  %146 = vst [vmem:[%s2 + $0x8] sm:$0xff] %v138
  %147 = vst [vmem:[%s2 + $0x10] sm:$0xff] %v139
  %148 = vst [vmem:[%s2 + $0x18] sm:$0xff] %v140
  // Predicated region
  $region10: #{fwd.53} parent=0 // pred_check
    _
  $region11: #{fwd.53} parent=0 // pred_check_branch
    %150 = sbr.rel (0) target = $region13
  $region12: #{fwd.53} parent=0 // pred_region
    _
  $region13: #{fwd.53} parent=0 // pred_fallthru
    _
  // Predicated region
  $region14: #{fwd.53} parent=0 // pred_check
    _
  $region15: #{fwd.53} parent=0 // pred_check_branch
    %152 = sbr.rel (0) target = $region17
  $region16: #{fwd.53} parent=0 // pred_region
    _
  $region17: #{fwd.53} parent=0 // pred_fallthru
    _

// kernel: fwd.52
$region0: #{fwd.52}
  #allocation0 [shape = 'u32[]', space=smem, size = 0x4, offset = 0x4, fixed_abs, tag = 'smem constant byte address 0x4 - core index']
  #allocation1 [shape = 'u32[144,128]{1,0:T(1,128)}', space=vmem, size = 0x12000, scoped, tag = 'internal scratch']
  %s0 = inlined_call_operand.vmem [shape: bf16[2,10,10,64], index: 0, kind: input, shape index: {}]
  %s1 = inlined_call_operand.vmem [shape: bf16[576,64], index: 1, kind: input, shape index: {}]
  %s2 = inlined_call_operand.vmem [shape: bf16[2,8,8,64], index: 2, kind: output, shape index: {0}]
  %s3 = inlined_call_operand.vmem [shape: f32[2,1,64], index: 3, kind: output, shape index: {1}]
  %s4 = inlined_call_operand.vmem [shape: f32[2,1,64], index: 4, kind: output, shape index: {2}]
  %5 = xla_tuple %s2, %s3, %s4
  %s6 = sld [smem:[#allocation0]]
  $region57: #{fwd.52} parent=0
    _
  %s8 = ssub.s32 1, %s6
  %s9 = scalar_select 0, %s8, %s6
  loop: start=0, step=1, limit=4
  $region2: #{fwd.52} parent=0 // loop_pre_header
    _
  $region3: #{fwd.52} parent=0 // loop_header
    %s11 = sphi 0, %s15
    %p12 = scmp.ge.s32.totalorder %s11, 4
    %s21 = sphi 0, %s23
    %s24 = sphi 0, %s21
    %s25 = sphi 0, %s24
    %s41 = sphi 0, %s25
    %s45 = sphi 0, %s45
    %s47 = sphi 0, %s45
    %s48 = sphi 0, %s47
    %s62 = sphi 0, %s48
    %s68 = sphi 0, %s70
    %s71 = sphi 0, %s68
    %s72 = sphi 0, %s71
    %s88 = sphi 0, %s72
    %s94 = sphi 0, %s96
    %s97 = sphi 0, %s94
    %s98 = sphi 0, %s97
    %s114 = sphi 0, %s98
    %s120 = sphi 0, %s122
    %s123 = sphi 0, %s120
    %s124 = sphi 0, %s123
    %s140 = sphi 0, %s124
  $region4: #{fwd.52} parent=0 // loop_header_branch
    %14 = sbr.rel (%p12) target = $region8
  $region5: #{fwd.52} parent=0 // loop_body
    %s16 = ssub.s32 %s11, 1
    %s17 = ssub.s32 %s11, 2
    %s18 = sadd.s32 %s11, 1
    %s19 = ssub.s32 %s11, %s18
    %p20 = scmp.eq.s32.totalorder %s19, 0
    %s22 = sadd.s32 %s21, 1
    %s23 = scalar_select %p20, %s21, %s22
    %p26 = pneg %p20
    %p27 = scmp.eq.s32.totalorder %s11, 1
    %p28 = por %p26, %p27
    %p29 = scmp.ne.s32.totalorder %s21, %s24
    %p30 = scmp.eq.s32.totalorder %s11, 0
    %p31 = por %p29, %p30
    %p32 = scmp.ne.s32.totalorder %s21, %s24
    %p33 = scmp.eq.s32.totalorder %s16, 1
    %p34 = por %p32, %p33
    %p35 = scmp.ne.s32.totalorder %s24, %s25
    %p36 = scmp.eq.s32.totalorder %s16, 0
    %p37 = por %p35, %p36
    %p38 = scmp.ne.s32.totalorder %s24, %s25
    %p39 = scmp.eq.s32.totalorder %s17, 1
    %p40 = por %p38, %p39
    %p42 = scmp.ne.s32.totalorder %s25, %s41
    %p43 = scmp.eq.s32.totalorder %s17, 0
    %p44 = por %p42, %p43
    %s46 = sadd.s32 %s45, 1
    %p49 = scmp.eq.s32.totalorder %s11, 1
    %p50 = scmp.ne.s32.totalorder %s45, %s47
    %p51 = scmp.eq.s32.totalorder %s11, 0
    %p52 = por %p50, %p51
    %p53 = scmp.ne.s32.totalorder %s45, %s47
    %p54 = scmp.eq.s32.totalorder %s16, 1
    %p55 = por %p53, %p54
    %p56 = scmp.ne.s32.totalorder %s47, %s48
    %p57 = scmp.eq.s32.totalorder %s16, 0
    %p58 = por %p56, %p57
    %p59 = scmp.ne.s32.totalorder %s47, %s48
    %p60 = scmp.eq.s32.totalorder %s17, 1
    %p61 = por %p59, %p60
    %p63 = scmp.ne.s32.totalorder %s48, %s62
    %p64 = scmp.eq.s32.totalorder %s17, 0
    %p65 = por %p63, %p64
    %s66 = ssub.s32 %s11, %s18
    %p67 = scmp.eq.s32.totalorder %s66, 0
    %s69 = sadd.s32 %s68, 1
    %s70 = scalar_select %p67, %s68, %s69
    %p73 = pneg %p67
    %p74 = scmp.eq.s32.totalorder %s11, 1
    %p75 = por %p73, %p74
    %p76 = scmp.ne.s32.totalorder %s68, %s71
    %p77 = scmp.eq.s32.totalorder %s11, 0
    %p78 = por %p76, %p77
    %p79 = scmp.ne.s32.totalorder %s68, %s71
    %p80 = scmp.eq.s32.totalorder %s16, 1
    %p81 = por %p79, %p80
    %p82 = scmp.ne.s32.totalorder %s71, %s72
    %p83 = scmp.eq.s32.totalorder %s16, 0
    %p84 = por %p82, %p83
    %p85 = scmp.ne.s32.totalorder %s71, %s72
    %p86 = scmp.eq.s32.totalorder %s17, 1
    %p87 = por %p85, %p86
    %p89 = scmp.ne.s32.totalorder %s72, %s88
    %p90 = scmp.eq.s32.totalorder %s17, 0
    %p91 = por %p89, %p90
    %s92 = ssub.s32 %s11, %s18
    %p93 = scmp.eq.s32.totalorder %s92, 0
    %s95 = sadd.s32 %s94, 1
    %s96 = scalar_select %p93, %s94, %s95
    %p99 = pneg %p93
    %p100 = scmp.eq.s32.totalorder %s11, 1
    %p101 = por %p99, %p100
    %p102 = scmp.ne.s32.totalorder %s94, %s97
    %p103 = scmp.eq.s32.totalorder %s11, 0
    %p104 = por %p102, %p103
    %p105 = scmp.ne.s32.totalorder %s94, %s97
    %p106 = scmp.eq.s32.totalorder %s16, 1
    %p107 = por %p105, %p106
    %p108 = scmp.ne.s32.totalorder %s97, %s98
    %p109 = scmp.eq.s32.totalorder %s16, 0
    %p110 = por %p108, %p109
    %p111 = scmp.ne.s32.totalorder %s97, %s98
    %p112 = scmp.eq.s32.totalorder %s17, 1
    %p113 = por %p111, %p112
    %p115 = scmp.ne.s32.totalorder %s98, %s114
    %p116 = scmp.eq.s32.totalorder %s17, 0
    %p117 = por %p115, %p116
    %s118 = ssub.s32 %s11, %s18
    %p119 = scmp.eq.s32.totalorder %s118, 0
    %s121 = sadd.s32 %s120, 1
    %s122 = scalar_select %p119, %s120, %s121
    %p125 = pneg %p119
    %p126 = scmp.eq.s32.totalorder %s11, 1
    %p127 = por %p125, %p126
    %p128 = scmp.ne.s32.totalorder %s120, %s123
    %p129 = scmp.eq.s32.totalorder %s11, 0
    %p130 = por %p128, %p129
    %p131 = scmp.ne.s32.totalorder %s120, %s123
    %p132 = scmp.eq.s32.totalorder %s16, 1
    %p133 = por %p131, %p132
    %p134 = scmp.ne.s32.totalorder %s123, %s124
    %p135 = scmp.eq.s32.totalorder %s16, 0
    %p136 = por %p134, %p135
    %p137 = scmp.ne.s32.totalorder %s123, %s124
    %p138 = scmp.eq.s32.totalorder %s17, 1
    %p139 = por %p137, %p138
    %p141 = scmp.ne.s32.totalorder %s124, %s140
    %p142 = scmp.eq.s32.totalorder %s17, 0
    %p143 = por %p141, %p142
    %p144 = scmp.le.s32.totalorder 1, %s11
    %p145 = scmp.lt.s32.totalorder %s11, 3
    %p146 = pnand %p144, %p145
    %p147 = pneg %p146
    // Predicated region
    $region9: #{fwd.52} parent=5 // pred_check
      _
    $region10: #{fwd.52} parent=5 // pred_check_branch
      %149 = sbr.rel (%p146) target = $region12
    $region11: #{fwd.52} parent=5 // pred_region
      %s150 = ssub.s32 %s11, 1
      // Predicated region
      $region13: #{fwd.52} parent=11 // pred_check
        %p151 = pneg %p58
      $region14: #{fwd.52} parent=11 // pred_check_branch
        %153 = sbr.rel (%p151) target = $region16
      $region15: #{fwd.52} parent=11 // pred_region
        _
      $region16: #{fwd.52} parent=11 // pred_fallthru
        _
    $region12: #{fwd.52} parent=5 // pred_fallthru
      _
    %p154 = scmp.lt.s32.totalorder %s11, 2
    // Predicated region
    $region17: #{fwd.52} parent=5 // pred_check
      %p155 = pneg %p154
    $region18: #{fwd.52} parent=5 // pred_check_branch
      %157 = sbr.rel (%p155) target = $region20
    $region19: #{fwd.52} parent=5 // pred_region
      // Predicated region
      $region21: #{fwd.52} parent=19 // pred_check
        %p158 = pneg %p31
      $region22: #{fwd.52} parent=19 // pred_check_branch
        %160 = sbr.rel (%p158) target = $region24
      $region23: #{fwd.52} parent=19 // pred_region
        %p161 = scmp.lt.s32.totalorder %s11, 1
        %s162 = scalar_select %p161, %s11, 1
        %s163 = smul.addr %s162, 20
        %s164 = smul.addr %s163, 4
        %s165 = scalar_lea.vmem %s0, %s164
      $region24: #{fwd.52} parent=19 // pred_fallthru
        _
    $region20: #{fwd.52} parent=5 // pred_fallthru
      _
    %p166 = scmp.le.s32.totalorder 1, %s11
    %p167 = scmp.lt.s32.totalorder %s11, 3
    %p168 = pnand %p166, %p167
    %p169 = pneg %p168
    // Predicated region
    $region25: #{fwd.52} parent=5 // pred_check
      _
    $region26: #{fwd.52} parent=5 // pred_check_branch
      %171 = sbr.rel (%p168) target = $region28
    $region27: #{fwd.52} parent=5 // pred_region
      %s172 = ssub.s32 %s11, 1
      %p173 = scmp.lt.s32.totalorder %s16, 1
      %s174 = scalar_select %p173, %s16, 1
      %s175 = smul.addr %s174, 20
      %s176 = smul.addr %s175, 4
      %s177 = scalar_lea.vmem %s0, %s176
      %p178 = pneg %p37
      %p179 = pneg %p34
      %p180 = pneg %p58
      %p181 = pneg %p55
      %p182 = pneg %p84
      %p183 = pneg %p81
      %p184 = scmp.lt.s32.totalorder %s16, 1
      %s185 = scalar_select %p184, %s16, 1
      %s186 = smul.addr %s185, 8
      %s187 = smul.addr %s186, 4
      %s188 = scalar_lea.vmem %s2, %s187
      %p189 = pneg %p110
      %p190 = pneg %p107
      %p191 = scmp.lt.s32.totalorder %s16, 1
      %s192 = scalar_select %p191, %s16, 1
      %s193 = scalar_lea.vmem %s3, %s192
      %p194 = pneg %p136
      %p195 = pneg %p133
      %p196 = scmp.lt.s32.totalorder %s16, 1
      %s197 = scalar_select %p196, %s16, 1
      %s198 = scalar_lea.vmem %s4, %s197
      %p199 = scmp.lt.s32.totalorder %s16, 1
      %s200 = scalar_select %p199, %s16, 1
      %s201 = smul.addr %s200, 20
      %s202 = smul.addr %s201, 4
      %s203 = scalar_lea.vmem %s0, %s202
      %p204 = scmp.lt.s32.totalorder %s16, 1
      %s205 = scalar_select %p204, %s16, 1
      %s206 = smul.addr %s205, 8
      %s207 = smul.addr %s206, 4
      %s208 = scalar_lea.vmem %s2, %s207
      %p209 = scmp.lt.s32.totalorder %s16, 1
      %s210 = scalar_select %p209, %s16, 1
      %s211 = scalar_lea.vmem %s3, %s210
      %p212 = scmp.lt.s32.totalorder %s16, 1
      %s213 = scalar_select %p212, %s16, 1
      %s214 = scalar_lea.vmem %s4, %s213
      %v216 = vld [vmem:[%s203] sm:$0xf]
      %v217 = vld [vmem:[%s203 + $0x4] sm:$0x1]
      %v218 = vld [vmem:[%s203 + $0x8] sm:$0xf]
      %v219 = vld [vmem:[%s203 + $0xc] sm:$0x1]
      %v220 = vld [vmem:[%s203 + $0x10] sm:$0xf]
      %v221 = vld [vmem:[%s203 + $0x14] sm:$0x1]
      %v222 = vld [vmem:[%s203 + $0x18] sm:$0xf]
      %v223 = vld [vmem:[%s203 + $0x1c] sm:$0x1]
      %v224 = vld [vmem:[%s203 + $0x20] sm:$0xf]
      %v225 = vld [vmem:[%s203 + $0x24] sm:$0x1]
      %v226 = vld [vmem:[%s203 + $0x28] sm:$0xf]
      %v227 = vld [vmem:[%s203 + $0x2c] sm:$0x1]
      %v228 = vld [vmem:[%s203 + $0x30] sm:$0xf]
      %v229 = vld [vmem:[%s203 + $0x34] sm:$0x1]
      %v230 = vld [vmem:[%s203 + $0x38] sm:$0xf]
      %v231 = vld [vmem:[%s203 + $0x3c] sm:$0x1]
      %v232 = vld [vmem:[%s203 + $0x40] sm:$0xf]
      %v233 = vld [vmem:[%s203 + $0x44] sm:$0x1]
      %v234 = vld [vmem:[%s203 + $0x48] sm:$0xf]
      %v235 = vld [vmem:[%s203 + $0x4c] sm:$0x1]
      %v236 = vld [vmem:[%s1] sm:$0xf]
      %v237 = vld [vmem:[%s1 + $0x4] sm:$0xf]
      %v238 = vld [vmem:[%s1 + $0x8] sm:$0xf]
      %v239 = vld [vmem:[%s1 + $0xc] sm:$0xf]
      %v240 = vld [vmem:[%s1 + $0x10] sm:$0xf]
      %v241 = vld [vmem:[%s1 + $0x14] sm:$0xf]
      %v242 = vld [vmem:[%s1 + $0x18] sm:$0xf]
      %v243 = vld [vmem:[%s1 + $0x1c] sm:$0xf]
      %vm244 = vsmask.f32 3328
      %vm245 = vsmask.f32 7440
      %vm246 = vmor %vm244, %vm245
      %v248 = vshrl.u32 %v216, 16
      %v250 = vrot.slane %v248, 4
      %v251 = vshll.u32 %v216, 16
      %v253 = vrot.slane %v251, 5
      %v254 = vor.u32 %v250, %v253
      %v255 = vrot.slane %v254, 4
      %v257 = vshll.u32 %v217, 16
      %v259 = vrot.slane %v257, 5
      %v260 = vsel %vm246, %v255, %v259
      %v262 = vshrl.u32 %v218, 16
      %v264 = vrot.slane %v262, 4
      %v265 = vshll.u32 %v218, 16
      %v267 = vrot.slane %v265, 5
      %v268 = vor.u32 %v264, %v267
      %v269 = vrot.slane %v268, 4
      %v271 = vshll.u32 %v219, 16
      %v273 = vrot.slane %v271, 5
      %v274 = vsel %vm246, %v269, %v273
      %v276 = vshrl.u32 %v220, 16
      %v278 = vrot.slane %v276, 4
      %v279 = vshll.u32 %v220, 16
      %v281 = vrot.slane %v279, 5
      %v282 = vor.u32 %v278, %v281
      %v283 = vrot.slane %v282, 4
      %v285 = vshll.u32 %v221, 16
      %v287 = vrot.slane %v285, 5
      %v288 = vsel %vm246, %v283, %v287
      %v290 = vshrl.u32 %v222, 16
      %v292 = vrot.slane %v290, 4
      %v293 = vshll.u32 %v222, 16
      %v295 = vrot.slane %v293, 5
      %v296 = vor.u32 %v292, %v295
      %v297 = vrot.slane %v296, 4
      %v299 = vshll.u32 %v223, 16
      %v301 = vrot.slane %v299, 5
      %v302 = vsel %vm246, %v297, %v301
      %v304 = vshrl.u32 %v224, 16
      %v306 = vrot.slane %v304, 4
      %v307 = vshll.u32 %v224, 16
      %v309 = vrot.slane %v307, 5
      %v310 = vor.u32 %v306, %v309
      %v311 = vrot.slane %v310, 4
      %v313 = vshll.u32 %v225, 16
      %v315 = vrot.slane %v313, 5
      %v316 = vsel %vm246, %v311, %v315
      %v318 = vshrl.u32 %v226, 16
      %v320 = vrot.slane %v318, 4
      %v321 = vshll.u32 %v226, 16
      %v323 = vrot.slane %v321, 5
      %v324 = vor.u32 %v320, %v323
      %v325 = vrot.slane %v324, 4
      %v327 = vshll.u32 %v227, 16
      %v329 = vrot.slane %v327, 5
      %v330 = vsel %vm246, %v325, %v329
      %v332 = vshrl.u32 %v228, 16
      %v334 = vrot.slane %v332, 4
      %v335 = vshll.u32 %v228, 16
      %v337 = vrot.slane %v335, 5
      %v338 = vor.u32 %v334, %v337
      %v339 = vrot.slane %v338, 4
      %v341 = vshll.u32 %v229, 16
      %v343 = vrot.slane %v341, 5
      %v344 = vsel %vm246, %v339, %v343
      %v346 = vshrl.u32 %v230, 16
      %v348 = vrot.slane %v346, 4
      %v349 = vshll.u32 %v230, 16
      %v351 = vrot.slane %v349, 5
      %v352 = vor.u32 %v348, %v351
      %v353 = vrot.slane %v352, 4
      %v355 = vshll.u32 %v231, 16
      %v357 = vrot.slane %v355, 5
      %v358 = vsel %vm246, %v353, %v357
      %v359 = vld [vmem:[%s1 + $0x20] sm:$0xf]
      %v360 = vld [vmem:[%s1 + $0x24] sm:$0xf]
      %v361 = vld [vmem:[%s1 + $0x28] sm:$0xf]
      %v362 = vld [vmem:[%s1 + $0x2c] sm:$0xf]
      %v363 = vld [vmem:[%s1 + $0x30] sm:$0xf]
      %v364 = vld [vmem:[%s1 + $0x34] sm:$0xf]
      %v365 = vld [vmem:[%s1 + $0x38] sm:$0xf]
      %v366 = vld [vmem:[%s1 + $0x3c] sm:$0xf]
      %v367 = vunpack.c.l.b16 %v260
      %v368 = vunpack.c.l.b16 %v274
      %v369 = vunpack.c.l.b16 %v288
      %v370 = vunpack.c.l.b16 %v302
      %v371 = vunpack.c.l.b16 %v316
      %v372 = vunpack.c.l.b16 %v330
      %v373 = vunpack.c.l.b16 %v344
      %v374 = vunpack.c.l.b16 %v358
      %v375 = vpack.c.b16 %v368, %v367
      %v376 = vpack.c.b16 %v370, %v369
      %v377 = vpack.c.b16 %v372, %v371
      %v378 = vpack.c.b16 %v374, %v373
      %v387 = vunpack.c.l.b16 %v359
      %v388 = vunpack.c.l.b16 %v360
      %v389 = vunpack.c.l.b16 %v361
      %v390 = vunpack.c.l.b16 %v362
      %v391 = vunpack.c.l.b16 %v363
      %v392 = vunpack.c.l.b16 %v364
      %v393 = vunpack.c.l.b16 %v365
      %v394 = vunpack.c.l.b16 %v366
      %v395 = vpack.c.b16 %v388, %v387
      %v396 = vpack.c.b16 %v390, %v389
      %v397 = vpack.c.b16 %v392, %v391
      %v398 = vpack.c.b16 %v394, %v393
      %vm403 = vcmask 523264
      %v405 = vsel %vm403, %v375, 0
      %v408 = vsel %vm403, %v376, 0
      %v411 = vsel %vm403, %v377, 0
      %v414 = vsel %vm403, %v378, 0
      %416 = vmatprep.subr.bf16.mxu0 0
      %417 = vmatpush1.bf16.msra.mxu0 0
      %418 = vmatprep.subr.bf16.mxu0 0
      %419 = vmatpush1.bf16.msra.mxu0 0
      %420 = vmatprep.subr.bf16.mxu0 0
      %421 = vmatpush1.bf16.msra.mxu0 0
      %422 = vmatprep.subr.bf16.mxu0 0
      %423 = vmatpush1.bf16.msra.mxu0 0
      %424 = vmatprep.subr.bf16.mxu0 0
      %425 = vmatpush1.bf16.msra.mxu0 %v398
      %426 = vmatprep.subr.bf16.mxu0 0
      %427 = vmatpush1.bf16.msra.mxu0 %v397
      %428 = vmatprep.subr.bf16.mxu0 0
      %429 = vmatpush1.bf16.msra.mxu0 %v396
      %430 = vmatprep.subr.bf16.mxu0 0
      %431 = vmatpush1.bf16.msra.mxu0 %v395
      %432 = vmatprep.subr.bf16.mxu0 0
      %433 = vmatpush2.bf16.msra.mxu0 0
      %434 = vmatprep.subr.bf16.mxu0 0
      %435 = vmatpush2.bf16.msra.mxu0 0
      %436 = vmatprep.subr.bf16.mxu0 0
      %437 = vmatpush2.bf16.msra.mxu0 0
      %438 = vmatprep.subr.bf16.mxu0 0
      %439 = vmatpush2.bf16.msra.mxu0 0
      %440 = vmatprep.subr.bf16.mxu0 0
      %441 = vmatpush2.bf16.msra.mxu0 0
      %442 = vmatprep.subr.bf16.mxu0 0
      %443 = vmatpush2.bf16.msra.mxu0 0
      %444 = vmatprep.subr.bf16.mxu0 0
      %445 = vmatpush2.bf16.msra.mxu0 0
      %446 = vmatprep.subr.bf16.mxu0 0
      %447 = vmatpush2.bf16.msra.mxu0 0
      %448 = vmatprep.mubr.bf16.mxu0 0
      %449 = vmatmul.mubr.bf16.gmra.mxu0 %v405
      %v450 = vpop.f32.mrf.mxu0
      %v451 = vadd.f32 0.0, %v450
      %v452 = vpop.f32.mrf.mxu0
      %v453 = vpop.f32.mrf.mxu0
      %v454 = vadd.f32 0.0, %v453
      %v455 = vpop.f32.mrf.mxu0
      %456 = vmatprep.mubr.bf16.mxu0 0
      %457 = vmatmul.mubr.bf16.gmra.mxu0 %v408
      %v458 = vpop.f32.mrf.mxu0
      %v459 = vadd.f32 0.0, %v458
      %v460 = vpop.f32.mrf.mxu0
      %v461 = vpop.f32.mrf.mxu0
      %v462 = vadd.f32 0.0, %v461
      %v463 = vpop.f32.mrf.mxu0
      %464 = vmatprep.mubr.bf16.mxu0 0
      %465 = vmatmul.mubr.bf16.gmra.mxu0 %v411
      %v466 = vpop.f32.mrf.mxu0
      %v467 = vadd.f32 0.0, %v466
      %v468 = vpop.f32.mrf.mxu0
      %v469 = vpop.f32.mrf.mxu0
      %v470 = vadd.f32 0.0, %v469
      %v471 = vpop.f32.mrf.mxu0
      %472 = vmatprep.mubr.bf16.mxu0 0
      %473 = vmatmul.mubr.bf16.gmra.mxu0 %v414
      %v474 = vpop.f32.mrf.mxu0
      %v475 = vadd.f32 0.0, %v474
      %v476 = vpop.f32.mrf.mxu0
      %v477 = vpop.f32.mrf.mxu0
      %v478 = vadd.f32 0.0, %v477
      %v479 = vpop.f32.mrf.mxu0
      %480 = vdwg.mxu0
      %v489 = vunpack.c.l.b16 %v216
      %v490 = vunpack.c.l.b16 %v218
      %v491 = vunpack.c.l.b16 %v220
      %v492 = vunpack.c.l.b16 %v222
      %v493 = vunpack.c.l.b16 %v224
      %v494 = vunpack.c.l.b16 %v226
      %v495 = vunpack.c.l.b16 %v228
      %v496 = vunpack.c.l.b16 %v230
      %v497 = vpack.c.b16 %v490, %v489
      %v498 = vpack.c.b16 %v492, %v491
      %v499 = vpack.c.b16 %v494, %v493
      %v500 = vpack.c.b16 %v496, %v495
      %v509 = vunpack.c.l.b16 %v236
      %v510 = vunpack.c.l.b16 %v237
      %v511 = vunpack.c.l.b16 %v238
      %v512 = vunpack.c.l.b16 %v239
      %v513 = vunpack.c.l.b16 %v240
      %v514 = vunpack.c.l.b16 %v241
      %v515 = vunpack.c.l.b16 %v242
      %v516 = vunpack.c.l.b16 %v243
      %v517 = vpack.c.b16 %v510, %v509
      %v518 = vpack.c.b16 %v512, %v511
      %v519 = vpack.c.b16 %v514, %v513
      %v520 = vpack.c.b16 %v516, %v515
      %v526 = vsel %vm403, %v497, 0
      %v529 = vsel %vm403, %v498, 0
      %v532 = vsel %vm403, %v499, 0
      %v535 = vsel %vm403, %v500, 0
      %537 = vmatprep.subr.bf16.mxu0 0
      %538 = vmatpush1.bf16.msra.mxu0 0
      %539 = vmatprep.subr.bf16.mxu0 0
      %540 = vmatpush1.bf16.msra.mxu0 0
      %541 = vmatprep.subr.bf16.mxu0 0
      %542 = vmatpush1.bf16.msra.mxu0 0
      %543 = vmatprep.subr.bf16.mxu0 0
      %544 = vmatpush1.bf16.msra.mxu0 0
      %545 = vmatprep.subr.bf16.mxu0 0
      %546 = vmatpush1.bf16.msra.mxu0 %v520
      %547 = vmatprep.subr.bf16.mxu0 0
      %548 = vmatpush1.bf16.msra.mxu0 %v519
      %549 = vmatprep.subr.bf16.mxu0 0
      %550 = vmatpush1.bf16.msra.mxu0 %v518
      %551 = vmatprep.subr.bf16.mxu0 0
      %552 = vmatpush1.bf16.msra.mxu0 %v517
      %553 = vmatprep.subr.bf16.mxu0 0
      %554 = vmatpush2.bf16.msra.mxu0 0
      %555 = vmatprep.subr.bf16.mxu0 0
      %556 = vmatpush2.bf16.msra.mxu0 0
      %557 = vmatprep.subr.bf16.mxu0 0
      %558 = vmatpush2.bf16.msra.mxu0 0
      %559 = vmatprep.subr.bf16.mxu0 0
      %560 = vmatpush2.bf16.msra.mxu0 0
      %561 = vmatprep.subr.bf16.mxu0 0
      %562 = vmatpush2.bf16.msra.mxu0 0
      %563 = vmatprep.subr.bf16.mxu0 0
      %564 = vmatpush2.bf16.msra.mxu0 0
      %565 = vmatprep.subr.bf16.mxu0 0
      %566 = vmatpush2.bf16.msra.mxu0 0
      %567 = vmatprep.subr.bf16.mxu0 0
      %568 = vmatpush2.bf16.msra.mxu0 0
      %569 = vmatprep.mubr.bf16.mxu0 0
      %570 = vmatmul.mubr.bf16.gmra.mxu0 %v526
      %v571 = vpop.f32.mrf.mxu0
      %v572 = vadd.f32 %v451, %v571
      %v573 = vpop.f32.mrf.mxu0
      %v574 = vpop.f32.mrf.mxu0
      %v575 = vadd.f32 %v454, %v574
      %v576 = vpop.f32.mrf.mxu0
      %577 = vmatprep.mubr.bf16.mxu0 0
      %578 = vmatmul.mubr.bf16.gmra.mxu0 %v529
      %v579 = vpop.f32.mrf.mxu0
      %v580 = vadd.f32 %v459, %v579
      %v581 = vpop.f32.mrf.mxu0
      %v582 = vpop.f32.mrf.mxu0
      %v583 = vadd.f32 %v462, %v582
      %v584 = vpop.f32.mrf.mxu0
      %585 = vmatprep.mubr.bf16.mxu0 0
      %586 = vmatmul.mubr.bf16.gmra.mxu0 %v532
      %v587 = vpop.f32.mrf.mxu0
      %v588 = vadd.f32 %v467, %v587
      %v589 = vpop.f32.mrf.mxu0
      %v590 = vpop.f32.mrf.mxu0
      %v591 = vadd.f32 %v470, %v590
      %v592 = vpop.f32.mrf.mxu0
      %593 = vmatprep.mubr.bf16.mxu0 0
      %594 = vmatmul.mubr.bf16.gmra.mxu0 %v535
      %v595 = vpop.f32.mrf.mxu0
      %v596 = vadd.f32 %v475, %v595
      %v597 = vpop.f32.mrf.mxu0
      %v598 = vpop.f32.mrf.mxu0
      %v599 = vadd.f32 %v478, %v598
      %v600 = vpop.f32.mrf.mxu0
      %601 = vdwg.mxu0
      %vm610 = vcmask 1042432
      %vm611 = vcmask 1046532
      %vm612 = vmor %vm610, %vm611
      %v613 = vrot.slane %v216, 5
      %v614 = vrot.slane %v613, 4
      %v615 = vrot.slane %v217, 5
      %v616 = vsel %vm612, %v614, %v615
      %v617 = vrot.slane %v218, 5
      %v618 = vrot.slane %v617, 4
      %v619 = vrot.slane %v219, 5
      %v620 = vsel %vm612, %v618, %v619
      %v621 = vrot.slane %v220, 5
      %v622 = vrot.slane %v621, 4
      %v623 = vrot.slane %v221, 5
      %v624 = vsel %vm612, %v622, %v623
      %v625 = vrot.slane %v222, 5
      %v626 = vrot.slane %v625, 4
      %v627 = vrot.slane %v223, 5
      %v628 = vsel %vm612, %v626, %v627
      %v629 = vrot.slane %v224, 5
      %v630 = vrot.slane %v629, 4
      %v631 = vrot.slane %v225, 5
      %v632 = vsel %vm612, %v630, %v631
      %v633 = vrot.slane %v226, 5
      %v634 = vrot.slane %v633, 4
      %v635 = vrot.slane %v227, 5
      %v636 = vsel %vm612, %v634, %v635
      %v637 = vrot.slane %v228, 5
      %v638 = vrot.slane %v637, 4
      %v639 = vrot.slane %v229, 5
      %v640 = vsel %vm612, %v638, %v639
      %v641 = vrot.slane %v230, 5
      %v642 = vrot.slane %v641, 4
      %v643 = vrot.slane %v231, 5
      %v644 = vsel %vm612, %v642, %v643
      %v645 = vld [vmem:[%s1 + $0x40] sm:$0xf]
      %v646 = vld [vmem:[%s1 + $0x44] sm:$0xf]
      %v647 = vld [vmem:[%s1 + $0x48] sm:$0xf]
      %v648 = vld [vmem:[%s1 + $0x4c] sm:$0xf]
      %v649 = vld [vmem:[%s1 + $0x50] sm:$0xf]
      %v650 = vld [vmem:[%s1 + $0x54] sm:$0xf]
      %v651 = vld [vmem:[%s1 + $0x58] sm:$0xf]
      %v652 = vld [vmem:[%s1 + $0x5c] sm:$0xf]
      %v653 = vunpack.c.l.b16 %v616
      %v654 = vunpack.c.l.b16 %v620
      %v655 = vunpack.c.l.b16 %v624
      %v656 = vunpack.c.l.b16 %v628
      %v657 = vunpack.c.l.b16 %v632
      %v658 = vunpack.c.l.b16 %v636
      %v659 = vunpack.c.l.b16 %v640
      %v660 = vunpack.c.l.b16 %v644
      %v661 = vpack.c.b16 %v654, %v653
      %v662 = vpack.c.b16 %v656, %v655
      %v663 = vpack.c.b16 %v658, %v657
      %v664 = vpack.c.b16 %v660, %v659
      %v673 = vunpack.c.l.b16 %v645
      %v674 = vunpack.c.l.b16 %v646
      %v675 = vunpack.c.l.b16 %v647
      %v676 = vunpack.c.l.b16 %v648
      %v677 = vunpack.c.l.b16 %v649
      %v678 = vunpack.c.l.b16 %v650
      %v679 = vunpack.c.l.b16 %v651
      %v680 = vunpack.c.l.b16 %v652
      %v681 = vpack.c.b16 %v674, %v673
      %v682 = vpack.c.b16 %v676, %v675
      %v683 = vpack.c.b16 %v678, %v677
      %v684 = vpack.c.b16 %v680, %v679
      %v690 = vsel %vm403, %v661, 0
      %v693 = vsel %vm403, %v662, 0
      %v696 = vsel %vm403, %v663, 0
      %v699 = vsel %vm403, %v664, 0
      %701 = vmatprep.subr.bf16.mxu0 0
      %702 = vmatpush1.bf16.msra.mxu0 0
      %703 = vmatprep.subr.bf16.mxu0 0
      %704 = vmatpush1.bf16.msra.mxu0 0
      %705 = vmatprep.subr.bf16.mxu0 0
      %706 = vmatpush1.bf16.msra.mxu0 0
      %707 = vmatprep.subr.bf16.mxu0 0
      %708 = vmatpush1.bf16.msra.mxu0 0
      %709 = vmatprep.subr.bf16.mxu0 0
      %710 = vmatpush1.bf16.msra.mxu0 %v684
      %711 = vmatprep.subr.bf16.mxu0 0
      %712 = vmatpush1.bf16.msra.mxu0 %v683
      %713 = vmatprep.subr.bf16.mxu0 0
      %714 = vmatpush1.bf16.msra.mxu0 %v682
      %715 = vmatprep.subr.bf16.mxu0 0
      %716 = vmatpush1.bf16.msra.mxu0 %v681
      %717 = vmatprep.subr.bf16.mxu0 0
      %718 = vmatpush2.bf16.msra.mxu0 0
      %719 = vmatprep.subr.bf16.mxu0 0
      %720 = vmatpush2.bf16.msra.mxu0 0
      %721 = vmatprep.subr.bf16.mxu0 0
      %722 = vmatpush2.bf16.msra.mxu0 0
      %723 = vmatprep.subr.bf16.mxu0 0
      %724 = vmatpush2.bf16.msra.mxu0 0
      %725 = vmatprep.subr.bf16.mxu0 0
      %726 = vmatpush2.bf16.msra.mxu0 0
      %727 = vmatprep.subr.bf16.mxu0 0
      %728 = vmatpush2.bf16.msra.mxu0 0
      %729 = vmatprep.subr.bf16.mxu0 0
      %730 = vmatpush2.bf16.msra.mxu0 0
      %731 = vmatprep.subr.bf16.mxu0 0
      %732 = vmatpush2.bf16.msra.mxu0 0
      %733 = vmatprep.mubr.bf16.mxu0 0
      %734 = vmatmul.mubr.bf16.gmra.mxu0 %v690
      %v735 = vpop.f32.mrf.mxu0
      %v736 = vadd.f32 0.0, %v735
      %v737 = vpop.f32.mrf.mxu0
      %v738 = vpop.f32.mrf.mxu0
      %v739 = vadd.f32 0.0, %v738
      %v740 = vpop.f32.mrf.mxu0
      %741 = vmatprep.mubr.bf16.mxu0 0
      %742 = vmatmul.mubr.bf16.gmra.mxu0 %v693
      %v743 = vpop.f32.mrf.mxu0
      %v744 = vadd.f32 0.0, %v743
      %v745 = vpop.f32.mrf.mxu0
      %v746 = vpop.f32.mrf.mxu0
      %v747 = vadd.f32 0.0, %v746
      %v748 = vpop.f32.mrf.mxu0
      %749 = vmatprep.mubr.bf16.mxu0 0
      %750 = vmatmul.mubr.bf16.gmra.mxu0 %v696
      %v751 = vpop.f32.mrf.mxu0
      %v752 = vadd.f32 0.0, %v751
      %v753 = vpop.f32.mrf.mxu0
      %v754 = vpop.f32.mrf.mxu0
      %v755 = vadd.f32 0.0, %v754
      %v756 = vpop.f32.mrf.mxu0
      %757 = vmatprep.mubr.bf16.mxu0 0
      %758 = vmatmul.mubr.bf16.gmra.mxu0 %v699
      %v759 = vpop.f32.mrf.mxu0
      %v760 = vadd.f32 0.0, %v759
      %v761 = vpop.f32.mrf.mxu0
      %v762 = vpop.f32.mrf.mxu0
      %v763 = vadd.f32 0.0, %v762
      %v764 = vpop.f32.mrf.mxu0
      %765 = vdwg.mxu0
      %v766 = vadd.f32 %v572, %v736
      %v767 = vadd.f32 %v575, %v739
      %v768 = vadd.f32 %v580, %v744
      %v769 = vadd.f32 %v583, %v747
      %v770 = vadd.f32 %v588, %v752
      %v771 = vadd.f32 %v591, %v755
      %v772 = vadd.f32 %v596, %v760
      %v773 = vadd.f32 %v599, %v763
      %v774 = vld [vmem:[%s1 + $0x60] sm:$0xf]
      %v775 = vld [vmem:[%s1 + $0x64] sm:$0xf]
      %v776 = vld [vmem:[%s1 + $0x68] sm:$0xf]
      %v777 = vld [vmem:[%s1 + $0x6c] sm:$0xf]
      %v778 = vld [vmem:[%s1 + $0x70] sm:$0xf]
      %v779 = vld [vmem:[%s1 + $0x74] sm:$0xf]
      %v780 = vld [vmem:[%s1 + $0x78] sm:$0xf]
      %v781 = vld [vmem:[%s1 + $0x7c] sm:$0xf]
      %v783 = vunpack.c.l.b16 %v232
      %v784 = vpack.c.b16 %v491, %v490
      %v785 = vpack.c.b16 %v493, %v492
      %v786 = vpack.c.b16 %v495, %v494
      %v787 = vpack.c.b16 %v783, %v496
      %v796 = vunpack.c.l.b16 %v774
      %v797 = vunpack.c.l.b16 %v775
      %v798 = vunpack.c.l.b16 %v776
      %v799 = vunpack.c.l.b16 %v777
      %v800 = vunpack.c.l.b16 %v778
      %v801 = vunpack.c.l.b16 %v779
      %v802 = vunpack.c.l.b16 %v780
      %v803 = vunpack.c.l.b16 %v781
      %v804 = vpack.c.b16 %v797, %v796
      %v805 = vpack.c.b16 %v799, %v798
      %v806 = vpack.c.b16 %v801, %v800
      %v807 = vpack.c.b16 %v803, %v802
      %v813 = vsel %vm403, %v784, 0
      %v816 = vsel %vm403, %v785, 0
      %v819 = vsel %vm403, %v786, 0
      %v822 = vsel %vm403, %v787, 0
      %824 = vmatprep.subr.bf16.mxu0 0
      %825 = vmatpush1.bf16.msra.mxu0 0
      %826 = vmatprep.subr.bf16.mxu0 0
      %827 = vmatpush1.bf16.msra.mxu0 0
      %828 = vmatprep.subr.bf16.mxu0 0
      %829 = vmatpush1.bf16.msra.mxu0 0
      %830 = vmatprep.subr.bf16.mxu0 0
      %831 = vmatpush1.bf16.msra.mxu0 0
      %832 = vmatprep.subr.bf16.mxu0 0
      %833 = vmatpush1.bf16.msra.mxu0 %v807
      %834 = vmatprep.subr.bf16.mxu0 0
      %835 = vmatpush1.bf16.msra.mxu0 %v806
      %836 = vmatprep.subr.bf16.mxu0 0
      %837 = vmatpush1.bf16.msra.mxu0 %v805
      %838 = vmatprep.subr.bf16.mxu0 0
      %839 = vmatpush1.bf16.msra.mxu0 %v804
      %840 = vmatprep.subr.bf16.mxu0 0
      %841 = vmatpush2.bf16.msra.mxu0 0
      %842 = vmatprep.subr.bf16.mxu0 0
      %843 = vmatpush2.bf16.msra.mxu0 0
      %844 = vmatprep.subr.bf16.mxu0 0
      %845 = vmatpush2.bf16.msra.mxu0 0
      %846 = vmatprep.subr.bf16.mxu0 0
      %847 = vmatpush2.bf16.msra.mxu0 0
      %848 = vmatprep.subr.bf16.mxu0 0
      %849 = vmatpush2.bf16.msra.mxu0 0
      %850 = vmatprep.subr.bf16.mxu0 0
      %851 = vmatpush2.bf16.msra.mxu0 0
      %852 = vmatprep.subr.bf16.mxu0 0
      %853 = vmatpush2.bf16.msra.mxu0 0
      %854 = vmatprep.subr.bf16.mxu0 0
      %855 = vmatpush2.bf16.msra.mxu0 0
      %856 = vmatprep.mubr.bf16.mxu0 0
      %857 = vmatmul.mubr.bf16.gmra.mxu0 %v813
      %v858 = vpop.f32.mrf.mxu0
      %v859 = vadd.f32 0.0, %v858
      %v860 = vpop.f32.mrf.mxu0
      %v861 = vpop.f32.mrf.mxu0
      %v862 = vadd.f32 0.0, %v861
      %v863 = vpop.f32.mrf.mxu0
      %864 = vmatprep.mubr.bf16.mxu0 0
      %865 = vmatmul.mubr.bf16.gmra.mxu0 %v816
      %v866 = vpop.f32.mrf.mxu0
      %v867 = vadd.f32 0.0, %v866
      %v868 = vpop.f32.mrf.mxu0
      %v869 = vpop.f32.mrf.mxu0
      %v870 = vadd.f32 0.0, %v869
      %v871 = vpop.f32.mrf.mxu0
      %872 = vmatprep.mubr.bf16.mxu0 0
      %873 = vmatmul.mubr.bf16.gmra.mxu0 %v819
      %v874 = vpop.f32.mrf.mxu0
      %v875 = vadd.f32 0.0, %v874
      %v876 = vpop.f32.mrf.mxu0
      %v877 = vpop.f32.mrf.mxu0
      %v878 = vadd.f32 0.0, %v877
      %v879 = vpop.f32.mrf.mxu0
      %880 = vmatprep.mubr.bf16.mxu0 0
      %881 = vmatmul.mubr.bf16.gmra.mxu0 %v822
      %v882 = vpop.f32.mrf.mxu0
      %v883 = vadd.f32 0.0, %v882
      %v884 = vpop.f32.mrf.mxu0
      %v885 = vpop.f32.mrf.mxu0
      %v886 = vadd.f32 0.0, %v885
      %v887 = vpop.f32.mrf.mxu0
      %888 = vdwg.mxu0
      %v889 = vadd.f32 %v766, %v859
      %v890 = vadd.f32 %v767, %v862
      %v891 = vadd.f32 %v768, %v867
      %v892 = vadd.f32 %v769, %v870
      %v893 = vadd.f32 %v770, %v875
      %v894 = vadd.f32 %v771, %v878
      %v895 = vadd.f32 %v772, %v883
      %v896 = vadd.f32 %v773, %v886
      %v898 = vshrl.u32 %v232, 16
      %v900 = vrot.slane %v898, 4
      %v901 = vshll.u32 %v232, 16
      %v903 = vrot.slane %v901, 5
      %v904 = vor.u32 %v900, %v903
      %v905 = vrot.slane %v904, 4
      %v907 = vshll.u32 %v233, 16
      %v909 = vrot.slane %v907, 5
      %v910 = vsel %vm246, %v905, %v909
      %v911 = vld [vmem:[%s1 + $0x80] sm:$0xf]
      %v912 = vld [vmem:[%s1 + $0x84] sm:$0xf]
      %v913 = vld [vmem:[%s1 + $0x88] sm:$0xf]
      %v914 = vld [vmem:[%s1 + $0x8c] sm:$0xf]
      %v915 = vld [vmem:[%s1 + $0x90] sm:$0xf]
      %v916 = vld [vmem:[%s1 + $0x94] sm:$0xf]
      %v917 = vld [vmem:[%s1 + $0x98] sm:$0xf]
      %v918 = vld [vmem:[%s1 + $0x9c] sm:$0xf]
      %v919 = vunpack.c.l.b16 %v910
      %v920 = vpack.c.b16 %v369, %v368
      %v921 = vpack.c.b16 %v371, %v370
      %v922 = vpack.c.b16 %v373, %v372
      %v923 = vpack.c.b16 %v919, %v374
      %v932 = vunpack.c.l.b16 %v911
      %v933 = vunpack.c.l.b16 %v912
      %v934 = vunpack.c.l.b16 %v913
      %v935 = vunpack.c.l.b16 %v914
      %v936 = vunpack.c.l.b16 %v915
      %v937 = vunpack.c.l.b16 %v916
      %v938 = vunpack.c.l.b16 %v917
      %v939 = vunpack.c.l.b16 %v918
      %v940 = vpack.c.b16 %v933, %v932
      %v941 = vpack.c.b16 %v935, %v934
      %v942 = vpack.c.b16 %v937, %v936
      %v943 = vpack.c.b16 %v939, %v938
      %v949 = vsel %vm403, %v920, 0
      %v952 = vsel %vm403, %v921, 0
      %v955 = vsel %vm403, %v922, 0
      %v958 = vsel %vm403, %v923, 0
      %960 = vmatprep.subr.bf16.mxu0 0
      %961 = vmatpush1.bf16.msra.mxu0 0
      %962 = vmatprep.subr.bf16.mxu0 0
      %963 = vmatpush1.bf16.msra.mxu0 0
      %964 = vmatprep.subr.bf16.mxu0 0
      %965 = vmatpush1.bf16.msra.mxu0 0
      %966 = vmatprep.subr.bf16.mxu0 0
      %967 = vmatpush1.bf16.msra.mxu0 0
      %968 = vmatprep.subr.bf16.mxu0 0
      %969 = vmatpush1.bf16.msra.mxu0 %v943
      %970 = vmatprep.subr.bf16.mxu0 0
      %971 = vmatpush1.bf16.msra.mxu0 %v942
      %972 = vmatprep.subr.bf16.mxu0 0
      %973 = vmatpush1.bf16.msra.mxu0 %v941
      %974 = vmatprep.subr.bf16.mxu0 0
      %975 = vmatpush1.bf16.msra.mxu0 %v940
      %976 = vmatprep.subr.bf16.mxu0 0
      %977 = vmatpush2.bf16.msra.mxu0 0
      %978 = vmatprep.subr.bf16.mxu0 0
      %979 = vmatpush2.bf16.msra.mxu0 0
      %980 = vmatprep.subr.bf16.mxu0 0
      %981 = vmatpush2.bf16.msra.mxu0 0
      %982 = vmatprep.subr.bf16.mxu0 0
      %983 = vmatpush2.bf16.msra.mxu0 0
      %984 = vmatprep.subr.bf16.mxu0 0
      %985 = vmatpush2.bf16.msra.mxu0 0
      %986 = vmatprep.subr.bf16.mxu0 0
      %987 = vmatpush2.bf16.msra.mxu0 0
      %988 = vmatprep.subr.bf16.mxu0 0
      %989 = vmatpush2.bf16.msra.mxu0 0
      %990 = vmatprep.subr.bf16.mxu0 0
      %991 = vmatpush2.bf16.msra.mxu0 0
      %992 = vmatprep.mubr.bf16.mxu0 0
      %993 = vmatmul.mubr.bf16.gmra.mxu0 %v949
      %v994 = vpop.f32.mrf.mxu0
      %v995 = vadd.f32 0.0, %v994
      %v996 = vpop.f32.mrf.mxu0
      %v997 = vpop.f32.mrf.mxu0
      %v998 = vadd.f32 0.0, %v997
      %v999 = vpop.f32.mrf.mxu0
      %1000 = vmatprep.mubr.bf16.mxu0 0
      %1001 = vmatmul.mubr.bf16.gmra.mxu0 %v952
      %v1002 = vpop.f32.mrf.mxu0
      %v1003 = vadd.f32 0.0, %v1002
      %v1004 = vpop.f32.mrf.mxu0
      %v1005 = vpop.f32.mrf.mxu0
      %v1006 = vadd.f32 0.0, %v1005
      %v1007 = vpop.f32.mrf.mxu0
      %1008 = vmatprep.mubr.bf16.mxu0 0
      %1009 = vmatmul.mubr.bf16.gmra.mxu0 %v955
      %v1010 = vpop.f32.mrf.mxu0
      %v1011 = vadd.f32 0.0, %v1010
      %v1012 = vpop.f32.mrf.mxu0
      %v1013 = vpop.f32.mrf.mxu0
      %v1014 = vadd.f32 0.0, %v1013
      %v1015 = vpop.f32.mrf.mxu0
      %1016 = vmatprep.mubr.bf16.mxu0 0
      %1017 = vmatmul.mubr.bf16.gmra.mxu0 %v958
      %v1018 = vpop.f32.mrf.mxu0
      %v1019 = vadd.f32 0.0, %v1018
      %v1020 = vpop.f32.mrf.mxu0
      %v1021 = vpop.f32.mrf.mxu0
      %v1022 = vadd.f32 0.0, %v1021
      %v1023 = vpop.f32.mrf.mxu0
      %1024 = vdwg.mxu0
      %v1025 = vadd.f32 %v889, %v995
      %v1026 = vadd.f32 %v890, %v998
      %v1027 = vadd.f32 %v891, %v1003
      %v1028 = vadd.f32 %v892, %v1006
      %v1029 = vadd.f32 %v893, %v1011
      %v1030 = vadd.f32 %v894, %v1014
      %v1031 = vadd.f32 %v895, %v1019
      %v1032 = vadd.f32 %v896, %v1022
      %v1034 = vrot.slane %v232, 5
      %v1035 = vrot.slane %v1034, 4
      %v1036 = vrot.slane %v233, 5
      %v1037 = vsel %vm612, %v1035, %v1036
      %v1038 = vld [vmem:[%s1 + $0xa0] sm:$0xf]
      %v1039 = vld [vmem:[%s1 + $0xa4] sm:$0xf]
      %v1040 = vld [vmem:[%s1 + $0xa8] sm:$0xf]
      %v1041 = vld [vmem:[%s1 + $0xac] sm:$0xf]
      %v1042 = vld [vmem:[%s1 + $0xb0] sm:$0xf]
      %v1043 = vld [vmem:[%s1 + $0xb4] sm:$0xf]
      %v1044 = vld [vmem:[%s1 + $0xb8] sm:$0xf]
      %v1045 = vld [vmem:[%s1 + $0xbc] sm:$0xf]
      %v1046 = vunpack.c.l.b16 %v1037
      %v1047 = vpack.c.b16 %v655, %v654
      %v1048 = vpack.c.b16 %v657, %v656
      %v1049 = vpack.c.b16 %v659, %v658
      %v1050 = vpack.c.b16 %v1046, %v660
      %v1059 = vunpack.c.l.b16 %v1038
      %v1060 = vunpack.c.l.b16 %v1039
      %v1061 = vunpack.c.l.b16 %v1040
      %v1062 = vunpack.c.l.b16 %v1041
      %v1063 = vunpack.c.l.b16 %v1042
      %v1064 = vunpack.c.l.b16 %v1043
      %v1065 = vunpack.c.l.b16 %v1044
      %v1066 = vunpack.c.l.b16 %v1045
      %v1067 = vpack.c.b16 %v1060, %v1059
      %v1068 = vpack.c.b16 %v1062, %v1061
      %v1069 = vpack.c.b16 %v1064, %v1063
      %v1070 = vpack.c.b16 %v1066, %v1065
      %v1076 = vsel %vm403, %v1047, 0
      %v1079 = vsel %vm403, %v1048, 0
      %v1082 = vsel %vm403, %v1049, 0
      %v1085 = vsel %vm403, %v1050, 0
      %1087 = vmatprep.subr.bf16.mxu0 0
      %1088 = vmatpush1.bf16.msra.mxu0 0
      %1089 = vmatprep.subr.bf16.mxu0 0
      %1090 = vmatpush1.bf16.msra.mxu0 0
      %1091 = vmatprep.subr.bf16.mxu0 0
      %1092 = vmatpush1.bf16.msra.mxu0 0
      %1093 = vmatprep.subr.bf16.mxu0 0
      %1094 = vmatpush1.bf16.msra.mxu0 0
      %1095 = vmatprep.subr.bf16.mxu0 0
      %1096 = vmatpush1.bf16.msra.mxu0 %v1070
      %1097 = vmatprep.subr.bf16.mxu0 0
      %1098 = vmatpush1.bf16.msra.mxu0 %v1069
      %1099 = vmatprep.subr.bf16.mxu0 0
      %1100 = vmatpush1.bf16.msra.mxu0 %v1068
      %1101 = vmatprep.subr.bf16.mxu0 0
      %1102 = vmatpush1.bf16.msra.mxu0 %v1067
      %1103 = vmatprep.subr.bf16.mxu0 0
      %1104 = vmatpush2.bf16.msra.mxu0 0
      %1105 = vmatprep.subr.bf16.mxu0 0
      %1106 = vmatpush2.bf16.msra.mxu0 0
      %1107 = vmatprep.subr.bf16.mxu0 0
      %1108 = vmatpush2.bf16.msra.mxu0 0
      %1109 = vmatprep.subr.bf16.mxu0 0
      %1110 = vmatpush2.bf16.msra.mxu0 0
      %1111 = vmatprep.subr.bf16.mxu0 0
      %1112 = vmatpush2.bf16.msra.mxu0 0
      %1113 = vmatprep.subr.bf16.mxu0 0
      %1114 = vmatpush2.bf16.msra.mxu0 0
      %1115 = vmatprep.subr.bf16.mxu0 0
      %1116 = vmatpush2.bf16.msra.mxu0 0
      %1117 = vmatprep.subr.bf16.mxu0 0
      %1118 = vmatpush2.bf16.msra.mxu0 0
      %1119 = vmatprep.mubr.bf16.mxu0 0
      %1120 = vmatmul.mubr.bf16.gmra.mxu0 %v1076
      %v1121 = vpop.f32.mrf.mxu0
      %v1122 = vadd.f32 0.0, %v1121
      %v1123 = vpop.f32.mrf.mxu0
      %v1124 = vpop.f32.mrf.mxu0
      %v1125 = vadd.f32 0.0, %v1124
      %v1126 = vpop.f32.mrf.mxu0
      %1127 = vmatprep.mubr.bf16.mxu0 0
      %1128 = vmatmul.mubr.bf16.gmra.mxu0 %v1079
      %v1129 = vpop.f32.mrf.mxu0
      %v1130 = vadd.f32 0.0, %v1129
      %v1131 = vpop.f32.mrf.mxu0
      %v1132 = vpop.f32.mrf.mxu0
      %v1133 = vadd.f32 0.0, %v1132
      %v1134 = vpop.f32.mrf.mxu0
      %1135 = vmatprep.mubr.bf16.mxu0 0
      %1136 = vmatmul.mubr.bf16.gmra.mxu0 %v1082
      %v1137 = vpop.f32.mrf.mxu0
      %v1138 = vadd.f32 0.0, %v1137
      %v1139 = vpop.f32.mrf.mxu0
      %v1140 = vpop.f32.mrf.mxu0
      %v1141 = vadd.f32 0.0, %v1140
      %v1142 = vpop.f32.mrf.mxu0
      %1143 = vmatprep.mubr.bf16.mxu0 0
      %1144 = vmatmul.mubr.bf16.gmra.mxu0 %v1085
      %v1145 = vpop.f32.mrf.mxu0
      %v1146 = vadd.f32 0.0, %v1145
      %v1147 = vpop.f32.mrf.mxu0
      %v1148 = vpop.f32.mrf.mxu0
      %v1149 = vadd.f32 0.0, %v1148
      %v1150 = vpop.f32.mrf.mxu0
      %1151 = vdwg.mxu0
      %v1152 = vadd.f32 %v1025, %v1122
      %v1153 = vadd.f32 %v1026, %v1125
      %v1154 = vadd.f32 %v1027, %v1130
      %v1155 = vadd.f32 %v1028, %v1133
      %v1156 = vadd.f32 %v1029, %v1138
      %v1157 = vadd.f32 %v1030, %v1141
      %v1158 = vadd.f32 %v1031, %v1146
      %v1159 = vadd.f32 %v1032, %v1149
      %v1160 = vld [vmem:[%s1 + $0xc0] sm:$0xf]
      %v1161 = vld [vmem:[%s1 + $0xc4] sm:$0xf]
      %v1162 = vld [vmem:[%s1 + $0xc8] sm:$0xf]
      %v1163 = vld [vmem:[%s1 + $0xcc] sm:$0xf]
      %v1164 = vld [vmem:[%s1 + $0xd0] sm:$0xf]
      %v1165 = vld [vmem:[%s1 + $0xd4] sm:$0xf]
      %v1166 = vld [vmem:[%s1 + $0xd8] sm:$0xf]
      %v1167 = vld [vmem:[%s1 + $0xdc] sm:$0xf]
      %v1169 = vunpack.c.l.b16 %v234
      %v1170 = vpack.c.b16 %v1169, %v783
      %v1179 = vunpack.c.l.b16 %v1160
      %v1180 = vunpack.c.l.b16 %v1161
      %v1181 = vunpack.c.l.b16 %v1162
      %v1182 = vunpack.c.l.b16 %v1163
      %v1183 = vunpack.c.l.b16 %v1164
      %v1184 = vunpack.c.l.b16 %v1165
      %v1185 = vunpack.c.l.b16 %v1166
      %v1186 = vunpack.c.l.b16 %v1167
      %v1187 = vpack.c.b16 %v1180, %v1179
      %v1188 = vpack.c.b16 %v1182, %v1181
      %v1189 = vpack.c.b16 %v1184, %v1183
      %v1190 = vpack.c.b16 %v1186, %v1185
      %v1196 = vsel %vm403, %v1170, 0
      %1198 = vmatprep.subr.bf16.mxu0 0
      %1199 = vmatpush1.bf16.msra.mxu0 0
      %1200 = vmatprep.subr.bf16.mxu0 0
      %1201 = vmatpush1.bf16.msra.mxu0 0
      %1202 = vmatprep.subr.bf16.mxu0 0
      %1203 = vmatpush1.bf16.msra.mxu0 0
      %1204 = vmatprep.subr.bf16.mxu0 0
      %1205 = vmatpush1.bf16.msra.mxu0 0
      %1206 = vmatprep.subr.bf16.mxu0 0
      %1207 = vmatpush1.bf16.msra.mxu0 %v1190
      %1208 = vmatprep.subr.bf16.mxu0 0
      %1209 = vmatpush1.bf16.msra.mxu0 %v1189
      %1210 = vmatprep.subr.bf16.mxu0 0
      %1211 = vmatpush1.bf16.msra.mxu0 %v1188
      %1212 = vmatprep.subr.bf16.mxu0 0
      %1213 = vmatpush1.bf16.msra.mxu0 %v1187
      %1214 = vmatprep.subr.bf16.mxu0 0
      %1215 = vmatpush2.bf16.msra.mxu0 0
      %1216 = vmatprep.subr.bf16.mxu0 0
      %1217 = vmatpush2.bf16.msra.mxu0 0
      %1218 = vmatprep.subr.bf16.mxu0 0
      %1219 = vmatpush2.bf16.msra.mxu0 0
      %1220 = vmatprep.subr.bf16.mxu0 0
      %1221 = vmatpush2.bf16.msra.mxu0 0
      %1222 = vmatprep.subr.bf16.mxu0 0
      %1223 = vmatpush2.bf16.msra.mxu0 0
      %1224 = vmatprep.subr.bf16.mxu0 0
      %1225 = vmatpush2.bf16.msra.mxu0 0
      %1226 = vmatprep.subr.bf16.mxu0 0
      %1227 = vmatpush2.bf16.msra.mxu0 0
      %1228 = vmatprep.subr.bf16.mxu0 0
      %1229 = vmatpush2.bf16.msra.mxu0 0
      %1230 = vmatprep.mubr.bf16.mxu0 0
      %1231 = vmatmul.mubr.bf16.gmra.mxu0 %v529
      %v1232 = vpop.f32.mrf.mxu0
      %v1233 = vadd.f32 0.0, %v1232
      %v1234 = vpop.f32.mrf.mxu0
      %v1235 = vpop.f32.mrf.mxu0
      %v1236 = vadd.f32 0.0, %v1235
      %v1237 = vpop.f32.mrf.mxu0
      %1238 = vmatprep.mubr.bf16.mxu0 0
      %1239 = vmatmul.mubr.bf16.gmra.mxu0 %v532
      %v1240 = vpop.f32.mrf.mxu0
      %v1241 = vadd.f32 0.0, %v1240
      %v1242 = vpop.f32.mrf.mxu0
      %v1243 = vpop.f32.mrf.mxu0
      %v1244 = vadd.f32 0.0, %v1243
      %v1245 = vpop.f32.mrf.mxu0
      %1246 = vmatprep.mubr.bf16.mxu0 0
      %1247 = vmatmul.mubr.bf16.gmra.mxu0 %v535
      %v1248 = vpop.f32.mrf.mxu0
      %v1249 = vadd.f32 0.0, %v1248
      %v1250 = vpop.f32.mrf.mxu0
      %v1251 = vpop.f32.mrf.mxu0
      %v1252 = vadd.f32 0.0, %v1251
      %v1253 = vpop.f32.mrf.mxu0
      %1254 = vmatprep.mubr.bf16.mxu0 0
      %1255 = vmatmul.mubr.bf16.gmra.mxu0 %v1196
      %v1256 = vpop.f32.mrf.mxu0
      %v1257 = vadd.f32 0.0, %v1256
      %v1258 = vpop.f32.mrf.mxu0
      %v1259 = vpop.f32.mrf.mxu0
      %v1260 = vadd.f32 0.0, %v1259
      %v1261 = vpop.f32.mrf.mxu0
      %1262 = vdwg.mxu0
      %v1263 = vadd.f32 %v1152, %v1233
      %v1264 = vadd.f32 %v1153, %v1236
      %v1265 = vadd.f32 %v1154, %v1241
      %v1266 = vadd.f32 %v1155, %v1244
      %v1267 = vadd.f32 %v1156, %v1249
      %v1268 = vadd.f32 %v1157, %v1252
      %v1269 = vadd.f32 %v1158, %v1257
      %v1270 = vadd.f32 %v1159, %v1260
      %v1272 = vshrl.u32 %v234, 16
      %v1274 = vrot.slane %v1272, 4
      %v1275 = vshll.u32 %v234, 16
      %v1277 = vrot.slane %v1275, 5
      %v1278 = vor.u32 %v1274, %v1277
      %v1279 = vrot.slane %v1278, 4
      %v1281 = vshll.u32 %v235, 16
      %v1283 = vrot.slane %v1281, 5
      %v1284 = vsel %vm246, %v1279, %v1283
      %v1285 = vld [vmem:[%s1 + $0xe0] sm:$0xf]
      %v1286 = vld [vmem:[%s1 + $0xe4] sm:$0xf]
      %v1287 = vld [vmem:[%s1 + $0xe8] sm:$0xf]
      %v1288 = vld [vmem:[%s1 + $0xec] sm:$0xf]
      %v1289 = vld [vmem:[%s1 + $0xf0] sm:$0xf]
      %v1290 = vld [vmem:[%s1 + $0xf4] sm:$0xf]
      %v1291 = vld [vmem:[%s1 + $0xf8] sm:$0xf]
      %v1292 = vld [vmem:[%s1 + $0xfc] sm:$0xf]
      %v1293 = vunpack.c.l.b16 %v1284
      %v1294 = vpack.c.b16 %v1293, %v919
      %v1303 = vunpack.c.l.b16 %v1285
      %v1304 = vunpack.c.l.b16 %v1286
      %v1305 = vunpack.c.l.b16 %v1287
      %v1306 = vunpack.c.l.b16 %v1288
      %v1307 = vunpack.c.l.b16 %v1289
      %v1308 = vunpack.c.l.b16 %v1290
      %v1309 = vunpack.c.l.b16 %v1291
      %v1310 = vunpack.c.l.b16 %v1292
      %v1311 = vpack.c.b16 %v1304, %v1303
      %v1312 = vpack.c.b16 %v1306, %v1305
      %v1313 = vpack.c.b16 %v1308, %v1307
      %v1314 = vpack.c.b16 %v1310, %v1309
      %v1320 = vsel %vm403, %v1294, 0
      %1322 = vmatprep.subr.bf16.mxu0 0
      %1323 = vmatpush1.bf16.msra.mxu0 0
      %1324 = vmatprep.subr.bf16.mxu0 0
      %1325 = vmatpush1.bf16.msra.mxu0 0
      %1326 = vmatprep.subr.bf16.mxu0 0
      %1327 = vmatpush1.bf16.msra.mxu0 0
      %1328 = vmatprep.subr.bf16.mxu0 0
      %1329 = vmatpush1.bf16.msra.mxu0 0
      %1330 = vmatprep.subr.bf16.mxu0 0
      %1331 = vmatpush1.bf16.msra.mxu0 %v1314
      %1332 = vmatprep.subr.bf16.mxu0 0
      %1333 = vmatpush1.bf16.msra.mxu0 %v1313
      %1334 = vmatprep.subr.bf16.mxu0 0
      %1335 = vmatpush1.bf16.msra.mxu0 %v1312
      %1336 = vmatprep.subr.bf16.mxu0 0
      %1337 = vmatpush1.bf16.msra.mxu0 %v1311
      %1338 = vmatprep.subr.bf16.mxu0 0
      %1339 = vmatpush2.bf16.msra.mxu0 0
      %1340 = vmatprep.subr.bf16.mxu0 0
      %1341 = vmatpush2.bf16.msra.mxu0 0
      %1342 = vmatprep.subr.bf16.mxu0 0
      %1343 = vmatpush2.bf16.msra.mxu0 0
      %1344 = vmatprep.subr.bf16.mxu0 0
      %1345 = vmatpush2.bf16.msra.mxu0 0
      %1346 = vmatprep.subr.bf16.mxu0 0
      %1347 = vmatpush2.bf16.msra.mxu0 0
      %1348 = vmatprep.subr.bf16.mxu0 0
      %1349 = vmatpush2.bf16.msra.mxu0 0
      %1350 = vmatprep.subr.bf16.mxu0 0
      %1351 = vmatpush2.bf16.msra.mxu0 0
      %1352 = vmatprep.subr.bf16.mxu0 0
      %1353 = vmatpush2.bf16.msra.mxu0 0
      %1354 = vmatprep.mubr.bf16.mxu0 0
      %1355 = vmatmul.mubr.bf16.gmra.mxu0 %v408
      %v1356 = vpop.f32.mrf.mxu0
      %v1357 = vadd.f32 0.0, %v1356
      %v1358 = vpop.f32.mrf.mxu0
      %v1359 = vpop.f32.mrf.mxu0
      %v1360 = vadd.f32 0.0, %v1359
      %v1361 = vpop.f32.mrf.mxu0
      %1362 = vmatprep.mubr.bf16.mxu0 0
      %1363 = vmatmul.mubr.bf16.gmra.mxu0 %v411
      %v1364 = vpop.f32.mrf.mxu0
      %v1365 = vadd.f32 0.0, %v1364
      %v1366 = vpop.f32.mrf.mxu0
      %v1367 = vpop.f32.mrf.mxu0
      %v1368 = vadd.f32 0.0, %v1367
      %v1369 = vpop.f32.mrf.mxu0
      %1370 = vmatprep.mubr.bf16.mxu0 0
      %1371 = vmatmul.mubr.bf16.gmra.mxu0 %v414
      %v1372 = vpop.f32.mrf.mxu0
      %v1373 = vadd.f32 0.0, %v1372
      %v1374 = vpop.f32.mrf.mxu0
      %v1375 = vpop.f32.mrf.mxu0
      %v1376 = vadd.f32 0.0, %v1375
      %v1377 = vpop.f32.mrf.mxu0
      %1378 = vmatprep.mubr.bf16.mxu0 0
      %1379 = vmatmul.mubr.bf16.gmra.mxu0 %v1320
      %v1380 = vpop.f32.mrf.mxu0
      %v1381 = vadd.f32 0.0, %v1380
      %v1382 = vpop.f32.mrf.mxu0
      %v1383 = vpop.f32.mrf.mxu0
      %v1384 = vadd.f32 0.0, %v1383
      %v1385 = vpop.f32.mrf.mxu0
      %1386 = vdwg.mxu0
      %v1387 = vadd.f32 %v1263, %v1357
      %v1388 = vadd.f32 %v1264, %v1360
      %v1389 = vadd.f32 %v1265, %v1365
      %v1390 = vadd.f32 %v1266, %v1368
      %v1391 = vadd.f32 %v1267, %v1373
      %v1392 = vadd.f32 %v1268, %v1376
      %v1393 = vadd.f32 %v1269, %v1381
      %v1394 = vadd.f32 %v1270, %v1384
      %v1396 = vrot.slane %v234, 5
      %v1397 = vrot.slane %v1396, 4
      %v1398 = vrot.slane %v235, 5
      %v1399 = vsel %vm612, %v1397, %v1398
      %v1400 = vld [vmem:[%s1 + $0x100] sm:$0xf]
      %v1401 = vld [vmem:[%s1 + $0x104] sm:$0xf]
      %v1402 = vld [vmem:[%s1 + $0x108] sm:$0xf]
      %v1403 = vld [vmem:[%s1 + $0x10c] sm:$0xf]
      %v1404 = vld [vmem:[%s1 + $0x110] sm:$0xf]
      %v1405 = vld [vmem:[%s1 + $0x114] sm:$0xf]
      %v1406 = vld [vmem:[%s1 + $0x118] sm:$0xf]
      %v1407 = vld [vmem:[%s1 + $0x11c] sm:$0xf]
      %v1408 = vunpack.c.l.b16 %v1399
      %v1409 = vpack.c.b16 %v1408, %v1046
      %v1418 = vunpack.c.l.b16 %v1400
      %v1419 = vunpack.c.l.b16 %v1401
      %v1420 = vunpack.c.l.b16 %v1402
      %v1421 = vunpack.c.l.b16 %v1403
      %v1422 = vunpack.c.l.b16 %v1404
      %v1423 = vunpack.c.l.b16 %v1405
      %v1424 = vunpack.c.l.b16 %v1406
      %v1425 = vunpack.c.l.b16 %v1407
      %v1426 = vpack.c.b16 %v1419, %v1418
      %v1427 = vpack.c.b16 %v1421, %v1420
      %v1428 = vpack.c.b16 %v1423, %v1422
      %v1429 = vpack.c.b16 %v1425, %v1424
      %v1435 = vsel %vm403, %v1409, 0
      %1437 = vmatprep.subr.bf16.mxu0 0
      %1438 = vmatpush1.bf16.msra.mxu0 0
      %1439 = vmatprep.subr.bf16.mxu0 0
      %1440 = vmatpush1.bf16.msra.mxu0 0
      %1441 = vmatprep.subr.bf16.mxu0 0
      %1442 = vmatpush1.bf16.msra.mxu0 0
      %1443 = vmatprep.subr.bf16.mxu0 0
      %1444 = vmatpush1.bf16.msra.mxu0 0
      %1445 = vmatprep.subr.bf16.mxu0 0
      %1446 = vmatpush1.bf16.msra.mxu0 %v1429
      %1447 = vmatprep.subr.bf16.mxu0 0
      %1448 = vmatpush1.bf16.msra.mxu0 %v1428
      %1449 = vmatprep.subr.bf16.mxu0 0
      %1450 = vmatpush1.bf16.msra.mxu0 %v1427
      %1451 = vmatprep.subr.bf16.mxu0 0
      %1452 = vmatpush1.bf16.msra.mxu0 %v1426
      %1453 = vmatprep.subr.bf16.mxu0 0
      %1454 = vmatpush2.bf16.msra.mxu0 0
      %1455 = vmatprep.subr.bf16.mxu0 0
      %1456 = vmatpush2.bf16.msra.mxu0 0
      %1457 = vmatprep.subr.bf16.mxu0 0
      %1458 = vmatpush2.bf16.msra.mxu0 0
      %1459 = vmatprep.subr.bf16.mxu0 0
      %1460 = vmatpush2.bf16.msra.mxu0 0
      %1461 = vmatprep.subr.bf16.mxu0 0
      %1462 = vmatpush2.bf16.msra.mxu0 0
      %1463 = vmatprep.subr.bf16.mxu0 0
      %1464 = vmatpush2.bf16.msra.mxu0 0
      %1465 = vmatprep.subr.bf16.mxu0 0
      %1466 = vmatpush2.bf16.msra.mxu0 0
      %1467 = vmatprep.subr.bf16.mxu0 0
      %1468 = vmatpush2.bf16.msra.mxu0 0
      %1469 = vmatprep.mubr.bf16.mxu0 0
      %1470 = vmatmul.mubr.bf16.gmra.mxu0 %v693
      %v1471 = vpop.f32.mrf.mxu0
      %v1472 = vadd.f32 0.0, %v1471
      %v1473 = vpop.f32.mrf.mxu0
      %v1474 = vpop.f32.mrf.mxu0
      %v1475 = vadd.f32 0.0, %v1474
      %v1476 = vpop.f32.mrf.mxu0
      %1477 = vmatprep.mubr.bf16.mxu0 0
      %1478 = vmatmul.mubr.bf16.gmra.mxu0 %v696
      %v1479 = vpop.f32.mrf.mxu0
      %v1480 = vadd.f32 0.0, %v1479
      %v1481 = vpop.f32.mrf.mxu0
      %v1482 = vpop.f32.mrf.mxu0
      %v1483 = vadd.f32 0.0, %v1482
      %v1484 = vpop.f32.mrf.mxu0
      %1485 = vmatprep.mubr.bf16.mxu0 0
      %1486 = vmatmul.mubr.bf16.gmra.mxu0 %v699
      %v1487 = vpop.f32.mrf.mxu0
      %v1488 = vadd.f32 0.0, %v1487
      %v1489 = vpop.f32.mrf.mxu0
      %v1490 = vpop.f32.mrf.mxu0
      %v1491 = vadd.f32 0.0, %v1490
      %v1492 = vpop.f32.mrf.mxu0
      %1493 = vmatprep.mubr.bf16.mxu0 0
      %1494 = vmatmul.mubr.bf16.gmra.mxu0 %v1435
      %v1495 = vpop.f32.mrf.mxu0
      %v1496 = vadd.f32 0.0, %v1495
      %v1497 = vpop.f32.mrf.mxu0
      %v1498 = vpop.f32.mrf.mxu0
      %v1499 = vadd.f32 0.0, %v1498
      %v1500 = vpop.f32.mrf.mxu0
      %1501 = vdwg.mxu0
      %v1502 = vadd.f32 %v1387, %v1472
      %v1503 = vadd.f32 %v1388, %v1475
      %v1504 = vadd.f32 %v1389, %v1480
      %v1505 = vadd.f32 %v1390, %v1483
      %v1506 = vadd.f32 %v1391, %v1488
      %v1507 = vadd.f32 %v1392, %v1491
      %v1508 = vadd.f32 %v1393, %v1496
      %v1509 = vadd.f32 %v1394, %v1499
      %v1510 = vpack.c.bf16 %v1502, %v1502
      %v1511 = vpack.c.bf16 %v1503, %v1503
      %v1512 = vpack.c.bf16 %v1504, %v1504
      %v1513 = vpack.c.bf16 %v1505, %v1505
      %v1514 = vpack.c.bf16 %v1506, %v1506
      %v1515 = vpack.c.bf16 %v1507, %v1507
      %v1516 = vpack.c.bf16 %v1508, %v1508
      %v1517 = vpack.c.bf16 %v1509, %v1509
      %vm1518 = vcmask 519168
      %1519 = vst.msk [vmem:[%s208] sm:$0xf] %vm1518, %v1510
      %1520 = vst.msk [vmem:[%s208 + $0x4] sm:$0xf] %vm1518, %v1511
      %1521 = vst.msk [vmem:[%s208 + $0x8] sm:$0xf] %vm1518, %v1512
      %1522 = vst.msk [vmem:[%s208 + $0xc] sm:$0xf] %vm1518, %v1513
      %1523 = vst.msk [vmem:[%s208 + $0x10] sm:$0xf] %vm1518, %v1514
      %1524 = vst.msk [vmem:[%s208 + $0x14] sm:$0xf] %vm1518, %v1515
      %1525 = vst.msk [vmem:[%s208 + $0x18] sm:$0xf] %vm1518, %v1516
      %1526 = vst.msk [vmem:[%s208 + $0x1c] sm:$0xf] %vm1518, %v1517
      %v1527 = vsel %vm403, %v1502, 0.0
      %v1528 = vsel %vm403, %v1503, 0.0
      %v1529 = vadd.f32 %v1527, %v1528
      %v1530 = vsel %vm403, %v1504, 0.0
      %v1531 = vadd.f32 %v1529, %v1530
      %v1532 = vsel %vm403, %v1505, 0.0
      %v1533 = vadd.f32 %v1531, %v1532
      %v1534 = vsel %vm403, %v1506, 0.0
      %v1535 = vadd.f32 %v1533, %v1534
      %v1536 = vsel %vm403, %v1507, 0.0
      %v1537 = vadd.f32 %v1535, %v1536
      %v1538 = vsel %vm403, %v1508, 0.0
      %v1539 = vadd.f32 %v1537, %v1538
      %v1540 = vsel %vm403, %v1509, 0.0
      %v1541 = vadd.f32 %v1539, %v1540
      %v1542 = vrot.slane %v1541, 4
      %v1543 = vadd.f32 %v1541, %v1542
      %v1544 = vrot.slane %v1543, 2
      %v1545 = vadd.f32 %v1543, %v1544
      %v1546 = vrot.slane %v1545, 1
      %v1547 = vadd.f32 %v1545, %v1546
      %vm1548 = vcmask 516096
      %1549 = vst.msk [vmem:[%s211] sm:$0x1] %vm1548, %v1547
      %v1550 = vmul.f32 %v1502, %v1502
      %v1551 = vmul.f32 %v1503, %v1503
      %v1552 = vmul.f32 %v1504, %v1504
      %v1553 = vmul.f32 %v1505, %v1505
      %v1554 = vmul.f32 %v1506, %v1506
      %v1555 = vmul.f32 %v1507, %v1507
      %v1556 = vmul.f32 %v1508, %v1508
      %v1557 = vmul.f32 %v1509, %v1509
      %v1558 = vsel %vm403, %v1550, 0.0
      %v1559 = vsel %vm403, %v1551, 0.0
      %v1560 = vadd.f32 %v1558, %v1559
      %v1561 = vsel %vm403, %v1552, 0.0
      %v1562 = vadd.f32 %v1560, %v1561
      %v1563 = vsel %vm403, %v1553, 0.0
      %v1564 = vadd.f32 %v1562, %v1563
      %v1565 = vsel %vm403, %v1554, 0.0
      %v1566 = vadd.f32 %v1564, %v1565
      %v1567 = vsel %vm403, %v1555, 0.0
      %v1568 = vadd.f32 %v1566, %v1567
      %v1569 = vsel %vm403, %v1556, 0.0
      %v1570 = vadd.f32 %v1568, %v1569
      %v1571 = vsel %vm403, %v1557, 0.0
      %v1572 = vadd.f32 %v1570, %v1571
      %v1573 = vrot.slane %v1572, 4
      %v1574 = vadd.f32 %v1572, %v1573
      %v1575 = vrot.slane %v1574, 2
      %v1576 = vadd.f32 %v1574, %v1575
      %v1577 = vrot.slane %v1576, 1
      %v1578 = vadd.f32 %v1576, %v1577
      %1579 = vst.msk [vmem:[%s214] sm:$0x1] %vm1548, %v1578
      %p1580 = scmp.lt.s32.totalorder %s16, 1
      %s1581 = scalar_select %p1580, %s16, 1
      %s1582 = smul.addr %s1581, 8
      %s1583 = smul.addr %s1582, 4
      %s1584 = scalar_lea.vmem %s2, %s1583
      %p1585 = scmp.lt.s32.totalorder %s16, 1
      %s1586 = scalar_select %p1585, %s16, 1
      %s1587 = scalar_lea.vmem %s3, %s1586
      %p1588 = scmp.lt.s32.totalorder %s16, 1
      %s1589 = scalar_select %p1588, %s16, 1
      %s1590 = scalar_lea.vmem %s4, %s1589
      // Predicated region
      $region29: #{fwd.52} parent=27 // pred_check
        %p1591 = pneg %p81
      $region30: #{fwd.52} parent=27 // pred_check_branch
        %1593 = sbr.rel (%p1591) target = $region32
      $region31: #{fwd.52} parent=27 // pred_region
        _
      $region32: #{fwd.52} parent=27 // pred_fallthru
        _
      // Predicated region
      $region33: #{fwd.52} parent=27 // pred_check
        %p1594 = pneg %p107
      $region34: #{fwd.52} parent=27 // pred_check_branch
        %1596 = sbr.rel (%p1594) target = $region36
      $region35: #{fwd.52} parent=27 // pred_region
        _
      $region36: #{fwd.52} parent=27 // pred_fallthru
        _
      // Predicated region
      $region37: #{fwd.52} parent=27 // pred_check
        %p1597 = pneg %p133
      $region38: #{fwd.52} parent=27 // pred_check_branch
        %1599 = sbr.rel (%p1597) target = $region40
      $region39: #{fwd.52} parent=27 // pred_region
        _
      $region40: #{fwd.52} parent=27 // pred_fallthru
        _
    $region28: #{fwd.52} parent=5 // pred_fallthru
      _
    %p1600 = scmp.le.s32.totalorder 2, %s11
    // Predicated region
    $region41: #{fwd.52} parent=5 // pred_check
      %p1601 = pneg %p1600
    $region42: #{fwd.52} parent=5 // pred_check_branch
      %1603 = sbr.rel (%p1601) target = $region44
    $region43: #{fwd.52} parent=5 // pred_region
      %s1604 = ssub.s32 %s11, 2
      // Predicated region
      $region45: #{fwd.52} parent=43 // pred_check
        %p1605 = pneg %p87
      $region46: #{fwd.52} parent=43 // pred_check_branch
        %1607 = sbr.rel (%p1605) target = $region48
      $region47: #{fwd.52} parent=43 // pred_region
        %p1608 = scmp.lt.s32.totalorder %s17, 1
        %s1609 = scalar_select %p1608, %s17, 1
        %s1610 = smul.addr %s1609, 8
        %s1611 = smul.addr %s1610, 4
        %s1612 = scalar_lea.vmem %s2, %s1611
      $region48: #{fwd.52} parent=43 // pred_fallthru
        _
      // Predicated region
      $region49: #{fwd.52} parent=43 // pred_check
        %p1613 = pneg %p113
      $region50: #{fwd.52} parent=43 // pred_check_branch
        %1615 = sbr.rel (%p1613) target = $region52
      $region51: #{fwd.52} parent=43 // pred_region
        %p1616 = scmp.lt.s32.totalorder %s17, 1
        %s1617 = scalar_select %p1616, %s17, 1
        %s1618 = scalar_lea.vmem %s3, %s1617
      $region52: #{fwd.52} parent=43 // pred_fallthru
        _
      // Predicated region
      $region53: #{fwd.52} parent=43 // pred_check
        %p1619 = pneg %p139
      $region54: #{fwd.52} parent=43 // pred_check_branch
        %1621 = sbr.rel (%p1619) target = $region56
      $region55: #{fwd.52} parent=43 // pred_region
        %p1622 = scmp.lt.s32.totalorder %s17, 1
        %s1623 = scalar_select %p1622, %s17, 1
        %s1624 = scalar_lea.vmem %s4, %s1623
      $region56: #{fwd.52} parent=43 // pred_fallthru
        _
    $region44: #{fwd.52} parent=5 // pred_fallthru
      _
  $region6: #{fwd.52} parent=0 // loop_footer
    %s15 = sadd.s32 1, %s11
  $region7: #{fwd.52} parent=0 // loop_footer_branch
    %10 = sbr.rel target = $region3
  $region8: #{fwd.52} parent=0 // loop_exit
    _

// kernel: fwd.55
$region0: #{fwd.55}
  #allocation0 [shape = 'u32[]', space=smem, size = 0x4, offset = 0x4, fixed_abs, tag = 'smem constant byte address 0x4 - core index']
  #allocation1 [shape = 'u32[144,128]{1,0:T(1,128)}', space=vmem, size = 0x12000, scoped, tag = 'internal scratch']
  %s0 = inlined_call_operand.vmem [shape: bf16[16,512], index: 0, kind: input, shape index: {}]
  %s1 = inlined_call_operand.vmem [shape: bf16[16,512], index: 1, kind: input, shape index: {}]
  %s2 = inlined_call_operand.vmem [shape: f32[4,512], index: 2, kind: input, shape index: {}]
  %s3 = inlined_call_operand.vmem [shape: bf16[16,512], index: 3, kind: output, shape index: {}]
  %s4 = sld [smem:[#allocation0]]
  $region22: #{fwd.55} parent=0
    _
  %s6 = ssub.s32 1, %s4
  %s7 = scalar_select 0, %s6, %s4
  // Predicated region
  $region2: #{fwd.55} parent=0 // pred_check
    _
  $region3: #{fwd.55} parent=0 // pred_check_branch
    %9 = sbr.rel (0) target = $region5
  $region4: #{fwd.55} parent=0 // pred_region
    _
  $region5: #{fwd.55} parent=0 // pred_fallthru
    _
  // Predicated region
  $region6: #{fwd.55} parent=0 // pred_check
    _
  $region7: #{fwd.55} parent=0 // pred_check_branch
    %11 = sbr.rel (0) target = $region9
  $region8: #{fwd.55} parent=0 // pred_region
    _
  $region9: #{fwd.55} parent=0 // pred_fallthru
    _
  // Predicated region
  $region10: #{fwd.55} parent=0 // pred_check
    _
  $region11: #{fwd.55} parent=0 // pred_check_branch
    %13 = sbr.rel (0) target = $region13
  $region12: #{fwd.55} parent=0 // pred_region
    _
  $region13: #{fwd.55} parent=0 // pred_fallthru
    _
  %v14 = vld [vmem:[%s2] sm:$0xff]
  %v15 = vld [vmem:[%s2 + $0x8] sm:$0xff]
  %v16 = vld [vmem:[%s0] sm:$0xff]
  %v17 = vld [vmem:[%s0 + $0x8] sm:$0xff]
  %v18 = vld [vmem:[%s0 + $0x10] sm:$0xff]
  %v19 = vld [vmem:[%s0 + $0x18] sm:$0xff]
  %v20 = vunpack.c.l.bf16 %v16
  %v21 = vunpack.c.h.bf16 %v16
  %v22 = vunpack.c.l.bf16 %v17
  %v23 = vunpack.c.h.bf16 %v17
  %v24 = vunpack.c.l.bf16 %v18
  %v25 = vunpack.c.h.bf16 %v18
  %v26 = vunpack.c.l.bf16 %v19
  %v27 = vunpack.c.h.bf16 %v19
  %v30 = vlaneseq
  %v31 = vshrl.u32 %v30, 7
  %v32 = vsub.s32 0, %v31
  %v33 = vrot.slane %v14, %v32
  %v34 = vlaneseq
  %v35 = vshrl.u32 %v34, 7
  %v36 = vsub.s32 4, %v35
  %v37 = vrot.slane %v14, %v36
  %v38 = vlaneseq
  %v39 = vshrl.u32 %v38, 7
  %v40 = vsub.s32 0, %v39
  %v41 = vrot.slane %v15, %v40
  %v42 = vlaneseq
  %v43 = vshrl.u32 %v42, 7
  %v44 = vsub.s32 4, %v43
  %v45 = vrot.slane %v15, %v44
  %v50 = vlaneseq
  %v51 = vshrl.u32 %v50, 7
  %v52 = vsub.s32 0, %v51
  %v53 = vrot.slane %v33, %v52
  %v54 = vlaneseq
  %v55 = vshrl.u32 %v54, 7
  %v56 = vsub.s32 0, %v55
  %v57 = vrot.slane %v37, %v56
  %v58 = vlaneseq
  %v59 = vshrl.u32 %v58, 7
  %v60 = vsub.s32 0, %v59
  %v61 = vrot.slane %v41, %v60
  %v62 = vlaneseq
  %v63 = vshrl.u32 %v62, 7
  %v64 = vsub.s32 0, %v63
  %v65 = vrot.slane %v45, %v64
  %v66 = vmul.f32 %v20, %v53
  %v67 = vmul.f32 %v21, %v57
  %v68 = vmul.f32 %v22, %v61
  %v69 = vmul.f32 %v23, %v65
  %v70 = vmul.f32 %v24, %v53
  %v71 = vmul.f32 %v25, %v57
  %v72 = vmul.f32 %v26, %v61
  %v73 = vmul.f32 %v27, %v65
  %v74 = vlaneseq
  %v75 = vshrl.u32 %v74, 7
  %v76 = vsub.s32 2, %v75
  %v77 = vrot.slane %v14, %v76
  %v78 = vlaneseq
  %v79 = vshrl.u32 %v78, 7
  %v80 = vsub.s32 6, %v79
  %v81 = vrot.slane %v14, %v80
  %v82 = vlaneseq
  %v83 = vshrl.u32 %v82, 7
  %v84 = vsub.s32 2, %v83
  %v85 = vrot.slane %v15, %v84
  %v86 = vlaneseq
  %v87 = vshrl.u32 %v86, 7
  %v88 = vsub.s32 6, %v87
  %v89 = vrot.slane %v15, %v88
  %v94 = vlaneseq
  %v95 = vshrl.u32 %v94, 7
  %v96 = vsub.s32 2, %v95
  %v97 = vrot.slane %v77, %v96
  %v98 = vlaneseq
  %v99 = vshrl.u32 %v98, 7
  %v100 = vsub.s32 2, %v99
  %v101 = vrot.slane %v81, %v100
  %v102 = vlaneseq
  %v103 = vshrl.u32 %v102, 7
  %v104 = vsub.s32 2, %v103
  %v105 = vrot.slane %v85, %v104
  %v106 = vlaneseq
  %v107 = vshrl.u32 %v106, 7
  %v108 = vsub.s32 2, %v107
  %v109 = vrot.slane %v89, %v108
  %v110 = vadd.f32 %v66, %v97
  %v111 = vadd.f32 %v67, %v101
  %v112 = vadd.f32 %v68, %v105
  %v113 = vadd.f32 %v69, %v109
  %v114 = vadd.f32 %v70, %v97
  %v115 = vadd.f32 %v71, %v101
  %v116 = vadd.f32 %v72, %v105
  %v117 = vadd.f32 %v73, %v109
  %v118 = vld [vmem:[%s1] sm:$0xff]
  %v119 = vld [vmem:[%s1 + $0x8] sm:$0xff]
  %v120 = vld [vmem:[%s1 + $0x10] sm:$0xff]
  %v121 = vld [vmem:[%s1 + $0x18] sm:$0xff]
  %v122 = vunpack.c.l.bf16 %v118
  %v123 = vunpack.c.h.bf16 %v118
  %v124 = vunpack.c.l.bf16 %v119
  %v125 = vunpack.c.h.bf16 %v119
  %v126 = vunpack.c.l.bf16 %v120
  %v127 = vunpack.c.h.bf16 %v120
  %v128 = vunpack.c.l.bf16 %v121
  %v129 = vunpack.c.h.bf16 %v121
  %v130 = vlaneseq
  %v131 = vshrl.u32 %v130, 7
  %v132 = vsub.s32 1, %v131
  %v133 = vrot.slane %v14, %v132
  %v134 = vlaneseq
  %v135 = vshrl.u32 %v134, 7
  %v136 = vsub.s32 5, %v135
  %v137 = vrot.slane %v14, %v136
  %v138 = vlaneseq
  %v139 = vshrl.u32 %v138, 7
  %v140 = vsub.s32 1, %v139
  %v141 = vrot.slane %v15, %v140
  %v142 = vlaneseq
  %v143 = vshrl.u32 %v142, 7
  %v144 = vsub.s32 5, %v143
  %v145 = vrot.slane %v15, %v144
  %v150 = vlaneseq
  %v151 = vshrl.u32 %v150, 7
  %v152 = vsub.s32 1, %v151
  %v153 = vrot.slane %v133, %v152
  %v154 = vlaneseq
  %v155 = vshrl.u32 %v154, 7
  %v156 = vsub.s32 1, %v155
  %v157 = vrot.slane %v137, %v156
  %v158 = vlaneseq
  %v159 = vshrl.u32 %v158, 7
  %v160 = vsub.s32 1, %v159
  %v161 = vrot.slane %v141, %v160
  %v162 = vlaneseq
  %v163 = vshrl.u32 %v162, 7
  %v164 = vsub.s32 1, %v163
  %v165 = vrot.slane %v145, %v164
  %v166 = vmul.f32 %v122, %v153
  %v167 = vmul.f32 %v123, %v157
  %v168 = vmul.f32 %v124, %v161
  %v169 = vmul.f32 %v125, %v165
  %v170 = vmul.f32 %v126, %v153
  %v171 = vmul.f32 %v127, %v157
  %v172 = vmul.f32 %v128, %v161
  %v173 = vmul.f32 %v129, %v165
  %v174 = vadd.f32 %v110, %v166
  %v175 = vadd.f32 %v111, %v167
  %v176 = vadd.f32 %v112, %v168
  %v177 = vadd.f32 %v113, %v169
  %v178 = vadd.f32 %v114, %v170
  %v179 = vadd.f32 %v115, %v171
  %v180 = vadd.f32 %v116, %v172
  %v181 = vadd.f32 %v117, %v173
  %v182 = vlaneseq
  %v183 = vshrl.u32 %v182, 7
  %v184 = vsub.s32 3, %v183
  %v185 = vrot.slane %v14, %v184
  %v186 = vlaneseq
  %v187 = vshrl.u32 %v186, 7
  %v188 = vsub.s32 7, %v187
  %v189 = vrot.slane %v14, %v188
  %v190 = vlaneseq
  %v191 = vshrl.u32 %v190, 7
  %v192 = vsub.s32 3, %v191
  %v193 = vrot.slane %v15, %v192
  %v194 = vlaneseq
  %v195 = vshrl.u32 %v194, 7
  %v196 = vsub.s32 7, %v195
  %v197 = vrot.slane %v15, %v196
  %v202 = vlaneseq
  %v203 = vshrl.u32 %v202, 7
  %v204 = vsub.s32 3, %v203
  %v205 = vrot.slane %v185, %v204
  %v206 = vlaneseq
  %v207 = vshrl.u32 %v206, 7
  %v208 = vsub.s32 3, %v207
  %v209 = vrot.slane %v189, %v208
  %v210 = vlaneseq
  %v211 = vshrl.u32 %v210, 7
  %v212 = vsub.s32 3, %v211
  %v213 = vrot.slane %v193, %v212
  %v214 = vlaneseq
  %v215 = vshrl.u32 %v214, 7
  %v216 = vsub.s32 3, %v215
  %v217 = vrot.slane %v197, %v216
  %v218 = vadd.f32 %v174, %v205
  %v219 = vadd.f32 %v175, %v209
  %v220 = vadd.f32 %v176, %v213
  %v221 = vadd.f32 %v177, %v217
  %v222 = vadd.f32 %v178, %v205
  %v223 = vadd.f32 %v179, %v209
  %v224 = vadd.f32 %v180, %v213
  %v225 = vadd.f32 %v181, %v217
  %v226 = vmax.f32 %v218, 0.0
  %v227 = vmax.f32 %v219, 0.0
  %v228 = vmax.f32 %v220, 0.0
  %v229 = vmax.f32 %v221, 0.0
  %v230 = vmax.f32 %v222, 0.0
  %v231 = vmax.f32 %v223, 0.0
  %v232 = vmax.f32 %v224, 0.0
  %v233 = vmax.f32 %v225, 0.0
  %v234 = vpack.c.bf16 %v230, %v226
  %v235 = vpack.c.bf16 %v231, %v227
  %v236 = vpack.c.bf16 %v232, %v228
  %v237 = vpack.c.bf16 %v233, %v229
  %v242 = vunpack.c.l.b16 %v234
  %v243 = vunpack.c.l.b16 %v235
  %v244 = vunpack.c.l.b16 %v236
  %v245 = vunpack.c.l.b16 %v237
  %v246 = vunpack.c.h.b16 %v234
  %v247 = vunpack.c.h.b16 %v235
  %v248 = vunpack.c.h.b16 %v236
  %v249 = vunpack.c.h.b16 %v237
  %v250 = vpack.c.b16 %v243, %v242
  %v251 = vpack.c.b16 %v245, %v244
  %v252 = vpack.c.b16 %v247, %v246
  %v253 = vpack.c.b16 %v249, %v248
  %258 = vst [vmem:[%s3] sm:$0xff] %v250
  %259 = vst [vmem:[%s3 + $0x8] sm:$0xff] %v251
  %260 = vst [vmem:[%s3 + $0x10] sm:$0xff] %v252
  %261 = vst [vmem:[%s3 + $0x18] sm:$0xff] %v253
  // Predicated region
  $region14: #{fwd.55} parent=0 // pred_check
    _
  $region15: #{fwd.55} parent=0 // pred_check_branch
    %263 = sbr.rel (0) target = $region17
  $region16: #{fwd.55} parent=0 // pred_region
    _
  $region17: #{fwd.55} parent=0 // pred_fallthru
    _
  // Predicated region
  $region18: #{fwd.55} parent=0 // pred_check
    _
  $region19: #{fwd.55} parent=0 // pred_check_branch
    %265 = sbr.rel (0) target = $region21
  $region20: #{fwd.55} parent=0 // pred_region
    _
  $region21: #{fwd.55} parent=0 // pred_fallthru
    _

// kernel: fwd.68
$region0: #{fwd.68}
  #allocation0 [shape = 'u32[]', space=smem, size = 0x4, offset = 0x4, fixed_abs, tag = 'smem constant byte address 0x4 - core index']
  #allocation1 [shape = 'u32[144,128]{1,0:T(1,128)}', space=vmem, size = 0x12000, scoped, tag = 'internal scratch']
  %s0 = inlined_call_operand.vmem [shape: bf16[128,64], index: 0, kind: input, shape index: {}]
  %s1 = inlined_call_operand.vmem [shape: bf16[64,32], index: 1, kind: input, shape index: {}]
  %s2 = inlined_call_operand.vmem [shape: bf16[128,32], index: 2, kind: output, shape index: {0}]
  %s3 = inlined_call_operand.vmem [shape: f32[1,1,32], index: 3, kind: output, shape index: {1}]
  %s4 = inlined_call_operand.vmem [shape: f32[1,1,32], index: 4, kind: output, shape index: {2}]
  %5 = xla_tuple %s2, %s3, %s4
  %s6 = sld [smem:[#allocation0]]
  $region34: #{fwd.68} parent=0
    _
  %s8 = ssub.s32 1, %s6
  %s9 = scalar_select 0, %s8, %s6
  // Predicated region
  $region2: #{fwd.68} parent=0 // pred_check
    _
  $region3: #{fwd.68} parent=0 // pred_check_branch
    %11 = sbr.rel (0) target = $region5
  $region4: #{fwd.68} parent=0 // pred_region
    _
  $region5: #{fwd.68} parent=0 // pred_fallthru
    _
  // Predicated region
  $region6: #{fwd.68} parent=0 // pred_check
    _
  $region7: #{fwd.68} parent=0 // pred_check_branch
    %13 = sbr.rel (0) target = $region9
  $region8: #{fwd.68} parent=0 // pred_region
    _
  $region9: #{fwd.68} parent=0 // pred_fallthru
    _
  %v15 = vld [vmem:[%s0] sm:$0xf]
  %v16 = vld [vmem:[%s0 + $0x4] sm:$0xf]
  %v17 = vld [vmem:[%s0 + $0x8] sm:$0xf]
  %v18 = vld [vmem:[%s0 + $0xc] sm:$0xf]
  %v19 = vld [vmem:[%s0 + $0x10] sm:$0xf]
  %v20 = vld [vmem:[%s0 + $0x14] sm:$0xf]
  %v21 = vld [vmem:[%s0 + $0x18] sm:$0xf]
  %v22 = vld [vmem:[%s0 + $0x1c] sm:$0xf]
  %v23 = vld [vmem:[%s0 + $0x20] sm:$0xf]
  %v24 = vld [vmem:[%s0 + $0x24] sm:$0xf]
  %v25 = vld [vmem:[%s0 + $0x28] sm:$0xf]
  %v26 = vld [vmem:[%s0 + $0x2c] sm:$0xf]
  %v27 = vld [vmem:[%s0 + $0x30] sm:$0xf]
  %v28 = vld [vmem:[%s0 + $0x34] sm:$0xf]
  %v29 = vld [vmem:[%s0 + $0x38] sm:$0xf]
  %v30 = vld [vmem:[%s0 + $0x3c] sm:$0xf]
  %v31 = vld [vmem:[%s1] sm:$0xf]
  %v32 = vld [vmem:[%s1 + $0x4] sm:$0xf]
  %v33 = vld [vmem:[%s1 + $0x8] sm:$0xf]
  %v34 = vld [vmem:[%s1 + $0xc] sm:$0xf]
  %v35 = vld [vmem:[%s1 + $0x10] sm:$0xf]
  %v36 = vld [vmem:[%s1 + $0x14] sm:$0xf]
  %v37 = vld [vmem:[%s1 + $0x18] sm:$0xf]
  %v38 = vld [vmem:[%s1 + $0x1c] sm:$0xf]
  %v55 = vunpack.c.l.b16 %v15
  %v56 = vunpack.c.l.b16 %v16
  %v57 = vunpack.c.l.b16 %v17
  %v58 = vunpack.c.l.b16 %v18
  %v59 = vunpack.c.l.b16 %v19
  %v60 = vunpack.c.l.b16 %v20
  %v61 = vunpack.c.l.b16 %v21
  %v62 = vunpack.c.l.b16 %v22
  %v63 = vunpack.c.l.b16 %v23
  %v64 = vunpack.c.l.b16 %v24
  %v65 = vunpack.c.l.b16 %v25
  %v66 = vunpack.c.l.b16 %v26
  %v67 = vunpack.c.l.b16 %v27
  %v68 = vunpack.c.l.b16 %v28
  %v69 = vunpack.c.l.b16 %v29
  %v70 = vunpack.c.l.b16 %v30
  %v71 = vpack.c.b16 %v56, %v55
  %v72 = vpack.c.b16 %v58, %v57
  %v73 = vpack.c.b16 %v60, %v59
  %v74 = vpack.c.b16 %v62, %v61
  %v75 = vpack.c.b16 %v64, %v63
  %v76 = vpack.c.b16 %v66, %v65
  %v77 = vpack.c.b16 %v68, %v67
  %v78 = vpack.c.b16 %v70, %v69
  %v87 = vunpack.c.l.b16 %v31
  %v88 = vunpack.c.l.b16 %v32
  %v89 = vunpack.c.l.b16 %v33
  %v90 = vunpack.c.l.b16 %v34
  %v91 = vunpack.c.l.b16 %v35
  %v92 = vunpack.c.l.b16 %v36
  %v93 = vunpack.c.l.b16 %v37
  %v94 = vunpack.c.l.b16 %v38
  %v95 = vpack.c.b16 %v88, %v87
  %v96 = vpack.c.b16 %v90, %v89
  %v97 = vpack.c.b16 %v92, %v91
  %v98 = vpack.c.b16 %v94, %v93
  %vm103 = vcmask 523264
  %v105 = vsel %vm103, %v71, 0
  %v108 = vsel %vm103, %v72, 0
  %v111 = vsel %vm103, %v73, 0
  %v114 = vsel %vm103, %v74, 0
  %v117 = vsel %vm103, %v75, 0
  %v120 = vsel %vm103, %v76, 0
  %v123 = vsel %vm103, %v77, 0
  %v126 = vsel %vm103, %v78, 0
  %128 = vmatprep.subr.bf16.mxu0 0
  %129 = vmatpush1.bf16.msra.mxu0 0
  %130 = vmatprep.subr.bf16.mxu0 0
  %131 = vmatpush1.bf16.msra.mxu0 0
  %132 = vmatprep.subr.bf16.mxu0 0
  %133 = vmatpush1.bf16.msra.mxu0 0
  %134 = vmatprep.subr.bf16.mxu0 0
  %135 = vmatpush1.bf16.msra.mxu0 0
  %136 = vmatprep.subr.bf16.mxu0 0
  %137 = vmatpush1.bf16.msra.mxu0 %v98
  %138 = vmatprep.subr.bf16.mxu0 0
  %139 = vmatpush1.bf16.msra.mxu0 %v97
  %140 = vmatprep.subr.bf16.mxu0 0
  %141 = vmatpush1.bf16.msra.mxu0 %v96
  %142 = vmatprep.subr.bf16.mxu0 0
  %143 = vmatpush1.bf16.msra.mxu0 %v95
  %144 = vmatprep.subr.bf16.mxu0 0
  %145 = vmatpush2.bf16.msra.mxu0 0
  %146 = vmatprep.subr.bf16.mxu0 0
  %147 = vmatpush2.bf16.msra.mxu0 0
  %148 = vmatprep.subr.bf16.mxu0 0
  %149 = vmatpush2.bf16.msra.mxu0 0
  %150 = vmatprep.subr.bf16.mxu0 0
  %151 = vmatpush2.bf16.msra.mxu0 0
  %152 = vmatprep.subr.bf16.mxu0 0
  %153 = vmatpush2.bf16.msra.mxu0 0
  %154 = vmatprep.subr.bf16.mxu0 0
  %155 = vmatpush2.bf16.msra.mxu0 0
  %156 = vmatprep.subr.bf16.mxu0 0
  %157 = vmatpush2.bf16.msra.mxu0 0
  %158 = vmatprep.subr.bf16.mxu0 0
  %159 = vmatpush2.bf16.msra.mxu0 0
  %160 = vmatprep.mubr.bf16.mxu0 0
  %161 = vmatmul.mubr.bf16.gmra.mxu0 %v105
  %v162 = vpop.f32.mrf.mxu0
  %v163 = vadd.f32 0.0, %v162
  %v164 = vpop.f32.mrf.mxu0
  %v165 = vpop.f32.mrf.mxu0
  %v166 = vadd.f32 0.0, %v165
  %v167 = vpop.f32.mrf.mxu0
  %168 = vmatprep.mubr.bf16.mxu0 0
  %169 = vmatmul.mubr.bf16.gmra.mxu0 %v108
  %v170 = vpop.f32.mrf.mxu0
  %v171 = vadd.f32 0.0, %v170
  %v172 = vpop.f32.mrf.mxu0
  %v173 = vpop.f32.mrf.mxu0
  %v174 = vadd.f32 0.0, %v173
  %v175 = vpop.f32.mrf.mxu0
  %176 = vmatprep.mubr.bf16.mxu0 0
  %177 = vmatmul.mubr.bf16.gmra.mxu0 %v111
  %v178 = vpop.f32.mrf.mxu0
  %v179 = vadd.f32 0.0, %v178
  %v180 = vpop.f32.mrf.mxu0
  %v181 = vpop.f32.mrf.mxu0
  %v182 = vadd.f32 0.0, %v181
  %v183 = vpop.f32.mrf.mxu0
  %184 = vmatprep.mubr.bf16.mxu0 0
  %185 = vmatmul.mubr.bf16.gmra.mxu0 %v114
  %v186 = vpop.f32.mrf.mxu0
  %v187 = vadd.f32 0.0, %v186
  %v188 = vpop.f32.mrf.mxu0
  %v189 = vpop.f32.mrf.mxu0
  %v190 = vadd.f32 0.0, %v189
  %v191 = vpop.f32.mrf.mxu0
  %192 = vmatprep.mubr.bf16.mxu0 0
  %193 = vmatmul.mubr.bf16.gmra.mxu0 %v117
  %v194 = vpop.f32.mrf.mxu0
  %v195 = vadd.f32 0.0, %v194
  %v196 = vpop.f32.mrf.mxu0
  %v197 = vpop.f32.mrf.mxu0
  %v198 = vadd.f32 0.0, %v197
  %v199 = vpop.f32.mrf.mxu0
  %200 = vmatprep.mubr.bf16.mxu0 0
  %201 = vmatmul.mubr.bf16.gmra.mxu0 %v120
  %v202 = vpop.f32.mrf.mxu0
  %v203 = vadd.f32 0.0, %v202
  %v204 = vpop.f32.mrf.mxu0
  %v205 = vpop.f32.mrf.mxu0
  %v206 = vadd.f32 0.0, %v205
  %v207 = vpop.f32.mrf.mxu0
  %208 = vmatprep.mubr.bf16.mxu0 0
  %209 = vmatmul.mubr.bf16.gmra.mxu0 %v123
  %v210 = vpop.f32.mrf.mxu0
  %v211 = vadd.f32 0.0, %v210
  %v212 = vpop.f32.mrf.mxu0
  %v213 = vpop.f32.mrf.mxu0
  %v214 = vadd.f32 0.0, %v213
  %v215 = vpop.f32.mrf.mxu0
  %216 = vmatprep.mubr.bf16.mxu0 0
  %217 = vmatmul.mubr.bf16.gmra.mxu0 %v126
  %v218 = vpop.f32.mrf.mxu0
  %v219 = vadd.f32 0.0, %v218
  %v220 = vpop.f32.mrf.mxu0
  %v221 = vpop.f32.mrf.mxu0
  %v222 = vadd.f32 0.0, %v221
  %v223 = vpop.f32.mrf.mxu0
  %224 = vdwg.mxu0
  %v225 = vpack.c.bf16 %v166, %v163
  %v226 = vpack.c.bf16 %v174, %v171
  %v227 = vpack.c.bf16 %v182, %v179
  %v228 = vpack.c.bf16 %v190, %v187
  %v229 = vpack.c.bf16 %v198, %v195
  %v230 = vpack.c.bf16 %v206, %v203
  %v231 = vpack.c.bf16 %v214, %v211
  %v232 = vpack.c.bf16 %v222, %v219
  %v241 = vunpack.c.l.b16 %v225
  %v242 = vunpack.c.h.b16 %v225
  %v243 = vunpack.c.l.b16 %v226
  %v244 = vunpack.c.h.b16 %v226
  %v245 = vunpack.c.l.b16 %v227
  %v246 = vunpack.c.h.b16 %v227
  %v247 = vunpack.c.l.b16 %v228
  %v248 = vunpack.c.h.b16 %v228
  %v249 = vunpack.c.l.b16 %v229
  %v250 = vunpack.c.h.b16 %v229
  %v251 = vunpack.c.l.b16 %v230
  %v252 = vunpack.c.h.b16 %v230
  %v253 = vunpack.c.l.b16 %v231
  %v254 = vunpack.c.h.b16 %v231
  %v255 = vunpack.c.l.b16 %v232
  %v256 = vunpack.c.h.b16 %v232
  %v257 = vpack.c.b16 %v241, %v241
  %v258 = vpack.c.b16 %v242, %v242
  %v259 = vpack.c.b16 %v243, %v243
  %v260 = vpack.c.b16 %v244, %v244
  %v261 = vpack.c.b16 %v245, %v245
  %v262 = vpack.c.b16 %v246, %v246
  %v263 = vpack.c.b16 %v247, %v247
  %v264 = vpack.c.b16 %v248, %v248
  %v265 = vpack.c.b16 %v249, %v249
  %v266 = vpack.c.b16 %v250, %v250
  %v267 = vpack.c.b16 %v251, %v251
  %v268 = vpack.c.b16 %v252, %v252
  %v269 = vpack.c.b16 %v253, %v253
  %v270 = vpack.c.b16 %v254, %v254
  %v271 = vpack.c.b16 %v255, %v255
  %v272 = vpack.c.b16 %v256, %v256
  %vm289 = vcmask 257024
  %290 = vst.msk [vmem:[%s2] sm:$0xf] %vm289, %v257
  %291 = vst.msk [vmem:[%s2 + $0x4] sm:$0xf] %vm289, %v258
  %292 = vst.msk [vmem:[%s2 + $0x8] sm:$0xf] %vm289, %v259
  %293 = vst.msk [vmem:[%s2 + $0xc] sm:$0xf] %vm289, %v260
  %294 = vst.msk [vmem:[%s2 + $0x10] sm:$0xf] %vm289, %v261
  %295 = vst.msk [vmem:[%s2 + $0x14] sm:$0xf] %vm289, %v262
  %296 = vst.msk [vmem:[%s2 + $0x18] sm:$0xf] %vm289, %v263
  %297 = vst.msk [vmem:[%s2 + $0x1c] sm:$0xf] %vm289, %v264
  %298 = vst.msk [vmem:[%s2 + $0x20] sm:$0xf] %vm289, %v265
  %299 = vst.msk [vmem:[%s2 + $0x24] sm:$0xf] %vm289, %v266
  %300 = vst.msk [vmem:[%s2 + $0x28] sm:$0xf] %vm289, %v267
  %301 = vst.msk [vmem:[%s2 + $0x2c] sm:$0xf] %vm289, %v268
  %302 = vst.msk [vmem:[%s2 + $0x30] sm:$0xf] %vm289, %v269
  %303 = vst.msk [vmem:[%s2 + $0x34] sm:$0xf] %vm289, %v270
  %304 = vst.msk [vmem:[%s2 + $0x38] sm:$0xf] %vm289, %v271
  %305 = vst.msk [vmem:[%s2 + $0x3c] sm:$0xf] %vm289, %v272
  %vm306 = vcmask 261120
  %v307 = vsel %vm306, %v163, 0.0
  %v308 = vsel %vm306, %v166, 0.0
  %v309 = vadd.f32 %v307, %v308
  %v310 = vsel %vm306, %v171, 0.0
  %v311 = vadd.f32 %v309, %v310
  %v312 = vsel %vm306, %v174, 0.0
  %v313 = vadd.f32 %v311, %v312
  %v314 = vsel %vm306, %v179, 0.0
  %v315 = vadd.f32 %v313, %v314
  %v316 = vsel %vm306, %v182, 0.0
  %v317 = vadd.f32 %v315, %v316
  %v318 = vsel %vm306, %v187, 0.0
  %v319 = vadd.f32 %v317, %v318
  %v320 = vsel %vm306, %v190, 0.0
  %v321 = vadd.f32 %v319, %v320
  %v322 = vsel %vm306, %v195, 0.0
  %v323 = vadd.f32 %v321, %v322
  %v324 = vsel %vm306, %v198, 0.0
  %v325 = vadd.f32 %v323, %v324
  %v326 = vsel %vm306, %v203, 0.0
  %v327 = vadd.f32 %v325, %v326
  %v328 = vsel %vm306, %v206, 0.0
  %v329 = vadd.f32 %v327, %v328
  %v330 = vsel %vm306, %v211, 0.0
  %v331 = vadd.f32 %v329, %v330
  %v332 = vsel %vm306, %v214, 0.0
  %v333 = vadd.f32 %v331, %v332
  %v334 = vsel %vm306, %v219, 0.0
  %v335 = vadd.f32 %v333, %v334
  %v336 = vsel %vm306, %v222, 0.0
  %v337 = vadd.f32 %v335, %v336
  %v338 = vrot.slane %v337, 4
  %v339 = vadd.f32 %v337, %v338
  %v340 = vrot.slane %v339, 2
  %v341 = vadd.f32 %v339, %v340
  %v342 = vrot.slane %v341, 1
  %v343 = vadd.f32 %v341, %v342
  %vm344 = vcmask 253952
  %345 = vst.msk [vmem:[%s3] sm:$0x1] %vm344, %v343
  %v346 = vmul.f32 %v163, %v163
  %v347 = vmul.f32 %v166, %v166
  %v348 = vmul.f32 %v171, %v171
  %v349 = vmul.f32 %v174, %v174
  %v350 = vmul.f32 %v179, %v179
  %v351 = vmul.f32 %v182, %v182
  %v352 = vmul.f32 %v187, %v187
  %v353 = vmul.f32 %v190, %v190
  %v354 = vmul.f32 %v195, %v195
  %v355 = vmul.f32 %v198, %v198
  %v356 = vmul.f32 %v203, %v203
  %v357 = vmul.f32 %v206, %v206
  %v358 = vmul.f32 %v211, %v211
  %v359 = vmul.f32 %v214, %v214
  %v360 = vmul.f32 %v219, %v219
  %v361 = vmul.f32 %v222, %v222
  %v362 = vsel %vm306, %v346, 0.0
  %v363 = vsel %vm306, %v347, 0.0
  %v364 = vadd.f32 %v362, %v363
  %v365 = vsel %vm306, %v348, 0.0
  %v366 = vadd.f32 %v364, %v365
  %v367 = vsel %vm306, %v349, 0.0
  %v368 = vadd.f32 %v366, %v367
  %v369 = vsel %vm306, %v350, 0.0
  %v370 = vadd.f32 %v368, %v369
  %v371 = vsel %vm306, %v351, 0.0
  %v372 = vadd.f32 %v370, %v371
  %v373 = vsel %vm306, %v352, 0.0
  %v374 = vadd.f32 %v372, %v373
  %v375 = vsel %vm306, %v353, 0.0
  %v376 = vadd.f32 %v374, %v375
  %v377 = vsel %vm306, %v354, 0.0
  %v378 = vadd.f32 %v376, %v377
  %v379 = vsel %vm306, %v355, 0.0
  %v380 = vadd.f32 %v378, %v379
  %v381 = vsel %vm306, %v356, 0.0
  %v382 = vadd.f32 %v380, %v381
  %v383 = vsel %vm306, %v357, 0.0
  %v384 = vadd.f32 %v382, %v383
  %v385 = vsel %vm306, %v358, 0.0
  %v386 = vadd.f32 %v384, %v385
  %v387 = vsel %vm306, %v359, 0.0
  %v388 = vadd.f32 %v386, %v387
  %v389 = vsel %vm306, %v360, 0.0
  %v390 = vadd.f32 %v388, %v389
  %v391 = vsel %vm306, %v361, 0.0
  %v392 = vadd.f32 %v390, %v391
  %v393 = vrot.slane %v392, 4
  %v394 = vadd.f32 %v392, %v393
  %v395 = vrot.slane %v394, 2
  %v396 = vadd.f32 %v394, %v395
  %v397 = vrot.slane %v396, 1
  %v398 = vadd.f32 %v396, %v397
  %399 = vst.msk [vmem:[%s4] sm:$0x1] %vm344, %v398
  // Predicated region
  $region10: #{fwd.68} parent=0 // pred_check
    _
  $region11: #{fwd.68} parent=0 // pred_check_branch
    %401 = sbr.rel (0) target = $region13
  $region12: #{fwd.68} parent=0 // pred_region
    _
  $region13: #{fwd.68} parent=0 // pred_fallthru
    _
  // Predicated region
  $region14: #{fwd.68} parent=0 // pred_check
    _
  $region15: #{fwd.68} parent=0 // pred_check_branch
    %403 = sbr.rel (0) target = $region17
  $region16: #{fwd.68} parent=0 // pred_region
    _
  $region17: #{fwd.68} parent=0 // pred_fallthru
    _
  // Predicated region
  $region18: #{fwd.68} parent=0 // pred_check
    _
  $region19: #{fwd.68} parent=0 // pred_check_branch
    %405 = sbr.rel (0) target = $region21
  $region20: #{fwd.68} parent=0 // pred_region
    _
  $region21: #{fwd.68} parent=0 // pred_fallthru
    _
  // Predicated region
  $region22: #{fwd.68} parent=0 // pred_check
    _
  $region23: #{fwd.68} parent=0 // pred_check_branch
    %407 = sbr.rel (0) target = $region25
  $region24: #{fwd.68} parent=0 // pred_region
    _
  $region25: #{fwd.68} parent=0 // pred_fallthru
    _
  // Predicated region
  $region26: #{fwd.68} parent=0 // pred_check
    _
  $region27: #{fwd.68} parent=0 // pred_check_branch
    %409 = sbr.rel (0) target = $region29
  $region28: #{fwd.68} parent=0 // pred_region
    _
  $region29: #{fwd.68} parent=0 // pred_fallthru
    _
  // Predicated region
  $region30: #{fwd.68} parent=0 // pred_check
    _
  $region31: #{fwd.68} parent=0 // pred_check_branch
    %411 = sbr.rel (0) target = $region33
  $region32: #{fwd.68} parent=0 // pred_region
    _
  $region33: #{fwd.68} parent=0 // pred_fallthru
    _

</llo_original>
